<compile_context>
chip_gen: v5e
topology: v5e:2x2
jax: 0.10.0
libtpu: 0.0.40
codegen_flags: <defaults>
</compile_context>

<pallas_src>
import functools

import jax
import jax.numpy as jnp
from jax.experimental import pallas as pl
from jax.experimental.pallas import tpu as pltpu

BN_EPS = 1e-5


# ----------------------------------------------------------------------------
# Fused kernel: PointNetfeat + max-pool + classification head + rotation head.
# ----------------------------------------------------------------------------
def _fused_kernel(B, N, num_classes,
                  x_ref,
                  w1, s1, t1, w2, s2, t2, w3, s3, t3,
                  hw1, hs1, ht1, hw2, hs2, ht2,
                  cw3, cb3, rw3, rb3,
                  cls_ref, rot_ref):
    # ---- PointNetfeat on all B*N points at once (rows = points) ----
    x = x_ref[...]                                                  # (B*N, 12) bf16
    h = jnp.dot(x, w1[...], preferred_element_type=jnp.float32)
    h = jnp.maximum(h * s1[...] + t1[...], 0.0)                     # (B*N, 64)
    h = jnp.dot(h.astype(jnp.bfloat16), w2[...],
                preferred_element_type=jnp.float32)
    h = jnp.maximum(h * s2[...] + t2[...], 0.0)                     # (B*N, 128)
    h = jnp.dot(h.astype(jnp.bfloat16), w3[...],
                preferred_element_type=jnp.float32)
    h = h * s3[...] + t3[...]                                       # (B*N, D), no relu

    # torch.max over the points dimension, per sample (B is tiny & static).
    g = jnp.concatenate(
        [jnp.max(h[b * N:(b + 1) * N, :], axis=0, keepdims=True)
         for b in range(B)],
        axis=0)                                                     # (B, D)

    # ---- Both heads: layer 1 merged (concat), layer 2 merged (block-diag) ----
    u = jnp.dot(g.astype(jnp.bfloat16), hw1[...],
                preferred_element_type=jnp.float32)
    u = jnp.maximum(u * hs1[...] + ht1[...], 0.0)                   # (B, 1024) = [cls512 | rot512]
    u = jnp.dot(u.astype(jnp.bfloat16), hw2[...],
                preferred_element_type=jnp.float32)
    u = jnp.maximum(u * hs2[...] + ht2[...], 0.0)                   # (B, 512)  = [cls256 | rot256]

    c = cw3.shape[0]                                                # 256 (128-aligned split)

    # Classification head final fc + log_softmax (numerically stable).
    logits = jnp.dot(u[:, :c].astype(jnp.bfloat16), cw3[...],
                     preferred_element_type=jnp.float32) + cb3[...]
    m = jnp.max(logits, axis=1, keepdims=True)
    lse = m + jnp.log(jnp.sum(jnp.exp(logits - m), axis=1, keepdims=True))
    cls_ref[...] = logits - lse

    # Rotation head final fc.
    rot_ref[...] = jnp.dot(u[:, c:].astype(jnp.bfloat16), rw3[...],
                           preferred_element_type=jnp.float32) + rb3[...]


# ----------------------------------------------------------------------------
# Parameter setup (deterministic, synthetic) + BN folding + head merging.
# ----------------------------------------------------------------------------
def _fold_bn(bias, gamma, beta):
    # Eval-mode BN with running_mean=0, running_var=1:
    #   y = ((x + bias) - 0) * gamma / sqrt(1 + eps) + beta
    # TODO(synk): with real trained BN stats, fold the actual running mean/var.
    scale = gamma / jnp.sqrt(1.0 + BN_EPS)
    shift = bias * scale + beta
    return scale[None, :], shift[None, :]


def init_params(key, num_classes=2, output_dim=1024):
    keys = iter(jax.random.split(key, 40))

    def nrm(shape, std=0.05):
        return std * jax.random.normal(next(keys), shape, dtype=jnp.float32)

    def layer(cin, cout):
        w = nrm((cin, cout))
        b = nrm((cout,))
        gamma = 1.0 + nrm((cout,))
        beta = nrm((cout,))
        s, t = _fold_bn(b, gamma, beta)
        return w, s, t

    # PointNetfeat (input_dim=12): conv1 12->64, conv2 64->128, conv3 128->D.
    w1, s1, t1 = layer(12, 64)
    w2, s2, t2 = layer(64, 128)
    w3, s3, t3 = layer(128, output_dim)

    # Classification head: D->512->256->num_classes.
    cw1, cs1, ct1 = layer(output_dim, 512)
    cw2, cs2, ct2 = layer(512, 256)
    cw3 = nrm((256, num_classes))
    cb3 = nrm((num_classes,))[None, :]
    # Rotation head: D->512->256->9.
    rw1, rs1, rt1 = layer(output_dim, 512)
    rw2, rs2, rt2 = layer(512, 256)
    rw3 = nrm((256, 9))
    rb3 = nrm((9,))[None, :]

    # Merge head layer 1: one (D, 1024) matmul  [cls | rot].
    hw1 = jnp.concatenate([cw1, rw1], axis=1)
    hs1 = jnp.concatenate([cs1, rs1], axis=1)
    ht1 = jnp.concatenate([ct1, rt1], axis=1)
    # Merge head layer 2: block-diagonal (1024, 512) matmul.
    hw2 = jax.scipy.linalg.block_diag(cw2, rw2)
    hs2 = jnp.concatenate([cs2, rs2], axis=1)
    ht2 = jnp.concatenate([ct2, rt2], axis=1)

    bf16 = lambda a: a.astype(jnp.bfloat16)
    return dict(
        w1=bf16(w1), s1=s1, t1=t1,
        w2=bf16(w2), s2=s2, t2=t2,
        w3=bf16(w3), s3=s3, t3=t3,
        hw1=bf16(hw1), hs1=hs1, ht1=ht1,
        hw2=bf16(hw2), hs2=hs2, ht2=ht2,
        cw3=bf16(cw3), cb3=cb3,
        rw3=bf16(rw3), rb3=rb3,
    )


PARAM_ORDER = ["w1", "s1", "t1", "w2", "s2", "t2", "w3", "s3", "t3",
               "hw1", "hs1", "ht1", "hw2", "hs2", "ht2",
               "cw3", "cb3", "rw3", "rb3"]


# ----------------------------------------------------------------------------
# Full forward.
# ----------------------------------------------------------------------------
@functools.partial(jax.jit, static_argnames=("num_classes",))
def pointnet_cls_and_pose(point_set1, point_set2, params, num_classes=2):
    """point_set1/2: [B, C, N] (PyTorch NCW). Returns (log_probs, rotation)."""
    B, C, N = point_set1.shape
    # torch.cat([p1, p2], dim=1) over channels; channels-last and flatten to
    # (B*N, 2C) rows so every 1x1 conv / linear is one MXU matmul. This tiny
    # transform fuses into a single XLA op under jit.
    p1 = jnp.transpose(point_set1, (0, 2, 1))
    p2 = jnp.transpose(point_set2, (0, 2, 1))
    x = jnp.concatenate([p1, p2], axis=-1).reshape(B * N, 2 * C)
    x = x.astype(jnp.bfloat16)

    args = [x] + [params[n] for n in PARAM_ORDER]
    in_specs = [pl.BlockSpec(a.shape, lambda i, nd=a.ndim: (0,) * nd)
                for a in args]

    kernel = functools.partial(_fused_kernel, B, N, num_classes)

    cls_out, rot_out = pl.pallas_call(
        kernel,
        out_shape=(jax.ShapeDtypeStruct((B, num_classes), jnp.float32),
                   jax.ShapeDtypeStruct((B, 9), jnp.float32)),
        grid=(1,),
        in_specs=in_specs,
        out_specs=(pl.BlockSpec((B, num_classes), lambda i: (0, 0)),
                   pl.BlockSpec((B, 9), lambda i: (0, 0))),
        compiler_params=pltpu.CompilerParams(
            dimension_semantics=("arbitrary",),
            vmem_limit_bytes=32 * 1024 * 1024,
        ),
    )(*args)
    return cls_out, rot_out


if __name__ == "__main__":
    # PointNetfeat is built with input_dim=12, so each point set carries
    # 6 channels (concat along the channel axis gives 12).
    B, C, N = 4, 6, 16
    NUM_CLASSES, OUTPUT_DIM = 2, 1024

    key = jax.random.PRNGKey(0)
    k1, k2, kp = jax.random.split(key, 3)
    point_set1 = jax.random.normal(k1, (B, C, N), dtype=jnp.float32)
    point_set2 = jax.random.normal(k2, (B, C, N), dtype=jnp.float32)

    params = init_params(kp, NUM_CLASSES, OUTPUT_DIM)

    pred_class, pred_rotation = pointnet_cls_and_pose(
        point_set1, point_set2, params, num_classes=NUM_CLASSES)
    jax.block_until_ready((pred_class, pred_rotation))

    assert pred_class.shape == (B, NUM_CLASSES)
    assert pred_rotation.shape == (B, 9)
    # log_softmax rows must exp-sum to 1.
    assert jnp.allclose(jnp.sum(jnp.exp(pred_class), axis=1), 1.0, atol=1e-4)

    print("KERNEL_OK")
</pallas_src>

<mosaic_0001>
module attributes {stable_mosaic.version = 11 : i64} {
  func.func @_fused_kernel(%arg0: i32, %arg1: memref<64x12xbf16, #tpu.memory_space<vmem>>, %arg2: memref<12x64xbf16, #tpu.memory_space<vmem>>, %arg3: memref<1x64xf32, #tpu.memory_space<vmem>>, %arg4: memref<1x64xf32, #tpu.memory_space<vmem>>, %arg5: memref<64x128xbf16, #tpu.memory_space<vmem>>, %arg6: memref<1x128xf32, #tpu.memory_space<vmem>>, %arg7: memref<1x128xf32, #tpu.memory_space<vmem>>, %arg8: memref<128x1024xbf16, #tpu.memory_space<vmem>>, %arg9: memref<1x1024xf32, #tpu.memory_space<vmem>>, %arg10: memref<1x1024xf32, #tpu.memory_space<vmem>>, %arg11: memref<1024x1024xbf16, #tpu.memory_space<vmem>>, %arg12: memref<1x1024xf32, #tpu.memory_space<vmem>>, %arg13: memref<1x1024xf32, #tpu.memory_space<vmem>>, %arg14: memref<1024x512xbf16, #tpu.memory_space<vmem>>, %arg15: memref<1x512xf32, #tpu.memory_space<vmem>>, %arg16: memref<1x512xf32, #tpu.memory_space<vmem>>, %arg17: memref<256x2xbf16, #tpu.memory_space<vmem>>, %arg18: memref<1x2xf32, #tpu.memory_space<vmem>>, %arg19: memref<256x9xbf16, #tpu.memory_space<vmem>>, %arg20: memref<1x9xf32, #tpu.memory_space<vmem>>, %arg21: memref<4x2xf32, #tpu.memory_space<vmem>>, %arg22: memref<4x9xf32, #tpu.memory_space<vmem>>) attributes {dimension_semantics = [#tpu.dimension_semantics<arbitrary>], iteration_bounds = array<i64: 1>, scalar_prefetch = 0 : i64, scratch_operands = 0 : i64, tpu.core_type = #tpu.core_type<tc>, window_params = [{pipeline_mode = #tpu.pipeline_mode<synchronous>, transform_indices = @transform_0, window_bounds = array<i64: 64, 12>}, {pipeline_mode = #tpu.pipeline_mode<synchronous>, transform_indices = @transform_1, window_bounds = array<i64: 12, 64>}, {pipeline_mode = #tpu.pipeline_mode<synchronous>, transform_indices = @transform_2, window_bounds = array<i64: 1, 64>}, {pipeline_mode = #tpu.pipeline_mode<synchronous>, transform_indices = @transform_3, window_bounds = array<i64: 1, 64>}, {pipeline_mode = #tpu.pipeline_mode<synchronous>, transform_indices = @transform_4, window_bounds = array<i64: 64, 128>}, {pipeline_mode = #tpu.pipeline_mode<synchronous>, transform_indices = @transform_5, window_bounds = array<i64: 1, 128>}, {pipeline_mode = #tpu.pipeline_mode<synchronous>, transform_indices = @transform_6, window_bounds = array<i64: 1, 128>}, {pipeline_mode = #tpu.pipeline_mode<synchronous>, transform_indices = @transform_7, window_bounds = array<i64: 128, 1024>}, {pipeline_mode = #tpu.pipeline_mode<synchronous>, transform_indices = @transform_8, window_bounds = array<i64: 1, 1024>}, {pipeline_mode = #tpu.pipeline_mode<synchronous>, transform_indices = @transform_9, window_bounds = array<i64: 1, 1024>}, {pipeline_mode = #tpu.pipeline_mode<synchronous>, transform_indices = @transform_10, window_bounds = array<i64: 1024, 1024>}, {pipeline_mode = #tpu.pipeline_mode<synchronous>, transform_indices = @transform_11, window_bounds = array<i64: 1, 1024>}, {pipeline_mode = #tpu.pipeline_mode<synchronous>, transform_indices = @transform_12, window_bounds = array<i64: 1, 1024>}, {pipeline_mode = #tpu.pipeline_mode<synchronous>, transform_indices = @transform_13, window_bounds = array<i64: 1024, 512>}, {pipeline_mode = #tpu.pipeline_mode<synchronous>, transform_indices = @transform_14, window_bounds = array<i64: 1, 512>}, {pipeline_mode = #tpu.pipeline_mode<synchronous>, transform_indices = @transform_15, window_bounds = array<i64: 1, 512>}, {pipeline_mode = #tpu.pipeline_mode<synchronous>, transform_indices = @transform_16, window_bounds = array<i64: 256, 2>}, {pipeline_mode = #tpu.pipeline_mode<synchronous>, transform_indices = @transform_17, window_bounds = array<i64: 1, 2>}, {pipeline_mode = #tpu.pipeline_mode<synchronous>, transform_indices = @transform_18, window_bounds = array<i64: 256, 9>}, {pipeline_mode = #tpu.pipeline_mode<synchronous>, transform_indices = @transform_19, window_bounds = array<i64: 1, 9>}, {pipeline_mode = #tpu.pipeline_mode<synchronous>, transform_indices = @transform_20, window_bounds = array<i64: 4, 2>}, {pipeline_mode = #tpu.pipeline_mode<synchronous>, transform_indices = @transform_21, window_bounds = array<i64: 4, 9>}]} {
    %c0 = arith.constant 0 : index
    %c0_0 = arith.constant 0 : index
    %0 = vector.load %arg1[%c0, %c0_0] : memref<64x12xbf16, #tpu.memory_space<vmem>>, vector<64x12xbf16>
    %c0_1 = arith.constant 0 : index
    %c0_2 = arith.constant 0 : index
    %1 = vector.load %arg2[%c0_1, %c0_2] : memref<12x64xbf16, #tpu.memory_space<vmem>>, vector<12x64xbf16>
    %cst = arith.constant dense<0.000000e+00> : vector<64x64xf32>
    %2 = tpu.matmul %0, %1, %cst {dimension_numbers = #tpu.dot_dimension_numbers<[1], [0], [0], [1], [0, 0, 1, 1], [], []>} : vector<64x12xbf16>, vector<12x64xbf16>, vector<64x64xf32> -> vector<64x64xf32>
    %c0_3 = arith.constant 0 : index
    %c0_4 = arith.constant 0 : index
    %3 = vector.load %arg3[%c0_3, %c0_4] : memref<1x64xf32, #tpu.memory_space<vmem>>, vector<1x64xf32>
    %4 = vector.broadcast %3 : vector<1x64xf32> to vector<64x64xf32>
    %5 = arith.mulf %2, %4 : vector<64x64xf32>
    %c0_5 = arith.constant 0 : index
    %c0_6 = arith.constant 0 : index
    %6 = vector.load %arg4[%c0_5, %c0_6] : memref<1x64xf32, #tpu.memory_space<vmem>>, vector<1x64xf32>
    %7 = vector.broadcast %6 : vector<1x64xf32> to vector<64x64xf32>
    %8 = arith.addf %5, %7 : vector<64x64xf32>
    %cst_7 = arith.constant 0.000000e+00 : f32
    %9 = vector.broadcast %cst_7 : f32 to vector<64x64xf32>
    %10 = arith.maximumf %8, %9 : vector<64x64xf32>
    %11 = arith.truncf %10 : vector<64x64xf32> to vector<64x64xbf16>
    %c0_8 = arith.constant 0 : index
    %c0_9 = arith.constant 0 : index
    %12 = vector.load %arg5[%c0_8, %c0_9] : memref<64x128xbf16, #tpu.memory_space<vmem>>, vector<64x128xbf16>
    %cst_10 = arith.constant dense<0.000000e+00> : vector<64x128xf32>
    %13 = tpu.matmul %11, %12, %cst_10 {dimension_numbers = #tpu.dot_dimension_numbers<[1], [0], [0], [1], [0, 0, 1, 1], [], []>} : vector<64x64xbf16>, vector<64x128xbf16>, vector<64x128xf32> -> vector<64x128xf32>
    %c0_11 = arith.constant 0 : index
    %c0_12 = arith.constant 0 : index
    %14 = vector.load %arg6[%c0_11, %c0_12] : memref<1x128xf32, #tpu.memory_space<vmem>>, vector<1x128xf32>
    %15 = vector.broadcast %14 : vector<1x128xf32> to vector<64x128xf32>
    %16 = arith.mulf %13, %15 : vector<64x128xf32>
    %c0_13 = arith.constant 0 : index
    %c0_14 = arith.constant 0 : index
    %17 = vector.load %arg7[%c0_13, %c0_14] : memref<1x128xf32, #tpu.memory_space<vmem>>, vector<1x128xf32>
    %18 = vector.broadcast %17 : vector<1x128xf32> to vector<64x128xf32>
    %19 = arith.addf %16, %18 : vector<64x128xf32>
    %cst_15 = arith.constant 0.000000e+00 : f32
    %20 = vector.broadcast %cst_15 : f32 to vector<64x128xf32>
    %21 = arith.maximumf %19, %20 : vector<64x128xf32>
    %22 = arith.truncf %21 : vector<64x128xf32> to vector<64x128xbf16>
    %c0_16 = arith.constant 0 : index
    %c0_17 = arith.constant 0 : index
    %23 = vector.load %arg8[%c0_16, %c0_17] : memref<128x1024xbf16, #tpu.memory_space<vmem>>, vector<128x1024xbf16>
    %cst_18 = arith.constant dense<0.000000e+00> : vector<64x1024xf32>
    %24 = tpu.matmul %22, %23, %cst_18 {dimension_numbers = #tpu.dot_dimension_numbers<[1], [0], [0], [1], [0, 0, 1, 1], [], []>} : vector<64x128xbf16>, vector<128x1024xbf16>, vector<64x1024xf32> -> vector<64x1024xf32>
    %c0_19 = arith.constant 0 : index
    %c0_20 = arith.constant 0 : index
    %25 = vector.load %arg9[%c0_19, %c0_20] : memref<1x1024xf32, #tpu.memory_space<vmem>>, vector<1x1024xf32>
    %26 = vector.broadcast %25 : vector<1x1024xf32> to vector<64x1024xf32>
    %27 = arith.mulf %24, %26 : vector<64x1024xf32>
    %c0_21 = arith.constant 0 : index
    %c0_22 = arith.constant 0 : index
    %28 = vector.load %arg10[%c0_21, %c0_22] : memref<1x1024xf32, #tpu.memory_space<vmem>>, vector<1x1024xf32>
    %29 = vector.broadcast %28 : vector<1x1024xf32> to vector<64x1024xf32>
    %30 = arith.addf %27, %29 : vector<64x1024xf32>
    %31 = vector.extract_strided_slice %30 {offsets = [0, 0], sizes = [16, 1024], strides = [1, 1]} : vector<64x1024xf32> to vector<16x1024xf32>
    %cst_23 = arith.constant dense<0xFF800000> : vector<1024xf32>
    %32 = vector.multi_reduction <maximumf>, %31, %cst_23 [0] : vector<16x1024xf32> to vector<1024xf32>
    %33 = vector.shape_cast %32 : vector<1024xf32> to vector<1x1024xf32>
    %34 = vector.extract_strided_slice %30 {offsets = [16, 0], sizes = [16, 1024], strides = [1, 1]} : vector<64x1024xf32> to vector<16x1024xf32>
    %cst_24 = arith.constant dense<0xFF800000> : vector<1024xf32>
    %35 = vector.multi_reduction <maximumf>, %34, %cst_24 [0] : vector<16x1024xf32> to vector<1024xf32>
    %36 = vector.shape_cast %35 : vector<1024xf32> to vector<1x1024xf32>
    %37 = vector.extract_strided_slice %30 {offsets = [32, 0], sizes = [16, 1024], strides = [1, 1]} : vector<64x1024xf32> to vector<16x1024xf32>
    %cst_25 = arith.constant dense<0xFF800000> : vector<1024xf32>
    %38 = vector.multi_reduction <maximumf>, %37, %cst_25 [0] : vector<16x1024xf32> to vector<1024xf32>
    %39 = vector.shape_cast %38 : vector<1024xf32> to vector<1x1024xf32>
    %40 = vector.extract_strided_slice %30 {offsets = [48, 0], sizes = [16, 1024], strides = [1, 1]} : vector<64x1024xf32> to vector<16x1024xf32>
    %cst_26 = arith.constant dense<0xFF800000> : vector<1024xf32>
    %41 = vector.multi_reduction <maximumf>, %40, %cst_26 [0] : vector<16x1024xf32> to vector<1024xf32>
    %42 = vector.shape_cast %41 : vector<1024xf32> to vector<1x1024xf32>
    %43 = tpu.concatenate %33, %36, %39, %42 in 0 : vector<1x1024xf32>, vector<1x1024xf32>, vector<1x1024xf32>, vector<1x1024xf32> -> vector<4x1024xf32>
    %44 = arith.truncf %43 : vector<4x1024xf32> to vector<4x1024xbf16>
    %c0_27 = arith.constant 0 : index
    %c0_28 = arith.constant 0 : index
    %45 = vector.load %arg11[%c0_27, %c0_28] : memref<1024x1024xbf16, #tpu.memory_space<vmem>>, vector<1024x1024xbf16>
    %cst_29 = arith.constant dense<0.000000e+00> : vector<4x1024xf32>
    %46 = tpu.matmul %44, %45, %cst_29 {dimension_numbers = #tpu.dot_dimension_numbers<[1], [0], [0], [1], [0, 0, 1, 1], [], []>} : vector<4x1024xbf16>, vector<1024x1024xbf16>, vector<4x1024xf32> -> vector<4x1024xf32>
    %c0_30 = arith.constant 0 : index
    %c0_31 = arith.constant 0 : index
    %47 = vector.load %arg12[%c0_30, %c0_31] : memref<1x1024xf32, #tpu.memory_space<vmem>>, vector<1x1024xf32>
    %48 = vector.broadcast %47 : vector<1x1024xf32> to vector<4x1024xf32>
    %49 = arith.mulf %46, %48 : vector<4x1024xf32>
    %c0_32 = arith.constant 0 : index
    %c0_33 = arith.constant 0 : index
    %50 = vector.load %arg13[%c0_32, %c0_33] : memref<1x1024xf32, #tpu.memory_space<vmem>>, vector<1x1024xf32>
    %51 = vector.broadcast %50 : vector<1x1024xf32> to vector<4x1024xf32>
    %52 = arith.addf %49, %51 : vector<4x1024xf32>
    %cst_34 = arith.constant 0.000000e+00 : f32
    %53 = vector.broadcast %cst_34 : f32 to vector<4x1024xf32>
    %54 = arith.maximumf %52, %53 : vector<4x1024xf32>
    %55 = arith.truncf %54 : vector<4x1024xf32> to vector<4x1024xbf16>
    %c0_35 = arith.constant 0 : index
    %c0_36 = arith.constant 0 : index
    %56 = vector.load %arg14[%c0_35, %c0_36] : memref<1024x512xbf16, #tpu.memory_space<vmem>>, vector<1024x512xbf16>
    %cst_37 = arith.constant dense<0.000000e+00> : vector<4x512xf32>
    %57 = tpu.matmul %55, %56, %cst_37 {dimension_numbers = #tpu.dot_dimension_numbers<[1], [0], [0], [1], [0, 0, 1, 1], [], []>} : vector<4x1024xbf16>, vector<1024x512xbf16>, vector<4x512xf32> -> vector<4x512xf32>
    %c0_38 = arith.constant 0 : index
    %c0_39 = arith.constant 0 : index
    %58 = vector.load %arg15[%c0_38, %c0_39] : memref<1x512xf32, #tpu.memory_space<vmem>>, vector<1x512xf32>
    %59 = vector.broadcast %58 : vector<1x512xf32> to vector<4x512xf32>
    %60 = arith.mulf %57, %59 : vector<4x512xf32>
    %c0_40 = arith.constant 0 : index
    %c0_41 = arith.constant 0 : index
    %61 = vector.load %arg16[%c0_40, %c0_41] : memref<1x512xf32, #tpu.memory_space<vmem>>, vector<1x512xf32>
    %62 = vector.broadcast %61 : vector<1x512xf32> to vector<4x512xf32>
    %63 = arith.addf %60, %62 : vector<4x512xf32>
    %cst_42 = arith.constant 0.000000e+00 : f32
    %64 = vector.broadcast %cst_42 : f32 to vector<4x512xf32>
    %65 = arith.maximumf %63, %64 : vector<4x512xf32>
    %66 = vector.extract_strided_slice %65 {offsets = [0, 0], sizes = [4, 256], strides = [1, 1]} : vector<4x512xf32> to vector<4x256xf32>
    %67 = arith.truncf %66 : vector<4x256xf32> to vector<4x256xbf16>
    %c0_43 = arith.constant 0 : index
    %c0_44 = arith.constant 0 : index
    %68 = vector.load %arg17[%c0_43, %c0_44] : memref<256x2xbf16, #tpu.memory_space<vmem>>, vector<256x2xbf16>
    %cst_45 = arith.constant dense<0.000000e+00> : vector<4x2xf32>
    %69 = tpu.matmul %67, %68, %cst_45 {dimension_numbers = #tpu.dot_dimension_numbers<[1], [0], [0], [1], [0, 0, 1, 1], [], []>} : vector<4x256xbf16>, vector<256x2xbf16>, vector<4x2xf32> -> vector<4x2xf32>
    %c0_46 = arith.constant 0 : index
    %c0_47 = arith.constant 0 : index
    %70 = vector.load %arg18[%c0_46, %c0_47] : memref<1x2xf32, #tpu.memory_space<vmem>>, vector<1x2xf32>
    %71 = vector.broadcast %70 : vector<1x2xf32> to vector<4x2xf32>
    %72 = arith.addf %69, %71 : vector<4x2xf32>
    %cst_48 = arith.constant dense<0xFF800000> : vector<4xf32>
    %73 = vector.multi_reduction <maximumf>, %72, %cst_48 [1] : vector<4x2xf32> to vector<4xf32>
    %74 = vector.shape_cast %73 : vector<4xf32> to vector<4x1xf32>
    %75 = vector.broadcast %74 : vector<4x1xf32> to vector<4x2xf32>
    %76 = arith.subf %72, %75 : vector<4x2xf32>
    %77 = math.exp %76 : vector<4x2xf32>
    %cst_49 = arith.constant dense<0.000000e+00> : vector<4xf32>
    %78 = vector.multi_reduction <add>, %77, %cst_49 [1] : vector<4x2xf32> to vector<4xf32>
    %79 = vector.shape_cast %78 : vector<4xf32> to vector<4x1xf32>
    %80 = math.log %79 : vector<4x1xf32>
    %81 = arith.addf %74, %80 : vector<4x1xf32>
    %82 = vector.broadcast %81 : vector<4x1xf32> to vector<4x2xf32>
    %83 = arith.subf %72, %82 : vector<4x2xf32>
    %c0_50 = arith.constant 0 : index
    %c0_51 = arith.constant 0 : index
    %84 = vector.load %arg21[%c0_50, %c0_51] : memref<4x2xf32, #tpu.memory_space<vmem>>, vector<4x2xf32>
    tpu.vector_store %arg21[%c0_50, %c0_51], %83 {strides = array<i32>} : memref<4x2xf32, #tpu.memory_space<vmem>>, vector<4x2xf32>,
    %85 = vector.extract_strided_slice %65 {offsets = [0, 256], sizes = [4, 256], strides = [1, 1]} : vector<4x512xf32> to vector<4x256xf32>
    %86 = arith.truncf %85 : vector<4x256xf32> to vector<4x256xbf16>
    %c0_52 = arith.constant 0 : index
    %c0_53 = arith.constant 0 : index
    %87 = vector.load %arg19[%c0_52, %c0_53] : memref<256x9xbf16, #tpu.memory_space<vmem>>, vector<256x9xbf16>
    %cst_54 = arith.constant dense<0.000000e+00> : vector<4x9xf32>
    %88 = tpu.matmul %86, %87, %cst_54 {dimension_numbers = #tpu.dot_dimension_numbers<[1], [0], [0], [1], [0, 0, 1, 1], [], []>} : vector<4x256xbf16>, vector<256x9xbf16>, vector<4x9xf32> -> vector<4x9xf32>
    %c0_55 = arith.constant 0 : index
    %c0_56 = arith.constant 0 : index
    %89 = vector.load %arg20[%c0_55, %c0_56] : memref<1x9xf32, #tpu.memory_space<vmem>>, vector<1x9xf32>
    %90 = vector.broadcast %89 : vector<1x9xf32> to vector<4x9xf32>
    %91 = arith.addf %88, %90 : vector<4x9xf32>
    %c0_57 = arith.constant 0 : index
    %c0_58 = arith.constant 0 : index
    %92 = vector.load %arg22[%c0_57, %c0_58] : memref<4x9xf32, #tpu.memory_space<vmem>>, vector<4x9xf32>
    tpu.vector_store %arg22[%c0_57, %c0_58], %91 {strides = array<i32>} : memref<4x9xf32, #tpu.memory_space<vmem>>, vector<4x9xf32>,
    return
  }
  func.func @transform_0(%arg0: i32) -> (i32, i32) {
    %c0_i32 = arith.constant 0 : i32
    %c0_i32_0 = arith.constant 0 : i32
    %c0_i32_1 = arith.constant 0 : i32
    return %c0_i32, %c0_i32_0 : i32, i32
  }
  func.func @transform_1(%arg0: i32) -> (i32, i32) {
    %c0_i32 = arith.constant 0 : i32
    %c0_i32_0 = arith.constant 0 : i32
    %c0_i32_1 = arith.constant 0 : i32
    return %c0_i32, %c0_i32_0 : i32, i32
  }
  func.func @transform_2(%arg0: i32) -> (i32, i32) {
    %c0_i32 = arith.constant 0 : i32
    %c0_i32_0 = arith.constant 0 : i32
    %c0_i32_1 = arith.constant 0 : i32
    return %c0_i32, %c0_i32_0 : i32, i32
  }
  func.func @transform_3(%arg0: i32) -> (i32, i32) {
    %c0_i32 = arith.constant 0 : i32
    %c0_i32_0 = arith.constant 0 : i32
    %c0_i32_1 = arith.constant 0 : i32
    return %c0_i32, %c0_i32_0 : i32, i32
  }
  func.func @transform_4(%arg0: i32) -> (i32, i32) {
    %c0_i32 = arith.constant 0 : i32
    %c0_i32_0 = arith.constant 0 : i32
    %c0_i32_1 = arith.constant 0 : i32
    return %c0_i32, %c0_i32_0 : i32, i32
  }
  func.func @transform_5(%arg0: i32) -> (i32, i32) {
    %c0_i32 = arith.constant 0 : i32
    %c0_i32_0 = arith.constant 0 : i32
    %c0_i32_1 = arith.constant 0 : i32
    return %c0_i32, %c0_i32_0 : i32, i32
  }
  func.func @transform_6(%arg0: i32) -> (i32, i32) {
    %c0_i32 = arith.constant 0 : i32
    %c0_i32_0 = arith.constant 0 : i32
    %c0_i32_1 = arith.constant 0 : i32
    return %c0_i32, %c0_i32_0 : i32, i32
  }
  func.func @transform_7(%arg0: i32) -> (i32, i32) {
    %c0_i32 = arith.constant 0 : i32
    %c0_i32_0 = arith.constant 0 : i32
    %c0_i32_1 = arith.constant 0 : i32
    return %c0_i32, %c0_i32_0 : i32, i32
  }
  func.func @transform_8(%arg0: i32) -> (i32, i32) {
    %c0_i32 = arith.constant 0 : i32
    %c0_i32_0 = arith.constant 0 : i32
    %c0_i32_1 = arith.constant 0 : i32
    return %c0_i32, %c0_i32_0 : i32, i32
  }
  func.func @transform_9(%arg0: i32) -> (i32, i32) {
    %c0_i32 = arith.constant 0 : i32
    %c0_i32_0 = arith.constant 0 : i32
    %c0_i32_1 = arith.constant 0 : i32
    return %c0_i32, %c0_i32_0 : i32, i32
  }
  func.func @transform_10(%arg0: i32) -> (i32, i32) {
    %c0_i32 = arith.constant 0 : i32
    %c0_i32_0 = arith.constant 0 : i32
    %c0_i32_1 = arith.constant 0 : i32
    return %c0_i32, %c0_i32_0 : i32, i32
  }
  func.func @transform_11(%arg0: i32) -> (i32, i32) {
    %c0_i32 = arith.constant 0 : i32
    %c0_i32_0 = arith.constant 0 : i32
    %c0_i32_1 = arith.constant 0 : i32
    return %c0_i32, %c0_i32_0 : i32, i32
  }
  func.func @transform_12(%arg0: i32) -> (i32, i32) {
    %c0_i32 = arith.constant 0 : i32
    %c0_i32_0 = arith.constant 0 : i32
    %c0_i32_1 = arith.constant 0 : i32
    return %c0_i32, %c0_i32_0 : i32, i32
  }
  func.func @transform_13(%arg0: i32) -> (i32, i32) {
    %c0_i32 = arith.constant 0 : i32
    %c0_i32_0 = arith.constant 0 : i32
    %c0_i32_1 = arith.constant 0 : i32
    return %c0_i32, %c0_i32_0 : i32, i32
  }
  func.func @transform_14(%arg0: i32) -> (i32, i32) {
    %c0_i32 = arith.constant 0 : i32
    %c0_i32_0 = arith.constant 0 : i32
    %c0_i32_1 = arith.constant 0 : i32
    return %c0_i32, %c0_i32_0 : i32, i32
  }
  func.func @transform_15(%arg0: i32) -> (i32, i32) {
    %c0_i32 = arith.constant 0 : i32
    %c0_i32_0 = arith.constant 0 : i32
    %c0_i32_1 = arith.constant 0 : i32
    return %c0_i32, %c0_i32_0 : i32, i32
  }
  func.func @transform_16(%arg0: i32) -> (i32, i32) {
    %c0_i32 = arith.constant 0 : i32
    %c0_i32_0 = arith.constant 0 : i32
    %c0_i32_1 = arith.constant 0 : i32
    return %c0_i32, %c0_i32_0 : i32, i32
  }
  func.func @transform_17(%arg0: i32) -> (i32, i32) {
    %c0_i32 = arith.constant 0 : i32
    %c0_i32_0 = arith.constant 0 : i32
    %c0_i32_1 = arith.constant 0 : i32
    return %c0_i32, %c0_i32_0 : i32, i32
  }
  func.func @transform_18(%arg0: i32) -> (i32, i32) {
    %c0_i32 = arith.constant 0 : i32
    %c0_i32_0 = arith.constant 0 : i32
    %c0_i32_1 = arith.constant 0 : i32
    return %c0_i32, %c0_i32_0 : i32, i32
  }
  func.func @transform_19(%arg0: i32) -> (i32, i32) {
    %c0_i32 = arith.constant 0 : i32
    %c0_i32_0 = arith.constant 0 : i32
    %c0_i32_1 = arith.constant 0 : i32
    return %c0_i32, %c0_i32_0 : i32, i32
  }
  func.func @transform_20(%arg0: i32) -> (i32, i32) {
    %c0_i32 = arith.constant 0 : i32
    %c0_i32_0 = arith.constant 0 : i32
    %c0_i32_1 = arith.constant 0 : i32
    return %c0_i32, %c0_i32_0 : i32, i32
  }
  func.func @transform_21(%arg0: i32) -> (i32, i32) {
    %c0_i32 = arith.constant 0 : i32
    %c0_i32_0 = arith.constant 0 : i32
    %c0_i32_1 = arith.constant 0 : i32
    return %c0_i32, %c0_i32_0 : i32, i32
  }
}

</mosaic_0001>

<llo_original>
// kernel: pointnet_cls_and_pose.1
$region0: #{pointnet_cls_and_pose.1}
  #allocation0 [shape = 'u32[]', space=smem, size = 0x4, offset = 0x4, fixed_abs, tag = 'smem constant byte address 0x4 - core index']
  #allocation1 [shape = 'u32[72,128]{1,0:T(1,128)}', space=vmem, size = 0x9000, scoped, tag = 'internal scratch']
  %s0 = inlined_call_operand.vmem [shape: bf16[64,12], index: 0, kind: input, shape index: {}]
  %s1 = inlined_call_operand.hbm [shape: bf16[12,64], index: 1, kind: input, shape index: {}]
  %s2 = inlined_call_operand.hbm [shape: f32[1,64], index: 2, kind: input, shape index: {}]
  %s3 = inlined_call_operand.hbm [shape: f32[1,64], index: 3, kind: input, shape index: {}]
  %s4 = inlined_call_operand.hbm [shape: bf16[64,128], index: 4, kind: input, shape index: {}]
  %s5 = inlined_call_operand.hbm [shape: f32[1,128], index: 5, kind: input, shape index: {}]
  %s6 = inlined_call_operand.hbm [shape: f32[1,128], index: 6, kind: input, shape index: {}]
  %s7 = inlined_call_operand.hbm [shape: bf16[128,1024], index: 7, kind: input, shape index: {}]
  %s8 = inlined_call_operand.hbm [shape: f32[1,1024], index: 8, kind: input, shape index: {}]
  %s9 = inlined_call_operand.hbm [shape: f32[1,1024], index: 9, kind: input, shape index: {}]
  %s10 = inlined_call_operand.hbm [shape: bf16[1024,1024], index: 10, kind: input, shape index: {}]
  %s11 = inlined_call_operand.hbm [shape: f32[1,1024], index: 11, kind: input, shape index: {}]
  %s12 = inlined_call_operand.hbm [shape: f32[1,1024], index: 12, kind: input, shape index: {}]
  %s13 = inlined_call_operand.hbm [shape: bf16[1024,512], index: 13, kind: input, shape index: {}]
  %s14 = inlined_call_operand.hbm [shape: f32[1,512], index: 14, kind: input, shape index: {}]
  %s15 = inlined_call_operand.hbm [shape: f32[1,512], index: 15, kind: input, shape index: {}]
  %s16 = inlined_call_operand.vmem [shape: bf16[256,2], index: 16, kind: input, shape index: {}]
  %s17 = inlined_call_operand.hbm [shape: f32[1,2], index: 17, kind: input, shape index: {}]
  %s18 = inlined_call_operand.vmem [shape: bf16[256,9], index: 18, kind: input, shape index: {}]
  %s19 = inlined_call_operand.hbm [shape: f32[1,9], index: 19, kind: input, shape index: {}]
  %s20 = inlined_call_operand.vmem [shape: f32[4,2], index: 20, kind: output, shape index: {0}]
  %s21 = inlined_call_operand.hbm [shape: f32[4,9], index: 21, kind: output, shape index: {1}]
  %22 = xla_tuple %s20, %s21
  %s23 = sld [smem:[#allocation0]]
  $region166: #{pointnet_cls_and_pose.1} parent=0
    _
  %s25 = ssub.s32 1, %s23
  %s26 = scalar_select 0, %s25, %s23
  $region1: #{pointnet_cls_and_pose.1} parent=0
    #allocation2 [shape = 'u8[4096]{0}', space=vmem, size = 0x1000, scoped, tag = 'input window, operand 1, single buffered']
    #allocation3 [shape = 's32[1]{0}', space=sflag, size = 0x4, scoped, tag = 'scoped memory for pointnet_cls_and_pose.1']
    #allocation4 [shape = 's32[1]{0}', space=sflag, size = 0x4, scoped, tag = 'scoped memory for pointnet_cls_and_pose.1']
    #allocation5 [shape = 'u8[512]{0}', space=vmem, size = 0x400, scoped, tag = 'input window, operand 2, single buffered']
    #allocation6 [shape = 's32[1]{0}', space=sflag, size = 0x4, scoped, tag = 'scoped memory for pointnet_cls_and_pose.1']
    #allocation7 [shape = 'u8[512]{0}', space=vmem, size = 0x400, scoped, tag = 'input window, operand 3, single buffered']
    #allocation8 [shape = 'u8[16384]{0}', space=vmem, size = 0x4000, scoped, tag = 'input window, operand 4, single buffered']
    #allocation9 [shape = 's32[1]{0}', space=sflag, size = 0x4, scoped, tag = 'scoped memory for pointnet_cls_and_pose.1']
    #allocation10 [shape = 'u8[512]{0}', space=vmem, size = 0x400, scoped, tag = 'input window, operand 5, single buffered']
    #allocation11 [shape = 'u8[512]{0}', space=vmem, size = 0x400, scoped, tag = 'input window, operand 6, single buffered']
    #allocation12 [shape = 's32[1]{0}', space=sflag, size = 0x4, scoped, tag = 'scoped memory for pointnet_cls_and_pose.1']
    #allocation13 [shape = 'u8[262144]{0}', space=vmem, size = 0x40000, scoped, tag = 'input window, operand 7, single buffered']
    #allocation14 [shape = 'u8[4096]{0}', space=vmem, size = 0x1000, scoped, tag = 'input window, operand 8, single buffered']
    #allocation15 [shape = 's32[1]{0}', space=sflag, size = 0x4, scoped, tag = 'scoped memory for pointnet_cls_and_pose.1']
    #allocation16 [shape = 'u8[4096]{0}', space=vmem, size = 0x1000, scoped, tag = 'input window, operand 9, single buffered']
    #allocation17 [shape = 'u8[2097152]{0}', space=vmem, size = 0x200000, scoped, tag = 'input window, operand 10, single buffered']
    #allocation18 [shape = 's32[1]{0}', space=sflag, size = 0x4, scoped, tag = 'scoped memory for pointnet_cls_and_pose.1']
    #allocation19 [shape = 'u8[4096]{0}', space=vmem, size = 0x1000, scoped, tag = 'input window, operand 11, single buffered']
    #allocation20 [shape = 'u8[4096]{0}', space=vmem, size = 0x1000, scoped, tag = 'input window, operand 12, single buffered']
    #allocation21 [shape = 's32[1]{0}', space=sflag, size = 0x4, scoped, tag = 'scoped memory for pointnet_cls_and_pose.1']
    #allocation22 [shape = 'u8[1048576]{0}', space=vmem, size = 0x100000, scoped, tag = 'input window, operand 13, single buffered']
    #allocation23 [shape = 'u8[2048]{0}', space=vmem, size = 0x800, scoped, tag = 'input window, operand 14, single buffered']
    #allocation24 [shape = 's32[1]{0}', space=sflag, size = 0x4, scoped, tag = 'scoped memory for pointnet_cls_and_pose.1']
    #allocation25 [shape = 'u8[2048]{0}', space=vmem, size = 0x800, scoped, tag = 'input window, operand 15, single buffered']
    #allocation26 [shape = 'u8[512]{0}', space=vmem, size = 0x400, scoped, tag = 'input window, operand 17, single buffered']
    #allocation27 [shape = 's32[1]{0}', space=sflag, size = 0x4, scoped, tag = 'scoped memory for pointnet_cls_and_pose.1']
    #allocation28 [shape = 'u8[512]{0}', space=vmem, size = 0x400, scoped, tag = 'input window, operand 19, single buffered']
    #allocation29 [shape = 'u8[2048]{0}', space=vmem, size = 0x800, scoped, tag = 'output window, operand 1, single buffered']
    %27 = vsyncpa [#allocation3], 0
    %28 = vsyncpa [#allocation6], 0
    %29 = vsyncpa [#allocation9], 0
    %30 = vsyncpa [#allocation12], 0
    %31 = vsyncpa [#allocation15], 0
    %32 = vsyncpa [#allocation18], 0
    %33 = vsyncpa [#allocation21], 0
    %34 = vsyncpa [#allocation24], 0
    %35 = vsyncpa [#allocation27], 0
    %36 = vsyncpa [#allocation4], 0
    // Predicated region
    $region2: #{pointnet_cls_and_pose.1} parent=1 // pred_check
      _
    $region3: #{pointnet_cls_and_pose.1} parent=1 // pred_check_branch
      %38 = sbr.rel (0) target = $region5
    $region4: #{pointnet_cls_and_pose.1} parent=1 // pred_region
      _
    $region5: #{pointnet_cls_and_pose.1} parent=1 // pred_fallthru
      _
    // Predicated region
    $region6: #{pointnet_cls_and_pose.1} parent=1 // pred_check
      _
    $region7: #{pointnet_cls_and_pose.1} parent=1 // pred_check_branch
      %40 = sbr.rel (0) target = $region9
    $region8: #{pointnet_cls_and_pose.1} parent=1 // pred_region
      %42 = vsyncadd [#allocation3], 0
      %s43 = sshll.u32 %s1, 4
      %s44 = int_to_ptr.hbm [resolvable:$true] %s43
      %s45 = sshll.u32 [#allocation2], 4
      %s46 = int_to_ptr.vmem [resolvable:$true] %s45
      %51 = dma.hbm_to_vmem [thread:$0]  %s44, 128, %s46, [#allocation3], 64, 64, 4
    $region9: #{pointnet_cls_and_pose.1} parent=1 // pred_fallthru
      _
    // Predicated region
    $region10: #{pointnet_cls_and_pose.1} parent=1 // pred_check
      _
    $region11: #{pointnet_cls_and_pose.1} parent=1 // pred_check_branch
      %53 = sbr.rel (0) target = $region13
    $region12: #{pointnet_cls_and_pose.1} parent=1 // pred_region
      %55 = vsyncadd [#allocation6], 0
      %s57 = sshll.u32 %s2, 4
      %s58 = int_to_ptr.hbm [resolvable:$true] %s57
      %s59 = sshll.u32 [#allocation5], 4
      %s60 = int_to_ptr.vmem [resolvable:$true] %s59
      %62 = dma.hbm_to_vmem [thread:$0]  %s58, 16, %s60, [#allocation6]
    $region13: #{pointnet_cls_and_pose.1} parent=1 // pred_fallthru
      _
    // Predicated region
    $region14: #{pointnet_cls_and_pose.1} parent=1 // pred_check
      _
    $region15: #{pointnet_cls_and_pose.1} parent=1 // pred_check_branch
      %64 = sbr.rel (0) target = $region17
    $region16: #{pointnet_cls_and_pose.1} parent=1 // pred_region
      %66 = vsyncadd [#allocation6], 0
      %s68 = sshll.u32 %s3, 4
      %s69 = int_to_ptr.hbm [resolvable:$true] %s68
      %s70 = sshll.u32 [#allocation7], 4
      %s71 = int_to_ptr.vmem [resolvable:$true] %s70
      %73 = dma.hbm_to_vmem [thread:$0]  %s69, 16, %s71, [#allocation6]
    $region17: #{pointnet_cls_and_pose.1} parent=1 // pred_fallthru
      _
    // Predicated region
    $region18: #{pointnet_cls_and_pose.1} parent=1 // pred_check
      _
    $region19: #{pointnet_cls_and_pose.1} parent=1 // pred_check_branch
      %75 = sbr.rel (0) target = $region21
    $region20: #{pointnet_cls_and_pose.1} parent=1 // pred_region
      %77 = vsyncadd [#allocation9], 0
      %s78 = sshll.u32 %s4, 4
      %s79 = int_to_ptr.hbm [resolvable:$true] %s78
      %s80 = sshll.u32 [#allocation8], 4
      %s81 = int_to_ptr.vmem [resolvable:$true] %s80
      %86 = dma.hbm_to_vmem [thread:$0]  %s79, 512, %s81, [#allocation9], 64, 64, 4
    $region21: #{pointnet_cls_and_pose.1} parent=1 // pred_fallthru
      _
    // Predicated region
    $region22: #{pointnet_cls_and_pose.1} parent=1 // pred_check
      _
    $region23: #{pointnet_cls_and_pose.1} parent=1 // pred_check_branch
      %88 = sbr.rel (0) target = $region25
    $region24: #{pointnet_cls_and_pose.1} parent=1 // pred_region
      %90 = vsyncadd [#allocation9], 0
      %s92 = sshll.u32 %s5, 4
      %s93 = int_to_ptr.hbm [resolvable:$true] %s92
      %s94 = sshll.u32 [#allocation10], 4
      %s95 = int_to_ptr.vmem [resolvable:$true] %s94
      %97 = dma.hbm_to_vmem [thread:$0]  %s93, 16, %s95, [#allocation9]
    $region25: #{pointnet_cls_and_pose.1} parent=1 // pred_fallthru
      _
    // Predicated region
    $region26: #{pointnet_cls_and_pose.1} parent=1 // pred_check
      _
    $region27: #{pointnet_cls_and_pose.1} parent=1 // pred_check_branch
      %99 = sbr.rel (0) target = $region29
    $region28: #{pointnet_cls_and_pose.1} parent=1 // pred_region
      %101 = vsyncadd [#allocation12], 0
      %s103 = sshll.u32 %s6, 4
      %s104 = int_to_ptr.hbm [resolvable:$true] %s103
      %s105 = sshll.u32 [#allocation11], 4
      %s106 = int_to_ptr.vmem [resolvable:$true] %s105
      %108 = dma.hbm_to_vmem [thread:$0]  %s104, 16, %s106, [#allocation12]
    $region29: #{pointnet_cls_and_pose.1} parent=1 // pred_fallthru
      _
    // Predicated region
    $region30: #{pointnet_cls_and_pose.1} parent=1 // pred_check
      _
    $region31: #{pointnet_cls_and_pose.1} parent=1 // pred_check_branch
      %110 = sbr.rel (0) target = $region33
    $region32: #{pointnet_cls_and_pose.1} parent=1 // pred_region
      %112 = vsyncadd [#allocation12], 0
      %s113 = sshll.u32 %s7, 4
      %s114 = int_to_ptr.hbm [resolvable:$true] %s113
      %s115 = sshll.u32 [#allocation13], 4
      %s116 = int_to_ptr.vmem [resolvable:$true] %s115
      %121 = dma.hbm_to_vmem [thread:$0]  %s114, 8192, %s116, [#allocation12], 512, 512, 32
    $region33: #{pointnet_cls_and_pose.1} parent=1 // pred_fallthru
      _
    // Predicated region
    $region34: #{pointnet_cls_and_pose.1} parent=1 // pred_check
      _
    $region35: #{pointnet_cls_and_pose.1} parent=1 // pred_check_branch
      %123 = sbr.rel (0) target = $region37
    $region36: #{pointnet_cls_and_pose.1} parent=1 // pred_region
      %125 = vsyncadd [#allocation15], 0
      %s127 = sshll.u32 %s8, 4
      %s128 = int_to_ptr.hbm [resolvable:$true] %s127
      %s129 = sshll.u32 [#allocation14], 4
      %s130 = int_to_ptr.vmem [resolvable:$true] %s129
      %132 = dma.hbm_to_vmem [thread:$0]  %s128, 128, %s130, [#allocation15]
    $region37: #{pointnet_cls_and_pose.1} parent=1 // pred_fallthru
      _
    // Predicated region
    $region38: #{pointnet_cls_and_pose.1} parent=1 // pred_check
      _
    $region39: #{pointnet_cls_and_pose.1} parent=1 // pred_check_branch
      %134 = sbr.rel (0) target = $region41
    $region40: #{pointnet_cls_and_pose.1} parent=1 // pred_region
      %136 = vsyncadd [#allocation15], 0
      %s138 = sshll.u32 %s9, 4
      %s139 = int_to_ptr.hbm [resolvable:$true] %s138
      %s140 = sshll.u32 [#allocation16], 4
      %s141 = int_to_ptr.vmem [resolvable:$true] %s140
      %143 = dma.hbm_to_vmem [thread:$0]  %s139, 128, %s141, [#allocation15]
    $region41: #{pointnet_cls_and_pose.1} parent=1 // pred_fallthru
      _
    // Predicated region
    $region42: #{pointnet_cls_and_pose.1} parent=1 // pred_check
      _
    $region43: #{pointnet_cls_and_pose.1} parent=1 // pred_check_branch
      %145 = sbr.rel (0) target = $region45
    $region44: #{pointnet_cls_and_pose.1} parent=1 // pred_region
      %147 = vsyncadd [#allocation18], 0
      %s148 = sshll.u32 %s10, 4
      %s149 = int_to_ptr.hbm [resolvable:$true] %s148
      %s150 = sshll.u32 [#allocation17], 4
      %s151 = int_to_ptr.vmem [resolvable:$true] %s150
      %156 = dma.hbm_to_vmem [thread:$0]  %s149, 65536, %s151, [#allocation18], 512, 512, 32
    $region45: #{pointnet_cls_and_pose.1} parent=1 // pred_fallthru
      _
    // Predicated region
    $region46: #{pointnet_cls_and_pose.1} parent=1 // pred_check
      _
    $region47: #{pointnet_cls_and_pose.1} parent=1 // pred_check_branch
      %158 = sbr.rel (0) target = $region49
    $region48: #{pointnet_cls_and_pose.1} parent=1 // pred_region
      %160 = vsyncadd [#allocation18], 0
      %s162 = sshll.u32 %s11, 4
      %s163 = int_to_ptr.hbm [resolvable:$true] %s162
      %s164 = sshll.u32 [#allocation19], 4
      %s165 = int_to_ptr.vmem [resolvable:$true] %s164
      %167 = dma.hbm_to_vmem [thread:$0]  %s163, 128, %s165, [#allocation18]
    $region49: #{pointnet_cls_and_pose.1} parent=1 // pred_fallthru
      _
    // Predicated region
    $region50: #{pointnet_cls_and_pose.1} parent=1 // pred_check
      _
    $region51: #{pointnet_cls_and_pose.1} parent=1 // pred_check_branch
      %169 = sbr.rel (0) target = $region53
    $region52: #{pointnet_cls_and_pose.1} parent=1 // pred_region
      %171 = vsyncadd [#allocation21], 0
      %s173 = sshll.u32 %s12, 4
      %s174 = int_to_ptr.hbm [resolvable:$true] %s173
      %s175 = sshll.u32 [#allocation20], 4
      %s176 = int_to_ptr.vmem [resolvable:$true] %s175
      %178 = dma.hbm_to_vmem [thread:$0]  %s174, 128, %s176, [#allocation21]
    $region53: #{pointnet_cls_and_pose.1} parent=1 // pred_fallthru
      _
    // Predicated region
    $region54: #{pointnet_cls_and_pose.1} parent=1 // pred_check
      _
    $region55: #{pointnet_cls_and_pose.1} parent=1 // pred_check_branch
      %180 = sbr.rel (0) target = $region57
    $region56: #{pointnet_cls_and_pose.1} parent=1 // pred_region
      %182 = vsyncadd [#allocation21], 0
      %s183 = sshll.u32 %s13, 4
      %s184 = int_to_ptr.hbm [resolvable:$true] %s183
      %s185 = sshll.u32 [#allocation22], 4
      %s186 = int_to_ptr.vmem [resolvable:$true] %s185
      %191 = dma.hbm_to_vmem [thread:$0]  %s184, 32768, %s186, [#allocation21], 256, 256, 16
    $region57: #{pointnet_cls_and_pose.1} parent=1 // pred_fallthru
      _
    // Predicated region
    $region58: #{pointnet_cls_and_pose.1} parent=1 // pred_check
      _
    $region59: #{pointnet_cls_and_pose.1} parent=1 // pred_check_branch
      %193 = sbr.rel (0) target = $region61
    $region60: #{pointnet_cls_and_pose.1} parent=1 // pred_region
      %195 = vsyncadd [#allocation24], 0
      %s197 = sshll.u32 %s14, 4
      %s198 = int_to_ptr.hbm [resolvable:$true] %s197
      %s199 = sshll.u32 [#allocation23], 4
      %s200 = int_to_ptr.vmem [resolvable:$true] %s199
      %202 = dma.hbm_to_vmem [thread:$0]  %s198, 64, %s200, [#allocation24]
    $region61: #{pointnet_cls_and_pose.1} parent=1 // pred_fallthru
      _
    // Predicated region
    $region62: #{pointnet_cls_and_pose.1} parent=1 // pred_check
      _
    $region63: #{pointnet_cls_and_pose.1} parent=1 // pred_check_branch
      %204 = sbr.rel (0) target = $region65
    $region64: #{pointnet_cls_and_pose.1} parent=1 // pred_region
      %206 = vsyncadd [#allocation24], 0
      %s208 = sshll.u32 %s15, 4
      %s209 = int_to_ptr.hbm [resolvable:$true] %s208
      %s210 = sshll.u32 [#allocation25], 4
      %s211 = int_to_ptr.vmem [resolvable:$true] %s210
      %213 = dma.hbm_to_vmem [thread:$0]  %s209, 64, %s211, [#allocation24]
    $region65: #{pointnet_cls_and_pose.1} parent=1 // pred_fallthru
      _
    // Predicated region
    $region66: #{pointnet_cls_and_pose.1} parent=1 // pred_check
      _
    $region67: #{pointnet_cls_and_pose.1} parent=1 // pred_check_branch
      %215 = sbr.rel (0) target = $region69
    $region68: #{pointnet_cls_and_pose.1} parent=1 // pred_region
      _
    $region69: #{pointnet_cls_and_pose.1} parent=1 // pred_fallthru
      _
    // Predicated region
    $region70: #{pointnet_cls_and_pose.1} parent=1 // pred_check
      _
    $region71: #{pointnet_cls_and_pose.1} parent=1 // pred_check_branch
      %217 = sbr.rel (0) target = $region73
    $region72: #{pointnet_cls_and_pose.1} parent=1 // pred_region
      %219 = vsyncadd [#allocation27], 0
      %s221 = sshll.u32 %s17, 4
      %s222 = int_to_ptr.hbm [resolvable:$true] %s221
      %s223 = sshll.u32 [#allocation26], 4
      %s224 = int_to_ptr.vmem [resolvable:$true] %s223
      %226 = dma.hbm_to_vmem [thread:$0]  %s222, 16, %s224, [#allocation27]
    $region73: #{pointnet_cls_and_pose.1} parent=1 // pred_fallthru
      _
    // Predicated region
    $region74: #{pointnet_cls_and_pose.1} parent=1 // pred_check
      _
    $region75: #{pointnet_cls_and_pose.1} parent=1 // pred_check_branch
      %228 = sbr.rel (0) target = $region77
    $region76: #{pointnet_cls_and_pose.1} parent=1 // pred_region
      _
    $region77: #{pointnet_cls_and_pose.1} parent=1 // pred_fallthru
      _
    // Predicated region
    $region78: #{pointnet_cls_and_pose.1} parent=1 // pred_check
      _
    $region79: #{pointnet_cls_and_pose.1} parent=1 // pred_check_branch
      %230 = sbr.rel (0) target = $region81
    $region80: #{pointnet_cls_and_pose.1} parent=1 // pred_region
      %232 = vsyncadd [#allocation27], 0
      %s234 = sshll.u32 %s19, 4
      %s235 = int_to_ptr.hbm [resolvable:$true] %s234
      %s236 = sshll.u32 [#allocation28], 4
      %s237 = int_to_ptr.vmem [resolvable:$true] %s236
      %239 = dma.hbm_to_vmem [thread:$0]  %s235, 16, %s237, [#allocation27]
    $region81: #{pointnet_cls_and_pose.1} parent=1 // pred_fallthru
      _
    // Predicated region
    $region82: #{pointnet_cls_and_pose.1} parent=1 // pred_check
      _
    $region83: #{pointnet_cls_and_pose.1} parent=1 // pred_check_branch
      %241 = sbr.rel (0) target = $region85
    $region84: #{pointnet_cls_and_pose.1} parent=1 // pred_region
      %243 = dma.done [#allocation3], 128
    $region85: #{pointnet_cls_and_pose.1} parent=1 // pred_fallthru
      _
    // Predicated region
    $region86: #{pointnet_cls_and_pose.1} parent=1 // pred_check
      _
    $region87: #{pointnet_cls_and_pose.1} parent=1 // pred_check_branch
      %245 = sbr.rel (0) target = $region89
    $region88: #{pointnet_cls_and_pose.1} parent=1 // pred_region
      %247 = dma.done [#allocation6], 16
    $region89: #{pointnet_cls_and_pose.1} parent=1 // pred_fallthru
      _
    // Predicated region
    $region90: #{pointnet_cls_and_pose.1} parent=1 // pred_check
      _
    $region91: #{pointnet_cls_and_pose.1} parent=1 // pred_check_branch
      %249 = sbr.rel (0) target = $region93
    $region92: #{pointnet_cls_and_pose.1} parent=1 // pred_region
      %251 = dma.done [#allocation6], 16
    $region93: #{pointnet_cls_and_pose.1} parent=1 // pred_fallthru
      _
    // Predicated region
    $region94: #{pointnet_cls_and_pose.1} parent=1 // pred_check
      _
    $region95: #{pointnet_cls_and_pose.1} parent=1 // pred_check_branch
      %253 = sbr.rel (0) target = $region97
    $region96: #{pointnet_cls_and_pose.1} parent=1 // pred_region
      %255 = dma.done [#allocation9], 512
    $region97: #{pointnet_cls_and_pose.1} parent=1 // pred_fallthru
      _
    // Predicated region
    $region98: #{pointnet_cls_and_pose.1} parent=1 // pred_check
      _
    $region99: #{pointnet_cls_and_pose.1} parent=1 // pred_check_branch
      %257 = sbr.rel (0) target = $region101
    $region100: #{pointnet_cls_and_pose.1} parent=1 // pred_region
      %259 = dma.done [#allocation9], 16
    $region101: #{pointnet_cls_and_pose.1} parent=1 // pred_fallthru
      _
    // Predicated region
    $region102: #{pointnet_cls_and_pose.1} parent=1 // pred_check
      _
    $region103: #{pointnet_cls_and_pose.1} parent=1 // pred_check_branch
      %261 = sbr.rel (0) target = $region105
    $region104: #{pointnet_cls_and_pose.1} parent=1 // pred_region
      %263 = dma.done [#allocation12], 16
    $region105: #{pointnet_cls_and_pose.1} parent=1 // pred_fallthru
      _
    // Predicated region
    $region106: #{pointnet_cls_and_pose.1} parent=1 // pred_check
      _
    $region107: #{pointnet_cls_and_pose.1} parent=1 // pred_check_branch
      %265 = sbr.rel (0) target = $region109
    $region108: #{pointnet_cls_and_pose.1} parent=1 // pred_region
      %267 = dma.done [#allocation12], 8192
    $region109: #{pointnet_cls_and_pose.1} parent=1 // pred_fallthru
      _
    // Predicated region
    $region110: #{pointnet_cls_and_pose.1} parent=1 // pred_check
      _
    $region111: #{pointnet_cls_and_pose.1} parent=1 // pred_check_branch
      %269 = sbr.rel (0) target = $region113
    $region112: #{pointnet_cls_and_pose.1} parent=1 // pred_region
      %271 = dma.done [#allocation15], 128
    $region113: #{pointnet_cls_and_pose.1} parent=1 // pred_fallthru
      _
    // Predicated region
    $region114: #{pointnet_cls_and_pose.1} parent=1 // pred_check
      _
    $region115: #{pointnet_cls_and_pose.1} parent=1 // pred_check_branch
      %273 = sbr.rel (0) target = $region117
    $region116: #{pointnet_cls_and_pose.1} parent=1 // pred_region
      %275 = dma.done [#allocation15], 128
    $region117: #{pointnet_cls_and_pose.1} parent=1 // pred_fallthru
      _
    // Predicated region
    $region118: #{pointnet_cls_and_pose.1} parent=1 // pred_check
      _
    $region119: #{pointnet_cls_and_pose.1} parent=1 // pred_check_branch
      %277 = sbr.rel (0) target = $region121
    $region120: #{pointnet_cls_and_pose.1} parent=1 // pred_region
      %279 = dma.done [#allocation18], 65536
    $region121: #{pointnet_cls_and_pose.1} parent=1 // pred_fallthru
      _
    // Predicated region
    $region122: #{pointnet_cls_and_pose.1} parent=1 // pred_check
      _
    $region123: #{pointnet_cls_and_pose.1} parent=1 // pred_check_branch
      %281 = sbr.rel (0) target = $region125
    $region124: #{pointnet_cls_and_pose.1} parent=1 // pred_region
      %283 = dma.done [#allocation18], 128
    $region125: #{pointnet_cls_and_pose.1} parent=1 // pred_fallthru
      _
    // Predicated region
    $region126: #{pointnet_cls_and_pose.1} parent=1 // pred_check
      _
    $region127: #{pointnet_cls_and_pose.1} parent=1 // pred_check_branch
      %285 = sbr.rel (0) target = $region129
    $region128: #{pointnet_cls_and_pose.1} parent=1 // pred_region
      %287 = dma.done [#allocation21], 128
    $region129: #{pointnet_cls_and_pose.1} parent=1 // pred_fallthru
      _
    // Predicated region
    $region130: #{pointnet_cls_and_pose.1} parent=1 // pred_check
      _
    $region131: #{pointnet_cls_and_pose.1} parent=1 // pred_check_branch
      %289 = sbr.rel (0) target = $region133
    $region132: #{pointnet_cls_and_pose.1} parent=1 // pred_region
      %291 = dma.done [#allocation21], 32768
    $region133: #{pointnet_cls_and_pose.1} parent=1 // pred_fallthru
      _
    // Predicated region
    $region134: #{pointnet_cls_and_pose.1} parent=1 // pred_check
      _
    $region135: #{pointnet_cls_and_pose.1} parent=1 // pred_check_branch
      %293 = sbr.rel (0) target = $region137
    $region136: #{pointnet_cls_and_pose.1} parent=1 // pred_region
      %295 = dma.done [#allocation24], 64
    $region137: #{pointnet_cls_and_pose.1} parent=1 // pred_fallthru
      _
    // Predicated region
    $region138: #{pointnet_cls_and_pose.1} parent=1 // pred_check
      _
    $region139: #{pointnet_cls_and_pose.1} parent=1 // pred_check_branch
      %297 = sbr.rel (0) target = $region141
    $region140: #{pointnet_cls_and_pose.1} parent=1 // pred_region
      %299 = dma.done [#allocation24], 64
    $region141: #{pointnet_cls_and_pose.1} parent=1 // pred_fallthru
      _
    // Predicated region
    $region142: #{pointnet_cls_and_pose.1} parent=1 // pred_check
      _
    $region143: #{pointnet_cls_and_pose.1} parent=1 // pred_check_branch
      %301 = sbr.rel (0) target = $region145
    $region144: #{pointnet_cls_and_pose.1} parent=1 // pred_region
      %303 = dma.done [#allocation27], 16
    $region145: #{pointnet_cls_and_pose.1} parent=1 // pred_fallthru
      _
    // Predicated region
    $region146: #{pointnet_cls_and_pose.1} parent=1 // pred_check
      _
    $region147: #{pointnet_cls_and_pose.1} parent=1 // pred_check_branch
      %305 = sbr.rel (0) target = $region149
    $region148: #{pointnet_cls_and_pose.1} parent=1 // pred_region
      %307 = dma.done [#allocation27], 16
    $region149: #{pointnet_cls_and_pose.1} parent=1 // pred_fallthru
      _
    %v309 = vld [vmem:[%s0] sm:$0xf]
    %v310 = vld [vmem:[%s0 + $0x4] sm:$0xf]
    %v311 = vld [vmem:[%s0 + $0x8] sm:$0xf]
    %v312 = vld [vmem:[%s0 + $0xc] sm:$0xf]
    %v313 = vld [vmem:[%s0 + $0x10] sm:$0xf]
    %v314 = vld [vmem:[%s0 + $0x14] sm:$0xf]
    %v315 = vld [vmem:[%s0 + $0x18] sm:$0xf]
    %v316 = vld [vmem:[%s0 + $0x1c] sm:$0xf]
    %v317 = vld [vmem:[#allocation2] sm:$0xf]
    %v318 = vld [vmem:[#allocation2 + $0x4] sm:$0x3]
    %v327 = vunpack.c.l.b16 %v309
    %v328 = vunpack.c.l.b16 %v310
    %v329 = vunpack.c.l.b16 %v311
    %v330 = vunpack.c.l.b16 %v312
    %v331 = vunpack.c.l.b16 %v313
    %v332 = vunpack.c.l.b16 %v314
    %v333 = vunpack.c.l.b16 %v315
    %v334 = vunpack.c.l.b16 %v316
    %v335 = vpack.c.b16 %v328, %v327
    %v336 = vpack.c.b16 %v330, %v329
    %v337 = vpack.c.b16 %v332, %v331
    %v338 = vpack.c.b16 %v334, %v333
    %v341 = vunpack.c.l.b16 %v317
    %v342 = vunpack.c.l.b16 %v318
    %v343 = vpack.c.b16 %v342, %v341
    %vm344 = vcmask 97280
    %v346 = vsel %vm344, %v335, 0
    %v349 = vsel %vm344, %v336, 0
    %v352 = vsel %vm344, %v337, 0
    %v355 = vsel %vm344, %v338, 0
    %vm357 = vcmask 1045504
    %v359 = vsel %vm357, %v343, 0
    %361 = vmatpush.bf16.msra.mxu0 0
    %362 = vmatpush.bf16.msra.mxu0 0
    %363 = vmatpush.bf16.msra.mxu0 0
    %364 = vmatpush.bf16.msra.mxu0 0
    %365 = vmatpush.bf16.msra.mxu0 0
    %366 = vmatpush.bf16.msra.mxu0 0
    %367 = vmatpush.bf16.msra.mxu0 0
    %368 = vmatpush.bf16.msra.mxu0 %v359
    %369 = vmatmul.bf16.gmra.mxu0 %v346
    %v370 = vpop.f32.mrf.mxu0
    %v371 = vadd.f32 0.0, %v370
    %v372 = vpop.f32.mrf.mxu0
    %v373 = vadd.f32 0.0, %v372
    %374 = vmatmul.bf16.gmra.mxu0 %v349
    %v375 = vpop.f32.mrf.mxu0
    %v376 = vadd.f32 0.0, %v375
    %v377 = vpop.f32.mrf.mxu0
    %v378 = vadd.f32 0.0, %v377
    %379 = vmatmul.bf16.gmra.mxu0 %v352
    %v380 = vpop.f32.mrf.mxu0
    %v381 = vadd.f32 0.0, %v380
    %v382 = vpop.f32.mrf.mxu0
    %v383 = vadd.f32 0.0, %v382
    %384 = vmatmul.bf16.gmra.mxu0 %v355
    %v385 = vpop.f32.mrf.mxu0
    %v386 = vadd.f32 0.0, %v385
    %v387 = vpop.f32.mrf.mxu0
    %v388 = vadd.f32 0.0, %v387
    %389 = vdwg.mxu0
    %v390 = vld [vmem:[#allocation5] sm:$0x1]
    %v392 = vperm.slane %v390, 0
    %v394 = vmul.f32 %v371, %v392
    %v395 = vmul.f32 %v373, %v392
    %v396 = vmul.f32 %v376, %v392
    %v397 = vmul.f32 %v378, %v392
    %v398 = vmul.f32 %v381, %v392
    %v399 = vmul.f32 %v383, %v392
    %v400 = vmul.f32 %v386, %v392
    %v401 = vmul.f32 %v388, %v392
    %v402 = vld [vmem:[#allocation7] sm:$0x1]
    %v404 = vperm.slane %v402, 0
    %v406 = vadd.f32 %v394, %v404
    %v407 = vadd.f32 %v395, %v404
    %v408 = vadd.f32 %v396, %v404
    %v409 = vadd.f32 %v397, %v404
    %v410 = vadd.f32 %v398, %v404
    %v411 = vadd.f32 %v399, %v404
    %v412 = vadd.f32 %v400, %v404
    %v413 = vadd.f32 %v401, %v404
    %v414 = vmax.f32 %v406, 0.0
    %v415 = vmax.f32 %v407, 0.0
    %v416 = vmax.f32 %v408, 0.0
    %v417 = vmax.f32 %v409, 0.0
    %v418 = vmax.f32 %v410, 0.0
    %v419 = vmax.f32 %v411, 0.0
    %v420 = vmax.f32 %v412, 0.0
    %v421 = vmax.f32 %v413, 0.0
    %v422 = vpack.c.bf16 %v415, %v414
    %v423 = vpack.c.bf16 %v417, %v416
    %v424 = vpack.c.bf16 %v419, %v418
    %v425 = vpack.c.bf16 %v421, %v420
    %v426 = vld [vmem:[#allocation8] sm:$0xf]
    %v427 = vld [vmem:[#allocation8 + $0x4] sm:$0xf]
    %v428 = vld [vmem:[#allocation8 + $0x8] sm:$0xf]
    %v429 = vld [vmem:[#allocation8 + $0xc] sm:$0xf]
    %v430 = vld [vmem:[#allocation8 + $0x10] sm:$0xf]
    %v431 = vld [vmem:[#allocation8 + $0x14] sm:$0xf]
    %v432 = vld [vmem:[#allocation8 + $0x18] sm:$0xf]
    %v433 = vld [vmem:[#allocation8 + $0x1c] sm:$0xf]
    %v442 = vunpack.c.l.b16 %v426
    %v443 = vunpack.c.l.b16 %v427
    %v444 = vunpack.c.l.b16 %v428
    %v445 = vunpack.c.l.b16 %v429
    %v446 = vunpack.c.l.b16 %v430
    %v447 = vunpack.c.l.b16 %v431
    %v448 = vunpack.c.l.b16 %v432
    %v449 = vunpack.c.l.b16 %v433
    %v450 = vpack.c.b16 %v443, %v442
    %v451 = vpack.c.b16 %v445, %v444
    %v452 = vpack.c.b16 %v447, %v446
    %v453 = vpack.c.b16 %v449, %v448
    %vm458 = vcmask 523264
    %v460 = vsel %vm458, %v422, 0
    %v463 = vsel %vm458, %v423, 0
    %v466 = vsel %vm458, %v424, 0
    %v469 = vsel %vm458, %v425, 0
    %471 = vmatpush.bf16.msra.mxu0 0
    %472 = vmatpush.bf16.msra.mxu0 0
    %473 = vmatpush.bf16.msra.mxu0 0
    %474 = vmatpush.bf16.msra.mxu0 0
    %475 = vmatpush.bf16.msra.mxu0 %v453
    %476 = vmatpush.bf16.msra.mxu0 %v452
    %477 = vmatpush.bf16.msra.mxu0 %v451
    %478 = vmatpush.bf16.msra.mxu0 %v450
    %479 = vmatmul.bf16.gmra.mxu0 %v460
    %v480 = vpop.f32.mrf.mxu0
    %v481 = vadd.f32 0.0, %v480
    %v482 = vpop.f32.mrf.mxu0
    %v483 = vadd.f32 0.0, %v482
    %484 = vmatmul.bf16.gmra.mxu0 %v463
    %v485 = vpop.f32.mrf.mxu0
    %v486 = vadd.f32 0.0, %v485
    %v487 = vpop.f32.mrf.mxu0
    %v488 = vadd.f32 0.0, %v487
    %489 = vmatmul.bf16.gmra.mxu0 %v466
    %v490 = vpop.f32.mrf.mxu0
    %v491 = vadd.f32 0.0, %v490
    %v492 = vpop.f32.mrf.mxu0
    %v493 = vadd.f32 0.0, %v492
    %494 = vmatmul.bf16.gmra.mxu0 %v469
    %v495 = vpop.f32.mrf.mxu0
    %v496 = vadd.f32 0.0, %v495
    %v497 = vpop.f32.mrf.mxu0
    %v498 = vadd.f32 0.0, %v497
    %499 = vdwg.mxu0
    %v500 = vld [vmem:[#allocation10] sm:$0x1]
    %v502 = vperm.slane %v500, 0
    %v504 = vmul.f32 %v481, %v502
    %v505 = vmul.f32 %v483, %v502
    %v506 = vmul.f32 %v486, %v502
    %v507 = vmul.f32 %v488, %v502
    %v508 = vmul.f32 %v491, %v502
    %v509 = vmul.f32 %v493, %v502
    %v510 = vmul.f32 %v496, %v502
    %v511 = vmul.f32 %v498, %v502
    %v512 = vld [vmem:[#allocation11] sm:$0x1]
    %v514 = vperm.slane %v512, 0
    %v516 = vadd.f32 %v504, %v514
    %v517 = vadd.f32 %v505, %v514
    %v518 = vadd.f32 %v506, %v514
    %v519 = vadd.f32 %v507, %v514
    %v520 = vadd.f32 %v508, %v514
    %v521 = vadd.f32 %v509, %v514
    %v522 = vadd.f32 %v510, %v514
    %v523 = vadd.f32 %v511, %v514
    %v524 = vmax.f32 %v516, 0.0
    %v525 = vmax.f32 %v517, 0.0
    %v526 = vmax.f32 %v518, 0.0
    %v527 = vmax.f32 %v519, 0.0
    %v528 = vmax.f32 %v520, 0.0
    %v529 = vmax.f32 %v521, 0.0
    %v530 = vmax.f32 %v522, 0.0
    %v531 = vmax.f32 %v523, 0.0
    %v532 = vpack.c.bf16 %v525, %v524
    %v533 = vpack.c.bf16 %v527, %v526
    %v534 = vpack.c.bf16 %v529, %v528
    %v535 = vpack.c.bf16 %v531, %v530
    %v536 = vld [vmem:[#allocation13] sm:$0xff]
    %v537 = vld [vmem:[#allocation13 + $0x8] sm:$0xff]
    %v538 = vld [vmem:[#allocation13 + $0x10] sm:$0xff]
    %v539 = vld [vmem:[#allocation13 + $0x18] sm:$0xff]
    %v540 = vld [vmem:[#allocation13 + $0x20] sm:$0xff]
    %v541 = vld [vmem:[#allocation13 + $0x28] sm:$0xff]
    %v542 = vld [vmem:[#allocation13 + $0x30] sm:$0xff]
    %v543 = vld [vmem:[#allocation13 + $0x38] sm:$0xff]
    %v544 = vld [vmem:[#allocation13 + $0x40] sm:$0xff]
    %v545 = vld [vmem:[#allocation13 + $0x48] sm:$0xff]
    %v546 = vld [vmem:[#allocation13 + $0x50] sm:$0xff]
    %v547 = vld [vmem:[#allocation13 + $0x58] sm:$0xff]
    %v548 = vld [vmem:[#allocation13 + $0x60] sm:$0xff]
    %v549 = vld [vmem:[#allocation13 + $0x68] sm:$0xff]
    %v550 = vld [vmem:[#allocation13 + $0x70] sm:$0xff]
    %v551 = vld [vmem:[#allocation13 + $0x78] sm:$0xff]
    %v552 = vld [vmem:[#allocation13 + $0x80] sm:$0xff]
    %v553 = vld [vmem:[#allocation13 + $0x88] sm:$0xff]
    %v554 = vld [vmem:[#allocation13 + $0x90] sm:$0xff]
    %v555 = vld [vmem:[#allocation13 + $0x98] sm:$0xff]
    %v556 = vld [vmem:[#allocation13 + $0xa0] sm:$0xff]
    %v557 = vld [vmem:[#allocation13 + $0xa8] sm:$0xff]
    %v558 = vld [vmem:[#allocation13 + $0xb0] sm:$0xff]
    %v559 = vld [vmem:[#allocation13 + $0xb8] sm:$0xff]
    %v560 = vld [vmem:[#allocation13 + $0xc0] sm:$0xff]
    %v561 = vld [vmem:[#allocation13 + $0xc8] sm:$0xff]
    %v562 = vld [vmem:[#allocation13 + $0xd0] sm:$0xff]
    %v563 = vld [vmem:[#allocation13 + $0xd8] sm:$0xff]
    %v564 = vld [vmem:[#allocation13 + $0xe0] sm:$0xff]
    %v565 = vld [vmem:[#allocation13 + $0xe8] sm:$0xff]
    %v566 = vld [vmem:[#allocation13 + $0xf0] sm:$0xff]
    %v567 = vld [vmem:[#allocation13 + $0xf8] sm:$0xff]
    %v568 = vld [vmem:[#allocation13 + $0x100] sm:$0xff]
    %v569 = vld [vmem:[#allocation13 + $0x108] sm:$0xff]
    %v570 = vld [vmem:[#allocation13 + $0x110] sm:$0xff]
    %v571 = vld [vmem:[#allocation13 + $0x118] sm:$0xff]
    %v572 = vld [vmem:[#allocation13 + $0x120] sm:$0xff]
    %v573 = vld [vmem:[#allocation13 + $0x128] sm:$0xff]
    %v574 = vld [vmem:[#allocation13 + $0x130] sm:$0xff]
    %v575 = vld [vmem:[#allocation13 + $0x138] sm:$0xff]
    %v576 = vld [vmem:[#allocation13 + $0x140] sm:$0xff]
    %v577 = vld [vmem:[#allocation13 + $0x148] sm:$0xff]
    %v578 = vld [vmem:[#allocation13 + $0x150] sm:$0xff]
    %v579 = vld [vmem:[#allocation13 + $0x158] sm:$0xff]
    %v580 = vld [vmem:[#allocation13 + $0x160] sm:$0xff]
    %v581 = vld [vmem:[#allocation13 + $0x168] sm:$0xff]
    %v582 = vld [vmem:[#allocation13 + $0x170] sm:$0xff]
    %v583 = vld [vmem:[#allocation13 + $0x178] sm:$0xff]
    %v584 = vld [vmem:[#allocation13 + $0x180] sm:$0xff]
    %v585 = vld [vmem:[#allocation13 + $0x188] sm:$0xff]
    %v586 = vld [vmem:[#allocation13 + $0x190] sm:$0xff]
    %v587 = vld [vmem:[#allocation13 + $0x198] sm:$0xff]
    %v588 = vld [vmem:[#allocation13 + $0x1a0] sm:$0xff]
    %v589 = vld [vmem:[#allocation13 + $0x1a8] sm:$0xff]
    %v590 = vld [vmem:[#allocation13 + $0x1b0] sm:$0xff]
    %v591 = vld [vmem:[#allocation13 + $0x1b8] sm:$0xff]
    %v592 = vld [vmem:[#allocation13 + $0x1c0] sm:$0xff]
    %v593 = vld [vmem:[#allocation13 + $0x1c8] sm:$0xff]
    %v594 = vld [vmem:[#allocation13 + $0x1d0] sm:$0xff]
    %v595 = vld [vmem:[#allocation13 + $0x1d8] sm:$0xff]
    %v596 = vld [vmem:[#allocation13 + $0x1e0] sm:$0xff]
    %v597 = vld [vmem:[#allocation13 + $0x1e8] sm:$0xff]
    %v598 = vld [vmem:[#allocation13 + $0x1f0] sm:$0xff]
    %v599 = vld [vmem:[#allocation13 + $0x1f8] sm:$0xff]
    %v664 = vunpack.c.l.b16 %v536
    %v665 = vunpack.c.h.b16 %v536
    %v666 = vunpack.c.l.b16 %v537
    %v667 = vunpack.c.h.b16 %v537
    %v668 = vunpack.c.l.b16 %v538
    %v669 = vunpack.c.h.b16 %v538
    %v670 = vunpack.c.l.b16 %v539
    %v671 = vunpack.c.h.b16 %v539
    %v672 = vunpack.c.l.b16 %v540
    %v673 = vunpack.c.h.b16 %v540
    %v674 = vunpack.c.l.b16 %v541
    %v675 = vunpack.c.h.b16 %v541
    %v676 = vunpack.c.l.b16 %v542
    %v677 = vunpack.c.h.b16 %v542
    %v678 = vunpack.c.l.b16 %v543
    %v679 = vunpack.c.h.b16 %v543
    %v680 = vunpack.c.l.b16 %v544
    %v681 = vunpack.c.h.b16 %v544
    %v682 = vunpack.c.l.b16 %v545
    %v683 = vunpack.c.h.b16 %v545
    %v684 = vunpack.c.l.b16 %v546
    %v685 = vunpack.c.h.b16 %v546
    %v686 = vunpack.c.l.b16 %v547
    %v687 = vunpack.c.h.b16 %v547
    %v688 = vunpack.c.l.b16 %v548
    %v689 = vunpack.c.h.b16 %v548
    %v690 = vunpack.c.l.b16 %v549
    %v691 = vunpack.c.h.b16 %v549
    %v692 = vunpack.c.l.b16 %v550
    %v693 = vunpack.c.h.b16 %v550
    %v694 = vunpack.c.l.b16 %v551
    %v695 = vunpack.c.h.b16 %v551
    %v696 = vunpack.c.l.b16 %v552
    %v697 = vunpack.c.h.b16 %v552
    %v698 = vunpack.c.l.b16 %v553
    %v699 = vunpack.c.h.b16 %v553
    %v700 = vunpack.c.l.b16 %v554
    %v701 = vunpack.c.h.b16 %v554
    %v702 = vunpack.c.l.b16 %v555
    %v703 = vunpack.c.h.b16 %v555
    %v704 = vunpack.c.l.b16 %v556
    %v705 = vunpack.c.h.b16 %v556
    %v706 = vunpack.c.l.b16 %v557
    %v707 = vunpack.c.h.b16 %v557
    %v708 = vunpack.c.l.b16 %v558
    %v709 = vunpack.c.h.b16 %v558
    %v710 = vunpack.c.l.b16 %v559
    %v711 = vunpack.c.h.b16 %v559
    %v712 = vunpack.c.l.b16 %v560
    %v713 = vunpack.c.h.b16 %v560
    %v714 = vunpack.c.l.b16 %v561
    %v715 = vunpack.c.h.b16 %v561
    %v716 = vunpack.c.l.b16 %v562
    %v717 = vunpack.c.h.b16 %v562
    %v718 = vunpack.c.l.b16 %v563
    %v719 = vunpack.c.h.b16 %v563
    %v720 = vunpack.c.l.b16 %v564
    %v721 = vunpack.c.h.b16 %v564
    %v722 = vunpack.c.l.b16 %v565
    %v723 = vunpack.c.h.b16 %v565
    %v724 = vunpack.c.l.b16 %v566
    %v725 = vunpack.c.h.b16 %v566
    %v726 = vunpack.c.l.b16 %v567
    %v727 = vunpack.c.h.b16 %v567
    %v728 = vunpack.c.l.b16 %v568
    %v729 = vunpack.c.h.b16 %v568
    %v730 = vunpack.c.l.b16 %v569
    %v731 = vunpack.c.h.b16 %v569
    %v732 = vunpack.c.l.b16 %v570
    %v733 = vunpack.c.h.b16 %v570
    %v734 = vunpack.c.l.b16 %v571
    %v735 = vunpack.c.h.b16 %v571
    %v736 = vunpack.c.l.b16 %v572
    %v737 = vunpack.c.h.b16 %v572
    %v738 = vunpack.c.l.b16 %v573
    %v739 = vunpack.c.h.b16 %v573
    %v740 = vunpack.c.l.b16 %v574
    %v741 = vunpack.c.h.b16 %v574
    %v742 = vunpack.c.l.b16 %v575
    %v743 = vunpack.c.h.b16 %v575
    %v744 = vunpack.c.l.b16 %v576
    %v745 = vunpack.c.h.b16 %v576
    %v746 = vunpack.c.l.b16 %v577
    %v747 = vunpack.c.h.b16 %v577
    %v748 = vunpack.c.l.b16 %v578
    %v749 = vunpack.c.h.b16 %v578
    %v750 = vunpack.c.l.b16 %v579
    %v751 = vunpack.c.h.b16 %v579
    %v752 = vunpack.c.l.b16 %v580
    %v753 = vunpack.c.h.b16 %v580
    %v754 = vunpack.c.l.b16 %v581
    %v755 = vunpack.c.h.b16 %v581
    %v756 = vunpack.c.l.b16 %v582
    %v757 = vunpack.c.h.b16 %v582
    %v758 = vunpack.c.l.b16 %v583
    %v759 = vunpack.c.h.b16 %v583
    %v760 = vunpack.c.l.b16 %v584
    %v761 = vunpack.c.h.b16 %v584
    %v762 = vunpack.c.l.b16 %v585
    %v763 = vunpack.c.h.b16 %v585
    %v764 = vunpack.c.l.b16 %v586
    %v765 = vunpack.c.h.b16 %v586
    %v766 = vunpack.c.l.b16 %v587
    %v767 = vunpack.c.h.b16 %v587
    %v768 = vunpack.c.l.b16 %v588
    %v769 = vunpack.c.h.b16 %v588
    %v770 = vunpack.c.l.b16 %v589
    %v771 = vunpack.c.h.b16 %v589
    %v772 = vunpack.c.l.b16 %v590
    %v773 = vunpack.c.h.b16 %v590
    %v774 = vunpack.c.l.b16 %v591
    %v775 = vunpack.c.h.b16 %v591
    %v776 = vunpack.c.l.b16 %v592
    %v777 = vunpack.c.h.b16 %v592
    %v778 = vunpack.c.l.b16 %v593
    %v779 = vunpack.c.h.b16 %v593
    %v780 = vunpack.c.l.b16 %v594
    %v781 = vunpack.c.h.b16 %v594
    %v782 = vunpack.c.l.b16 %v595
    %v783 = vunpack.c.h.b16 %v595
    %v784 = vunpack.c.l.b16 %v596
    %v785 = vunpack.c.h.b16 %v596
    %v786 = vunpack.c.l.b16 %v597
    %v787 = vunpack.c.h.b16 %v597
    %v788 = vunpack.c.l.b16 %v598
    %v789 = vunpack.c.h.b16 %v598
    %v790 = vunpack.c.l.b16 %v599
    %v791 = vunpack.c.h.b16 %v599
    %v792 = vpack.c.b16 %v672, %v664
    %v793 = vpack.c.b16 %v673, %v665
    %v794 = vpack.c.b16 %v674, %v666
    %v795 = vpack.c.b16 %v675, %v667
    %v796 = vpack.c.b16 %v676, %v668
    %v797 = vpack.c.b16 %v677, %v669
    %v798 = vpack.c.b16 %v678, %v670
    %v799 = vpack.c.b16 %v679, %v671
    %v800 = vpack.c.b16 %v688, %v680
    %v801 = vpack.c.b16 %v689, %v681
    %v802 = vpack.c.b16 %v690, %v682
    %v803 = vpack.c.b16 %v691, %v683
    %v804 = vpack.c.b16 %v692, %v684
    %v805 = vpack.c.b16 %v693, %v685
    %v806 = vpack.c.b16 %v694, %v686
    %v807 = vpack.c.b16 %v695, %v687
    %v808 = vpack.c.b16 %v704, %v696
    %v809 = vpack.c.b16 %v705, %v697
    %v810 = vpack.c.b16 %v706, %v698
    %v811 = vpack.c.b16 %v707, %v699
    %v812 = vpack.c.b16 %v708, %v700
    %v813 = vpack.c.b16 %v709, %v701
    %v814 = vpack.c.b16 %v710, %v702
    %v815 = vpack.c.b16 %v711, %v703
    %v816 = vpack.c.b16 %v720, %v712
    %v817 = vpack.c.b16 %v721, %v713
    %v818 = vpack.c.b16 %v722, %v714
    %v819 = vpack.c.b16 %v723, %v715
    %v820 = vpack.c.b16 %v724, %v716
    %v821 = vpack.c.b16 %v725, %v717
    %v822 = vpack.c.b16 %v726, %v718
    %v823 = vpack.c.b16 %v727, %v719
    %v824 = vpack.c.b16 %v736, %v728
    %v825 = vpack.c.b16 %v737, %v729
    %v826 = vpack.c.b16 %v738, %v730
    %v827 = vpack.c.b16 %v739, %v731
    %v828 = vpack.c.b16 %v740, %v732
    %v829 = vpack.c.b16 %v741, %v733
    %v830 = vpack.c.b16 %v742, %v734
    %v831 = vpack.c.b16 %v743, %v735
    %v832 = vpack.c.b16 %v752, %v744
    %v833 = vpack.c.b16 %v753, %v745
    %v834 = vpack.c.b16 %v754, %v746
    %v835 = vpack.c.b16 %v755, %v747
    %v836 = vpack.c.b16 %v756, %v748
    %v837 = vpack.c.b16 %v757, %v749
    %v838 = vpack.c.b16 %v758, %v750
    %v839 = vpack.c.b16 %v759, %v751
    %v840 = vpack.c.b16 %v768, %v760
    %v841 = vpack.c.b16 %v769, %v761
    %v842 = vpack.c.b16 %v770, %v762
    %v843 = vpack.c.b16 %v771, %v763
    %v844 = vpack.c.b16 %v772, %v764
    %v845 = vpack.c.b16 %v773, %v765
    %v846 = vpack.c.b16 %v774, %v766
    %v847 = vpack.c.b16 %v775, %v767
    %v848 = vpack.c.b16 %v784, %v776
    %v849 = vpack.c.b16 %v785, %v777
    %v850 = vpack.c.b16 %v786, %v778
    %v851 = vpack.c.b16 %v787, %v779
    %v852 = vpack.c.b16 %v788, %v780
    %v853 = vpack.c.b16 %v789, %v781
    %v854 = vpack.c.b16 %v790, %v782
    %v855 = vpack.c.b16 %v791, %v783
    %920 = vmatpush.bf16.msra.mxu0 %v848
    %921 = vmatpush.bf16.msra.mxu0 %v840
    %922 = vmatpush.bf16.msra.mxu0 %v832
    %923 = vmatpush.bf16.msra.mxu0 %v824
    %924 = vmatpush.bf16.msra.mxu0 %v816
    %925 = vmatpush.bf16.msra.mxu0 %v808
    %926 = vmatpush.bf16.msra.mxu0 %v800
    %927 = vmatpush.bf16.msra.mxu0 %v792
    %928 = vmatmul.bf16.gmra.mxu0 %v532
    %v929 = vpop.f32.mrf.mxu0
    %v930 = vadd.f32 0.0, %v929
    %v931 = vpop.f32.mrf.mxu0
    %v932 = vadd.f32 0.0, %v931
    %933 = vmatmul.bf16.gmra.mxu0 %v533
    %v934 = vpop.f32.mrf.mxu0
    %v935 = vadd.f32 0.0, %v934
    %v936 = vpop.f32.mrf.mxu0
    %v937 = vadd.f32 0.0, %v936
    %938 = vmatmul.bf16.gmra.mxu0 %v534
    %v939 = vpop.f32.mrf.mxu0
    %v940 = vadd.f32 0.0, %v939
    %v941 = vpop.f32.mrf.mxu0
    %v942 = vadd.f32 0.0, %v941
    %943 = vmatmul.bf16.gmra.mxu0 %v535
    %v944 = vpop.f32.mrf.mxu0
    %v945 = vadd.f32 0.0, %v944
    %v946 = vpop.f32.mrf.mxu0
    %v947 = vadd.f32 0.0, %v946
    %948 = vdwg.mxu0
    %949 = vmatpush.bf16.msra.mxu0 %v849
    %950 = vmatpush.bf16.msra.mxu0 %v841
    %951 = vmatpush.bf16.msra.mxu0 %v833
    %952 = vmatpush.bf16.msra.mxu0 %v825
    %953 = vmatpush.bf16.msra.mxu0 %v817
    %954 = vmatpush.bf16.msra.mxu0 %v809
    %955 = vmatpush.bf16.msra.mxu0 %v801
    %956 = vmatpush.bf16.msra.mxu0 %v793
    %957 = vmatmul.bf16.gmra.mxu0 %v532
    %v958 = vpop.f32.mrf.mxu0
    %v959 = vadd.f32 0.0, %v958
    %v960 = vpop.f32.mrf.mxu0
    %v961 = vadd.f32 0.0, %v960
    %962 = vmatmul.bf16.gmra.mxu0 %v533
    %v963 = vpop.f32.mrf.mxu0
    %v964 = vadd.f32 0.0, %v963
    %v965 = vpop.f32.mrf.mxu0
    %v966 = vadd.f32 0.0, %v965
    %967 = vmatmul.bf16.gmra.mxu0 %v534
    %v968 = vpop.f32.mrf.mxu0
    %v969 = vadd.f32 0.0, %v968
    %v970 = vpop.f32.mrf.mxu0
    %v971 = vadd.f32 0.0, %v970
    %972 = vmatmul.bf16.gmra.mxu0 %v535
    %v973 = vpop.f32.mrf.mxu0
    %v974 = vadd.f32 0.0, %v973
    %v975 = vpop.f32.mrf.mxu0
    %v976 = vadd.f32 0.0, %v975
    %977 = vdwg.mxu0
    %978 = vmatpush.bf16.msra.mxu0 %v850
    %979 = vmatpush.bf16.msra.mxu0 %v842
    %980 = vmatpush.bf16.msra.mxu0 %v834
    %981 = vmatpush.bf16.msra.mxu0 %v826
    %982 = vmatpush.bf16.msra.mxu0 %v818
    %983 = vmatpush.bf16.msra.mxu0 %v810
    %984 = vmatpush.bf16.msra.mxu0 %v802
    %985 = vmatpush.bf16.msra.mxu0 %v794
    %986 = vmatmul.bf16.gmra.mxu0 %v532
    %v987 = vpop.f32.mrf.mxu0
    %v988 = vadd.f32 0.0, %v987
    %v989 = vpop.f32.mrf.mxu0
    %v990 = vadd.f32 0.0, %v989
    %991 = vmatmul.bf16.gmra.mxu0 %v533
    %v992 = vpop.f32.mrf.mxu0
    %v993 = vadd.f32 0.0, %v992
    %v994 = vpop.f32.mrf.mxu0
    %v995 = vadd.f32 0.0, %v994
    %996 = vmatmul.bf16.gmra.mxu0 %v534
    %v997 = vpop.f32.mrf.mxu0
    %v998 = vadd.f32 0.0, %v997
    %v999 = vpop.f32.mrf.mxu0
    %v1000 = vadd.f32 0.0, %v999
    %1001 = vmatmul.bf16.gmra.mxu0 %v535
    %v1002 = vpop.f32.mrf.mxu0
    %v1003 = vadd.f32 0.0, %v1002
    %v1004 = vpop.f32.mrf.mxu0
    %v1005 = vadd.f32 0.0, %v1004
    %1006 = vdwg.mxu0
    %1007 = vmatpush.bf16.msra.mxu0 %v851
    %1008 = vmatpush.bf16.msra.mxu0 %v843
    %1009 = vmatpush.bf16.msra.mxu0 %v835
    %1010 = vmatpush.bf16.msra.mxu0 %v827
    %1011 = vmatpush.bf16.msra.mxu0 %v819
    %1012 = vmatpush.bf16.msra.mxu0 %v811
    %1013 = vmatpush.bf16.msra.mxu0 %v803
    %1014 = vmatpush.bf16.msra.mxu0 %v795
    %1015 = vmatmul.bf16.gmra.mxu0 %v532
    %v1016 = vpop.f32.mrf.mxu0
    %v1017 = vadd.f32 0.0, %v1016
    %v1018 = vpop.f32.mrf.mxu0
    %v1019 = vadd.f32 0.0, %v1018
    %1020 = vmatmul.bf16.gmra.mxu0 %v533
    %v1021 = vpop.f32.mrf.mxu0
    %v1022 = vadd.f32 0.0, %v1021
    %v1023 = vpop.f32.mrf.mxu0
    %v1024 = vadd.f32 0.0, %v1023
    %1025 = vmatmul.bf16.gmra.mxu0 %v534
    %v1026 = vpop.f32.mrf.mxu0
    %v1027 = vadd.f32 0.0, %v1026
    %v1028 = vpop.f32.mrf.mxu0
    %v1029 = vadd.f32 0.0, %v1028
    %1030 = vmatmul.bf16.gmra.mxu0 %v535
    %v1031 = vpop.f32.mrf.mxu0
    %v1032 = vadd.f32 0.0, %v1031
    %v1033 = vpop.f32.mrf.mxu0
    %v1034 = vadd.f32 0.0, %v1033
    %1035 = vdwg.mxu0
    %1036 = vmatpush.bf16.msra.mxu0 %v852
    %1037 = vmatpush.bf16.msra.mxu0 %v844
    %1038 = vmatpush.bf16.msra.mxu0 %v836
    %1039 = vmatpush.bf16.msra.mxu0 %v828
    %1040 = vmatpush.bf16.msra.mxu0 %v820
    %1041 = vmatpush.bf16.msra.mxu0 %v812
    %1042 = vmatpush.bf16.msra.mxu0 %v804
    %1043 = vmatpush.bf16.msra.mxu0 %v796
    %1044 = vmatmul.bf16.gmra.mxu0 %v532
    %v1045 = vpop.f32.mrf.mxu0
    %v1046 = vadd.f32 0.0, %v1045
    %v1047 = vpop.f32.mrf.mxu0
    %v1048 = vadd.f32 0.0, %v1047
    %1049 = vmatmul.bf16.gmra.mxu0 %v533
    %v1050 = vpop.f32.mrf.mxu0
    %v1051 = vadd.f32 0.0, %v1050
    %v1052 = vpop.f32.mrf.mxu0
    %v1053 = vadd.f32 0.0, %v1052
    %1054 = vmatmul.bf16.gmra.mxu0 %v534
    %v1055 = vpop.f32.mrf.mxu0
    %v1056 = vadd.f32 0.0, %v1055
    %v1057 = vpop.f32.mrf.mxu0
    %v1058 = vadd.f32 0.0, %v1057
    %1059 = vmatmul.bf16.gmra.mxu0 %v535
    %v1060 = vpop.f32.mrf.mxu0
    %v1061 = vadd.f32 0.0, %v1060
    %v1062 = vpop.f32.mrf.mxu0
    %v1063 = vadd.f32 0.0, %v1062
    %1064 = vdwg.mxu0
    %1065 = vmatpush.bf16.msra.mxu0 %v853
    %1066 = vmatpush.bf16.msra.mxu0 %v845
    %1067 = vmatpush.bf16.msra.mxu0 %v837
    %1068 = vmatpush.bf16.msra.mxu0 %v829
    %1069 = vmatpush.bf16.msra.mxu0 %v821
    %1070 = vmatpush.bf16.msra.mxu0 %v813
    %1071 = vmatpush.bf16.msra.mxu0 %v805
    %1072 = vmatpush.bf16.msra.mxu0 %v797
    %1073 = vmatmul.bf16.gmra.mxu0 %v532
    %v1074 = vpop.f32.mrf.mxu0
    %v1075 = vadd.f32 0.0, %v1074
    %v1076 = vpop.f32.mrf.mxu0
    %v1077 = vadd.f32 0.0, %v1076
    %1078 = vmatmul.bf16.gmra.mxu0 %v533
    %v1079 = vpop.f32.mrf.mxu0
    %v1080 = vadd.f32 0.0, %v1079
    %v1081 = vpop.f32.mrf.mxu0
    %v1082 = vadd.f32 0.0, %v1081
    %1083 = vmatmul.bf16.gmra.mxu0 %v534
    %v1084 = vpop.f32.mrf.mxu0
    %v1085 = vadd.f32 0.0, %v1084
    %v1086 = vpop.f32.mrf.mxu0
    %v1087 = vadd.f32 0.0, %v1086
    %1088 = vmatmul.bf16.gmra.mxu0 %v535
    %v1089 = vpop.f32.mrf.mxu0
    %v1090 = vadd.f32 0.0, %v1089
    %v1091 = vpop.f32.mrf.mxu0
    %v1092 = vadd.f32 0.0, %v1091
    %1093 = vdwg.mxu0
    %1094 = vmatpush.bf16.msra.mxu0 %v854
    %1095 = vmatpush.bf16.msra.mxu0 %v846
    %1096 = vmatpush.bf16.msra.mxu0 %v838
    %1097 = vmatpush.bf16.msra.mxu0 %v830
    %1098 = vmatpush.bf16.msra.mxu0 %v822
    %1099 = vmatpush.bf16.msra.mxu0 %v814
    %1100 = vmatpush.bf16.msra.mxu0 %v806
    %1101 = vmatpush.bf16.msra.mxu0 %v798
    %1102 = vmatmul.bf16.gmra.mxu0 %v532
    %v1103 = vpop.f32.mrf.mxu0
    %v1104 = vadd.f32 0.0, %v1103
    %v1105 = vpop.f32.mrf.mxu0
    %v1106 = vadd.f32 0.0, %v1105
    %1107 = vmatmul.bf16.gmra.mxu0 %v533
    %v1108 = vpop.f32.mrf.mxu0
    %v1109 = vadd.f32 0.0, %v1108
    %v1110 = vpop.f32.mrf.mxu0
    %v1111 = vadd.f32 0.0, %v1110
    %1112 = vmatmul.bf16.gmra.mxu0 %v534
    %v1113 = vpop.f32.mrf.mxu0
    %v1114 = vadd.f32 0.0, %v1113
    %v1115 = vpop.f32.mrf.mxu0
    %v1116 = vadd.f32 0.0, %v1115
    %1117 = vmatmul.bf16.gmra.mxu0 %v535
    %v1118 = vpop.f32.mrf.mxu0
    %v1119 = vadd.f32 0.0, %v1118
    %v1120 = vpop.f32.mrf.mxu0
    %v1121 = vadd.f32 0.0, %v1120
    %1122 = vdwg.mxu0
    %1123 = vmatpush.bf16.msra.mxu0 %v855
    %1124 = vmatpush.bf16.msra.mxu0 %v847
    %1125 = vmatpush.bf16.msra.mxu0 %v839
    %1126 = vmatpush.bf16.msra.mxu0 %v831
    %1127 = vmatpush.bf16.msra.mxu0 %v823
    %1128 = vmatpush.bf16.msra.mxu0 %v815
    %1129 = vmatpush.bf16.msra.mxu0 %v807
    %1130 = vmatpush.bf16.msra.mxu0 %v799
    %1131 = vmatmul.bf16.gmra.mxu0 %v532
    %v1132 = vpop.f32.mrf.mxu0
    %v1133 = vadd.f32 0.0, %v1132
    %v1134 = vpop.f32.mrf.mxu0
    %v1135 = vadd.f32 0.0, %v1134
    %1136 = vmatmul.bf16.gmra.mxu0 %v533
    %v1137 = vpop.f32.mrf.mxu0
    %v1138 = vadd.f32 0.0, %v1137
    %v1139 = vpop.f32.mrf.mxu0
    %v1140 = vadd.f32 0.0, %v1139
    %1141 = vmatmul.bf16.gmra.mxu0 %v534
    %v1142 = vpop.f32.mrf.mxu0
    %v1143 = vadd.f32 0.0, %v1142
    %v1144 = vpop.f32.mrf.mxu0
    %v1145 = vadd.f32 0.0, %v1144
    %1146 = vmatmul.bf16.gmra.mxu0 %v535
    %v1147 = vpop.f32.mrf.mxu0
    %v1148 = vadd.f32 0.0, %v1147
    %v1149 = vpop.f32.mrf.mxu0
    %v1150 = vadd.f32 0.0, %v1149
    %1151 = vdwg.mxu0
    %v1152 = vld [vmem:[#allocation14] sm:$0xff]
    %v1154 = vperm.slane %v1152, 0
    %v1155 = vperm.slane %v1152, 1
    %v1156 = vperm.slane %v1152, 2
    %v1157 = vperm.slane %v1152, 3
    %v1158 = vperm.slane %v1152, 4
    %v1159 = vperm.slane %v1152, 5
    %v1160 = vperm.slane %v1152, 6
    %v1161 = vperm.slane %v1152, 7
    %v1170 = vmul.f32 %v930, %v1154
    %v1171 = vmul.f32 %v959, %v1155
    %v1172 = vmul.f32 %v988, %v1156
    %v1173 = vmul.f32 %v1017, %v1157
    %v1174 = vmul.f32 %v1046, %v1158
    %v1175 = vmul.f32 %v1075, %v1159
    %v1176 = vmul.f32 %v1104, %v1160
    %v1177 = vmul.f32 %v1133, %v1161
    %v1178 = vmul.f32 %v932, %v1154
    %v1179 = vmul.f32 %v961, %v1155
    %v1180 = vmul.f32 %v990, %v1156
    %v1181 = vmul.f32 %v1019, %v1157
    %v1182 = vmul.f32 %v1048, %v1158
    %v1183 = vmul.f32 %v1077, %v1159
    %v1184 = vmul.f32 %v1106, %v1160
    %v1185 = vmul.f32 %v1135, %v1161
    %v1186 = vmul.f32 %v935, %v1154
    %v1187 = vmul.f32 %v964, %v1155
    %v1188 = vmul.f32 %v993, %v1156
    %v1189 = vmul.f32 %v1022, %v1157
    %v1190 = vmul.f32 %v1051, %v1158
    %v1191 = vmul.f32 %v1080, %v1159
    %v1192 = vmul.f32 %v1109, %v1160
    %v1193 = vmul.f32 %v1138, %v1161
    %v1194 = vmul.f32 %v937, %v1154
    %v1195 = vmul.f32 %v966, %v1155
    %v1196 = vmul.f32 %v995, %v1156
    %v1197 = vmul.f32 %v1024, %v1157
    %v1198 = vmul.f32 %v1053, %v1158
    %v1199 = vmul.f32 %v1082, %v1159
    %v1200 = vmul.f32 %v1111, %v1160
    %v1201 = vmul.f32 %v1140, %v1161
    %v1202 = vmul.f32 %v940, %v1154
    %v1203 = vmul.f32 %v969, %v1155
    %v1204 = vmul.f32 %v998, %v1156
    %v1205 = vmul.f32 %v1027, %v1157
    %v1206 = vmul.f32 %v1056, %v1158
    %v1207 = vmul.f32 %v1085, %v1159
    %v1208 = vmul.f32 %v1114, %v1160
    %v1209 = vmul.f32 %v1143, %v1161
    %v1210 = vmul.f32 %v942, %v1154
    %v1211 = vmul.f32 %v971, %v1155
    %v1212 = vmul.f32 %v1000, %v1156
    %v1213 = vmul.f32 %v1029, %v1157
    %v1214 = vmul.f32 %v1058, %v1158
    %v1215 = vmul.f32 %v1087, %v1159
    %v1216 = vmul.f32 %v1116, %v1160
    %v1217 = vmul.f32 %v1145, %v1161
    %v1218 = vmul.f32 %v945, %v1154
    %v1219 = vmul.f32 %v974, %v1155
    %v1220 = vmul.f32 %v1003, %v1156
    %v1221 = vmul.f32 %v1032, %v1157
    %v1222 = vmul.f32 %v1061, %v1158
    %v1223 = vmul.f32 %v1090, %v1159
    %v1224 = vmul.f32 %v1119, %v1160
    %v1225 = vmul.f32 %v1148, %v1161
    %v1226 = vmul.f32 %v947, %v1154
    %v1227 = vmul.f32 %v976, %v1155
    %v1228 = vmul.f32 %v1005, %v1156
    %v1229 = vmul.f32 %v1034, %v1157
    %v1230 = vmul.f32 %v1063, %v1158
    %v1231 = vmul.f32 %v1092, %v1159
    %v1232 = vmul.f32 %v1121, %v1160
    %v1233 = vmul.f32 %v1150, %v1161
    %v1234 = vld [vmem:[#allocation16] sm:$0xff]
    %v1236 = vperm.slane %v1234, 0
    %v1237 = vperm.slane %v1234, 1
    %v1238 = vperm.slane %v1234, 2
    %v1239 = vperm.slane %v1234, 3
    %v1240 = vperm.slane %v1234, 4
    %v1241 = vperm.slane %v1234, 5
    %v1242 = vperm.slane %v1234, 6
    %v1243 = vperm.slane %v1234, 7
    %v1252 = vadd.f32 %v1170, %v1236
    %v1253 = vadd.f32 %v1171, %v1237
    %v1254 = vadd.f32 %v1172, %v1238
    %v1255 = vadd.f32 %v1173, %v1239
    %v1256 = vadd.f32 %v1174, %v1240
    %v1257 = vadd.f32 %v1175, %v1241
    %v1258 = vadd.f32 %v1176, %v1242
    %v1259 = vadd.f32 %v1177, %v1243
    %v1260 = vadd.f32 %v1178, %v1236
    %v1261 = vadd.f32 %v1179, %v1237
    %v1262 = vadd.f32 %v1180, %v1238
    %v1263 = vadd.f32 %v1181, %v1239
    %v1264 = vadd.f32 %v1182, %v1240
    %v1265 = vadd.f32 %v1183, %v1241
    %v1266 = vadd.f32 %v1184, %v1242
    %v1267 = vadd.f32 %v1185, %v1243
    %v1268 = vadd.f32 %v1186, %v1236
    %v1269 = vadd.f32 %v1187, %v1237
    %v1270 = vadd.f32 %v1188, %v1238
    %v1271 = vadd.f32 %v1189, %v1239
    %v1272 = vadd.f32 %v1190, %v1240
    %v1273 = vadd.f32 %v1191, %v1241
    %v1274 = vadd.f32 %v1192, %v1242
    %v1275 = vadd.f32 %v1193, %v1243
    %v1276 = vadd.f32 %v1194, %v1236
    %v1277 = vadd.f32 %v1195, %v1237
    %v1278 = vadd.f32 %v1196, %v1238
    %v1279 = vadd.f32 %v1197, %v1239
    %v1280 = vadd.f32 %v1198, %v1240
    %v1281 = vadd.f32 %v1199, %v1241
    %v1282 = vadd.f32 %v1200, %v1242
    %v1283 = vadd.f32 %v1201, %v1243
    %v1284 = vadd.f32 %v1202, %v1236
    %v1285 = vadd.f32 %v1203, %v1237
    %v1286 = vadd.f32 %v1204, %v1238
    %v1287 = vadd.f32 %v1205, %v1239
    %v1288 = vadd.f32 %v1206, %v1240
    %v1289 = vadd.f32 %v1207, %v1241
    %v1290 = vadd.f32 %v1208, %v1242
    %v1291 = vadd.f32 %v1209, %v1243
    %v1292 = vadd.f32 %v1210, %v1236
    %v1293 = vadd.f32 %v1211, %v1237
    %v1294 = vadd.f32 %v1212, %v1238
    %v1295 = vadd.f32 %v1213, %v1239
    %v1296 = vadd.f32 %v1214, %v1240
    %v1297 = vadd.f32 %v1215, %v1241
    %v1298 = vadd.f32 %v1216, %v1242
    %v1299 = vadd.f32 %v1217, %v1243
    %v1300 = vadd.f32 %v1218, %v1236
    %v1301 = vadd.f32 %v1219, %v1237
    %v1302 = vadd.f32 %v1220, %v1238
    %v1303 = vadd.f32 %v1221, %v1239
    %v1304 = vadd.f32 %v1222, %v1240
    %v1305 = vadd.f32 %v1223, %v1241
    %v1306 = vadd.f32 %v1224, %v1242
    %v1307 = vadd.f32 %v1225, %v1243
    %v1308 = vadd.f32 %v1226, %v1236
    %v1309 = vadd.f32 %v1227, %v1237
    %v1310 = vadd.f32 %v1228, %v1238
    %v1311 = vadd.f32 %v1229, %v1239
    %v1312 = vadd.f32 %v1230, %v1240
    %v1313 = vadd.f32 %v1231, %v1241
    %v1314 = vadd.f32 %v1232, %v1242
    %v1315 = vadd.f32 %v1233, %v1243
    %v1316 = vmax.f32 %v1252, %v1260
    %v1317 = vrot.slane %v1316, 4
    %v1318 = vmax.f32 %v1316, %v1317
    %v1319 = vrot.slane %v1318, 2
    %v1320 = vmax.f32 %v1318, %v1319
    %v1321 = vrot.slane %v1320, 1
    %v1322 = vmax.f32 %v1320, %v1321
    %v1323 = vmax.f32 %v1253, %v1261
    %v1324 = vrot.slane %v1323, 4
    %v1325 = vmax.f32 %v1323, %v1324
    %v1326 = vrot.slane %v1325, 2
    %v1327 = vmax.f32 %v1325, %v1326
    %v1328 = vrot.slane %v1327, 1
    %v1329 = vmax.f32 %v1327, %v1328
    %v1330 = vmax.f32 %v1254, %v1262
    %v1331 = vrot.slane %v1330, 4
    %v1332 = vmax.f32 %v1330, %v1331
    %v1333 = vrot.slane %v1332, 2
    %v1334 = vmax.f32 %v1332, %v1333
    %v1335 = vrot.slane %v1334, 1
    %v1336 = vmax.f32 %v1334, %v1335
    %v1337 = vmax.f32 %v1255, %v1263
    %v1338 = vrot.slane %v1337, 4
    %v1339 = vmax.f32 %v1337, %v1338
    %v1340 = vrot.slane %v1339, 2
    %v1341 = vmax.f32 %v1339, %v1340
    %v1342 = vrot.slane %v1341, 1
    %v1343 = vmax.f32 %v1341, %v1342
    %v1344 = vmax.f32 %v1256, %v1264
    %v1345 = vrot.slane %v1344, 4
    %v1346 = vmax.f32 %v1344, %v1345
    %v1347 = vrot.slane %v1346, 2
    %v1348 = vmax.f32 %v1346, %v1347
    %v1349 = vrot.slane %v1348, 1
    %v1350 = vmax.f32 %v1348, %v1349
    %v1351 = vmax.f32 %v1257, %v1265
    %v1352 = vrot.slane %v1351, 4
    %v1353 = vmax.f32 %v1351, %v1352
    %v1354 = vrot.slane %v1353, 2
    %v1355 = vmax.f32 %v1353, %v1354
    %v1356 = vrot.slane %v1355, 1
    %v1357 = vmax.f32 %v1355, %v1356
    %v1358 = vmax.f32 %v1258, %v1266
    %v1359 = vrot.slane %v1358, 4
    %v1360 = vmax.f32 %v1358, %v1359
    %v1361 = vrot.slane %v1360, 2
    %v1362 = vmax.f32 %v1360, %v1361
    %v1363 = vrot.slane %v1362, 1
    %v1364 = vmax.f32 %v1362, %v1363
    %v1365 = vmax.f32 %v1259, %v1267
    %v1366 = vrot.slane %v1365, 4
    %v1367 = vmax.f32 %v1365, %v1366
    %v1368 = vrot.slane %v1367, 2
    %v1369 = vmax.f32 %v1367, %v1368
    %v1370 = vrot.slane %v1369, 1
    %v1371 = vmax.f32 %v1369, %v1370
    %v1372 = vmax.f32 %v1268, %v1276
    %v1373 = vrot.slane %v1372, 4
    %v1374 = vmax.f32 %v1372, %v1373
    %v1375 = vrot.slane %v1374, 2
    %v1376 = vmax.f32 %v1374, %v1375
    %v1377 = vrot.slane %v1376, 1
    %v1378 = vmax.f32 %v1376, %v1377
    %v1379 = vmax.f32 %v1269, %v1277
    %v1380 = vrot.slane %v1379, 4
    %v1381 = vmax.f32 %v1379, %v1380
    %v1382 = vrot.slane %v1381, 2
    %v1383 = vmax.f32 %v1381, %v1382
    %v1384 = vrot.slane %v1383, 1
    %v1385 = vmax.f32 %v1383, %v1384
    %v1386 = vmax.f32 %v1270, %v1278
    %v1387 = vrot.slane %v1386, 4
    %v1388 = vmax.f32 %v1386, %v1387
    %v1389 = vrot.slane %v1388, 2
    %v1390 = vmax.f32 %v1388, %v1389
    %v1391 = vrot.slane %v1390, 1
    %v1392 = vmax.f32 %v1390, %v1391
    %v1393 = vmax.f32 %v1271, %v1279
    %v1394 = vrot.slane %v1393, 4
    %v1395 = vmax.f32 %v1393, %v1394
    %v1396 = vrot.slane %v1395, 2
    %v1397 = vmax.f32 %v1395, %v1396
    %v1398 = vrot.slane %v1397, 1
    %v1399 = vmax.f32 %v1397, %v1398
    %v1400 = vmax.f32 %v1272, %v1280
    %v1401 = vrot.slane %v1400, 4
    %v1402 = vmax.f32 %v1400, %v1401
    %v1403 = vrot.slane %v1402, 2
    %v1404 = vmax.f32 %v1402, %v1403
    %v1405 = vrot.slane %v1404, 1
    %v1406 = vmax.f32 %v1404, %v1405
    %v1407 = vmax.f32 %v1273, %v1281
    %v1408 = vrot.slane %v1407, 4
    %v1409 = vmax.f32 %v1407, %v1408
    %v1410 = vrot.slane %v1409, 2
    %v1411 = vmax.f32 %v1409, %v1410
    %v1412 = vrot.slane %v1411, 1
    %v1413 = vmax.f32 %v1411, %v1412
    %v1414 = vmax.f32 %v1274, %v1282
    %v1415 = vrot.slane %v1414, 4
    %v1416 = vmax.f32 %v1414, %v1415
    %v1417 = vrot.slane %v1416, 2
    %v1418 = vmax.f32 %v1416, %v1417
    %v1419 = vrot.slane %v1418, 1
    %v1420 = vmax.f32 %v1418, %v1419
    %v1421 = vmax.f32 %v1275, %v1283
    %v1422 = vrot.slane %v1421, 4
    %v1423 = vmax.f32 %v1421, %v1422
    %v1424 = vrot.slane %v1423, 2
    %v1425 = vmax.f32 %v1423, %v1424
    %v1426 = vrot.slane %v1425, 1
    %v1427 = vmax.f32 %v1425, %v1426
    %v1428 = vmax.f32 %v1284, %v1292
    %v1429 = vrot.slane %v1428, 4
    %v1430 = vmax.f32 %v1428, %v1429
    %v1431 = vrot.slane %v1430, 2
    %v1432 = vmax.f32 %v1430, %v1431
    %v1433 = vrot.slane %v1432, 1
    %v1434 = vmax.f32 %v1432, %v1433
    %v1435 = vmax.f32 %v1285, %v1293
    %v1436 = vrot.slane %v1435, 4
    %v1437 = vmax.f32 %v1435, %v1436
    %v1438 = vrot.slane %v1437, 2
    %v1439 = vmax.f32 %v1437, %v1438
    %v1440 = vrot.slane %v1439, 1
    %v1441 = vmax.f32 %v1439, %v1440
    %v1442 = vmax.f32 %v1286, %v1294
    %v1443 = vrot.slane %v1442, 4
    %v1444 = vmax.f32 %v1442, %v1443
    %v1445 = vrot.slane %v1444, 2
    %v1446 = vmax.f32 %v1444, %v1445
    %v1447 = vrot.slane %v1446, 1
    %v1448 = vmax.f32 %v1446, %v1447
    %v1449 = vmax.f32 %v1287, %v1295
    %v1450 = vrot.slane %v1449, 4
    %v1451 = vmax.f32 %v1449, %v1450
    %v1452 = vrot.slane %v1451, 2
    %v1453 = vmax.f32 %v1451, %v1452
    %v1454 = vrot.slane %v1453, 1
    %v1455 = vmax.f32 %v1453, %v1454
    %v1456 = vmax.f32 %v1288, %v1296
    %v1457 = vrot.slane %v1456, 4
    %v1458 = vmax.f32 %v1456, %v1457
    %v1459 = vrot.slane %v1458, 2
    %v1460 = vmax.f32 %v1458, %v1459
    %v1461 = vrot.slane %v1460, 1
    %v1462 = vmax.f32 %v1460, %v1461
    %v1463 = vmax.f32 %v1289, %v1297
    %v1464 = vrot.slane %v1463, 4
    %v1465 = vmax.f32 %v1463, %v1464
    %v1466 = vrot.slane %v1465, 2
    %v1467 = vmax.f32 %v1465, %v1466
    %v1468 = vrot.slane %v1467, 1
    %v1469 = vmax.f32 %v1467, %v1468
    %v1470 = vmax.f32 %v1290, %v1298
    %v1471 = vrot.slane %v1470, 4
    %v1472 = vmax.f32 %v1470, %v1471
    %v1473 = vrot.slane %v1472, 2
    %v1474 = vmax.f32 %v1472, %v1473
    %v1475 = vrot.slane %v1474, 1
    %v1476 = vmax.f32 %v1474, %v1475
    %v1477 = vmax.f32 %v1291, %v1299
    %v1478 = vrot.slane %v1477, 4
    %v1479 = vmax.f32 %v1477, %v1478
    %v1480 = vrot.slane %v1479, 2
    %v1481 = vmax.f32 %v1479, %v1480
    %v1482 = vrot.slane %v1481, 1
    %v1483 = vmax.f32 %v1481, %v1482
    %v1484 = vmax.f32 %v1300, %v1308
    %v1485 = vrot.slane %v1484, 4
    %v1486 = vmax.f32 %v1484, %v1485
    %v1487 = vrot.slane %v1486, 2
    %v1488 = vmax.f32 %v1486, %v1487
    %v1489 = vrot.slane %v1488, 1
    %v1490 = vmax.f32 %v1488, %v1489
    %v1491 = vmax.f32 %v1301, %v1309
    %v1492 = vrot.slane %v1491, 4
    %v1493 = vmax.f32 %v1491, %v1492
    %v1494 = vrot.slane %v1493, 2
    %v1495 = vmax.f32 %v1493, %v1494
    %v1496 = vrot.slane %v1495, 1
    %v1497 = vmax.f32 %v1495, %v1496
    %v1498 = vmax.f32 %v1302, %v1310
    %v1499 = vrot.slane %v1498, 4
    %v1500 = vmax.f32 %v1498, %v1499
    %v1501 = vrot.slane %v1500, 2
    %v1502 = vmax.f32 %v1500, %v1501
    %v1503 = vrot.slane %v1502, 1
    %v1504 = vmax.f32 %v1502, %v1503
    %v1505 = vmax.f32 %v1303, %v1311
    %v1506 = vrot.slane %v1505, 4
    %v1507 = vmax.f32 %v1505, %v1506
    %v1508 = vrot.slane %v1507, 2
    %v1509 = vmax.f32 %v1507, %v1508
    %v1510 = vrot.slane %v1509, 1
    %v1511 = vmax.f32 %v1509, %v1510
    %v1512 = vmax.f32 %v1304, %v1312
    %v1513 = vrot.slane %v1512, 4
    %v1514 = vmax.f32 %v1512, %v1513
    %v1515 = vrot.slane %v1514, 2
    %v1516 = vmax.f32 %v1514, %v1515
    %v1517 = vrot.slane %v1516, 1
    %v1518 = vmax.f32 %v1516, %v1517
    %v1519 = vmax.f32 %v1305, %v1313
    %v1520 = vrot.slane %v1519, 4
    %v1521 = vmax.f32 %v1519, %v1520
    %v1522 = vrot.slane %v1521, 2
    %v1523 = vmax.f32 %v1521, %v1522
    %v1524 = vrot.slane %v1523, 1
    %v1525 = vmax.f32 %v1523, %v1524
    %v1526 = vmax.f32 %v1306, %v1314
    %v1527 = vrot.slane %v1526, 4
    %v1528 = vmax.f32 %v1526, %v1527
    %v1529 = vrot.slane %v1528, 2
    %v1530 = vmax.f32 %v1528, %v1529
    %v1531 = vrot.slane %v1530, 1
    %v1532 = vmax.f32 %v1530, %v1531
    %v1533 = vmax.f32 %v1307, %v1315
    %v1534 = vrot.slane %v1533, 4
    %v1535 = vmax.f32 %v1533, %v1534
    %v1536 = vrot.slane %v1535, 2
    %v1537 = vmax.f32 %v1535, %v1536
    %v1538 = vrot.slane %v1537, 1
    %v1539 = vmax.f32 %v1537, %v1538
    %vm1540 = vcmask 1040384
    %v1541 = vsel %vm1540, %v1322, %v1378
    %v1542 = vsel %vm1540, %v1329, %v1385
    %v1543 = vsel %vm1540, %v1336, %v1392
    %v1544 = vsel %vm1540, %v1343, %v1399
    %v1545 = vsel %vm1540, %v1350, %v1406
    %v1546 = vsel %vm1540, %v1357, %v1413
    %v1547 = vsel %vm1540, %v1364, %v1420
    %v1548 = vsel %vm1540, %v1371, %v1427
    %vm1549 = vcmask 1041408
    %v1550 = vsel %vm1549, %v1541, %v1434
    %v1551 = vsel %vm1549, %v1542, %v1441
    %v1552 = vsel %vm1549, %v1543, %v1448
    %v1553 = vsel %vm1549, %v1544, %v1455
    %v1554 = vsel %vm1549, %v1545, %v1462
    %v1555 = vsel %vm1549, %v1546, %v1469
    %v1556 = vsel %vm1549, %v1547, %v1476
    %v1557 = vsel %vm1549, %v1548, %v1483
    %vm1558 = vcmask 1042432
    %v1559 = vsel %vm1558, %v1550, %v1490
    %v1560 = vsel %vm1558, %v1551, %v1497
    %v1561 = vsel %vm1558, %v1552, %v1504
    %v1562 = vsel %vm1558, %v1553, %v1511
    %v1563 = vsel %vm1558, %v1554, %v1518
    %v1564 = vsel %vm1558, %v1555, %v1525
    %v1565 = vsel %vm1558, %v1556, %v1532
    %v1566 = vsel %vm1558, %v1557, %v1539
    %v1567 = vpack.c.bf16 %v1559, %v1559
    %v1568 = vpack.c.bf16 %v1560, %v1560
    %v1569 = vpack.c.bf16 %v1561, %v1561
    %v1570 = vpack.c.bf16 %v1562, %v1562
    %v1571 = vpack.c.bf16 %v1563, %v1563
    %v1572 = vpack.c.bf16 %v1564, %v1564
    %v1573 = vpack.c.bf16 %v1565, %v1565
    %v1574 = vpack.c.bf16 %v1566, %v1566
    %v1575 = vld [vmem:[#allocation17] sm:$0xff]
    %v1576 = vld [vmem:[#allocation17 + $0x8] sm:$0xff]
    %v1577 = vld [vmem:[#allocation17 + $0x10] sm:$0xff]
    %v1578 = vld [vmem:[#allocation17 + $0x18] sm:$0xff]
    %v1579 = vld [vmem:[#allocation17 + $0x20] sm:$0xff]
    %v1580 = vld [vmem:[#allocation17 + $0x28] sm:$0xff]
    %v1581 = vld [vmem:[#allocation17 + $0x30] sm:$0xff]
    %v1582 = vld [vmem:[#allocation17 + $0x38] sm:$0xff]
    %v1583 = vld [vmem:[#allocation17 + $0x40] sm:$0xff]
    %v1584 = vld [vmem:[#allocation17 + $0x48] sm:$0xff]
    %v1585 = vld [vmem:[#allocation17 + $0x50] sm:$0xff]
    %v1586 = vld [vmem:[#allocation17 + $0x58] sm:$0xff]
    %v1587 = vld [vmem:[#allocation17 + $0x60] sm:$0xff]
    %v1588 = vld [vmem:[#allocation17 + $0x68] sm:$0xff]
    %v1589 = vld [vmem:[#allocation17 + $0x70] sm:$0xff]
    %v1590 = vld [vmem:[#allocation17 + $0x78] sm:$0xff]
    %v1591 = vld [vmem:[#allocation17 + $0x80] sm:$0xff]
    %v1592 = vld [vmem:[#allocation17 + $0x88] sm:$0xff]
    %v1593 = vld [vmem:[#allocation17 + $0x90] sm:$0xff]
    %v1594 = vld [vmem:[#allocation17 + $0x98] sm:$0xff]
    %v1595 = vld [vmem:[#allocation17 + $0xa0] sm:$0xff]
    %v1596 = vld [vmem:[#allocation17 + $0xa8] sm:$0xff]
    %v1597 = vld [vmem:[#allocation17 + $0xb0] sm:$0xff]
    %v1598 = vld [vmem:[#allocation17 + $0xb8] sm:$0xff]
    %v1599 = vld [vmem:[#allocation17 + $0xc0] sm:$0xff]
    %v1600 = vld [vmem:[#allocation17 + $0xc8] sm:$0xff]
    %v1601 = vld [vmem:[#allocation17 + $0xd0] sm:$0xff]
    %v1602 = vld [vmem:[#allocation17 + $0xd8] sm:$0xff]
    %v1603 = vld [vmem:[#allocation17 + $0xe0] sm:$0xff]
    %v1604 = vld [vmem:[#allocation17 + $0xe8] sm:$0xff]
    %v1605 = vld [vmem:[#allocation17 + $0xf0] sm:$0xff]
    %v1606 = vld [vmem:[#allocation17 + $0xf8] sm:$0xff]
    %v1607 = vld [vmem:[#allocation17 + $0x100] sm:$0xff]
    %v1608 = vld [vmem:[#allocation17 + $0x108] sm:$0xff]
    %v1609 = vld [vmem:[#allocation17 + $0x110] sm:$0xff]
    %v1610 = vld [vmem:[#allocation17 + $0x118] sm:$0xff]
    %v1611 = vld [vmem:[#allocation17 + $0x120] sm:$0xff]
    %v1612 = vld [vmem:[#allocation17 + $0x128] sm:$0xff]
    %v1613 = vld [vmem:[#allocation17 + $0x130] sm:$0xff]
    %v1614 = vld [vmem:[#allocation17 + $0x138] sm:$0xff]
    %v1615 = vld [vmem:[#allocation17 + $0x140] sm:$0xff]
    %v1616 = vld [vmem:[#allocation17 + $0x148] sm:$0xff]
    %v1617 = vld [vmem:[#allocation17 + $0x150] sm:$0xff]
    %v1618 = vld [vmem:[#allocation17 + $0x158] sm:$0xff]
    %v1619 = vld [vmem:[#allocation17 + $0x160] sm:$0xff]
    %v1620 = vld [vmem:[#allocation17 + $0x168] sm:$0xff]
    %v1621 = vld [vmem:[#allocation17 + $0x170] sm:$0xff]
    %v1622 = vld [vmem:[#allocation17 + $0x178] sm:$0xff]
    %v1623 = vld [vmem:[#allocation17 + $0x180] sm:$0xff]
    %v1624 = vld [vmem:[#allocation17 + $0x188] sm:$0xff]
    %v1625 = vld [vmem:[#allocation17 + $0x190] sm:$0xff]
    %v1626 = vld [vmem:[#allocation17 + $0x198] sm:$0xff]
    %v1627 = vld [vmem:[#allocation17 + $0x1a0] sm:$0xff]
    %v1628 = vld [vmem:[#allocation17 + $0x1a8] sm:$0xff]
    %v1629 = vld [vmem:[#allocation17 + $0x1b0] sm:$0xff]
    %v1630 = vld [vmem:[#allocation17 + $0x1b8] sm:$0xff]
    %v1631 = vld [vmem:[#allocation17 + $0x1c0] sm:$0xff]
    %v1632 = vld [vmem:[#allocation17 + $0x1c8] sm:$0xff]
    %v1633 = vld [vmem:[#allocation17 + $0x1d0] sm:$0xff]
    %v1634 = vld [vmem:[#allocation17 + $0x1d8] sm:$0xff]
    %v1635 = vld [vmem:[#allocation17 + $0x1e0] sm:$0xff]
    %v1636 = vld [vmem:[#allocation17 + $0x1e8] sm:$0xff]
    %v1637 = vld [vmem:[#allocation17 + $0x1f0] sm:$0xff]
    %v1638 = vld [vmem:[#allocation17 + $0x1f8] sm:$0xff]
    %v1639 = vld [vmem:[#allocation17 + $0x200] sm:$0xff]
    %v1640 = vld [vmem:[#allocation17 + $0x208] sm:$0xff]
    %v1641 = vld [vmem:[#allocation17 + $0x210] sm:$0xff]
    %v1642 = vld [vmem:[#allocation17 + $0x218] sm:$0xff]
    %v1643 = vld [vmem:[#allocation17 + $0x220] sm:$0xff]
    %v1644 = vld [vmem:[#allocation17 + $0x228] sm:$0xff]
    %v1645 = vld [vmem:[#allocation17 + $0x230] sm:$0xff]
    %v1646 = vld [vmem:[#allocation17 + $0x238] sm:$0xff]
    %v1647 = vld [vmem:[#allocation17 + $0x240] sm:$0xff]
    %v1648 = vld [vmem:[#allocation17 + $0x248] sm:$0xff]
    %v1649 = vld [vmem:[#allocation17 + $0x250] sm:$0xff]
    %v1650 = vld [vmem:[#allocation17 + $0x258] sm:$0xff]
    %v1651 = vld [vmem:[#allocation17 + $0x260] sm:$0xff]
    %v1652 = vld [vmem:[#allocation17 + $0x268] sm:$0xff]
    %v1653 = vld [vmem:[#allocation17 + $0x270] sm:$0xff]
    %v1654 = vld [vmem:[#allocation17 + $0x278] sm:$0xff]
    %v1655 = vld [vmem:[#allocation17 + $0x280] sm:$0xff]
    %v1656 = vld [vmem:[#allocation17 + $0x288] sm:$0xff]
    %v1657 = vld [vmem:[#allocation17 + $0x290] sm:$0xff]
    %v1658 = vld [vmem:[#allocation17 + $0x298] sm:$0xff]
    %v1659 = vld [vmem:[#allocation17 + $0x2a0] sm:$0xff]
    %v1660 = vld [vmem:[#allocation17 + $0x2a8] sm:$0xff]
    %v1661 = vld [vmem:[#allocation17 + $0x2b0] sm:$0xff]
    %v1662 = vld [vmem:[#allocation17 + $0x2b8] sm:$0xff]
    %v1663 = vld [vmem:[#allocation17 + $0x2c0] sm:$0xff]
    %v1664 = vld [vmem:[#allocation17 + $0x2c8] sm:$0xff]
    %v1665 = vld [vmem:[#allocation17 + $0x2d0] sm:$0xff]
    %v1666 = vld [vmem:[#allocation17 + $0x2d8] sm:$0xff]
    %v1667 = vld [vmem:[#allocation17 + $0x2e0] sm:$0xff]
    %v1668 = vld [vmem:[#allocation17 + $0x2e8] sm:$0xff]
    %v1669 = vld [vmem:[#allocation17 + $0x2f0] sm:$0xff]
    %v1670 = vld [vmem:[#allocation17 + $0x2f8] sm:$0xff]
    %v1671 = vld [vmem:[#allocation17 + $0x300] sm:$0xff]
    %v1672 = vld [vmem:[#allocation17 + $0x308] sm:$0xff]
    %v1673 = vld [vmem:[#allocation17 + $0x310] sm:$0xff]
    %v1674 = vld [vmem:[#allocation17 + $0x318] sm:$0xff]
    %v1675 = vld [vmem:[#allocation17 + $0x320] sm:$0xff]
    %v1676 = vld [vmem:[#allocation17 + $0x328] sm:$0xff]
    %v1677 = vld [vmem:[#allocation17 + $0x330] sm:$0xff]
    %v1678 = vld [vmem:[#allocation17 + $0x338] sm:$0xff]
    %v1679 = vld [vmem:[#allocation17 + $0x340] sm:$0xff]
    %v1680 = vld [vmem:[#allocation17 + $0x348] sm:$0xff]
    %v1681 = vld [vmem:[#allocation17 + $0x350] sm:$0xff]
    %v1682 = vld [vmem:[#allocation17 + $0x358] sm:$0xff]
    %v1683 = vld [vmem:[#allocation17 + $0x360] sm:$0xff]
    %v1684 = vld [vmem:[#allocation17 + $0x368] sm:$0xff]
    %v1685 = vld [vmem:[#allocation17 + $0x370] sm:$0xff]
    %v1686 = vld [vmem:[#allocation17 + $0x378] sm:$0xff]
    %v1687 = vld [vmem:[#allocation17 + $0x380] sm:$0xff]
    %v1688 = vld [vmem:[#allocation17 + $0x388] sm:$0xff]
    %v1689 = vld [vmem:[#allocation17 + $0x390] sm:$0xff]
    %v1690 = vld [vmem:[#allocation17 + $0x398] sm:$0xff]
    %v1691 = vld [vmem:[#allocation17 + $0x3a0] sm:$0xff]
    %v1692 = vld [vmem:[#allocation17 + $0x3a8] sm:$0xff]
    %v1693 = vld [vmem:[#allocation17 + $0x3b0] sm:$0xff]
    %v1694 = vld [vmem:[#allocation17 + $0x3b8] sm:$0xff]
    %v1695 = vld [vmem:[#allocation17 + $0x3c0] sm:$0xff]
    %v1696 = vld [vmem:[#allocation17 + $0x3c8] sm:$0xff]
    %v1697 = vld [vmem:[#allocation17 + $0x3d0] sm:$0xff]
    %v1698 = vld [vmem:[#allocation17 + $0x3d8] sm:$0xff]
    %v1699 = vld [vmem:[#allocation17 + $0x3e0] sm:$0xff]
    %v1700 = vld [vmem:[#allocation17 + $0x3e8] sm:$0xff]
    %v1701 = vld [vmem:[#allocation17 + $0x3f0] sm:$0xff]
    %v1702 = vld [vmem:[#allocation17 + $0x3f8] sm:$0xff]
    %v1703 = vld [vmem:[#allocation17 + $0x400] sm:$0xff]
    %v1704 = vld [vmem:[#allocation17 + $0x408] sm:$0xff]
    %v1705 = vld [vmem:[#allocation17 + $0x410] sm:$0xff]
    %v1706 = vld [vmem:[#allocation17 + $0x418] sm:$0xff]
    %v1707 = vld [vmem:[#allocation17 + $0x420] sm:$0xff]
    %v1708 = vld [vmem:[#allocation17 + $0x428] sm:$0xff]
    %v1709 = vld [vmem:[#allocation17 + $0x430] sm:$0xff]
    %v1710 = vld [vmem:[#allocation17 + $0x438] sm:$0xff]
    %v1711 = vld [vmem:[#allocation17 + $0x440] sm:$0xff]
    %v1712 = vld [vmem:[#allocation17 + $0x448] sm:$0xff]
    %v1713 = vld [vmem:[#allocation17 + $0x450] sm:$0xff]
    %v1714 = vld [vmem:[#allocation17 + $0x458] sm:$0xff]
    %v1715 = vld [vmem:[#allocation17 + $0x460] sm:$0xff]
    %v1716 = vld [vmem:[#allocation17 + $0x468] sm:$0xff]
    %v1717 = vld [vmem:[#allocation17 + $0x470] sm:$0xff]
    %v1718 = vld [vmem:[#allocation17 + $0x478] sm:$0xff]
    %v1719 = vld [vmem:[#allocation17 + $0x480] sm:$0xff]
    %v1720 = vld [vmem:[#allocation17 + $0x488] sm:$0xff]
    %v1721 = vld [vmem:[#allocation17 + $0x490] sm:$0xff]
    %v1722 = vld [vmem:[#allocation17 + $0x498] sm:$0xff]
    %v1723 = vld [vmem:[#allocation17 + $0x4a0] sm:$0xff]
    %v1724 = vld [vmem:[#allocation17 + $0x4a8] sm:$0xff]
    %v1725 = vld [vmem:[#allocation17 + $0x4b0] sm:$0xff]
    %v1726 = vld [vmem:[#allocation17 + $0x4b8] sm:$0xff]
    %v1727 = vld [vmem:[#allocation17 + $0x4c0] sm:$0xff]
    %v1728 = vld [vmem:[#allocation17 + $0x4c8] sm:$0xff]
    %v1729 = vld [vmem:[#allocation17 + $0x4d0] sm:$0xff]
    %v1730 = vld [vmem:[#allocation17 + $0x4d8] sm:$0xff]
    %v1731 = vld [vmem:[#allocation17 + $0x4e0] sm:$0xff]
    %v1732 = vld [vmem:[#allocation17 + $0x4e8] sm:$0xff]
    %v1733 = vld [vmem:[#allocation17 + $0x4f0] sm:$0xff]
    %v1734 = vld [vmem:[#allocation17 + $0x4f8] sm:$0xff]
    %v1735 = vld [vmem:[#allocation17 + $0x500] sm:$0xff]
    %v1736 = vld [vmem:[#allocation17 + $0x508] sm:$0xff]
    %v1737 = vld [vmem:[#allocation17 + $0x510] sm:$0xff]
    %v1738 = vld [vmem:[#allocation17 + $0x518] sm:$0xff]
    %v1739 = vld [vmem:[#allocation17 + $0x520] sm:$0xff]
    %v1740 = vld [vmem:[#allocation17 + $0x528] sm:$0xff]
    %v1741 = vld [vmem:[#allocation17 + $0x530] sm:$0xff]
    %v1742 = vld [vmem:[#allocation17 + $0x538] sm:$0xff]
    %v1743 = vld [vmem:[#allocation17 + $0x540] sm:$0xff]
    %v1744 = vld [vmem:[#allocation17 + $0x548] sm:$0xff]
    %v1745 = vld [vmem:[#allocation17 + $0x550] sm:$0xff]
    %v1746 = vld [vmem:[#allocation17 + $0x558] sm:$0xff]
    %v1747 = vld [vmem:[#allocation17 + $0x560] sm:$0xff]
    %v1748 = vld [vmem:[#allocation17 + $0x568] sm:$0xff]
    %v1749 = vld [vmem:[#allocation17 + $0x570] sm:$0xff]
    %v1750 = vld [vmem:[#allocation17 + $0x578] sm:$0xff]
    %v1751 = vld [vmem:[#allocation17 + $0x580] sm:$0xff]
    %v1752 = vld [vmem:[#allocation17 + $0x588] sm:$0xff]
    %v1753 = vld [vmem:[#allocation17 + $0x590] sm:$0xff]
    %v1754 = vld [vmem:[#allocation17 + $0x598] sm:$0xff]
    %v1755 = vld [vmem:[#allocation17 + $0x5a0] sm:$0xff]
    %v1756 = vld [vmem:[#allocation17 + $0x5a8] sm:$0xff]
    %v1757 = vld [vmem:[#allocation17 + $0x5b0] sm:$0xff]
    %v1758 = vld [vmem:[#allocation17 + $0x5b8] sm:$0xff]
    %v1759 = vld [vmem:[#allocation17 + $0x5c0] sm:$0xff]
    %v1760 = vld [vmem:[#allocation17 + $0x5c8] sm:$0xff]
    %v1761 = vld [vmem:[#allocation17 + $0x5d0] sm:$0xff]
    %v1762 = vld [vmem:[#allocation17 + $0x5d8] sm:$0xff]
    %v1763 = vld [vmem:[#allocation17 + $0x5e0] sm:$0xff]
    %v1764 = vld [vmem:[#allocation17 + $0x5e8] sm:$0xff]
    %v1765 = vld [vmem:[#allocation17 + $0x5f0] sm:$0xff]
    %v1766 = vld [vmem:[#allocation17 + $0x5f8] sm:$0xff]
    %v1767 = vld [vmem:[#allocation17 + $0x600] sm:$0xff]
    %v1768 = vld [vmem:[#allocation17 + $0x608] sm:$0xff]
    %v1769 = vld [vmem:[#allocation17 + $0x610] sm:$0xff]
    %v1770 = vld [vmem:[#allocation17 + $0x618] sm:$0xff]
    %v1771 = vld [vmem:[#allocation17 + $0x620] sm:$0xff]
    %v1772 = vld [vmem:[#allocation17 + $0x628] sm:$0xff]
    %v1773 = vld [vmem:[#allocation17 + $0x630] sm:$0xff]
    %v1774 = vld [vmem:[#allocation17 + $0x638] sm:$0xff]
    %v1775 = vld [vmem:[#allocation17 + $0x640] sm:$0xff]
    %v1776 = vld [vmem:[#allocation17 + $0x648] sm:$0xff]
    %v1777 = vld [vmem:[#allocation17 + $0x650] sm:$0xff]
    %v1778 = vld [vmem:[#allocation17 + $0x658] sm:$0xff]
    %v1779 = vld [vmem:[#allocation17 + $0x660] sm:$0xff]
    %v1780 = vld [vmem:[#allocation17 + $0x668] sm:$0xff]
    %v1781 = vld [vmem:[#allocation17 + $0x670] sm:$0xff]
    %v1782 = vld [vmem:[#allocation17 + $0x678] sm:$0xff]
    %v1783 = vld [vmem:[#allocation17 + $0x680] sm:$0xff]
    %v1784 = vld [vmem:[#allocation17 + $0x688] sm:$0xff]
    %v1785 = vld [vmem:[#allocation17 + $0x690] sm:$0xff]
    %v1786 = vld [vmem:[#allocation17 + $0x698] sm:$0xff]
    %v1787 = vld [vmem:[#allocation17 + $0x6a0] sm:$0xff]
    %v1788 = vld [vmem:[#allocation17 + $0x6a8] sm:$0xff]
    %v1789 = vld [vmem:[#allocation17 + $0x6b0] sm:$0xff]
    %v1790 = vld [vmem:[#allocation17 + $0x6b8] sm:$0xff]
    %v1791 = vld [vmem:[#allocation17 + $0x6c0] sm:$0xff]
    %v1792 = vld [vmem:[#allocation17 + $0x6c8] sm:$0xff]
    %v1793 = vld [vmem:[#allocation17 + $0x6d0] sm:$0xff]
    %v1794 = vld [vmem:[#allocation17 + $0x6d8] sm:$0xff]
    %v1795 = vld [vmem:[#allocation17 + $0x6e0] sm:$0xff]
    %v1796 = vld [vmem:[#allocation17 + $0x6e8] sm:$0xff]
    %v1797 = vld [vmem:[#allocation17 + $0x6f0] sm:$0xff]
    %v1798 = vld [vmem:[#allocation17 + $0x6f8] sm:$0xff]
    %v1799 = vld [vmem:[#allocation17 + $0x700] sm:$0xff]
    %v1800 = vld [vmem:[#allocation17 + $0x708] sm:$0xff]
    %v1801 = vld [vmem:[#allocation17 + $0x710] sm:$0xff]
    %v1802 = vld [vmem:[#allocation17 + $0x718] sm:$0xff]
    %v1803 = vld [vmem:[#allocation17 + $0x720] sm:$0xff]
    %v1804 = vld [vmem:[#allocation17 + $0x728] sm:$0xff]
    %v1805 = vld [vmem:[#allocation17 + $0x730] sm:$0xff]
    %v1806 = vld [vmem:[#allocation17 + $0x738] sm:$0xff]
    %v1807 = vld [vmem:[#allocation17 + $0x740] sm:$0xff]
    %v1808 = vld [vmem:[#allocation17 + $0x748] sm:$0xff]
    %v1809 = vld [vmem:[#allocation17 + $0x750] sm:$0xff]
    %v1810 = vld [vmem:[#allocation17 + $0x758] sm:$0xff]
    %v1811 = vld [vmem:[#allocation17 + $0x760] sm:$0xff]
    %v1812 = vld [vmem:[#allocation17 + $0x768] sm:$0xff]
    %v1813 = vld [vmem:[#allocation17 + $0x770] sm:$0xff]
    %v1814 = vld [vmem:[#allocation17 + $0x778] sm:$0xff]
    %v1815 = vld [vmem:[#allocation17 + $0x780] sm:$0xff]
    %v1816 = vld [vmem:[#allocation17 + $0x788] sm:$0xff]
    %v1817 = vld [vmem:[#allocation17 + $0x790] sm:$0xff]
    %v1818 = vld [vmem:[#allocation17 + $0x798] sm:$0xff]
    %v1819 = vld [vmem:[#allocation17 + $0x7a0] sm:$0xff]
    %v1820 = vld [vmem:[#allocation17 + $0x7a8] sm:$0xff]
    %v1821 = vld [vmem:[#allocation17 + $0x7b0] sm:$0xff]
    %v1822 = vld [vmem:[#allocation17 + $0x7b8] sm:$0xff]
    %v1823 = vld [vmem:[#allocation17 + $0x7c0] sm:$0xff]
    %v1824 = vld [vmem:[#allocation17 + $0x7c8] sm:$0xff]
    %v1825 = vld [vmem:[#allocation17 + $0x7d0] sm:$0xff]
    %v1826 = vld [vmem:[#allocation17 + $0x7d8] sm:$0xff]
    %v1827 = vld [vmem:[#allocation17 + $0x7e0] sm:$0xff]
    %v1828 = vld [vmem:[#allocation17 + $0x7e8] sm:$0xff]
    %v1829 = vld [vmem:[#allocation17 + $0x7f0] sm:$0xff]
    %v1830 = vld [vmem:[#allocation17 + $0x7f8] sm:$0xff]
    %v1831 = vld [vmem:[#allocation17 + $0x800] sm:$0xff]
    %v1832 = vld [vmem:[#allocation17 + $0x808] sm:$0xff]
    %v1833 = vld [vmem:[#allocation17 + $0x810] sm:$0xff]
    %v1834 = vld [vmem:[#allocation17 + $0x818] sm:$0xff]
    %v1835 = vld [vmem:[#allocation17 + $0x820] sm:$0xff]
    %v1836 = vld [vmem:[#allocation17 + $0x828] sm:$0xff]
    %v1837 = vld [vmem:[#allocation17 + $0x830] sm:$0xff]
    %v1838 = vld [vmem:[#allocation17 + $0x838] sm:$0xff]
    %v1839 = vld [vmem:[#allocation17 + $0x840] sm:$0xff]
    %v1840 = vld [vmem:[#allocation17 + $0x848] sm:$0xff]
    %v1841 = vld [vmem:[#allocation17 + $0x850] sm:$0xff]
    %v1842 = vld [vmem:[#allocation17 + $0x858] sm:$0xff]
    %v1843 = vld [vmem:[#allocation17 + $0x860] sm:$0xff]
    %v1844 = vld [vmem:[#allocation17 + $0x868] sm:$0xff]
    %v1845 = vld [vmem:[#allocation17 + $0x870] sm:$0xff]
    %v1846 = vld [vmem:[#allocation17 + $0x878] sm:$0xff]
    %v1847 = vld [vmem:[#allocation17 + $0x880] sm:$0xff]
    %v1848 = vld [vmem:[#allocation17 + $0x888] sm:$0xff]
    %v1849 = vld [vmem:[#allocation17 + $0x890] sm:$0xff]
    %v1850 = vld [vmem:[#allocation17 + $0x898] sm:$0xff]
    %v1851 = vld [vmem:[#allocation17 + $0x8a0] sm:$0xff]
    %v1852 = vld [vmem:[#allocation17 + $0x8a8] sm:$0xff]
    %v1853 = vld [vmem:[#allocation17 + $0x8b0] sm:$0xff]
    %v1854 = vld [vmem:[#allocation17 + $0x8b8] sm:$0xff]
    %v1855 = vld [vmem:[#allocation17 + $0x8c0] sm:$0xff]
    %v1856 = vld [vmem:[#allocation17 + $0x8c8] sm:$0xff]
    %v1857 = vld [vmem:[#allocation17 + $0x8d0] sm:$0xff]
    %v1858 = vld [vmem:[#allocation17 + $0x8d8] sm:$0xff]
    %v1859 = vld [vmem:[#allocation17 + $0x8e0] sm:$0xff]
    %v1860 = vld [vmem:[#allocation17 + $0x8e8] sm:$0xff]
    %v1861 = vld [vmem:[#allocation17 + $0x8f0] sm:$0xff]
    %v1862 = vld [vmem:[#allocation17 + $0x8f8] sm:$0xff]
    %v1863 = vld [vmem:[#allocation17 + $0x900] sm:$0xff]
    %v1864 = vld [vmem:[#allocation17 + $0x908] sm:$0xff]
    %v1865 = vld [vmem:[#allocation17 + $0x910] sm:$0xff]
    %v1866 = vld [vmem:[#allocation17 + $0x918] sm:$0xff]
    %v1867 = vld [vmem:[#allocation17 + $0x920] sm:$0xff]
    %v1868 = vld [vmem:[#allocation17 + $0x928] sm:$0xff]
    %v1869 = vld [vmem:[#allocation17 + $0x930] sm:$0xff]
    %v1870 = vld [vmem:[#allocation17 + $0x938] sm:$0xff]
    %v1871 = vld [vmem:[#allocation17 + $0x940] sm:$0xff]
    %v1872 = vld [vmem:[#allocation17 + $0x948] sm:$0xff]
    %v1873 = vld [vmem:[#allocation17 + $0x950] sm:$0xff]
    %v1874 = vld [vmem:[#allocation17 + $0x958] sm:$0xff]
    %v1875 = vld [vmem:[#allocation17 + $0x960] sm:$0xff]
    %v1876 = vld [vmem:[#allocation17 + $0x968] sm:$0xff]
    %v1877 = vld [vmem:[#allocation17 + $0x970] sm:$0xff]
    %v1878 = vld [vmem:[#allocation17 + $0x978] sm:$0xff]
    %v1879 = vld [vmem:[#allocation17 + $0x980] sm:$0xff]
    %v1880 = vld [vmem:[#allocation17 + $0x988] sm:$0xff]
    %v1881 = vld [vmem:[#allocation17 + $0x990] sm:$0xff]
    %v1882 = vld [vmem:[#allocation17 + $0x998] sm:$0xff]
    %v1883 = vld [vmem:[#allocation17 + $0x9a0] sm:$0xff]
    %v1884 = vld [vmem:[#allocation17 + $0x9a8] sm:$0xff]
    %v1885 = vld [vmem:[#allocation17 + $0x9b0] sm:$0xff]
    %v1886 = vld [vmem:[#allocation17 + $0x9b8] sm:$0xff]
    %v1887 = vld [vmem:[#allocation17 + $0x9c0] sm:$0xff]
    %v1888 = vld [vmem:[#allocation17 + $0x9c8] sm:$0xff]
    %v1889 = vld [vmem:[#allocation17 + $0x9d0] sm:$0xff]
    %v1890 = vld [vmem:[#allocation17 + $0x9d8] sm:$0xff]
    %v1891 = vld [vmem:[#allocation17 + $0x9e0] sm:$0xff]
    %v1892 = vld [vmem:[#allocation17 + $0x9e8] sm:$0xff]
    %v1893 = vld [vmem:[#allocation17 + $0x9f0] sm:$0xff]
    %v1894 = vld [vmem:[#allocation17 + $0x9f8] sm:$0xff]
    %v1895 = vld [vmem:[#allocation17 + $0xa00] sm:$0xff]
    %v1896 = vld [vmem:[#allocation17 + $0xa08] sm:$0xff]
    %v1897 = vld [vmem:[#allocation17 + $0xa10] sm:$0xff]
    %v1898 = vld [vmem:[#allocation17 + $0xa18] sm:$0xff]
    %v1899 = vld [vmem:[#allocation17 + $0xa20] sm:$0xff]
    %v1900 = vld [vmem:[#allocation17 + $0xa28] sm:$0xff]
    %v1901 = vld [vmem:[#allocation17 + $0xa30] sm:$0xff]
    %v1902 = vld [vmem:[#allocation17 + $0xa38] sm:$0xff]
    %v1903 = vld [vmem:[#allocation17 + $0xa40] sm:$0xff]
    %v1904 = vld [vmem:[#allocation17 + $0xa48] sm:$0xff]
    %v1905 = vld [vmem:[#allocation17 + $0xa50] sm:$0xff]
    %v1906 = vld [vmem:[#allocation17 + $0xa58] sm:$0xff]
    %v1907 = vld [vmem:[#allocation17 + $0xa60] sm:$0xff]
    %v1908 = vld [vmem:[#allocation17 + $0xa68] sm:$0xff]
    %v1909 = vld [vmem:[#allocation17 + $0xa70] sm:$0xff]
    %v1910 = vld [vmem:[#allocation17 + $0xa78] sm:$0xff]
    %v1911 = vld [vmem:[#allocation17 + $0xa80] sm:$0xff]
    %v1912 = vld [vmem:[#allocation17 + $0xa88] sm:$0xff]
    %v1913 = vld [vmem:[#allocation17 + $0xa90] sm:$0xff]
    %v1914 = vld [vmem:[#allocation17 + $0xa98] sm:$0xff]
    %v1915 = vld [vmem:[#allocation17 + $0xaa0] sm:$0xff]
    %v1916 = vld [vmem:[#allocation17 + $0xaa8] sm:$0xff]
    %v1917 = vld [vmem:[#allocation17 + $0xab0] sm:$0xff]
    %v1918 = vld [vmem:[#allocation17 + $0xab8] sm:$0xff]
    %v1919 = vld [vmem:[#allocation17 + $0xac0] sm:$0xff]
    %v1920 = vld [vmem:[#allocation17 + $0xac8] sm:$0xff]
    %v1921 = vld [vmem:[#allocation17 + $0xad0] sm:$0xff]
    %v1922 = vld [vmem:[#allocation17 + $0xad8] sm:$0xff]
    %v1923 = vld [vmem:[#allocation17 + $0xae0] sm:$0xff]
    %v1924 = vld [vmem:[#allocation17 + $0xae8] sm:$0xff]
    %v1925 = vld [vmem:[#allocation17 + $0xaf0] sm:$0xff]
    %v1926 = vld [vmem:[#allocation17 + $0xaf8] sm:$0xff]
    %v1927 = vld [vmem:[#allocation17 + $0xb00] sm:$0xff]
    %v1928 = vld [vmem:[#allocation17 + $0xb08] sm:$0xff]
    %v1929 = vld [vmem:[#allocation17 + $0xb10] sm:$0xff]
    %v1930 = vld [vmem:[#allocation17 + $0xb18] sm:$0xff]
    %v1931 = vld [vmem:[#allocation17 + $0xb20] sm:$0xff]
    %v1932 = vld [vmem:[#allocation17 + $0xb28] sm:$0xff]
    %v1933 = vld [vmem:[#allocation17 + $0xb30] sm:$0xff]
    %v1934 = vld [vmem:[#allocation17 + $0xb38] sm:$0xff]
    %v1935 = vld [vmem:[#allocation17 + $0xb40] sm:$0xff]
    %v1936 = vld [vmem:[#allocation17 + $0xb48] sm:$0xff]
    %v1937 = vld [vmem:[#allocation17 + $0xb50] sm:$0xff]
    %v1938 = vld [vmem:[#allocation17 + $0xb58] sm:$0xff]
    %v1939 = vld [vmem:[#allocation17 + $0xb60] sm:$0xff]
    %v1940 = vld [vmem:[#allocation17 + $0xb68] sm:$0xff]
    %v1941 = vld [vmem:[#allocation17 + $0xb70] sm:$0xff]
    %v1942 = vld [vmem:[#allocation17 + $0xb78] sm:$0xff]
    %v1943 = vld [vmem:[#allocation17 + $0xb80] sm:$0xff]
    %v1944 = vld [vmem:[#allocation17 + $0xb88] sm:$0xff]
    %v1945 = vld [vmem:[#allocation17 + $0xb90] sm:$0xff]
    %v1946 = vld [vmem:[#allocation17 + $0xb98] sm:$0xff]
    %v1947 = vld [vmem:[#allocation17 + $0xba0] sm:$0xff]
    %v1948 = vld [vmem:[#allocation17 + $0xba8] sm:$0xff]
    %v1949 = vld [vmem:[#allocation17 + $0xbb0] sm:$0xff]
    %v1950 = vld [vmem:[#allocation17 + $0xbb8] sm:$0xff]
    %v1951 = vld [vmem:[#allocation17 + $0xbc0] sm:$0xff]
    %v1952 = vld [vmem:[#allocation17 + $0xbc8] sm:$0xff]
    %v1953 = vld [vmem:[#allocation17 + $0xbd0] sm:$0xff]
    %v1954 = vld [vmem:[#allocation17 + $0xbd8] sm:$0xff]
    %v1955 = vld [vmem:[#allocation17 + $0xbe0] sm:$0xff]
    %v1956 = vld [vmem:[#allocation17 + $0xbe8] sm:$0xff]
    %v1957 = vld [vmem:[#allocation17 + $0xbf0] sm:$0xff]
    %v1958 = vld [vmem:[#allocation17 + $0xbf8] sm:$0xff]
    %v1959 = vld [vmem:[#allocation17 + $0xc00] sm:$0xff]
    %v1960 = vld [vmem:[#allocation17 + $0xc08] sm:$0xff]
    %v1961 = vld [vmem:[#allocation17 + $0xc10] sm:$0xff]
    %v1962 = vld [vmem:[#allocation17 + $0xc18] sm:$0xff]
    %v1963 = vld [vmem:[#allocation17 + $0xc20] sm:$0xff]
    %v1964 = vld [vmem:[#allocation17 + $0xc28] sm:$0xff]
    %v1965 = vld [vmem:[#allocation17 + $0xc30] sm:$0xff]
    %v1966 = vld [vmem:[#allocation17 + $0xc38] sm:$0xff]
    %v1967 = vld [vmem:[#allocation17 + $0xc40] sm:$0xff]
    %v1968 = vld [vmem:[#allocation17 + $0xc48] sm:$0xff]
    %v1969 = vld [vmem:[#allocation17 + $0xc50] sm:$0xff]
    %v1970 = vld [vmem:[#allocation17 + $0xc58] sm:$0xff]
    %v1971 = vld [vmem:[#allocation17 + $0xc60] sm:$0xff]
    %v1972 = vld [vmem:[#allocation17 + $0xc68] sm:$0xff]
    %v1973 = vld [vmem:[#allocation17 + $0xc70] sm:$0xff]
    %v1974 = vld [vmem:[#allocation17 + $0xc78] sm:$0xff]
    %v1975 = vld [vmem:[#allocation17 + $0xc80] sm:$0xff]
    %v1976 = vld [vmem:[#allocation17 + $0xc88] sm:$0xff]
    %v1977 = vld [vmem:[#allocation17 + $0xc90] sm:$0xff]
    %v1978 = vld [vmem:[#allocation17 + $0xc98] sm:$0xff]
    %v1979 = vld [vmem:[#allocation17 + $0xca0] sm:$0xff]
    %v1980 = vld [vmem:[#allocation17 + $0xca8] sm:$0xff]
    %v1981 = vld [vmem:[#allocation17 + $0xcb0] sm:$0xff]
    %v1982 = vld [vmem:[#allocation17 + $0xcb8] sm:$0xff]
    %v1983 = vld [vmem:[#allocation17 + $0xcc0] sm:$0xff]
    %v1984 = vld [vmem:[#allocation17 + $0xcc8] sm:$0xff]
    %v1985 = vld [vmem:[#allocation17 + $0xcd0] sm:$0xff]
    %v1986 = vld [vmem:[#allocation17 + $0xcd8] sm:$0xff]
    %v1987 = vld [vmem:[#allocation17 + $0xce0] sm:$0xff]
    %v1988 = vld [vmem:[#allocation17 + $0xce8] sm:$0xff]
    %v1989 = vld [vmem:[#allocation17 + $0xcf0] sm:$0xff]
    %v1990 = vld [vmem:[#allocation17 + $0xcf8] sm:$0xff]
    %v1991 = vld [vmem:[#allocation17 + $0xd00] sm:$0xff]
    %v1992 = vld [vmem:[#allocation17 + $0xd08] sm:$0xff]
    %v1993 = vld [vmem:[#allocation17 + $0xd10] sm:$0xff]
    %v1994 = vld [vmem:[#allocation17 + $0xd18] sm:$0xff]
    %v1995 = vld [vmem:[#allocation17 + $0xd20] sm:$0xff]
    %v1996 = vld [vmem:[#allocation17 + $0xd28] sm:$0xff]
    %v1997 = vld [vmem:[#allocation17 + $0xd30] sm:$0xff]
    %v1998 = vld [vmem:[#allocation17 + $0xd38] sm:$0xff]
    %v1999 = vld [vmem:[#allocation17 + $0xd40] sm:$0xff]
    %v2000 = vld [vmem:[#allocation17 + $0xd48] sm:$0xff]
    %v2001 = vld [vmem:[#allocation17 + $0xd50] sm:$0xff]
    %v2002 = vld [vmem:[#allocation17 + $0xd58] sm:$0xff]
    %v2003 = vld [vmem:[#allocation17 + $0xd60] sm:$0xff]
    %v2004 = vld [vmem:[#allocation17 + $0xd68] sm:$0xff]
    %v2005 = vld [vmem:[#allocation17 + $0xd70] sm:$0xff]
    %v2006 = vld [vmem:[#allocation17 + $0xd78] sm:$0xff]
    %v2007 = vld [vmem:[#allocation17 + $0xd80] sm:$0xff]
    %v2008 = vld [vmem:[#allocation17 + $0xd88] sm:$0xff]
    %v2009 = vld [vmem:[#allocation17 + $0xd90] sm:$0xff]
    %v2010 = vld [vmem:[#allocation17 + $0xd98] sm:$0xff]
    %v2011 = vld [vmem:[#allocation17 + $0xda0] sm:$0xff]
    %v2012 = vld [vmem:[#allocation17 + $0xda8] sm:$0xff]
    %v2013 = vld [vmem:[#allocation17 + $0xdb0] sm:$0xff]
    %v2014 = vld [vmem:[#allocation17 + $0xdb8] sm:$0xff]
    %v2015 = vld [vmem:[#allocation17 + $0xdc0] sm:$0xff]
    %v2016 = vld [vmem:[#allocation17 + $0xdc8] sm:$0xff]
    %v2017 = vld [vmem:[#allocation17 + $0xdd0] sm:$0xff]
    %v2018 = vld [vmem:[#allocation17 + $0xdd8] sm:$0xff]
    %v2019 = vld [vmem:[#allocation17 + $0xde0] sm:$0xff]
    %v2020 = vld [vmem:[#allocation17 + $0xde8] sm:$0xff]
    %v2021 = vld [vmem:[#allocation17 + $0xdf0] sm:$0xff]
    %v2022 = vld [vmem:[#allocation17 + $0xdf8] sm:$0xff]
    %v2023 = vld [vmem:[#allocation17 + $0xe00] sm:$0xff]
    %v2024 = vld [vmem:[#allocation17 + $0xe08] sm:$0xff]
    %v2025 = vld [vmem:[#allocation17 + $0xe10] sm:$0xff]
    %v2026 = vld [vmem:[#allocation17 + $0xe18] sm:$0xff]
    %v2027 = vld [vmem:[#allocation17 + $0xe20] sm:$0xff]
    %v2028 = vld [vmem:[#allocation17 + $0xe28] sm:$0xff]
    %v2029 = vld [vmem:[#allocation17 + $0xe30] sm:$0xff]
    %v2030 = vld [vmem:[#allocation17 + $0xe38] sm:$0xff]
    %v2031 = vld [vmem:[#allocation17 + $0xe40] sm:$0xff]
    %v2032 = vld [vmem:[#allocation17 + $0xe48] sm:$0xff]
    %v2033 = vld [vmem:[#allocation17 + $0xe50] sm:$0xff]
    %v2034 = vld [vmem:[#allocation17 + $0xe58] sm:$0xff]
    %v2035 = vld [vmem:[#allocation17 + $0xe60] sm:$0xff]
    %v2036 = vld [vmem:[#allocation17 + $0xe68] sm:$0xff]
    %v2037 = vld [vmem:[#allocation17 + $0xe70] sm:$0xff]
    %v2038 = vld [vmem:[#allocation17 + $0xe78] sm:$0xff]
    %v2039 = vld [vmem:[#allocation17 + $0xe80] sm:$0xff]
    %v2040 = vld [vmem:[#allocation17 + $0xe88] sm:$0xff]
    %v2041 = vld [vmem:[#allocation17 + $0xe90] sm:$0xff]
    %v2042 = vld [vmem:[#allocation17 + $0xe98] sm:$0xff]
    %v2043 = vld [vmem:[#allocation17 + $0xea0] sm:$0xff]
    %v2044 = vld [vmem:[#allocation17 + $0xea8] sm:$0xff]
    %v2045 = vld [vmem:[#allocation17 + $0xeb0] sm:$0xff]
    %v2046 = vld [vmem:[#allocation17 + $0xeb8] sm:$0xff]
    %v2047 = vld [vmem:[#allocation17 + $0xec0] sm:$0xff]
    %v2048 = vld [vmem:[#allocation17 + $0xec8] sm:$0xff]
    %v2049 = vld [vmem:[#allocation17 + $0xed0] sm:$0xff]
    %v2050 = vld [vmem:[#allocation17 + $0xed8] sm:$0xff]
    %v2051 = vld [vmem:[#allocation17 + $0xee0] sm:$0xff]
    %v2052 = vld [vmem:[#allocation17 + $0xee8] sm:$0xff]
    %v2053 = vld [vmem:[#allocation17 + $0xef0] sm:$0xff]
    %v2054 = vld [vmem:[#allocation17 + $0xef8] sm:$0xff]
    %v2055 = vld [vmem:[#allocation17 + $0xf00] sm:$0xff]
    %v2056 = vld [vmem:[#allocation17 + $0xf08] sm:$0xff]
    %v2057 = vld [vmem:[#allocation17 + $0xf10] sm:$0xff]
    %v2058 = vld [vmem:[#allocation17 + $0xf18] sm:$0xff]
    %v2059 = vld [vmem:[#allocation17 + $0xf20] sm:$0xff]
    %v2060 = vld [vmem:[#allocation17 + $0xf28] sm:$0xff]
    %v2061 = vld [vmem:[#allocation17 + $0xf30] sm:$0xff]
    %v2062 = vld [vmem:[#allocation17 + $0xf38] sm:$0xff]
    %v2063 = vld [vmem:[#allocation17 + $0xf40] sm:$0xff]
    %v2064 = vld [vmem:[#allocation17 + $0xf48] sm:$0xff]
    %v2065 = vld [vmem:[#allocation17 + $0xf50] sm:$0xff]
    %v2066 = vld [vmem:[#allocation17 + $0xf58] sm:$0xff]
    %v2067 = vld [vmem:[#allocation17 + $0xf60] sm:$0xff]
    %v2068 = vld [vmem:[#allocation17 + $0xf68] sm:$0xff]
    %v2069 = vld [vmem:[#allocation17 + $0xf70] sm:$0xff]
    %v2070 = vld [vmem:[#allocation17 + $0xf78] sm:$0xff]
    %v2071 = vld [vmem:[#allocation17 + $0xf80] sm:$0xff]
    %v2072 = vld [vmem:[#allocation17 + $0xf88] sm:$0xff]
    %v2073 = vld [vmem:[#allocation17 + $0xf90] sm:$0xff]
    %v2074 = vld [vmem:[#allocation17 + $0xf98] sm:$0xff]
    %v2075 = vld [vmem:[#allocation17 + $0xfa0] sm:$0xff]
    %v2076 = vld [vmem:[#allocation17 + $0xfa8] sm:$0xff]
    %v2077 = vld [vmem:[#allocation17 + $0xfb0] sm:$0xff]
    %v2078 = vld [vmem:[#allocation17 + $0xfb8] sm:$0xff]
    %v2079 = vld [vmem:[#allocation17 + $0xfc0] sm:$0xff]
    %v2080 = vld [vmem:[#allocation17 + $0xfc8] sm:$0xff]
    %v2081 = vld [vmem:[#allocation17 + $0xfd0] sm:$0xff]
    %v2082 = vld [vmem:[#allocation17 + $0xfd8] sm:$0xff]
    %v2083 = vld [vmem:[#allocation17 + $0xfe0] sm:$0xff]
    %v2084 = vld [vmem:[#allocation17 + $0xfe8] sm:$0xff]
    %v2085 = vld [vmem:[#allocation17 + $0xff0] sm:$0xff]
    %v2086 = vld [vmem:[#allocation17 + $0xff8] sm:$0xff]
    %v2599 = vunpack.c.l.b16 %v1575
    %v2600 = vunpack.c.h.b16 %v1575
    %v2601 = vunpack.c.l.b16 %v1576
    %v2602 = vunpack.c.h.b16 %v1576
    %v2603 = vunpack.c.l.b16 %v1577
    %v2604 = vunpack.c.h.b16 %v1577
    %v2605 = vunpack.c.l.b16 %v1578
    %v2606 = vunpack.c.h.b16 %v1578
    %v2607 = vunpack.c.l.b16 %v1579
    %v2608 = vunpack.c.h.b16 %v1579
    %v2609 = vunpack.c.l.b16 %v1580
    %v2610 = vunpack.c.h.b16 %v1580
    %v2611 = vunpack.c.l.b16 %v1581
    %v2612 = vunpack.c.h.b16 %v1581
    %v2613 = vunpack.c.l.b16 %v1582
    %v2614 = vunpack.c.h.b16 %v1582
    %v2615 = vunpack.c.l.b16 %v1583
    %v2616 = vunpack.c.h.b16 %v1583
    %v2617 = vunpack.c.l.b16 %v1584
    %v2618 = vunpack.c.h.b16 %v1584
    %v2619 = vunpack.c.l.b16 %v1585
    %v2620 = vunpack.c.h.b16 %v1585
    %v2621 = vunpack.c.l.b16 %v1586
    %v2622 = vunpack.c.h.b16 %v1586
    %v2623 = vunpack.c.l.b16 %v1587
    %v2624 = vunpack.c.h.b16 %v1587
    %v2625 = vunpack.c.l.b16 %v1588
    %v2626 = vunpack.c.h.b16 %v1588
    %v2627 = vunpack.c.l.b16 %v1589
    %v2628 = vunpack.c.h.b16 %v1589
    %v2629 = vunpack.c.l.b16 %v1590
    %v2630 = vunpack.c.h.b16 %v1590
    %v2631 = vunpack.c.l.b16 %v1591
    %v2632 = vunpack.c.h.b16 %v1591
    %v2633 = vunpack.c.l.b16 %v1592
    %v2634 = vunpack.c.h.b16 %v1592
    %v2635 = vunpack.c.l.b16 %v1593
    %v2636 = vunpack.c.h.b16 %v1593
    %v2637 = vunpack.c.l.b16 %v1594
    %v2638 = vunpack.c.h.b16 %v1594
    %v2639 = vunpack.c.l.b16 %v1595
    %v2640 = vunpack.c.h.b16 %v1595
    %v2641 = vunpack.c.l.b16 %v1596
    %v2642 = vunpack.c.h.b16 %v1596
    %v2643 = vunpack.c.l.b16 %v1597
    %v2644 = vunpack.c.h.b16 %v1597
    %v2645 = vunpack.c.l.b16 %v1598
    %v2646 = vunpack.c.h.b16 %v1598
    %v2647 = vunpack.c.l.b16 %v1599
    %v2648 = vunpack.c.h.b16 %v1599
    %v2649 = vunpack.c.l.b16 %v1600
    %v2650 = vunpack.c.h.b16 %v1600
    %v2651 = vunpack.c.l.b16 %v1601
    %v2652 = vunpack.c.h.b16 %v1601
    %v2653 = vunpack.c.l.b16 %v1602
    %v2654 = vunpack.c.h.b16 %v1602
    %v2655 = vunpack.c.l.b16 %v1603
    %v2656 = vunpack.c.h.b16 %v1603
    %v2657 = vunpack.c.l.b16 %v1604
    %v2658 = vunpack.c.h.b16 %v1604
    %v2659 = vunpack.c.l.b16 %v1605
    %v2660 = vunpack.c.h.b16 %v1605
    %v2661 = vunpack.c.l.b16 %v1606
    %v2662 = vunpack.c.h.b16 %v1606
    %v2663 = vunpack.c.l.b16 %v1607
    %v2664 = vunpack.c.h.b16 %v1607
    %v2665 = vunpack.c.l.b16 %v1608
    %v2666 = vunpack.c.h.b16 %v1608
    %v2667 = vunpack.c.l.b16 %v1609
    %v2668 = vunpack.c.h.b16 %v1609
    %v2669 = vunpack.c.l.b16 %v1610
    %v2670 = vunpack.c.h.b16 %v1610
    %v2671 = vunpack.c.l.b16 %v1611
    %v2672 = vunpack.c.h.b16 %v1611
    %v2673 = vunpack.c.l.b16 %v1612
    %v2674 = vunpack.c.h.b16 %v1612
    %v2675 = vunpack.c.l.b16 %v1613
    %v2676 = vunpack.c.h.b16 %v1613
    %v2677 = vunpack.c.l.b16 %v1614
    %v2678 = vunpack.c.h.b16 %v1614
    %v2679 = vunpack.c.l.b16 %v1615
    %v2680 = vunpack.c.h.b16 %v1615
    %v2681 = vunpack.c.l.b16 %v1616
    %v2682 = vunpack.c.h.b16 %v1616
    %v2683 = vunpack.c.l.b16 %v1617
    %v2684 = vunpack.c.h.b16 %v1617
    %v2685 = vunpack.c.l.b16 %v1618
    %v2686 = vunpack.c.h.b16 %v1618
    %v2687 = vunpack.c.l.b16 %v1619
    %v2688 = vunpack.c.h.b16 %v1619
    %v2689 = vunpack.c.l.b16 %v1620
    %v2690 = vunpack.c.h.b16 %v1620
    %v2691 = vunpack.c.l.b16 %v1621
    %v2692 = vunpack.c.h.b16 %v1621
    %v2693 = vunpack.c.l.b16 %v1622
    %v2694 = vunpack.c.h.b16 %v1622
    %v2695 = vunpack.c.l.b16 %v1623
    %v2696 = vunpack.c.h.b16 %v1623
    %v2697 = vunpack.c.l.b16 %v1624
    %v2698 = vunpack.c.h.b16 %v1624
    %v2699 = vunpack.c.l.b16 %v1625
    %v2700 = vunpack.c.h.b16 %v1625
    %v2701 = vunpack.c.l.b16 %v1626
    %v2702 = vunpack.c.h.b16 %v1626
    %v2703 = vunpack.c.l.b16 %v1627
    %v2704 = vunpack.c.h.b16 %v1627
    %v2705 = vunpack.c.l.b16 %v1628
    %v2706 = vunpack.c.h.b16 %v1628
    %v2707 = vunpack.c.l.b16 %v1629
    %v2708 = vunpack.c.h.b16 %v1629
    %v2709 = vunpack.c.l.b16 %v1630
    %v2710 = vunpack.c.h.b16 %v1630
    %v2711 = vunpack.c.l.b16 %v1631
    %v2712 = vunpack.c.h.b16 %v1631
    %v2713 = vunpack.c.l.b16 %v1632
    %v2714 = vunpack.c.h.b16 %v1632
    %v2715 = vunpack.c.l.b16 %v1633
    %v2716 = vunpack.c.h.b16 %v1633
    %v2717 = vunpack.c.l.b16 %v1634
    %v2718 = vunpack.c.h.b16 %v1634
    %v2719 = vunpack.c.l.b16 %v1635
    %v2720 = vunpack.c.h.b16 %v1635
    %v2721 = vunpack.c.l.b16 %v1636
    %v2722 = vunpack.c.h.b16 %v1636
    %v2723 = vunpack.c.l.b16 %v1637
    %v2724 = vunpack.c.h.b16 %v1637
    %v2725 = vunpack.c.l.b16 %v1638
    %v2726 = vunpack.c.h.b16 %v1638
    %v2727 = vunpack.c.l.b16 %v1639
    %v2728 = vunpack.c.h.b16 %v1639
    %v2729 = vunpack.c.l.b16 %v1640
    %v2730 = vunpack.c.h.b16 %v1640
    %v2731 = vunpack.c.l.b16 %v1641
    %v2732 = vunpack.c.h.b16 %v1641
    %v2733 = vunpack.c.l.b16 %v1642
    %v2734 = vunpack.c.h.b16 %v1642
    %v2735 = vunpack.c.l.b16 %v1643
    %v2736 = vunpack.c.h.b16 %v1643
    %v2737 = vunpack.c.l.b16 %v1644
    %v2738 = vunpack.c.h.b16 %v1644
    %v2739 = vunpack.c.l.b16 %v1645
    %v2740 = vunpack.c.h.b16 %v1645
    %v2741 = vunpack.c.l.b16 %v1646
    %v2742 = vunpack.c.h.b16 %v1646
    %v2743 = vunpack.c.l.b16 %v1647
    %v2744 = vunpack.c.h.b16 %v1647
    %v2745 = vunpack.c.l.b16 %v1648
    %v2746 = vunpack.c.h.b16 %v1648
    %v2747 = vunpack.c.l.b16 %v1649
    %v2748 = vunpack.c.h.b16 %v1649
    %v2749 = vunpack.c.l.b16 %v1650
    %v2750 = vunpack.c.h.b16 %v1650
    %v2751 = vunpack.c.l.b16 %v1651
    %v2752 = vunpack.c.h.b16 %v1651
    %v2753 = vunpack.c.l.b16 %v1652
    %v2754 = vunpack.c.h.b16 %v1652
    %v2755 = vunpack.c.l.b16 %v1653
    %v2756 = vunpack.c.h.b16 %v1653
    %v2757 = vunpack.c.l.b16 %v1654
    %v2758 = vunpack.c.h.b16 %v1654
    %v2759 = vunpack.c.l.b16 %v1655
    %v2760 = vunpack.c.h.b16 %v1655
    %v2761 = vunpack.c.l.b16 %v1656
    %v2762 = vunpack.c.h.b16 %v1656
    %v2763 = vunpack.c.l.b16 %v1657
    %v2764 = vunpack.c.h.b16 %v1657
    %v2765 = vunpack.c.l.b16 %v1658
    %v2766 = vunpack.c.h.b16 %v1658
    %v2767 = vunpack.c.l.b16 %v1659
    %v2768 = vunpack.c.h.b16 %v1659
    %v2769 = vunpack.c.l.b16 %v1660
    %v2770 = vunpack.c.h.b16 %v1660
    %v2771 = vunpack.c.l.b16 %v1661
    %v2772 = vunpack.c.h.b16 %v1661
    %v2773 = vunpack.c.l.b16 %v1662
    %v2774 = vunpack.c.h.b16 %v1662
    %v2775 = vunpack.c.l.b16 %v1663
    %v2776 = vunpack.c.h.b16 %v1663
    %v2777 = vunpack.c.l.b16 %v1664
    %v2778 = vunpack.c.h.b16 %v1664
    %v2779 = vunpack.c.l.b16 %v1665
    %v2780 = vunpack.c.h.b16 %v1665
    %v2781 = vunpack.c.l.b16 %v1666
    %v2782 = vunpack.c.h.b16 %v1666
    %v2783 = vunpack.c.l.b16 %v1667
    %v2784 = vunpack.c.h.b16 %v1667
    %v2785 = vunpack.c.l.b16 %v1668
    %v2786 = vunpack.c.h.b16 %v1668
    %v2787 = vunpack.c.l.b16 %v1669
    %v2788 = vunpack.c.h.b16 %v1669
    %v2789 = vunpack.c.l.b16 %v1670
    %v2790 = vunpack.c.h.b16 %v1670
    %v2791 = vunpack.c.l.b16 %v1671
    %v2792 = vunpack.c.h.b16 %v1671
    %v2793 = vunpack.c.l.b16 %v1672
    %v2794 = vunpack.c.h.b16 %v1672
    %v2795 = vunpack.c.l.b16 %v1673
    %v2796 = vunpack.c.h.b16 %v1673
    %v2797 = vunpack.c.l.b16 %v1674
    %v2798 = vunpack.c.h.b16 %v1674
    %v2799 = vunpack.c.l.b16 %v1675
    %v2800 = vunpack.c.h.b16 %v1675
    %v2801 = vunpack.c.l.b16 %v1676
    %v2802 = vunpack.c.h.b16 %v1676
    %v2803 = vunpack.c.l.b16 %v1677
    %v2804 = vunpack.c.h.b16 %v1677
    %v2805 = vunpack.c.l.b16 %v1678
    %v2806 = vunpack.c.h.b16 %v1678
    %v2807 = vunpack.c.l.b16 %v1679
    %v2808 = vunpack.c.h.b16 %v1679
    %v2809 = vunpack.c.l.b16 %v1680
    %v2810 = vunpack.c.h.b16 %v1680
    %v2811 = vunpack.c.l.b16 %v1681
    %v2812 = vunpack.c.h.b16 %v1681
    %v2813 = vunpack.c.l.b16 %v1682
    %v2814 = vunpack.c.h.b16 %v1682
    %v2815 = vunpack.c.l.b16 %v1683
    %v2816 = vunpack.c.h.b16 %v1683
    %v2817 = vunpack.c.l.b16 %v1684
    %v2818 = vunpack.c.h.b16 %v1684
    %v2819 = vunpack.c.l.b16 %v1685
    %v2820 = vunpack.c.h.b16 %v1685
    %v2821 = vunpack.c.l.b16 %v1686
    %v2822 = vunpack.c.h.b16 %v1686
    %v2823 = vunpack.c.l.b16 %v1687
    %v2824 = vunpack.c.h.b16 %v1687
    %v2825 = vunpack.c.l.b16 %v1688
    %v2826 = vunpack.c.h.b16 %v1688
    %v2827 = vunpack.c.l.b16 %v1689
    %v2828 = vunpack.c.h.b16 %v1689
    %v2829 = vunpack.c.l.b16 %v1690
    %v2830 = vunpack.c.h.b16 %v1690
    %v2831 = vunpack.c.l.b16 %v1691
    %v2832 = vunpack.c.h.b16 %v1691
    %v2833 = vunpack.c.l.b16 %v1692
    %v2834 = vunpack.c.h.b16 %v1692
    %v2835 = vunpack.c.l.b16 %v1693
    %v2836 = vunpack.c.h.b16 %v1693
    %v2837 = vunpack.c.l.b16 %v1694
    %v2838 = vunpack.c.h.b16 %v1694
    %v2839 = vunpack.c.l.b16 %v1695
    %v2840 = vunpack.c.h.b16 %v1695
    %v2841 = vunpack.c.l.b16 %v1696
    %v2842 = vunpack.c.h.b16 %v1696
    %v2843 = vunpack.c.l.b16 %v1697
    %v2844 = vunpack.c.h.b16 %v1697
    %v2845 = vunpack.c.l.b16 %v1698
    %v2846 = vunpack.c.h.b16 %v1698
    %v2847 = vunpack.c.l.b16 %v1699
    %v2848 = vunpack.c.h.b16 %v1699
    %v2849 = vunpack.c.l.b16 %v1700
    %v2850 = vunpack.c.h.b16 %v1700
    %v2851 = vunpack.c.l.b16 %v1701
    %v2852 = vunpack.c.h.b16 %v1701
    %v2853 = vunpack.c.l.b16 %v1702
    %v2854 = vunpack.c.h.b16 %v1702
    %v2855 = vunpack.c.l.b16 %v1703
    %v2856 = vunpack.c.h.b16 %v1703
    %v2857 = vunpack.c.l.b16 %v1704
    %v2858 = vunpack.c.h.b16 %v1704
    %v2859 = vunpack.c.l.b16 %v1705
    %v2860 = vunpack.c.h.b16 %v1705
    %v2861 = vunpack.c.l.b16 %v1706
    %v2862 = vunpack.c.h.b16 %v1706
    %v2863 = vunpack.c.l.b16 %v1707
    %v2864 = vunpack.c.h.b16 %v1707
    %v2865 = vunpack.c.l.b16 %v1708
    %v2866 = vunpack.c.h.b16 %v1708
    %v2867 = vunpack.c.l.b16 %v1709
    %v2868 = vunpack.c.h.b16 %v1709
    %v2869 = vunpack.c.l.b16 %v1710
    %v2870 = vunpack.c.h.b16 %v1710
    %v2871 = vunpack.c.l.b16 %v1711
    %v2872 = vunpack.c.h.b16 %v1711
    %v2873 = vunpack.c.l.b16 %v1712
    %v2874 = vunpack.c.h.b16 %v1712
    %v2875 = vunpack.c.l.b16 %v1713
    %v2876 = vunpack.c.h.b16 %v1713
    %v2877 = vunpack.c.l.b16 %v1714
    %v2878 = vunpack.c.h.b16 %v1714
    %v2879 = vunpack.c.l.b16 %v1715
    %v2880 = vunpack.c.h.b16 %v1715
    %v2881 = vunpack.c.l.b16 %v1716
    %v2882 = vunpack.c.h.b16 %v1716
    %v2883 = vunpack.c.l.b16 %v1717
    %v2884 = vunpack.c.h.b16 %v1717
    %v2885 = vunpack.c.l.b16 %v1718
    %v2886 = vunpack.c.h.b16 %v1718
    %v2887 = vunpack.c.l.b16 %v1719
    %v2888 = vunpack.c.h.b16 %v1719
    %v2889 = vunpack.c.l.b16 %v1720
    %v2890 = vunpack.c.h.b16 %v1720
    %v2891 = vunpack.c.l.b16 %v1721
    %v2892 = vunpack.c.h.b16 %v1721
    %v2893 = vunpack.c.l.b16 %v1722
    %v2894 = vunpack.c.h.b16 %v1722
    %v2895 = vunpack.c.l.b16 %v1723
    %v2896 = vunpack.c.h.b16 %v1723
    %v2897 = vunpack.c.l.b16 %v1724
    %v2898 = vunpack.c.h.b16 %v1724
    %v2899 = vunpack.c.l.b16 %v1725
    %v2900 = vunpack.c.h.b16 %v1725
    %v2901 = vunpack.c.l.b16 %v1726
    %v2902 = vunpack.c.h.b16 %v1726
    %v2903 = vunpack.c.l.b16 %v1727
    %v2904 = vunpack.c.h.b16 %v1727
    %v2905 = vunpack.c.l.b16 %v1728
    %v2906 = vunpack.c.h.b16 %v1728
    %v2907 = vunpack.c.l.b16 %v1729
    %v2908 = vunpack.c.h.b16 %v1729
    %v2909 = vunpack.c.l.b16 %v1730
    %v2910 = vunpack.c.h.b16 %v1730
    %v2911 = vunpack.c.l.b16 %v1731
    %v2912 = vunpack.c.h.b16 %v1731
    %v2913 = vunpack.c.l.b16 %v1732
    %v2914 = vunpack.c.h.b16 %v1732
    %v2915 = vunpack.c.l.b16 %v1733
    %v2916 = vunpack.c.h.b16 %v1733
    %v2917 = vunpack.c.l.b16 %v1734
    %v2918 = vunpack.c.h.b16 %v1734
    %v2919 = vunpack.c.l.b16 %v1735
    %v2920 = vunpack.c.h.b16 %v1735
    %v2921 = vunpack.c.l.b16 %v1736
    %v2922 = vunpack.c.h.b16 %v1736
    %v2923 = vunpack.c.l.b16 %v1737
    %v2924 = vunpack.c.h.b16 %v1737
    %v2925 = vunpack.c.l.b16 %v1738
    %v2926 = vunpack.c.h.b16 %v1738
    %v2927 = vunpack.c.l.b16 %v1739
    %v2928 = vunpack.c.h.b16 %v1739
    %v2929 = vunpack.c.l.b16 %v1740
    %v2930 = vunpack.c.h.b16 %v1740
    %v2931 = vunpack.c.l.b16 %v1741
    %v2932 = vunpack.c.h.b16 %v1741
    %v2933 = vunpack.c.l.b16 %v1742
    %v2934 = vunpack.c.h.b16 %v1742
    %v2935 = vunpack.c.l.b16 %v1743
    %v2936 = vunpack.c.h.b16 %v1743
    %v2937 = vunpack.c.l.b16 %v1744
    %v2938 = vunpack.c.h.b16 %v1744
    %v2939 = vunpack.c.l.b16 %v1745
    %v2940 = vunpack.c.h.b16 %v1745
    %v2941 = vunpack.c.l.b16 %v1746
    %v2942 = vunpack.c.h.b16 %v1746
    %v2943 = vunpack.c.l.b16 %v1747
    %v2944 = vunpack.c.h.b16 %v1747
    %v2945 = vunpack.c.l.b16 %v1748
    %v2946 = vunpack.c.h.b16 %v1748
    %v2947 = vunpack.c.l.b16 %v1749
    %v2948 = vunpack.c.h.b16 %v1749
    %v2949 = vunpack.c.l.b16 %v1750
    %v2950 = vunpack.c.h.b16 %v1750
    %v2951 = vunpack.c.l.b16 %v1751
    %v2952 = vunpack.c.h.b16 %v1751
    %v2953 = vunpack.c.l.b16 %v1752
    %v2954 = vunpack.c.h.b16 %v1752
    %v2955 = vunpack.c.l.b16 %v1753
    %v2956 = vunpack.c.h.b16 %v1753
    %v2957 = vunpack.c.l.b16 %v1754
    %v2958 = vunpack.c.h.b16 %v1754
    %v2959 = vunpack.c.l.b16 %v1755
    %v2960 = vunpack.c.h.b16 %v1755
    %v2961 = vunpack.c.l.b16 %v1756
    %v2962 = vunpack.c.h.b16 %v1756
    %v2963 = vunpack.c.l.b16 %v1757
    %v2964 = vunpack.c.h.b16 %v1757
    %v2965 = vunpack.c.l.b16 %v1758
    %v2966 = vunpack.c.h.b16 %v1758
    %v2967 = vunpack.c.l.b16 %v1759
    %v2968 = vunpack.c.h.b16 %v1759
    %v2969 = vunpack.c.l.b16 %v1760
    %v2970 = vunpack.c.h.b16 %v1760
    %v2971 = vunpack.c.l.b16 %v1761
    %v2972 = vunpack.c.h.b16 %v1761
    %v2973 = vunpack.c.l.b16 %v1762
    %v2974 = vunpack.c.h.b16 %v1762
    %v2975 = vunpack.c.l.b16 %v1763
    %v2976 = vunpack.c.h.b16 %v1763
    %v2977 = vunpack.c.l.b16 %v1764
    %v2978 = vunpack.c.h.b16 %v1764
    %v2979 = vunpack.c.l.b16 %v1765
    %v2980 = vunpack.c.h.b16 %v1765
    %v2981 = vunpack.c.l.b16 %v1766
    %v2982 = vunpack.c.h.b16 %v1766
    %v2983 = vunpack.c.l.b16 %v1767
    %v2984 = vunpack.c.h.b16 %v1767
    %v2985 = vunpack.c.l.b16 %v1768
    %v2986 = vunpack.c.h.b16 %v1768
    %v2987 = vunpack.c.l.b16 %v1769
    %v2988 = vunpack.c.h.b16 %v1769
    %v2989 = vunpack.c.l.b16 %v1770
    %v2990 = vunpack.c.h.b16 %v1770
    %v2991 = vunpack.c.l.b16 %v1771
    %v2992 = vunpack.c.h.b16 %v1771
    %v2993 = vunpack.c.l.b16 %v1772
    %v2994 = vunpack.c.h.b16 %v1772
    %v2995 = vunpack.c.l.b16 %v1773
    %v2996 = vunpack.c.h.b16 %v1773
    %v2997 = vunpack.c.l.b16 %v1774
    %v2998 = vunpack.c.h.b16 %v1774
    %v2999 = vunpack.c.l.b16 %v1775
    %v3000 = vunpack.c.h.b16 %v1775
    %v3001 = vunpack.c.l.b16 %v1776
    %v3002 = vunpack.c.h.b16 %v1776
    %v3003 = vunpack.c.l.b16 %v1777
    %v3004 = vunpack.c.h.b16 %v1777
    %v3005 = vunpack.c.l.b16 %v1778
    %v3006 = vunpack.c.h.b16 %v1778
    %v3007 = vunpack.c.l.b16 %v1779
    %v3008 = vunpack.c.h.b16 %v1779
    %v3009 = vunpack.c.l.b16 %v1780
    %v3010 = vunpack.c.h.b16 %v1780
    %v3011 = vunpack.c.l.b16 %v1781
    %v3012 = vunpack.c.h.b16 %v1781
    %v3013 = vunpack.c.l.b16 %v1782
    %v3014 = vunpack.c.h.b16 %v1782
    %v3015 = vunpack.c.l.b16 %v1783
    %v3016 = vunpack.c.h.b16 %v1783
    %v3017 = vunpack.c.l.b16 %v1784
    %v3018 = vunpack.c.h.b16 %v1784
    %v3019 = vunpack.c.l.b16 %v1785
    %v3020 = vunpack.c.h.b16 %v1785
    %v3021 = vunpack.c.l.b16 %v1786
    %v3022 = vunpack.c.h.b16 %v1786
    %v3023 = vunpack.c.l.b16 %v1787
    %v3024 = vunpack.c.h.b16 %v1787
    %v3025 = vunpack.c.l.b16 %v1788
    %v3026 = vunpack.c.h.b16 %v1788
    %v3027 = vunpack.c.l.b16 %v1789
    %v3028 = vunpack.c.h.b16 %v1789
    %v3029 = vunpack.c.l.b16 %v1790
    %v3030 = vunpack.c.h.b16 %v1790
    %v3031 = vunpack.c.l.b16 %v1791
    %v3032 = vunpack.c.h.b16 %v1791
    %v3033 = vunpack.c.l.b16 %v1792
    %v3034 = vunpack.c.h.b16 %v1792
    %v3035 = vunpack.c.l.b16 %v1793
    %v3036 = vunpack.c.h.b16 %v1793
    %v3037 = vunpack.c.l.b16 %v1794
    %v3038 = vunpack.c.h.b16 %v1794
    %v3039 = vunpack.c.l.b16 %v1795
    %v3040 = vunpack.c.h.b16 %v1795
    %v3041 = vunpack.c.l.b16 %v1796
    %v3042 = vunpack.c.h.b16 %v1796
    %v3043 = vunpack.c.l.b16 %v1797
    %v3044 = vunpack.c.h.b16 %v1797
    %v3045 = vunpack.c.l.b16 %v1798
    %v3046 = vunpack.c.h.b16 %v1798
    %v3047 = vunpack.c.l.b16 %v1799
    %v3048 = vunpack.c.h.b16 %v1799
    %v3049 = vunpack.c.l.b16 %v1800
    %v3050 = vunpack.c.h.b16 %v1800
    %v3051 = vunpack.c.l.b16 %v1801
    %v3052 = vunpack.c.h.b16 %v1801
    %v3053 = vunpack.c.l.b16 %v1802
    %v3054 = vunpack.c.h.b16 %v1802
    %v3055 = vunpack.c.l.b16 %v1803
    %v3056 = vunpack.c.h.b16 %v1803
    %v3057 = vunpack.c.l.b16 %v1804
    %v3058 = vunpack.c.h.b16 %v1804
    %v3059 = vunpack.c.l.b16 %v1805
    %v3060 = vunpack.c.h.b16 %v1805
    %v3061 = vunpack.c.l.b16 %v1806
    %v3062 = vunpack.c.h.b16 %v1806
    %v3063 = vunpack.c.l.b16 %v1807
    %v3064 = vunpack.c.h.b16 %v1807
    %v3065 = vunpack.c.l.b16 %v1808
    %v3066 = vunpack.c.h.b16 %v1808
    %v3067 = vunpack.c.l.b16 %v1809
    %v3068 = vunpack.c.h.b16 %v1809
    %v3069 = vunpack.c.l.b16 %v1810
    %v3070 = vunpack.c.h.b16 %v1810
    %v3071 = vunpack.c.l.b16 %v1811
    %v3072 = vunpack.c.h.b16 %v1811
    %v3073 = vunpack.c.l.b16 %v1812
    %v3074 = vunpack.c.h.b16 %v1812
    %v3075 = vunpack.c.l.b16 %v1813
    %v3076 = vunpack.c.h.b16 %v1813
    %v3077 = vunpack.c.l.b16 %v1814
    %v3078 = vunpack.c.h.b16 %v1814
    %v3079 = vunpack.c.l.b16 %v1815
    %v3080 = vunpack.c.h.b16 %v1815
    %v3081 = vunpack.c.l.b16 %v1816
    %v3082 = vunpack.c.h.b16 %v1816
    %v3083 = vunpack.c.l.b16 %v1817
    %v3084 = vunpack.c.h.b16 %v1817
    %v3085 = vunpack.c.l.b16 %v1818
    %v3086 = vunpack.c.h.b16 %v1818
    %v3087 = vunpack.c.l.b16 %v1819
    %v3088 = vunpack.c.h.b16 %v1819
    %v3089 = vunpack.c.l.b16 %v1820
    %v3090 = vunpack.c.h.b16 %v1820
    %v3091 = vunpack.c.l.b16 %v1821
    %v3092 = vunpack.c.h.b16 %v1821
    %v3093 = vunpack.c.l.b16 %v1822
    %v3094 = vunpack.c.h.b16 %v1822
    %v3095 = vunpack.c.l.b16 %v1823
    %v3096 = vunpack.c.h.b16 %v1823
    %v3097 = vunpack.c.l.b16 %v1824
    %v3098 = vunpack.c.h.b16 %v1824
    %v3099 = vunpack.c.l.b16 %v1825
    %v3100 = vunpack.c.h.b16 %v1825
    %v3101 = vunpack.c.l.b16 %v1826
    %v3102 = vunpack.c.h.b16 %v1826
    %v3103 = vunpack.c.l.b16 %v1827
    %v3104 = vunpack.c.h.b16 %v1827
    %v3105 = vunpack.c.l.b16 %v1828
    %v3106 = vunpack.c.h.b16 %v1828
    %v3107 = vunpack.c.l.b16 %v1829
    %v3108 = vunpack.c.h.b16 %v1829
    %v3109 = vunpack.c.l.b16 %v1830
    %v3110 = vunpack.c.h.b16 %v1830
    %v3111 = vunpack.c.l.b16 %v1831
    %v3112 = vunpack.c.h.b16 %v1831
    %v3113 = vunpack.c.l.b16 %v1832
    %v3114 = vunpack.c.h.b16 %v1832
    %v3115 = vunpack.c.l.b16 %v1833
    %v3116 = vunpack.c.h.b16 %v1833
    %v3117 = vunpack.c.l.b16 %v1834
    %v3118 = vunpack.c.h.b16 %v1834
    %v3119 = vunpack.c.l.b16 %v1835
    %v3120 = vunpack.c.h.b16 %v1835
    %v3121 = vunpack.c.l.b16 %v1836
    %v3122 = vunpack.c.h.b16 %v1836
    %v3123 = vunpack.c.l.b16 %v1837
    %v3124 = vunpack.c.h.b16 %v1837
    %v3125 = vunpack.c.l.b16 %v1838
    %v3126 = vunpack.c.h.b16 %v1838
    %v3127 = vunpack.c.l.b16 %v1839
    %v3128 = vunpack.c.h.b16 %v1839
    %v3129 = vunpack.c.l.b16 %v1840
    %v3130 = vunpack.c.h.b16 %v1840
    %v3131 = vunpack.c.l.b16 %v1841
    %v3132 = vunpack.c.h.b16 %v1841
    %v3133 = vunpack.c.l.b16 %v1842
    %v3134 = vunpack.c.h.b16 %v1842
    %v3135 = vunpack.c.l.b16 %v1843
    %v3136 = vunpack.c.h.b16 %v1843
    %v3137 = vunpack.c.l.b16 %v1844
    %v3138 = vunpack.c.h.b16 %v1844
    %v3139 = vunpack.c.l.b16 %v1845
    %v3140 = vunpack.c.h.b16 %v1845
    %v3141 = vunpack.c.l.b16 %v1846
    %v3142 = vunpack.c.h.b16 %v1846
    %v3143 = vunpack.c.l.b16 %v1847
    %v3144 = vunpack.c.h.b16 %v1847
    %v3145 = vunpack.c.l.b16 %v1848
    %v3146 = vunpack.c.h.b16 %v1848
    %v3147 = vunpack.c.l.b16 %v1849
    %v3148 = vunpack.c.h.b16 %v1849
    %v3149 = vunpack.c.l.b16 %v1850
    %v3150 = vunpack.c.h.b16 %v1850
    %v3151 = vunpack.c.l.b16 %v1851
    %v3152 = vunpack.c.h.b16 %v1851
    %v3153 = vunpack.c.l.b16 %v1852
    %v3154 = vunpack.c.h.b16 %v1852
    %v3155 = vunpack.c.l.b16 %v1853
    %v3156 = vunpack.c.h.b16 %v1853
    %v3157 = vunpack.c.l.b16 %v1854
    %v3158 = vunpack.c.h.b16 %v1854
    %v3159 = vunpack.c.l.b16 %v1855
    %v3160 = vunpack.c.h.b16 %v1855
    %v3161 = vunpack.c.l.b16 %v1856
    %v3162 = vunpack.c.h.b16 %v1856
    %v3163 = vunpack.c.l.b16 %v1857
    %v3164 = vunpack.c.h.b16 %v1857
    %v3165 = vunpack.c.l.b16 %v1858
    %v3166 = vunpack.c.h.b16 %v1858
    %v3167 = vunpack.c.l.b16 %v1859
    %v3168 = vunpack.c.h.b16 %v1859
    %v3169 = vunpack.c.l.b16 %v1860
    %v3170 = vunpack.c.h.b16 %v1860
    %v3171 = vunpack.c.l.b16 %v1861
    %v3172 = vunpack.c.h.b16 %v1861
    %v3173 = vunpack.c.l.b16 %v1862
    %v3174 = vunpack.c.h.b16 %v1862
    %v3175 = vunpack.c.l.b16 %v1863
    %v3176 = vunpack.c.h.b16 %v1863
    %v3177 = vunpack.c.l.b16 %v1864
    %v3178 = vunpack.c.h.b16 %v1864
    %v3179 = vunpack.c.l.b16 %v1865
    %v3180 = vunpack.c.h.b16 %v1865
    %v3181 = vunpack.c.l.b16 %v1866
    %v3182 = vunpack.c.h.b16 %v1866
    %v3183 = vunpack.c.l.b16 %v1867
    %v3184 = vunpack.c.h.b16 %v1867
    %v3185 = vunpack.c.l.b16 %v1868
    %v3186 = vunpack.c.h.b16 %v1868
    %v3187 = vunpack.c.l.b16 %v1869
    %v3188 = vunpack.c.h.b16 %v1869
    %v3189 = vunpack.c.l.b16 %v1870
    %v3190 = vunpack.c.h.b16 %v1870
    %v3191 = vunpack.c.l.b16 %v1871
    %v3192 = vunpack.c.h.b16 %v1871
    %v3193 = vunpack.c.l.b16 %v1872
    %v3194 = vunpack.c.h.b16 %v1872
    %v3195 = vunpack.c.l.b16 %v1873
    %v3196 = vunpack.c.h.b16 %v1873
    %v3197 = vunpack.c.l.b16 %v1874
    %v3198 = vunpack.c.h.b16 %v1874
    %v3199 = vunpack.c.l.b16 %v1875
    %v3200 = vunpack.c.h.b16 %v1875
    %v3201 = vunpack.c.l.b16 %v1876
    %v3202 = vunpack.c.h.b16 %v1876
    %v3203 = vunpack.c.l.b16 %v1877
    %v3204 = vunpack.c.h.b16 %v1877
    %v3205 = vunpack.c.l.b16 %v1878
    %v3206 = vunpack.c.h.b16 %v1878
    %v3207 = vunpack.c.l.b16 %v1879
    %v3208 = vunpack.c.h.b16 %v1879
    %v3209 = vunpack.c.l.b16 %v1880
    %v3210 = vunpack.c.h.b16 %v1880
    %v3211 = vunpack.c.l.b16 %v1881
    %v3212 = vunpack.c.h.b16 %v1881
    %v3213 = vunpack.c.l.b16 %v1882
    %v3214 = vunpack.c.h.b16 %v1882
    %v3215 = vunpack.c.l.b16 %v1883
    %v3216 = vunpack.c.h.b16 %v1883
    %v3217 = vunpack.c.l.b16 %v1884
    %v3218 = vunpack.c.h.b16 %v1884
    %v3219 = vunpack.c.l.b16 %v1885
    %v3220 = vunpack.c.h.b16 %v1885
    %v3221 = vunpack.c.l.b16 %v1886
    %v3222 = vunpack.c.h.b16 %v1886
    %v3223 = vunpack.c.l.b16 %v1887
    %v3224 = vunpack.c.h.b16 %v1887
    %v3225 = vunpack.c.l.b16 %v1888
    %v3226 = vunpack.c.h.b16 %v1888
    %v3227 = vunpack.c.l.b16 %v1889
    %v3228 = vunpack.c.h.b16 %v1889
    %v3229 = vunpack.c.l.b16 %v1890
    %v3230 = vunpack.c.h.b16 %v1890
    %v3231 = vunpack.c.l.b16 %v1891
    %v3232 = vunpack.c.h.b16 %v1891
    %v3233 = vunpack.c.l.b16 %v1892
    %v3234 = vunpack.c.h.b16 %v1892
    %v3235 = vunpack.c.l.b16 %v1893
    %v3236 = vunpack.c.h.b16 %v1893
    %v3237 = vunpack.c.l.b16 %v1894
    %v3238 = vunpack.c.h.b16 %v1894
    %v3239 = vunpack.c.l.b16 %v1895
    %v3240 = vunpack.c.h.b16 %v1895
    %v3241 = vunpack.c.l.b16 %v1896
    %v3242 = vunpack.c.h.b16 %v1896
    %v3243 = vunpack.c.l.b16 %v1897
    %v3244 = vunpack.c.h.b16 %v1897
    %v3245 = vunpack.c.l.b16 %v1898
    %v3246 = vunpack.c.h.b16 %v1898
    %v3247 = vunpack.c.l.b16 %v1899
    %v3248 = vunpack.c.h.b16 %v1899
    %v3249 = vunpack.c.l.b16 %v1900
    %v3250 = vunpack.c.h.b16 %v1900
    %v3251 = vunpack.c.l.b16 %v1901
    %v3252 = vunpack.c.h.b16 %v1901
    %v3253 = vunpack.c.l.b16 %v1902
    %v3254 = vunpack.c.h.b16 %v1902
    %v3255 = vunpack.c.l.b16 %v1903
    %v3256 = vunpack.c.h.b16 %v1903
    %v3257 = vunpack.c.l.b16 %v1904
    %v3258 = vunpack.c.h.b16 %v1904
    %v3259 = vunpack.c.l.b16 %v1905
    %v3260 = vunpack.c.h.b16 %v1905
    %v3261 = vunpack.c.l.b16 %v1906
    %v3262 = vunpack.c.h.b16 %v1906
    %v3263 = vunpack.c.l.b16 %v1907
    %v3264 = vunpack.c.h.b16 %v1907
    %v3265 = vunpack.c.l.b16 %v1908
    %v3266 = vunpack.c.h.b16 %v1908
    %v3267 = vunpack.c.l.b16 %v1909
    %v3268 = vunpack.c.h.b16 %v1909
    %v3269 = vunpack.c.l.b16 %v1910
    %v3270 = vunpack.c.h.b16 %v1910
    %v3271 = vunpack.c.l.b16 %v1911
    %v3272 = vunpack.c.h.b16 %v1911
    %v3273 = vunpack.c.l.b16 %v1912
    %v3274 = vunpack.c.h.b16 %v1912
    %v3275 = vunpack.c.l.b16 %v1913
    %v3276 = vunpack.c.h.b16 %v1913
    %v3277 = vunpack.c.l.b16 %v1914
    %v3278 = vunpack.c.h.b16 %v1914
    %v3279 = vunpack.c.l.b16 %v1915
    %v3280 = vunpack.c.h.b16 %v1915
    %v3281 = vunpack.c.l.b16 %v1916
    %v3282 = vunpack.c.h.b16 %v1916
    %v3283 = vunpack.c.l.b16 %v1917
    %v3284 = vunpack.c.h.b16 %v1917
    %v3285 = vunpack.c.l.b16 %v1918
    %v3286 = vunpack.c.h.b16 %v1918
    %v3287 = vunpack.c.l.b16 %v1919
    %v3288 = vunpack.c.h.b16 %v1919
    %v3289 = vunpack.c.l.b16 %v1920
    %v3290 = vunpack.c.h.b16 %v1920
    %v3291 = vunpack.c.l.b16 %v1921
    %v3292 = vunpack.c.h.b16 %v1921
    %v3293 = vunpack.c.l.b16 %v1922
    %v3294 = vunpack.c.h.b16 %v1922
    %v3295 = vunpack.c.l.b16 %v1923
    %v3296 = vunpack.c.h.b16 %v1923
    %v3297 = vunpack.c.l.b16 %v1924
    %v3298 = vunpack.c.h.b16 %v1924
    %v3299 = vunpack.c.l.b16 %v1925
    %v3300 = vunpack.c.h.b16 %v1925
    %v3301 = vunpack.c.l.b16 %v1926
    %v3302 = vunpack.c.h.b16 %v1926
    %v3303 = vunpack.c.l.b16 %v1927
    %v3304 = vunpack.c.h.b16 %v1927
    %v3305 = vunpack.c.l.b16 %v1928
    %v3306 = vunpack.c.h.b16 %v1928
    %v3307 = vunpack.c.l.b16 %v1929
    %v3308 = vunpack.c.h.b16 %v1929
    %v3309 = vunpack.c.l.b16 %v1930
    %v3310 = vunpack.c.h.b16 %v1930
    %v3311 = vunpack.c.l.b16 %v1931
    %v3312 = vunpack.c.h.b16 %v1931
    %v3313 = vunpack.c.l.b16 %v1932
    %v3314 = vunpack.c.h.b16 %v1932
    %v3315 = vunpack.c.l.b16 %v1933
    %v3316 = vunpack.c.h.b16 %v1933
    %v3317 = vunpack.c.l.b16 %v1934
    %v3318 = vunpack.c.h.b16 %v1934
    %v3319 = vunpack.c.l.b16 %v1935
    %v3320 = vunpack.c.h.b16 %v1935
    %v3321 = vunpack.c.l.b16 %v1936
    %v3322 = vunpack.c.h.b16 %v1936
    %v3323 = vunpack.c.l.b16 %v1937
    %v3324 = vunpack.c.h.b16 %v1937
    %v3325 = vunpack.c.l.b16 %v1938
    %v3326 = vunpack.c.h.b16 %v1938
    %v3327 = vunpack.c.l.b16 %v1939
    %v3328 = vunpack.c.h.b16 %v1939
    %v3329 = vunpack.c.l.b16 %v1940
    %v3330 = vunpack.c.h.b16 %v1940
    %v3331 = vunpack.c.l.b16 %v1941
    %v3332 = vunpack.c.h.b16 %v1941
    %v3333 = vunpack.c.l.b16 %v1942
    %v3334 = vunpack.c.h.b16 %v1942
    %v3335 = vunpack.c.l.b16 %v1943
    %v3336 = vunpack.c.h.b16 %v1943
    %v3337 = vunpack.c.l.b16 %v1944
    %v3338 = vunpack.c.h.b16 %v1944
    %v3339 = vunpack.c.l.b16 %v1945
    %v3340 = vunpack.c.h.b16 %v1945
    %v3341 = vunpack.c.l.b16 %v1946
    %v3342 = vunpack.c.h.b16 %v1946
    %v3343 = vunpack.c.l.b16 %v1947
    %v3344 = vunpack.c.h.b16 %v1947
    %v3345 = vunpack.c.l.b16 %v1948
    %v3346 = vunpack.c.h.b16 %v1948
    %v3347 = vunpack.c.l.b16 %v1949
    %v3348 = vunpack.c.h.b16 %v1949
    %v3349 = vunpack.c.l.b16 %v1950
    %v3350 = vunpack.c.h.b16 %v1950
    %v3351 = vunpack.c.l.b16 %v1951
    %v3352 = vunpack.c.h.b16 %v1951
    %v3353 = vunpack.c.l.b16 %v1952
    %v3354 = vunpack.c.h.b16 %v1952
    %v3355 = vunpack.c.l.b16 %v1953
    %v3356 = vunpack.c.h.b16 %v1953
    %v3357 = vunpack.c.l.b16 %v1954
    %v3358 = vunpack.c.h.b16 %v1954
    %v3359 = vunpack.c.l.b16 %v1955
    %v3360 = vunpack.c.h.b16 %v1955
    %v3361 = vunpack.c.l.b16 %v1956
    %v3362 = vunpack.c.h.b16 %v1956
    %v3363 = vunpack.c.l.b16 %v1957
    %v3364 = vunpack.c.h.b16 %v1957
    %v3365 = vunpack.c.l.b16 %v1958
    %v3366 = vunpack.c.h.b16 %v1958
    %v3367 = vunpack.c.l.b16 %v1959
    %v3368 = vunpack.c.h.b16 %v1959
    %v3369 = vunpack.c.l.b16 %v1960
    %v3370 = vunpack.c.h.b16 %v1960
    %v3371 = vunpack.c.l.b16 %v1961
    %v3372 = vunpack.c.h.b16 %v1961
    %v3373 = vunpack.c.l.b16 %v1962
    %v3374 = vunpack.c.h.b16 %v1962
    %v3375 = vunpack.c.l.b16 %v1963
    %v3376 = vunpack.c.h.b16 %v1963
    %v3377 = vunpack.c.l.b16 %v1964
    %v3378 = vunpack.c.h.b16 %v1964
    %v3379 = vunpack.c.l.b16 %v1965
    %v3380 = vunpack.c.h.b16 %v1965
    %v3381 = vunpack.c.l.b16 %v1966
    %v3382 = vunpack.c.h.b16 %v1966
    %v3383 = vunpack.c.l.b16 %v1967
    %v3384 = vunpack.c.h.b16 %v1967
    %v3385 = vunpack.c.l.b16 %v1968
    %v3386 = vunpack.c.h.b16 %v1968
    %v3387 = vunpack.c.l.b16 %v1969
    %v3388 = vunpack.c.h.b16 %v1969
    %v3389 = vunpack.c.l.b16 %v1970
    %v3390 = vunpack.c.h.b16 %v1970
    %v3391 = vunpack.c.l.b16 %v1971
    %v3392 = vunpack.c.h.b16 %v1971
    %v3393 = vunpack.c.l.b16 %v1972
    %v3394 = vunpack.c.h.b16 %v1972
    %v3395 = vunpack.c.l.b16 %v1973
    %v3396 = vunpack.c.h.b16 %v1973
    %v3397 = vunpack.c.l.b16 %v1974
    %v3398 = vunpack.c.h.b16 %v1974
    %v3399 = vunpack.c.l.b16 %v1975
    %v3400 = vunpack.c.h.b16 %v1975
    %v3401 = vunpack.c.l.b16 %v1976
    %v3402 = vunpack.c.h.b16 %v1976
    %v3403 = vunpack.c.l.b16 %v1977
    %v3404 = vunpack.c.h.b16 %v1977
    %v3405 = vunpack.c.l.b16 %v1978
    %v3406 = vunpack.c.h.b16 %v1978
    %v3407 = vunpack.c.l.b16 %v1979
    %v3408 = vunpack.c.h.b16 %v1979
    %v3409 = vunpack.c.l.b16 %v1980
    %v3410 = vunpack.c.h.b16 %v1980
    %v3411 = vunpack.c.l.b16 %v1981
    %v3412 = vunpack.c.h.b16 %v1981
    %v3413 = vunpack.c.l.b16 %v1982
    %v3414 = vunpack.c.h.b16 %v1982
    %v3415 = vunpack.c.l.b16 %v1983
    %v3416 = vunpack.c.h.b16 %v1983
    %v3417 = vunpack.c.l.b16 %v1984
    %v3418 = vunpack.c.h.b16 %v1984
    %v3419 = vunpack.c.l.b16 %v1985
    %v3420 = vunpack.c.h.b16 %v1985
    %v3421 = vunpack.c.l.b16 %v1986
    %v3422 = vunpack.c.h.b16 %v1986
    %v3423 = vunpack.c.l.b16 %v1987
    %v3424 = vunpack.c.h.b16 %v1987
    %v3425 = vunpack.c.l.b16 %v1988
    %v3426 = vunpack.c.h.b16 %v1988
    %v3427 = vunpack.c.l.b16 %v1989
    %v3428 = vunpack.c.h.b16 %v1989
    %v3429 = vunpack.c.l.b16 %v1990
    %v3430 = vunpack.c.h.b16 %v1990
    %v3431 = vunpack.c.l.b16 %v1991
    %v3432 = vunpack.c.h.b16 %v1991
    %v3433 = vunpack.c.l.b16 %v1992
    %v3434 = vunpack.c.h.b16 %v1992
    %v3435 = vunpack.c.l.b16 %v1993
    %v3436 = vunpack.c.h.b16 %v1993
    %v3437 = vunpack.c.l.b16 %v1994
    %v3438 = vunpack.c.h.b16 %v1994
    %v3439 = vunpack.c.l.b16 %v1995
    %v3440 = vunpack.c.h.b16 %v1995
    %v3441 = vunpack.c.l.b16 %v1996
    %v3442 = vunpack.c.h.b16 %v1996
    %v3443 = vunpack.c.l.b16 %v1997
    %v3444 = vunpack.c.h.b16 %v1997
    %v3445 = vunpack.c.l.b16 %v1998
    %v3446 = vunpack.c.h.b16 %v1998
    %v3447 = vunpack.c.l.b16 %v1999
    %v3448 = vunpack.c.h.b16 %v1999
    %v3449 = vunpack.c.l.b16 %v2000
    %v3450 = vunpack.c.h.b16 %v2000
    %v3451 = vunpack.c.l.b16 %v2001
    %v3452 = vunpack.c.h.b16 %v2001
    %v3453 = vunpack.c.l.b16 %v2002
    %v3454 = vunpack.c.h.b16 %v2002
    %v3455 = vunpack.c.l.b16 %v2003
    %v3456 = vunpack.c.h.b16 %v2003
    %v3457 = vunpack.c.l.b16 %v2004
    %v3458 = vunpack.c.h.b16 %v2004
    %v3459 = vunpack.c.l.b16 %v2005
    %v3460 = vunpack.c.h.b16 %v2005
    %v3461 = vunpack.c.l.b16 %v2006
    %v3462 = vunpack.c.h.b16 %v2006
    %v3463 = vunpack.c.l.b16 %v2007
    %v3464 = vunpack.c.h.b16 %v2007
    %v3465 = vunpack.c.l.b16 %v2008
    %v3466 = vunpack.c.h.b16 %v2008
    %v3467 = vunpack.c.l.b16 %v2009
    %v3468 = vunpack.c.h.b16 %v2009
    %v3469 = vunpack.c.l.b16 %v2010
    %v3470 = vunpack.c.h.b16 %v2010
    %v3471 = vunpack.c.l.b16 %v2011
    %v3472 = vunpack.c.h.b16 %v2011
    %v3473 = vunpack.c.l.b16 %v2012
    %v3474 = vunpack.c.h.b16 %v2012
    %v3475 = vunpack.c.l.b16 %v2013
    %v3476 = vunpack.c.h.b16 %v2013
    %v3477 = vunpack.c.l.b16 %v2014
    %v3478 = vunpack.c.h.b16 %v2014
    %v3479 = vunpack.c.l.b16 %v2015
    %v3480 = vunpack.c.h.b16 %v2015
    %v3481 = vunpack.c.l.b16 %v2016
    %v3482 = vunpack.c.h.b16 %v2016
    %v3483 = vunpack.c.l.b16 %v2017
    %v3484 = vunpack.c.h.b16 %v2017
    %v3485 = vunpack.c.l.b16 %v2018
    %v3486 = vunpack.c.h.b16 %v2018
    %v3487 = vunpack.c.l.b16 %v2019
    %v3488 = vunpack.c.h.b16 %v2019
    %v3489 = vunpack.c.l.b16 %v2020
    %v3490 = vunpack.c.h.b16 %v2020
    %v3491 = vunpack.c.l.b16 %v2021
    %v3492 = vunpack.c.h.b16 %v2021
    %v3493 = vunpack.c.l.b16 %v2022
    %v3494 = vunpack.c.h.b16 %v2022
    %v3495 = vunpack.c.l.b16 %v2023
    %v3496 = vunpack.c.h.b16 %v2023
    %v3497 = vunpack.c.l.b16 %v2024
    %v3498 = vunpack.c.h.b16 %v2024
    %v3499 = vunpack.c.l.b16 %v2025
    %v3500 = vunpack.c.h.b16 %v2025
    %v3501 = vunpack.c.l.b16 %v2026
    %v3502 = vunpack.c.h.b16 %v2026
    %v3503 = vunpack.c.l.b16 %v2027
    %v3504 = vunpack.c.h.b16 %v2027
    %v3505 = vunpack.c.l.b16 %v2028
    %v3506 = vunpack.c.h.b16 %v2028
    %v3507 = vunpack.c.l.b16 %v2029
    %v3508 = vunpack.c.h.b16 %v2029
    %v3509 = vunpack.c.l.b16 %v2030
    %v3510 = vunpack.c.h.b16 %v2030
    %v3511 = vunpack.c.l.b16 %v2031
    %v3512 = vunpack.c.h.b16 %v2031
    %v3513 = vunpack.c.l.b16 %v2032
    %v3514 = vunpack.c.h.b16 %v2032
    %v3515 = vunpack.c.l.b16 %v2033
    %v3516 = vunpack.c.h.b16 %v2033
    %v3517 = vunpack.c.l.b16 %v2034
    %v3518 = vunpack.c.h.b16 %v2034
    %v3519 = vunpack.c.l.b16 %v2035
    %v3520 = vunpack.c.h.b16 %v2035
    %v3521 = vunpack.c.l.b16 %v2036
    %v3522 = vunpack.c.h.b16 %v2036
    %v3523 = vunpack.c.l.b16 %v2037
    %v3524 = vunpack.c.h.b16 %v2037
    %v3525 = vunpack.c.l.b16 %v2038
    %v3526 = vunpack.c.h.b16 %v2038
    %v3527 = vunpack.c.l.b16 %v2039
    %v3528 = vunpack.c.h.b16 %v2039
    %v3529 = vunpack.c.l.b16 %v2040
    %v3530 = vunpack.c.h.b16 %v2040
    %v3531 = vunpack.c.l.b16 %v2041
    %v3532 = vunpack.c.h.b16 %v2041
    %v3533 = vunpack.c.l.b16 %v2042
    %v3534 = vunpack.c.h.b16 %v2042
    %v3535 = vunpack.c.l.b16 %v2043
    %v3536 = vunpack.c.h.b16 %v2043
    %v3537 = vunpack.c.l.b16 %v2044
    %v3538 = vunpack.c.h.b16 %v2044
    %v3539 = vunpack.c.l.b16 %v2045
    %v3540 = vunpack.c.h.b16 %v2045
    %v3541 = vunpack.c.l.b16 %v2046
    %v3542 = vunpack.c.h.b16 %v2046
    %v3543 = vunpack.c.l.b16 %v2047
    %v3544 = vunpack.c.h.b16 %v2047
    %v3545 = vunpack.c.l.b16 %v2048
    %v3546 = vunpack.c.h.b16 %v2048
    %v3547 = vunpack.c.l.b16 %v2049
    %v3548 = vunpack.c.h.b16 %v2049
    %v3549 = vunpack.c.l.b16 %v2050
    %v3550 = vunpack.c.h.b16 %v2050
    %v3551 = vunpack.c.l.b16 %v2051
    %v3552 = vunpack.c.h.b16 %v2051
    %v3553 = vunpack.c.l.b16 %v2052
    %v3554 = vunpack.c.h.b16 %v2052
    %v3555 = vunpack.c.l.b16 %v2053
    %v3556 = vunpack.c.h.b16 %v2053
    %v3557 = vunpack.c.l.b16 %v2054
    %v3558 = vunpack.c.h.b16 %v2054
    %v3559 = vunpack.c.l.b16 %v2055
    %v3560 = vunpack.c.h.b16 %v2055
    %v3561 = vunpack.c.l.b16 %v2056
    %v3562 = vunpack.c.h.b16 %v2056
    %v3563 = vunpack.c.l.b16 %v2057
    %v3564 = vunpack.c.h.b16 %v2057
    %v3565 = vunpack.c.l.b16 %v2058
    %v3566 = vunpack.c.h.b16 %v2058
    %v3567 = vunpack.c.l.b16 %v2059
    %v3568 = vunpack.c.h.b16 %v2059
    %v3569 = vunpack.c.l.b16 %v2060
    %v3570 = vunpack.c.h.b16 %v2060
    %v3571 = vunpack.c.l.b16 %v2061
    %v3572 = vunpack.c.h.b16 %v2061
    %v3573 = vunpack.c.l.b16 %v2062
    %v3574 = vunpack.c.h.b16 %v2062
    %v3575 = vunpack.c.l.b16 %v2063
    %v3576 = vunpack.c.h.b16 %v2063
    %v3577 = vunpack.c.l.b16 %v2064
    %v3578 = vunpack.c.h.b16 %v2064
    %v3579 = vunpack.c.l.b16 %v2065
    %v3580 = vunpack.c.h.b16 %v2065
    %v3581 = vunpack.c.l.b16 %v2066
    %v3582 = vunpack.c.h.b16 %v2066
    %v3583 = vunpack.c.l.b16 %v2067
    %v3584 = vunpack.c.h.b16 %v2067
    %v3585 = vunpack.c.l.b16 %v2068
    %v3586 = vunpack.c.h.b16 %v2068
    %v3587 = vunpack.c.l.b16 %v2069
    %v3588 = vunpack.c.h.b16 %v2069
    %v3589 = vunpack.c.l.b16 %v2070
    %v3590 = vunpack.c.h.b16 %v2070
    %v3591 = vunpack.c.l.b16 %v2071
    %v3592 = vunpack.c.h.b16 %v2071
    %v3593 = vunpack.c.l.b16 %v2072
    %v3594 = vunpack.c.h.b16 %v2072
    %v3595 = vunpack.c.l.b16 %v2073
    %v3596 = vunpack.c.h.b16 %v2073
    %v3597 = vunpack.c.l.b16 %v2074
    %v3598 = vunpack.c.h.b16 %v2074
    %v3599 = vunpack.c.l.b16 %v2075
    %v3600 = vunpack.c.h.b16 %v2075
    %v3601 = vunpack.c.l.b16 %v2076
    %v3602 = vunpack.c.h.b16 %v2076
    %v3603 = vunpack.c.l.b16 %v2077
    %v3604 = vunpack.c.h.b16 %v2077
    %v3605 = vunpack.c.l.b16 %v2078
    %v3606 = vunpack.c.h.b16 %v2078
    %v3607 = vunpack.c.l.b16 %v2079
    %v3608 = vunpack.c.h.b16 %v2079
    %v3609 = vunpack.c.l.b16 %v2080
    %v3610 = vunpack.c.h.b16 %v2080
    %v3611 = vunpack.c.l.b16 %v2081
    %v3612 = vunpack.c.h.b16 %v2081
    %v3613 = vunpack.c.l.b16 %v2082
    %v3614 = vunpack.c.h.b16 %v2082
    %v3615 = vunpack.c.l.b16 %v2083
    %v3616 = vunpack.c.h.b16 %v2083
    %v3617 = vunpack.c.l.b16 %v2084
    %v3618 = vunpack.c.h.b16 %v2084
    %v3619 = vunpack.c.l.b16 %v2085
    %v3620 = vunpack.c.h.b16 %v2085
    %v3621 = vunpack.c.l.b16 %v2086
    %v3622 = vunpack.c.h.b16 %v2086
    %v3623 = vpack.c.b16 %v2607, %v2599
    %v3624 = vpack.c.b16 %v2608, %v2600
    %v3625 = vpack.c.b16 %v2609, %v2601
    %v3626 = vpack.c.b16 %v2610, %v2602
    %v3627 = vpack.c.b16 %v2611, %v2603
    %v3628 = vpack.c.b16 %v2612, %v2604
    %v3629 = vpack.c.b16 %v2613, %v2605
    %v3630 = vpack.c.b16 %v2614, %v2606
    %v3631 = vpack.c.b16 %v2623, %v2615
    %v3632 = vpack.c.b16 %v2624, %v2616
    %v3633 = vpack.c.b16 %v2625, %v2617
    %v3634 = vpack.c.b16 %v2626, %v2618
    %v3635 = vpack.c.b16 %v2627, %v2619
    %v3636 = vpack.c.b16 %v2628, %v2620
    %v3637 = vpack.c.b16 %v2629, %v2621
    %v3638 = vpack.c.b16 %v2630, %v2622
    %v3639 = vpack.c.b16 %v2639, %v2631
    %v3640 = vpack.c.b16 %v2640, %v2632
    %v3641 = vpack.c.b16 %v2641, %v2633
    %v3642 = vpack.c.b16 %v2642, %v2634
    %v3643 = vpack.c.b16 %v2643, %v2635
    %v3644 = vpack.c.b16 %v2644, %v2636
    %v3645 = vpack.c.b16 %v2645, %v2637
    %v3646 = vpack.c.b16 %v2646, %v2638
    %v3647 = vpack.c.b16 %v2655, %v2647
    %v3648 = vpack.c.b16 %v2656, %v2648
    %v3649 = vpack.c.b16 %v2657, %v2649
    %v3650 = vpack.c.b16 %v2658, %v2650
    %v3651 = vpack.c.b16 %v2659, %v2651
    %v3652 = vpack.c.b16 %v2660, %v2652
    %v3653 = vpack.c.b16 %v2661, %v2653
    %v3654 = vpack.c.b16 %v2662, %v2654
    %v3655 = vpack.c.b16 %v2671, %v2663
    %v3656 = vpack.c.b16 %v2672, %v2664
    %v3657 = vpack.c.b16 %v2673, %v2665
    %v3658 = vpack.c.b16 %v2674, %v2666
    %v3659 = vpack.c.b16 %v2675, %v2667
    %v3660 = vpack.c.b16 %v2676, %v2668
    %v3661 = vpack.c.b16 %v2677, %v2669
    %v3662 = vpack.c.b16 %v2678, %v2670
    %v3663 = vpack.c.b16 %v2687, %v2679
    %v3664 = vpack.c.b16 %v2688, %v2680
    %v3665 = vpack.c.b16 %v2689, %v2681
    %v3666 = vpack.c.b16 %v2690, %v2682
    %v3667 = vpack.c.b16 %v2691, %v2683
    %v3668 = vpack.c.b16 %v2692, %v2684
    %v3669 = vpack.c.b16 %v2693, %v2685
    %v3670 = vpack.c.b16 %v2694, %v2686
    %v3671 = vpack.c.b16 %v2703, %v2695
    %v3672 = vpack.c.b16 %v2704, %v2696
    %v3673 = vpack.c.b16 %v2705, %v2697
    %v3674 = vpack.c.b16 %v2706, %v2698
    %v3675 = vpack.c.b16 %v2707, %v2699
    %v3676 = vpack.c.b16 %v2708, %v2700
    %v3677 = vpack.c.b16 %v2709, %v2701
    %v3678 = vpack.c.b16 %v2710, %v2702
    %v3679 = vpack.c.b16 %v2719, %v2711
    %v3680 = vpack.c.b16 %v2720, %v2712
    %v3681 = vpack.c.b16 %v2721, %v2713
    %v3682 = vpack.c.b16 %v2722, %v2714
    %v3683 = vpack.c.b16 %v2723, %v2715
    %v3684 = vpack.c.b16 %v2724, %v2716
    %v3685 = vpack.c.b16 %v2725, %v2717
    %v3686 = vpack.c.b16 %v2726, %v2718
    %v3687 = vpack.c.b16 %v2735, %v2727
    %v3688 = vpack.c.b16 %v2736, %v2728
    %v3689 = vpack.c.b16 %v2737, %v2729
    %v3690 = vpack.c.b16 %v2738, %v2730
    %v3691 = vpack.c.b16 %v2739, %v2731
    %v3692 = vpack.c.b16 %v2740, %v2732
    %v3693 = vpack.c.b16 %v2741, %v2733
    %v3694 = vpack.c.b16 %v2742, %v2734
    %v3695 = vpack.c.b16 %v2751, %v2743
    %v3696 = vpack.c.b16 %v2752, %v2744
    %v3697 = vpack.c.b16 %v2753, %v2745
    %v3698 = vpack.c.b16 %v2754, %v2746
    %v3699 = vpack.c.b16 %v2755, %v2747
    %v3700 = vpack.c.b16 %v2756, %v2748
    %v3701 = vpack.c.b16 %v2757, %v2749
    %v3702 = vpack.c.b16 %v2758, %v2750
    %v3703 = vpack.c.b16 %v2767, %v2759
    %v3704 = vpack.c.b16 %v2768, %v2760
    %v3705 = vpack.c.b16 %v2769, %v2761
    %v3706 = vpack.c.b16 %v2770, %v2762
    %v3707 = vpack.c.b16 %v2771, %v2763
    %v3708 = vpack.c.b16 %v2772, %v2764
    %v3709 = vpack.c.b16 %v2773, %v2765
    %v3710 = vpack.c.b16 %v2774, %v2766
    %v3711 = vpack.c.b16 %v2783, %v2775
    %v3712 = vpack.c.b16 %v2784, %v2776
    %v3713 = vpack.c.b16 %v2785, %v2777
    %v3714 = vpack.c.b16 %v2786, %v2778
    %v3715 = vpack.c.b16 %v2787, %v2779
    %v3716 = vpack.c.b16 %v2788, %v2780
    %v3717 = vpack.c.b16 %v2789, %v2781
    %v3718 = vpack.c.b16 %v2790, %v2782
    %v3719 = vpack.c.b16 %v2799, %v2791
    %v3720 = vpack.c.b16 %v2800, %v2792
    %v3721 = vpack.c.b16 %v2801, %v2793
    %v3722 = vpack.c.b16 %v2802, %v2794
    %v3723 = vpack.c.b16 %v2803, %v2795
    %v3724 = vpack.c.b16 %v2804, %v2796
    %v3725 = vpack.c.b16 %v2805, %v2797
    %v3726 = vpack.c.b16 %v2806, %v2798
    %v3727 = vpack.c.b16 %v2815, %v2807
    %v3728 = vpack.c.b16 %v2816, %v2808
    %v3729 = vpack.c.b16 %v2817, %v2809
    %v3730 = vpack.c.b16 %v2818, %v2810
    %v3731 = vpack.c.b16 %v2819, %v2811
    %v3732 = vpack.c.b16 %v2820, %v2812
    %v3733 = vpack.c.b16 %v2821, %v2813
    %v3734 = vpack.c.b16 %v2822, %v2814
    %v3735 = vpack.c.b16 %v2831, %v2823
    %v3736 = vpack.c.b16 %v2832, %v2824
    %v3737 = vpack.c.b16 %v2833, %v2825
    %v3738 = vpack.c.b16 %v2834, %v2826
    %v3739 = vpack.c.b16 %v2835, %v2827
    %v3740 = vpack.c.b16 %v2836, %v2828
    %v3741 = vpack.c.b16 %v2837, %v2829
    %v3742 = vpack.c.b16 %v2838, %v2830
    %v3743 = vpack.c.b16 %v2847, %v2839
    %v3744 = vpack.c.b16 %v2848, %v2840
    %v3745 = vpack.c.b16 %v2849, %v2841
    %v3746 = vpack.c.b16 %v2850, %v2842
    %v3747 = vpack.c.b16 %v2851, %v2843
    %v3748 = vpack.c.b16 %v2852, %v2844
    %v3749 = vpack.c.b16 %v2853, %v2845
    %v3750 = vpack.c.b16 %v2854, %v2846
    %v3751 = vpack.c.b16 %v2863, %v2855
    %v3752 = vpack.c.b16 %v2864, %v2856
    %v3753 = vpack.c.b16 %v2865, %v2857
    %v3754 = vpack.c.b16 %v2866, %v2858
    %v3755 = vpack.c.b16 %v2867, %v2859
    %v3756 = vpack.c.b16 %v2868, %v2860
    %v3757 = vpack.c.b16 %v2869, %v2861
    %v3758 = vpack.c.b16 %v2870, %v2862
    %v3759 = vpack.c.b16 %v2879, %v2871
    %v3760 = vpack.c.b16 %v2880, %v2872
    %v3761 = vpack.c.b16 %v2881, %v2873
    %v3762 = vpack.c.b16 %v2882, %v2874
    %v3763 = vpack.c.b16 %v2883, %v2875
    %v3764 = vpack.c.b16 %v2884, %v2876
    %v3765 = vpack.c.b16 %v2885, %v2877
    %v3766 = vpack.c.b16 %v2886, %v2878
    %v3767 = vpack.c.b16 %v2895, %v2887
    %v3768 = vpack.c.b16 %v2896, %v2888
    %v3769 = vpack.c.b16 %v2897, %v2889
    %v3770 = vpack.c.b16 %v2898, %v2890
    %v3771 = vpack.c.b16 %v2899, %v2891
    %v3772 = vpack.c.b16 %v2900, %v2892
    %v3773 = vpack.c.b16 %v2901, %v2893
    %v3774 = vpack.c.b16 %v2902, %v2894
    %v3775 = vpack.c.b16 %v2911, %v2903
    %v3776 = vpack.c.b16 %v2912, %v2904
    %v3777 = vpack.c.b16 %v2913, %v2905
    %v3778 = vpack.c.b16 %v2914, %v2906
    %v3779 = vpack.c.b16 %v2915, %v2907
    %v3780 = vpack.c.b16 %v2916, %v2908
    %v3781 = vpack.c.b16 %v2917, %v2909
    %v3782 = vpack.c.b16 %v2918, %v2910
    %v3783 = vpack.c.b16 %v2927, %v2919
    %v3784 = vpack.c.b16 %v2928, %v2920
    %v3785 = vpack.c.b16 %v2929, %v2921
    %v3786 = vpack.c.b16 %v2930, %v2922
    %v3787 = vpack.c.b16 %v2931, %v2923
    %v3788 = vpack.c.b16 %v2932, %v2924
    %v3789 = vpack.c.b16 %v2933, %v2925
    %v3790 = vpack.c.b16 %v2934, %v2926
    %v3791 = vpack.c.b16 %v2943, %v2935
    %v3792 = vpack.c.b16 %v2944, %v2936
    %v3793 = vpack.c.b16 %v2945, %v2937
    %v3794 = vpack.c.b16 %v2946, %v2938
    %v3795 = vpack.c.b16 %v2947, %v2939
    %v3796 = vpack.c.b16 %v2948, %v2940
    %v3797 = vpack.c.b16 %v2949, %v2941
    %v3798 = vpack.c.b16 %v2950, %v2942
    %v3799 = vpack.c.b16 %v2959, %v2951
    %v3800 = vpack.c.b16 %v2960, %v2952
    %v3801 = vpack.c.b16 %v2961, %v2953
    %v3802 = vpack.c.b16 %v2962, %v2954
    %v3803 = vpack.c.b16 %v2963, %v2955
    %v3804 = vpack.c.b16 %v2964, %v2956
    %v3805 = vpack.c.b16 %v2965, %v2957
    %v3806 = vpack.c.b16 %v2966, %v2958
    %v3807 = vpack.c.b16 %v2975, %v2967
    %v3808 = vpack.c.b16 %v2976, %v2968
    %v3809 = vpack.c.b16 %v2977, %v2969
    %v3810 = vpack.c.b16 %v2978, %v2970
    %v3811 = vpack.c.b16 %v2979, %v2971
    %v3812 = vpack.c.b16 %v2980, %v2972
    %v3813 = vpack.c.b16 %v2981, %v2973
    %v3814 = vpack.c.b16 %v2982, %v2974
    %v3815 = vpack.c.b16 %v2991, %v2983
    %v3816 = vpack.c.b16 %v2992, %v2984
    %v3817 = vpack.c.b16 %v2993, %v2985
    %v3818 = vpack.c.b16 %v2994, %v2986
    %v3819 = vpack.c.b16 %v2995, %v2987
    %v3820 = vpack.c.b16 %v2996, %v2988
    %v3821 = vpack.c.b16 %v2997, %v2989
    %v3822 = vpack.c.b16 %v2998, %v2990
    %v3823 = vpack.c.b16 %v3007, %v2999
    %v3824 = vpack.c.b16 %v3008, %v3000
    %v3825 = vpack.c.b16 %v3009, %v3001
    %v3826 = vpack.c.b16 %v3010, %v3002
    %v3827 = vpack.c.b16 %v3011, %v3003
    %v3828 = vpack.c.b16 %v3012, %v3004
    %v3829 = vpack.c.b16 %v3013, %v3005
    %v3830 = vpack.c.b16 %v3014, %v3006
    %v3831 = vpack.c.b16 %v3023, %v3015
    %v3832 = vpack.c.b16 %v3024, %v3016
    %v3833 = vpack.c.b16 %v3025, %v3017
    %v3834 = vpack.c.b16 %v3026, %v3018
    %v3835 = vpack.c.b16 %v3027, %v3019
    %v3836 = vpack.c.b16 %v3028, %v3020
    %v3837 = vpack.c.b16 %v3029, %v3021
    %v3838 = vpack.c.b16 %v3030, %v3022
    %v3839 = vpack.c.b16 %v3039, %v3031
    %v3840 = vpack.c.b16 %v3040, %v3032
    %v3841 = vpack.c.b16 %v3041, %v3033
    %v3842 = vpack.c.b16 %v3042, %v3034
    %v3843 = vpack.c.b16 %v3043, %v3035
    %v3844 = vpack.c.b16 %v3044, %v3036
    %v3845 = vpack.c.b16 %v3045, %v3037
    %v3846 = vpack.c.b16 %v3046, %v3038
    %v3847 = vpack.c.b16 %v3055, %v3047
    %v3848 = vpack.c.b16 %v3056, %v3048
    %v3849 = vpack.c.b16 %v3057, %v3049
    %v3850 = vpack.c.b16 %v3058, %v3050
    %v3851 = vpack.c.b16 %v3059, %v3051
    %v3852 = vpack.c.b16 %v3060, %v3052
    %v3853 = vpack.c.b16 %v3061, %v3053
    %v3854 = vpack.c.b16 %v3062, %v3054
    %v3855 = vpack.c.b16 %v3071, %v3063
    %v3856 = vpack.c.b16 %v3072, %v3064
    %v3857 = vpack.c.b16 %v3073, %v3065
    %v3858 = vpack.c.b16 %v3074, %v3066
    %v3859 = vpack.c.b16 %v3075, %v3067
    %v3860 = vpack.c.b16 %v3076, %v3068
    %v3861 = vpack.c.b16 %v3077, %v3069
    %v3862 = vpack.c.b16 %v3078, %v3070
    %v3863 = vpack.c.b16 %v3087, %v3079
    %v3864 = vpack.c.b16 %v3088, %v3080
    %v3865 = vpack.c.b16 %v3089, %v3081
    %v3866 = vpack.c.b16 %v3090, %v3082
    %v3867 = vpack.c.b16 %v3091, %v3083
    %v3868 = vpack.c.b16 %v3092, %v3084
    %v3869 = vpack.c.b16 %v3093, %v3085
    %v3870 = vpack.c.b16 %v3094, %v3086
    %v3871 = vpack.c.b16 %v3103, %v3095
    %v3872 = vpack.c.b16 %v3104, %v3096
    %v3873 = vpack.c.b16 %v3105, %v3097
    %v3874 = vpack.c.b16 %v3106, %v3098
    %v3875 = vpack.c.b16 %v3107, %v3099
    %v3876 = vpack.c.b16 %v3108, %v3100
    %v3877 = vpack.c.b16 %v3109, %v3101
    %v3878 = vpack.c.b16 %v3110, %v3102
    %v3879 = vpack.c.b16 %v3119, %v3111
    %v3880 = vpack.c.b16 %v3120, %v3112
    %v3881 = vpack.c.b16 %v3121, %v3113
    %v3882 = vpack.c.b16 %v3122, %v3114
    %v3883 = vpack.c.b16 %v3123, %v3115
    %v3884 = vpack.c.b16 %v3124, %v3116
    %v3885 = vpack.c.b16 %v3125, %v3117
    %v3886 = vpack.c.b16 %v3126, %v3118
    %v3887 = vpack.c.b16 %v3135, %v3127
    %v3888 = vpack.c.b16 %v3136, %v3128
    %v3889 = vpack.c.b16 %v3137, %v3129
    %v3890 = vpack.c.b16 %v3138, %v3130
    %v3891 = vpack.c.b16 %v3139, %v3131
    %v3892 = vpack.c.b16 %v3140, %v3132
    %v3893 = vpack.c.b16 %v3141, %v3133
    %v3894 = vpack.c.b16 %v3142, %v3134
    %v3895 = vpack.c.b16 %v3151, %v3143
    %v3896 = vpack.c.b16 %v3152, %v3144
    %v3897 = vpack.c.b16 %v3153, %v3145
    %v3898 = vpack.c.b16 %v3154, %v3146
    %v3899 = vpack.c.b16 %v3155, %v3147
    %v3900 = vpack.c.b16 %v3156, %v3148
    %v3901 = vpack.c.b16 %v3157, %v3149
    %v3902 = vpack.c.b16 %v3158, %v3150
    %v3903 = vpack.c.b16 %v3167, %v3159
    %v3904 = vpack.c.b16 %v3168, %v3160
    %v3905 = vpack.c.b16 %v3169, %v3161
    %v3906 = vpack.c.b16 %v3170, %v3162
    %v3907 = vpack.c.b16 %v3171, %v3163
    %v3908 = vpack.c.b16 %v3172, %v3164
    %v3909 = vpack.c.b16 %v3173, %v3165
    %v3910 = vpack.c.b16 %v3174, %v3166
    %v3911 = vpack.c.b16 %v3183, %v3175
    %v3912 = vpack.c.b16 %v3184, %v3176
    %v3913 = vpack.c.b16 %v3185, %v3177
    %v3914 = vpack.c.b16 %v3186, %v3178
    %v3915 = vpack.c.b16 %v3187, %v3179
    %v3916 = vpack.c.b16 %v3188, %v3180
    %v3917 = vpack.c.b16 %v3189, %v3181
    %v3918 = vpack.c.b16 %v3190, %v3182
    %v3919 = vpack.c.b16 %v3199, %v3191
    %v3920 = vpack.c.b16 %v3200, %v3192
    %v3921 = vpack.c.b16 %v3201, %v3193
    %v3922 = vpack.c.b16 %v3202, %v3194
    %v3923 = vpack.c.b16 %v3203, %v3195
    %v3924 = vpack.c.b16 %v3204, %v3196
    %v3925 = vpack.c.b16 %v3205, %v3197
    %v3926 = vpack.c.b16 %v3206, %v3198
    %v3927 = vpack.c.b16 %v3215, %v3207
    %v3928 = vpack.c.b16 %v3216, %v3208
    %v3929 = vpack.c.b16 %v3217, %v3209
    %v3930 = vpack.c.b16 %v3218, %v3210
    %v3931 = vpack.c.b16 %v3219, %v3211
    %v3932 = vpack.c.b16 %v3220, %v3212
    %v3933 = vpack.c.b16 %v3221, %v3213
    %v3934 = vpack.c.b16 %v3222, %v3214
    %v3935 = vpack.c.b16 %v3231, %v3223
    %v3936 = vpack.c.b16 %v3232, %v3224
    %v3937 = vpack.c.b16 %v3233, %v3225
    %v3938 = vpack.c.b16 %v3234, %v3226
    %v3939 = vpack.c.b16 %v3235, %v3227
    %v3940 = vpack.c.b16 %v3236, %v3228
    %v3941 = vpack.c.b16 %v3237, %v3229
    %v3942 = vpack.c.b16 %v3238, %v3230
    %v3943 = vpack.c.b16 %v3247, %v3239
    %v3944 = vpack.c.b16 %v3248, %v3240
    %v3945 = vpack.c.b16 %v3249, %v3241
    %v3946 = vpack.c.b16 %v3250, %v3242
    %v3947 = vpack.c.b16 %v3251, %v3243
    %v3948 = vpack.c.b16 %v3252, %v3244
    %v3949 = vpack.c.b16 %v3253, %v3245
    %v3950 = vpack.c.b16 %v3254, %v3246
    %v3951 = vpack.c.b16 %v3263, %v3255
    %v3952 = vpack.c.b16 %v3264, %v3256
    %v3953 = vpack.c.b16 %v3265, %v3257
    %v3954 = vpack.c.b16 %v3266, %v3258
    %v3955 = vpack.c.b16 %v3267, %v3259
    %v3956 = vpack.c.b16 %v3268, %v3260
    %v3957 = vpack.c.b16 %v3269, %v3261
    %v3958 = vpack.c.b16 %v3270, %v3262
    %v3959 = vpack.c.b16 %v3279, %v3271
    %v3960 = vpack.c.b16 %v3280, %v3272
    %v3961 = vpack.c.b16 %v3281, %v3273
    %v3962 = vpack.c.b16 %v3282, %v3274
    %v3963 = vpack.c.b16 %v3283, %v3275
    %v3964 = vpack.c.b16 %v3284, %v3276
    %v3965 = vpack.c.b16 %v3285, %v3277
    %v3966 = vpack.c.b16 %v3286, %v3278
    %v3967 = vpack.c.b16 %v3295, %v3287
    %v3968 = vpack.c.b16 %v3296, %v3288
    %v3969 = vpack.c.b16 %v3297, %v3289
    %v3970 = vpack.c.b16 %v3298, %v3290
    %v3971 = vpack.c.b16 %v3299, %v3291
    %v3972 = vpack.c.b16 %v3300, %v3292
    %v3973 = vpack.c.b16 %v3301, %v3293
    %v3974 = vpack.c.b16 %v3302, %v3294
    %v3975 = vpack.c.b16 %v3311, %v3303
    %v3976 = vpack.c.b16 %v3312, %v3304
    %v3977 = vpack.c.b16 %v3313, %v3305
    %v3978 = vpack.c.b16 %v3314, %v3306
    %v3979 = vpack.c.b16 %v3315, %v3307
    %v3980 = vpack.c.b16 %v3316, %v3308
    %v3981 = vpack.c.b16 %v3317, %v3309
    %v3982 = vpack.c.b16 %v3318, %v3310
    %v3983 = vpack.c.b16 %v3327, %v3319
    %v3984 = vpack.c.b16 %v3328, %v3320
    %v3985 = vpack.c.b16 %v3329, %v3321
    %v3986 = vpack.c.b16 %v3330, %v3322
    %v3987 = vpack.c.b16 %v3331, %v3323
    %v3988 = vpack.c.b16 %v3332, %v3324
    %v3989 = vpack.c.b16 %v3333, %v3325
    %v3990 = vpack.c.b16 %v3334, %v3326
    %v3991 = vpack.c.b16 %v3343, %v3335
    %v3992 = vpack.c.b16 %v3344, %v3336
    %v3993 = vpack.c.b16 %v3345, %v3337
    %v3994 = vpack.c.b16 %v3346, %v3338
    %v3995 = vpack.c.b16 %v3347, %v3339
    %v3996 = vpack.c.b16 %v3348, %v3340
    %v3997 = vpack.c.b16 %v3349, %v3341
    %v3998 = vpack.c.b16 %v3350, %v3342
    %v3999 = vpack.c.b16 %v3359, %v3351
    %v4000 = vpack.c.b16 %v3360, %v3352
    %v4001 = vpack.c.b16 %v3361, %v3353
    %v4002 = vpack.c.b16 %v3362, %v3354
    %v4003 = vpack.c.b16 %v3363, %v3355
    %v4004 = vpack.c.b16 %v3364, %v3356
    %v4005 = vpack.c.b16 %v3365, %v3357
    %v4006 = vpack.c.b16 %v3366, %v3358
    %v4007 = vpack.c.b16 %v3375, %v3367
    %v4008 = vpack.c.b16 %v3376, %v3368
    %v4009 = vpack.c.b16 %v3377, %v3369
    %v4010 = vpack.c.b16 %v3378, %v3370
    %v4011 = vpack.c.b16 %v3379, %v3371
    %v4012 = vpack.c.b16 %v3380, %v3372
    %v4013 = vpack.c.b16 %v3381, %v3373
    %v4014 = vpack.c.b16 %v3382, %v3374
    %v4015 = vpack.c.b16 %v3391, %v3383
    %v4016 = vpack.c.b16 %v3392, %v3384
    %v4017 = vpack.c.b16 %v3393, %v3385
    %v4018 = vpack.c.b16 %v3394, %v3386
    %v4019 = vpack.c.b16 %v3395, %v3387
    %v4020 = vpack.c.b16 %v3396, %v3388
    %v4021 = vpack.c.b16 %v3397, %v3389
    %v4022 = vpack.c.b16 %v3398, %v3390
    %v4023 = vpack.c.b16 %v3407, %v3399
    %v4024 = vpack.c.b16 %v3408, %v3400
    %v4025 = vpack.c.b16 %v3409, %v3401
    %v4026 = vpack.c.b16 %v3410, %v3402
    %v4027 = vpack.c.b16 %v3411, %v3403
    %v4028 = vpack.c.b16 %v3412, %v3404
    %v4029 = vpack.c.b16 %v3413, %v3405
    %v4030 = vpack.c.b16 %v3414, %v3406
    %v4031 = vpack.c.b16 %v3423, %v3415
    %v4032 = vpack.c.b16 %v3424, %v3416
    %v4033 = vpack.c.b16 %v3425, %v3417
    %v4034 = vpack.c.b16 %v3426, %v3418
    %v4035 = vpack.c.b16 %v3427, %v3419
    %v4036 = vpack.c.b16 %v3428, %v3420
    %v4037 = vpack.c.b16 %v3429, %v3421
    %v4038 = vpack.c.b16 %v3430, %v3422
    %v4039 = vpack.c.b16 %v3439, %v3431
    %v4040 = vpack.c.b16 %v3440, %v3432
    %v4041 = vpack.c.b16 %v3441, %v3433
    %v4042 = vpack.c.b16 %v3442, %v3434
    %v4043 = vpack.c.b16 %v3443, %v3435
    %v4044 = vpack.c.b16 %v3444, %v3436
    %v4045 = vpack.c.b16 %v3445, %v3437
    %v4046 = vpack.c.b16 %v3446, %v3438
    %v4047 = vpack.c.b16 %v3455, %v3447
    %v4048 = vpack.c.b16 %v3456, %v3448
    %v4049 = vpack.c.b16 %v3457, %v3449
    %v4050 = vpack.c.b16 %v3458, %v3450
    %v4051 = vpack.c.b16 %v3459, %v3451
    %v4052 = vpack.c.b16 %v3460, %v3452
    %v4053 = vpack.c.b16 %v3461, %v3453
    %v4054 = vpack.c.b16 %v3462, %v3454
    %v4055 = vpack.c.b16 %v3471, %v3463
    %v4056 = vpack.c.b16 %v3472, %v3464
    %v4057 = vpack.c.b16 %v3473, %v3465
    %v4058 = vpack.c.b16 %v3474, %v3466
    %v4059 = vpack.c.b16 %v3475, %v3467
    %v4060 = vpack.c.b16 %v3476, %v3468
    %v4061 = vpack.c.b16 %v3477, %v3469
    %v4062 = vpack.c.b16 %v3478, %v3470
    %v4063 = vpack.c.b16 %v3487, %v3479
    %v4064 = vpack.c.b16 %v3488, %v3480
    %v4065 = vpack.c.b16 %v3489, %v3481
    %v4066 = vpack.c.b16 %v3490, %v3482
    %v4067 = vpack.c.b16 %v3491, %v3483
    %v4068 = vpack.c.b16 %v3492, %v3484
    %v4069 = vpack.c.b16 %v3493, %v3485
    %v4070 = vpack.c.b16 %v3494, %v3486
    %v4071 = vpack.c.b16 %v3503, %v3495
    %v4072 = vpack.c.b16 %v3504, %v3496
    %v4073 = vpack.c.b16 %v3505, %v3497
    %v4074 = vpack.c.b16 %v3506, %v3498
    %v4075 = vpack.c.b16 %v3507, %v3499
    %v4076 = vpack.c.b16 %v3508, %v3500
    %v4077 = vpack.c.b16 %v3509, %v3501
    %v4078 = vpack.c.b16 %v3510, %v3502
    %v4079 = vpack.c.b16 %v3519, %v3511
    %v4080 = vpack.c.b16 %v3520, %v3512
    %v4081 = vpack.c.b16 %v3521, %v3513
    %v4082 = vpack.c.b16 %v3522, %v3514
    %v4083 = vpack.c.b16 %v3523, %v3515
    %v4084 = vpack.c.b16 %v3524, %v3516
    %v4085 = vpack.c.b16 %v3525, %v3517
    %v4086 = vpack.c.b16 %v3526, %v3518
    %v4087 = vpack.c.b16 %v3535, %v3527
    %v4088 = vpack.c.b16 %v3536, %v3528
    %v4089 = vpack.c.b16 %v3537, %v3529
    %v4090 = vpack.c.b16 %v3538, %v3530
    %v4091 = vpack.c.b16 %v3539, %v3531
    %v4092 = vpack.c.b16 %v3540, %v3532
    %v4093 = vpack.c.b16 %v3541, %v3533
    %v4094 = vpack.c.b16 %v3542, %v3534
    %v4095 = vpack.c.b16 %v3551, %v3543
    %v4096 = vpack.c.b16 %v3552, %v3544
    %v4097 = vpack.c.b16 %v3553, %v3545
    %v4098 = vpack.c.b16 %v3554, %v3546
    %v4099 = vpack.c.b16 %v3555, %v3547
    %v4100 = vpack.c.b16 %v3556, %v3548
    %v4101 = vpack.c.b16 %v3557, %v3549
    %v4102 = vpack.c.b16 %v3558, %v3550
    %v4103 = vpack.c.b16 %v3567, %v3559
    %v4104 = vpack.c.b16 %v3568, %v3560
    %v4105 = vpack.c.b16 %v3569, %v3561
    %v4106 = vpack.c.b16 %v3570, %v3562
    %v4107 = vpack.c.b16 %v3571, %v3563
    %v4108 = vpack.c.b16 %v3572, %v3564
    %v4109 = vpack.c.b16 %v3573, %v3565
    %v4110 = vpack.c.b16 %v3574, %v3566
    %v4111 = vpack.c.b16 %v3583, %v3575
    %v4112 = vpack.c.b16 %v3584, %v3576
    %v4113 = vpack.c.b16 %v3585, %v3577
    %v4114 = vpack.c.b16 %v3586, %v3578
    %v4115 = vpack.c.b16 %v3587, %v3579
    %v4116 = vpack.c.b16 %v3588, %v3580
    %v4117 = vpack.c.b16 %v3589, %v3581
    %v4118 = vpack.c.b16 %v3590, %v3582
    %v4119 = vpack.c.b16 %v3599, %v3591
    %v4120 = vpack.c.b16 %v3600, %v3592
    %v4121 = vpack.c.b16 %v3601, %v3593
    %v4122 = vpack.c.b16 %v3602, %v3594
    %v4123 = vpack.c.b16 %v3603, %v3595
    %v4124 = vpack.c.b16 %v3604, %v3596
    %v4125 = vpack.c.b16 %v3605, %v3597
    %v4126 = vpack.c.b16 %v3606, %v3598
    %v4127 = vpack.c.b16 %v3615, %v3607
    %v4128 = vpack.c.b16 %v3616, %v3608
    %v4129 = vpack.c.b16 %v3617, %v3609
    %v4130 = vpack.c.b16 %v3618, %v3610
    %v4131 = vpack.c.b16 %v3619, %v3611
    %v4132 = vpack.c.b16 %v3620, %v3612
    %v4133 = vpack.c.b16 %v3621, %v3613
    %v4134 = vpack.c.b16 %v3622, %v3614
    %4647 = vmatpush.bf16.msra.mxu0 %v3679
    %4648 = vmatpush.bf16.msra.mxu0 %v3671
    %4649 = vmatpush.bf16.msra.mxu0 %v3663
    %4650 = vmatpush.bf16.msra.mxu0 %v3655
    %4651 = vmatpush.bf16.msra.mxu0 %v3647
    %4652 = vmatpush.bf16.msra.mxu0 %v3639
    %4653 = vmatpush.bf16.msra.mxu0 %v3631
    %4654 = vmatpush.bf16.msra.mxu0 %v3623
    %4655 = vmatmul.bf16.gmra.mxu0 %v1567
    %v4656 = vpop.f32.mrf.mxu0
    %v4657 = vadd.f32 0.0, %v4656
    %v4658 = vpop.f32.mrf.mxu0
    %4659 = vdwg.mxu0
    %4660 = vmatpush.bf16.msra.mxu0 %v3743
    %4661 = vmatpush.bf16.msra.mxu0 %v3735
    %4662 = vmatpush.bf16.msra.mxu0 %v3727
    %4663 = vmatpush.bf16.msra.mxu0 %v3719
    %4664 = vmatpush.bf16.msra.mxu0 %v3711
    %4665 = vmatpush.bf16.msra.mxu0 %v3703
    %4666 = vmatpush.bf16.msra.mxu0 %v3695
    %4667 = vmatpush.bf16.msra.mxu0 %v3687
    %4668 = vmatmul.bf16.gmra.mxu0 %v1568
    %v4669 = vpop.f32.mrf.mxu0
    %v4670 = vadd.f32 %v4657, %v4669
    %v4671 = vpop.f32.mrf.mxu0
    %4672 = vdwg.mxu0
    %4673 = vmatpush.bf16.msra.mxu0 %v3807
    %4674 = vmatpush.bf16.msra.mxu0 %v3799
    %4675 = vmatpush.bf16.msra.mxu0 %v3791
    %4676 = vmatpush.bf16.msra.mxu0 %v3783
    %4677 = vmatpush.bf16.msra.mxu0 %v3775
    %4678 = vmatpush.bf16.msra.mxu0 %v3767
    %4679 = vmatpush.bf16.msra.mxu0 %v3759
    %4680 = vmatpush.bf16.msra.mxu0 %v3751
    %4681 = vmatmul.bf16.gmra.mxu0 %v1569
    %v4682 = vpop.f32.mrf.mxu0
    %v4683 = vadd.f32 %v4670, %v4682
    %v4684 = vpop.f32.mrf.mxu0
    %4685 = vdwg.mxu0
    %4686 = vmatpush.bf16.msra.mxu0 %v3871
    %4687 = vmatpush.bf16.msra.mxu0 %v3863
    %4688 = vmatpush.bf16.msra.mxu0 %v3855
    %4689 = vmatpush.bf16.msra.mxu0 %v3847
    %4690 = vmatpush.bf16.msra.mxu0 %v3839
    %4691 = vmatpush.bf16.msra.mxu0 %v3831
    %4692 = vmatpush.bf16.msra.mxu0 %v3823
    %4693 = vmatpush.bf16.msra.mxu0 %v3815
    %4694 = vmatmul.bf16.gmra.mxu0 %v1570
    %v4695 = vpop.f32.mrf.mxu0
    %v4696 = vadd.f32 %v4683, %v4695
    %v4697 = vpop.f32.mrf.mxu0
    %4698 = vdwg.mxu0
    %4699 = vmatpush.bf16.msra.mxu0 %v3935
    %4700 = vmatpush.bf16.msra.mxu0 %v3927
    %4701 = vmatpush.bf16.msra.mxu0 %v3919
    %4702 = vmatpush.bf16.msra.mxu0 %v3911
    %4703 = vmatpush.bf16.msra.mxu0 %v3903
    %4704 = vmatpush.bf16.msra.mxu0 %v3895
    %4705 = vmatpush.bf16.msra.mxu0 %v3887
    %4706 = vmatpush.bf16.msra.mxu0 %v3879
    %4707 = vmatmul.bf16.gmra.mxu0 %v1571
    %v4708 = vpop.f32.mrf.mxu0
    %v4709 = vadd.f32 %v4696, %v4708
    %v4710 = vpop.f32.mrf.mxu0
    %4711 = vdwg.mxu0
    %4712 = vmatpush.bf16.msra.mxu0 %v3999
    %4713 = vmatpush.bf16.msra.mxu0 %v3991
    %4714 = vmatpush.bf16.msra.mxu0 %v3983
    %4715 = vmatpush.bf16.msra.mxu0 %v3975
    %4716 = vmatpush.bf16.msra.mxu0 %v3967
    %4717 = vmatpush.bf16.msra.mxu0 %v3959
    %4718 = vmatpush.bf16.msra.mxu0 %v3951
    %4719 = vmatpush.bf16.msra.mxu0 %v3943
    %4720 = vmatmul.bf16.gmra.mxu0 %v1572
    %v4721 = vpop.f32.mrf.mxu0
    %v4722 = vadd.f32 %v4709, %v4721
    %v4723 = vpop.f32.mrf.mxu0
    %4724 = vdwg.mxu0
    %4725 = vmatpush.bf16.msra.mxu0 %v4063
    %4726 = vmatpush.bf16.msra.mxu0 %v4055
    %4727 = vmatpush.bf16.msra.mxu0 %v4047
    %4728 = vmatpush.bf16.msra.mxu0 %v4039
    %4729 = vmatpush.bf16.msra.mxu0 %v4031
    %4730 = vmatpush.bf16.msra.mxu0 %v4023
    %4731 = vmatpush.bf16.msra.mxu0 %v4015
    %4732 = vmatpush.bf16.msra.mxu0 %v4007
    %4733 = vmatmul.bf16.gmra.mxu0 %v1573
    %v4734 = vpop.f32.mrf.mxu0
    %v4735 = vadd.f32 %v4722, %v4734
    %v4736 = vpop.f32.mrf.mxu0
    %4737 = vdwg.mxu0
    %4738 = vmatpush.bf16.msra.mxu0 %v4127
    %4739 = vmatpush.bf16.msra.mxu0 %v4119
    %4740 = vmatpush.bf16.msra.mxu0 %v4111
    %4741 = vmatpush.bf16.msra.mxu0 %v4103
    %4742 = vmatpush.bf16.msra.mxu0 %v4095
    %4743 = vmatpush.bf16.msra.mxu0 %v4087
    %4744 = vmatpush.bf16.msra.mxu0 %v4079
    %4745 = vmatpush.bf16.msra.mxu0 %v4071
    %4746 = vmatmul.bf16.gmra.mxu0 %v1574
    %v4747 = vpop.f32.mrf.mxu0
    %v4748 = vadd.f32 %v4735, %v4747
    %v4749 = vpop.f32.mrf.mxu0
    %4750 = vdwg.mxu0
    %4751 = vmatpush.bf16.msra.mxu0 %v3680
    %4752 = vmatpush.bf16.msra.mxu0 %v3672
    %4753 = vmatpush.bf16.msra.mxu0 %v3664
    %4754 = vmatpush.bf16.msra.mxu0 %v3656
    %4755 = vmatpush.bf16.msra.mxu0 %v3648
    %4756 = vmatpush.bf16.msra.mxu0 %v3640
    %4757 = vmatpush.bf16.msra.mxu0 %v3632
    %4758 = vmatpush.bf16.msra.mxu0 %v3624
    %4759 = vmatmul.bf16.gmra.mxu0 %v1567
    %v4760 = vpop.f32.mrf.mxu0
    %v4761 = vadd.f32 0.0, %v4760
    %v4762 = vpop.f32.mrf.mxu0
    %4763 = vdwg.mxu0
    %4764 = vmatpush.bf16.msra.mxu0 %v3744
    %4765 = vmatpush.bf16.msra.mxu0 %v3736
    %4766 = vmatpush.bf16.msra.mxu0 %v3728
    %4767 = vmatpush.bf16.msra.mxu0 %v3720
    %4768 = vmatpush.bf16.msra.mxu0 %v3712
    %4769 = vmatpush.bf16.msra.mxu0 %v3704
    %4770 = vmatpush.bf16.msra.mxu0 %v3696
    %4771 = vmatpush.bf16.msra.mxu0 %v3688
    %4772 = vmatmul.bf16.gmra.mxu0 %v1568
    %v4773 = vpop.f32.mrf.mxu0
    %v4774 = vadd.f32 %v4761, %v4773
    %v4775 = vpop.f32.mrf.mxu0
    %4776 = vdwg.mxu0
    %4777 = vmatpush.bf16.msra.mxu0 %v3808
    %4778 = vmatpush.bf16.msra.mxu0 %v3800
    %4779 = vmatpush.bf16.msra.mxu0 %v3792
    %4780 = vmatpush.bf16.msra.mxu0 %v3784
    %4781 = vmatpush.bf16.msra.mxu0 %v3776
    %4782 = vmatpush.bf16.msra.mxu0 %v3768
    %4783 = vmatpush.bf16.msra.mxu0 %v3760
    %4784 = vmatpush.bf16.msra.mxu0 %v3752
    %4785 = vmatmul.bf16.gmra.mxu0 %v1569
    %v4786 = vpop.f32.mrf.mxu0
    %v4787 = vadd.f32 %v4774, %v4786
    %v4788 = vpop.f32.mrf.mxu0
    %4789 = vdwg.mxu0
    %4790 = vmatpush.bf16.msra.mxu0 %v3872
    %4791 = vmatpush.bf16.msra.mxu0 %v3864
    %4792 = vmatpush.bf16.msra.mxu0 %v3856
    %4793 = vmatpush.bf16.msra.mxu0 %v3848
    %4794 = vmatpush.bf16.msra.mxu0 %v3840
    %4795 = vmatpush.bf16.msra.mxu0 %v3832
    %4796 = vmatpush.bf16.msra.mxu0 %v3824
    %4797 = vmatpush.bf16.msra.mxu0 %v3816
    %4798 = vmatmul.bf16.gmra.mxu0 %v1570
    %v4799 = vpop.f32.mrf.mxu0
    %v4800 = vadd.f32 %v4787, %v4799
    %v4801 = vpop.f32.mrf.mxu0
    %4802 = vdwg.mxu0
    %4803 = vmatpush.bf16.msra.mxu0 %v3936
    %4804 = vmatpush.bf16.msra.mxu0 %v3928
    %4805 = vmatpush.bf16.msra.mxu0 %v3920
    %4806 = vmatpush.bf16.msra.mxu0 %v3912
    %4807 = vmatpush.bf16.msra.mxu0 %v3904
    %4808 = vmatpush.bf16.msra.mxu0 %v3896
    %4809 = vmatpush.bf16.msra.mxu0 %v3888
    %4810 = vmatpush.bf16.msra.mxu0 %v3880
    %4811 = vmatmul.bf16.gmra.mxu0 %v1571
    %v4812 = vpop.f32.mrf.mxu0
    %v4813 = vadd.f32 %v4800, %v4812
    %v4814 = vpop.f32.mrf.mxu0
    %4815 = vdwg.mxu0
    %4816 = vmatpush.bf16.msra.mxu0 %v4000
    %4817 = vmatpush.bf16.msra.mxu0 %v3992
    %4818 = vmatpush.bf16.msra.mxu0 %v3984
    %4819 = vmatpush.bf16.msra.mxu0 %v3976
    %4820 = vmatpush.bf16.msra.mxu0 %v3968
    %4821 = vmatpush.bf16.msra.mxu0 %v3960
    %4822 = vmatpush.bf16.msra.mxu0 %v3952
    %4823 = vmatpush.bf16.msra.mxu0 %v3944
    %4824 = vmatmul.bf16.gmra.mxu0 %v1572
    %v4825 = vpop.f32.mrf.mxu0
    %v4826 = vadd.f32 %v4813, %v4825
    %v4827 = vpop.f32.mrf.mxu0
    %4828 = vdwg.mxu0
    %4829 = vmatpush.bf16.msra.mxu0 %v4064
    %4830 = vmatpush.bf16.msra.mxu0 %v4056
    %4831 = vmatpush.bf16.msra.mxu0 %v4048
    %4832 = vmatpush.bf16.msra.mxu0 %v4040
    %4833 = vmatpush.bf16.msra.mxu0 %v4032
    %4834 = vmatpush.bf16.msra.mxu0 %v4024
    %4835 = vmatpush.bf16.msra.mxu0 %v4016
    %4836 = vmatpush.bf16.msra.mxu0 %v4008
    %4837 = vmatmul.bf16.gmra.mxu0 %v1573
    %v4838 = vpop.f32.mrf.mxu0
    %v4839 = vadd.f32 %v4826, %v4838
    %v4840 = vpop.f32.mrf.mxu0
    %4841 = vdwg.mxu0
    %4842 = vmatpush.bf16.msra.mxu0 %v4128
    %4843 = vmatpush.bf16.msra.mxu0 %v4120
    %4844 = vmatpush.bf16.msra.mxu0 %v4112
    %4845 = vmatpush.bf16.msra.mxu0 %v4104
    %4846 = vmatpush.bf16.msra.mxu0 %v4096
    %4847 = vmatpush.bf16.msra.mxu0 %v4088
    %4848 = vmatpush.bf16.msra.mxu0 %v4080
    %4849 = vmatpush.bf16.msra.mxu0 %v4072
    %4850 = vmatmul.bf16.gmra.mxu0 %v1574
    %v4851 = vpop.f32.mrf.mxu0
    %v4852 = vadd.f32 %v4839, %v4851
    %v4853 = vpop.f32.mrf.mxu0
    %4854 = vdwg.mxu0
    %4855 = vmatpush.bf16.msra.mxu0 %v3681
    %4856 = vmatpush.bf16.msra.mxu0 %v3673
    %4857 = vmatpush.bf16.msra.mxu0 %v3665
    %4858 = vmatpush.bf16.msra.mxu0 %v3657
    %4859 = vmatpush.bf16.msra.mxu0 %v3649
    %4860 = vmatpush.bf16.msra.mxu0 %v3641
    %4861 = vmatpush.bf16.msra.mxu0 %v3633
    %4862 = vmatpush.bf16.msra.mxu0 %v3625
    %4863 = vmatmul.bf16.gmra.mxu0 %v1567
    %v4864 = vpop.f32.mrf.mxu0
    %v4865 = vadd.f32 0.0, %v4864
    %v4866 = vpop.f32.mrf.mxu0
    %4867 = vdwg.mxu0
    %4868 = vmatpush.bf16.msra.mxu0 %v3745
    %4869 = vmatpush.bf16.msra.mxu0 %v3737
    %4870 = vmatpush.bf16.msra.mxu0 %v3729
    %4871 = vmatpush.bf16.msra.mxu0 %v3721
    %4872 = vmatpush.bf16.msra.mxu0 %v3713
    %4873 = vmatpush.bf16.msra.mxu0 %v3705
    %4874 = vmatpush.bf16.msra.mxu0 %v3697
    %4875 = vmatpush.bf16.msra.mxu0 %v3689
    %4876 = vmatmul.bf16.gmra.mxu0 %v1568
    %v4877 = vpop.f32.mrf.mxu0
    %v4878 = vadd.f32 %v4865, %v4877
    %v4879 = vpop.f32.mrf.mxu0
    %4880 = vdwg.mxu0
    %4881 = vmatpush.bf16.msra.mxu0 %v3809
    %4882 = vmatpush.bf16.msra.mxu0 %v3801
    %4883 = vmatpush.bf16.msra.mxu0 %v3793
    %4884 = vmatpush.bf16.msra.mxu0 %v3785
    %4885 = vmatpush.bf16.msra.mxu0 %v3777
    %4886 = vmatpush.bf16.msra.mxu0 %v3769
    %4887 = vmatpush.bf16.msra.mxu0 %v3761
    %4888 = vmatpush.bf16.msra.mxu0 %v3753
    %4889 = vmatmul.bf16.gmra.mxu0 %v1569
    %v4890 = vpop.f32.mrf.mxu0
    %v4891 = vadd.f32 %v4878, %v4890
    %v4892 = vpop.f32.mrf.mxu0
    %4893 = vdwg.mxu0
    %4894 = vmatpush.bf16.msra.mxu0 %v3873
    %4895 = vmatpush.bf16.msra.mxu0 %v3865
    %4896 = vmatpush.bf16.msra.mxu0 %v3857
    %4897 = vmatpush.bf16.msra.mxu0 %v3849
    %4898 = vmatpush.bf16.msra.mxu0 %v3841
    %4899 = vmatpush.bf16.msra.mxu0 %v3833
    %4900 = vmatpush.bf16.msra.mxu0 %v3825
    %4901 = vmatpush.bf16.msra.mxu0 %v3817
    %4902 = vmatmul.bf16.gmra.mxu0 %v1570
    %v4903 = vpop.f32.mrf.mxu0
    %v4904 = vadd.f32 %v4891, %v4903
    %v4905 = vpop.f32.mrf.mxu0
    %4906 = vdwg.mxu0
    %4907 = vmatpush.bf16.msra.mxu0 %v3937
    %4908 = vmatpush.bf16.msra.mxu0 %v3929
    %4909 = vmatpush.bf16.msra.mxu0 %v3921
    %4910 = vmatpush.bf16.msra.mxu0 %v3913
    %4911 = vmatpush.bf16.msra.mxu0 %v3905
    %4912 = vmatpush.bf16.msra.mxu0 %v3897
    %4913 = vmatpush.bf16.msra.mxu0 %v3889
    %4914 = vmatpush.bf16.msra.mxu0 %v3881
    %4915 = vmatmul.bf16.gmra.mxu0 %v1571
    %v4916 = vpop.f32.mrf.mxu0
    %v4917 = vadd.f32 %v4904, %v4916
    %v4918 = vpop.f32.mrf.mxu0
    %4919 = vdwg.mxu0
    %4920 = vmatpush.bf16.msra.mxu0 %v4001
    %4921 = vmatpush.bf16.msra.mxu0 %v3993
    %4922 = vmatpush.bf16.msra.mxu0 %v3985
    %4923 = vmatpush.bf16.msra.mxu0 %v3977
    %4924 = vmatpush.bf16.msra.mxu0 %v3969
    %4925 = vmatpush.bf16.msra.mxu0 %v3961
    %4926 = vmatpush.bf16.msra.mxu0 %v3953
    %4927 = vmatpush.bf16.msra.mxu0 %v3945
    %4928 = vmatmul.bf16.gmra.mxu0 %v1572
    %v4929 = vpop.f32.mrf.mxu0
    %v4930 = vadd.f32 %v4917, %v4929
    %v4931 = vpop.f32.mrf.mxu0
    %4932 = vdwg.mxu0
    %4933 = vmatpush.bf16.msra.mxu0 %v4065
    %4934 = vmatpush.bf16.msra.mxu0 %v4057
    %4935 = vmatpush.bf16.msra.mxu0 %v4049
    %4936 = vmatpush.bf16.msra.mxu0 %v4041
    %4937 = vmatpush.bf16.msra.mxu0 %v4033
    %4938 = vmatpush.bf16.msra.mxu0 %v4025
    %4939 = vmatpush.bf16.msra.mxu0 %v4017
    %4940 = vmatpush.bf16.msra.mxu0 %v4009
    %4941 = vmatmul.bf16.gmra.mxu0 %v1573
    %v4942 = vpop.f32.mrf.mxu0
    %v4943 = vadd.f32 %v4930, %v4942
    %v4944 = vpop.f32.mrf.mxu0
    %4945 = vdwg.mxu0
    %4946 = vmatpush.bf16.msra.mxu0 %v4129
    %4947 = vmatpush.bf16.msra.mxu0 %v4121
    %4948 = vmatpush.bf16.msra.mxu0 %v4113
    %4949 = vmatpush.bf16.msra.mxu0 %v4105
    %4950 = vmatpush.bf16.msra.mxu0 %v4097
    %4951 = vmatpush.bf16.msra.mxu0 %v4089
    %4952 = vmatpush.bf16.msra.mxu0 %v4081
    %4953 = vmatpush.bf16.msra.mxu0 %v4073
    %4954 = vmatmul.bf16.gmra.mxu0 %v1574
    %v4955 = vpop.f32.mrf.mxu0
    %v4956 = vadd.f32 %v4943, %v4955
    %v4957 = vpop.f32.mrf.mxu0
    %4958 = vdwg.mxu0
    %4959 = vmatpush.bf16.msra.mxu0 %v3682
    %4960 = vmatpush.bf16.msra.mxu0 %v3674
    %4961 = vmatpush.bf16.msra.mxu0 %v3666
    %4962 = vmatpush.bf16.msra.mxu0 %v3658
    %4963 = vmatpush.bf16.msra.mxu0 %v3650
    %4964 = vmatpush.bf16.msra.mxu0 %v3642
    %4965 = vmatpush.bf16.msra.mxu0 %v3634
    %4966 = vmatpush.bf16.msra.mxu0 %v3626
    %4967 = vmatmul.bf16.gmra.mxu0 %v1567
    %v4968 = vpop.f32.mrf.mxu0
    %v4969 = vadd.f32 0.0, %v4968
    %v4970 = vpop.f32.mrf.mxu0
    %4971 = vdwg.mxu0
    %4972 = vmatpush.bf16.msra.mxu0 %v3746
    %4973 = vmatpush.bf16.msra.mxu0 %v3738
    %4974 = vmatpush.bf16.msra.mxu0 %v3730
    %4975 = vmatpush.bf16.msra.mxu0 %v3722
    %4976 = vmatpush.bf16.msra.mxu0 %v3714
    %4977 = vmatpush.bf16.msra.mxu0 %v3706
    %4978 = vmatpush.bf16.msra.mxu0 %v3698
    %4979 = vmatpush.bf16.msra.mxu0 %v3690
    %4980 = vmatmul.bf16.gmra.mxu0 %v1568
    %v4981 = vpop.f32.mrf.mxu0
    %v4982 = vadd.f32 %v4969, %v4981
    %v4983 = vpop.f32.mrf.mxu0
    %4984 = vdwg.mxu0
    %4985 = vmatpush.bf16.msra.mxu0 %v3810
    %4986 = vmatpush.bf16.msra.mxu0 %v3802
    %4987 = vmatpush.bf16.msra.mxu0 %v3794
    %4988 = vmatpush.bf16.msra.mxu0 %v3786
    %4989 = vmatpush.bf16.msra.mxu0 %v3778
    %4990 = vmatpush.bf16.msra.mxu0 %v3770
    %4991 = vmatpush.bf16.msra.mxu0 %v3762
    %4992 = vmatpush.bf16.msra.mxu0 %v3754
    %4993 = vmatmul.bf16.gmra.mxu0 %v1569
    %v4994 = vpop.f32.mrf.mxu0
    %v4995 = vadd.f32 %v4982, %v4994
    %v4996 = vpop.f32.mrf.mxu0
    %4997 = vdwg.mxu0
    %4998 = vmatpush.bf16.msra.mxu0 %v3874
    %4999 = vmatpush.bf16.msra.mxu0 %v3866
    %5000 = vmatpush.bf16.msra.mxu0 %v3858
    %5001 = vmatpush.bf16.msra.mxu0 %v3850
    %5002 = vmatpush.bf16.msra.mxu0 %v3842
    %5003 = vmatpush.bf16.msra.mxu0 %v3834
    %5004 = vmatpush.bf16.msra.mxu0 %v3826
    %5005 = vmatpush.bf16.msra.mxu0 %v3818
    %5006 = vmatmul.bf16.gmra.mxu0 %v1570
    %v5007 = vpop.f32.mrf.mxu0
    %v5008 = vadd.f32 %v4995, %v5007
    %v5009 = vpop.f32.mrf.mxu0
    %5010 = vdwg.mxu0
    %5011 = vmatpush.bf16.msra.mxu0 %v3938
    %5012 = vmatpush.bf16.msra.mxu0 %v3930
    %5013 = vmatpush.bf16.msra.mxu0 %v3922
    %5014 = vmatpush.bf16.msra.mxu0 %v3914
    %5015 = vmatpush.bf16.msra.mxu0 %v3906
    %5016 = vmatpush.bf16.msra.mxu0 %v3898
    %5017 = vmatpush.bf16.msra.mxu0 %v3890
    %5018 = vmatpush.bf16.msra.mxu0 %v3882
    %5019 = vmatmul.bf16.gmra.mxu0 %v1571
    %v5020 = vpop.f32.mrf.mxu0
    %v5021 = vadd.f32 %v5008, %v5020
    %v5022 = vpop.f32.mrf.mxu0
    %5023 = vdwg.mxu0
    %5024 = vmatpush.bf16.msra.mxu0 %v4002
    %5025 = vmatpush.bf16.msra.mxu0 %v3994
    %5026 = vmatpush.bf16.msra.mxu0 %v3986
    %5027 = vmatpush.bf16.msra.mxu0 %v3978
    %5028 = vmatpush.bf16.msra.mxu0 %v3970
    %5029 = vmatpush.bf16.msra.mxu0 %v3962
    %5030 = vmatpush.bf16.msra.mxu0 %v3954
    %5031 = vmatpush.bf16.msra.mxu0 %v3946
    %5032 = vmatmul.bf16.gmra.mxu0 %v1572
    %v5033 = vpop.f32.mrf.mxu0
    %v5034 = vadd.f32 %v5021, %v5033
    %v5035 = vpop.f32.mrf.mxu0
    %5036 = vdwg.mxu0
    %5037 = vmatpush.bf16.msra.mxu0 %v4066
    %5038 = vmatpush.bf16.msra.mxu0 %v4058
    %5039 = vmatpush.bf16.msra.mxu0 %v4050
    %5040 = vmatpush.bf16.msra.mxu0 %v4042
    %5041 = vmatpush.bf16.msra.mxu0 %v4034
    %5042 = vmatpush.bf16.msra.mxu0 %v4026
    %5043 = vmatpush.bf16.msra.mxu0 %v4018
    %5044 = vmatpush.bf16.msra.mxu0 %v4010
    %5045 = vmatmul.bf16.gmra.mxu0 %v1573
    %v5046 = vpop.f32.mrf.mxu0
    %v5047 = vadd.f32 %v5034, %v5046
    %v5048 = vpop.f32.mrf.mxu0
    %5049 = vdwg.mxu0
    %5050 = vmatpush.bf16.msra.mxu0 %v4130
    %5051 = vmatpush.bf16.msra.mxu0 %v4122
    %5052 = vmatpush.bf16.msra.mxu0 %v4114
    %5053 = vmatpush.bf16.msra.mxu0 %v4106
    %5054 = vmatpush.bf16.msra.mxu0 %v4098
    %5055 = vmatpush.bf16.msra.mxu0 %v4090
    %5056 = vmatpush.bf16.msra.mxu0 %v4082
    %5057 = vmatpush.bf16.msra.mxu0 %v4074
    %5058 = vmatmul.bf16.gmra.mxu0 %v1574
    %v5059 = vpop.f32.mrf.mxu0
    %v5060 = vadd.f32 %v5047, %v5059
    %v5061 = vpop.f32.mrf.mxu0
    %5062 = vdwg.mxu0
    %5063 = vmatpush.bf16.msra.mxu0 %v3683
    %5064 = vmatpush.bf16.msra.mxu0 %v3675
    %5065 = vmatpush.bf16.msra.mxu0 %v3667
    %5066 = vmatpush.bf16.msra.mxu0 %v3659
    %5067 = vmatpush.bf16.msra.mxu0 %v3651
    %5068 = vmatpush.bf16.msra.mxu0 %v3643
    %5069 = vmatpush.bf16.msra.mxu0 %v3635
    %5070 = vmatpush.bf16.msra.mxu0 %v3627
    %5071 = vmatmul.bf16.gmra.mxu0 %v1567
    %v5072 = vpop.f32.mrf.mxu0
    %v5073 = vadd.f32 0.0, %v5072
    %v5074 = vpop.f32.mrf.mxu0
    %5075 = vdwg.mxu0
    %5076 = vmatpush.bf16.msra.mxu0 %v3747
    %5077 = vmatpush.bf16.msra.mxu0 %v3739
    %5078 = vmatpush.bf16.msra.mxu0 %v3731
    %5079 = vmatpush.bf16.msra.mxu0 %v3723
    %5080 = vmatpush.bf16.msra.mxu0 %v3715
    %5081 = vmatpush.bf16.msra.mxu0 %v3707
    %5082 = vmatpush.bf16.msra.mxu0 %v3699
    %5083 = vmatpush.bf16.msra.mxu0 %v3691
    %5084 = vmatmul.bf16.gmra.mxu0 %v1568
    %v5085 = vpop.f32.mrf.mxu0
    %v5086 = vadd.f32 %v5073, %v5085
    %v5087 = vpop.f32.mrf.mxu0
    %5088 = vdwg.mxu0
    %5089 = vmatpush.bf16.msra.mxu0 %v3811
    %5090 = vmatpush.bf16.msra.mxu0 %v3803
    %5091 = vmatpush.bf16.msra.mxu0 %v3795
    %5092 = vmatpush.bf16.msra.mxu0 %v3787
    %5093 = vmatpush.bf16.msra.mxu0 %v3779
    %5094 = vmatpush.bf16.msra.mxu0 %v3771
    %5095 = vmatpush.bf16.msra.mxu0 %v3763
    %5096 = vmatpush.bf16.msra.mxu0 %v3755
    %5097 = vmatmul.bf16.gmra.mxu0 %v1569
    %v5098 = vpop.f32.mrf.mxu0
    %v5099 = vadd.f32 %v5086, %v5098
    %v5100 = vpop.f32.mrf.mxu0
    %5101 = vdwg.mxu0
    %5102 = vmatpush.bf16.msra.mxu0 %v3875
    %5103 = vmatpush.bf16.msra.mxu0 %v3867
    %5104 = vmatpush.bf16.msra.mxu0 %v3859
    %5105 = vmatpush.bf16.msra.mxu0 %v3851
    %5106 = vmatpush.bf16.msra.mxu0 %v3843
    %5107 = vmatpush.bf16.msra.mxu0 %v3835
    %5108 = vmatpush.bf16.msra.mxu0 %v3827
    %5109 = vmatpush.bf16.msra.mxu0 %v3819
    %5110 = vmatmul.bf16.gmra.mxu0 %v1570
    %v5111 = vpop.f32.mrf.mxu0
    %v5112 = vadd.f32 %v5099, %v5111
    %v5113 = vpop.f32.mrf.mxu0
    %5114 = vdwg.mxu0
    %5115 = vmatpush.bf16.msra.mxu0 %v3939
    %5116 = vmatpush.bf16.msra.mxu0 %v3931
    %5117 = vmatpush.bf16.msra.mxu0 %v3923
    %5118 = vmatpush.bf16.msra.mxu0 %v3915
    %5119 = vmatpush.bf16.msra.mxu0 %v3907
    %5120 = vmatpush.bf16.msra.mxu0 %v3899
    %5121 = vmatpush.bf16.msra.mxu0 %v3891
    %5122 = vmatpush.bf16.msra.mxu0 %v3883
    %5123 = vmatmul.bf16.gmra.mxu0 %v1571
    %v5124 = vpop.f32.mrf.mxu0
    %v5125 = vadd.f32 %v5112, %v5124
    %v5126 = vpop.f32.mrf.mxu0
    %5127 = vdwg.mxu0
    %5128 = vmatpush.bf16.msra.mxu0 %v4003
    %5129 = vmatpush.bf16.msra.mxu0 %v3995
    %5130 = vmatpush.bf16.msra.mxu0 %v3987
    %5131 = vmatpush.bf16.msra.mxu0 %v3979
    %5132 = vmatpush.bf16.msra.mxu0 %v3971
    %5133 = vmatpush.bf16.msra.mxu0 %v3963
    %5134 = vmatpush.bf16.msra.mxu0 %v3955
    %5135 = vmatpush.bf16.msra.mxu0 %v3947
    %5136 = vmatmul.bf16.gmra.mxu0 %v1572
    %v5137 = vpop.f32.mrf.mxu0
    %v5138 = vadd.f32 %v5125, %v5137
    %v5139 = vpop.f32.mrf.mxu0
    %5140 = vdwg.mxu0
    %5141 = vmatpush.bf16.msra.mxu0 %v4067
    %5142 = vmatpush.bf16.msra.mxu0 %v4059
    %5143 = vmatpush.bf16.msra.mxu0 %v4051
    %5144 = vmatpush.bf16.msra.mxu0 %v4043
    %5145 = vmatpush.bf16.msra.mxu0 %v4035
    %5146 = vmatpush.bf16.msra.mxu0 %v4027
    %5147 = vmatpush.bf16.msra.mxu0 %v4019
    %5148 = vmatpush.bf16.msra.mxu0 %v4011
    %5149 = vmatmul.bf16.gmra.mxu0 %v1573
    %v5150 = vpop.f32.mrf.mxu0
    %v5151 = vadd.f32 %v5138, %v5150
    %v5152 = vpop.f32.mrf.mxu0
    %5153 = vdwg.mxu0
    %5154 = vmatpush.bf16.msra.mxu0 %v4131
    %5155 = vmatpush.bf16.msra.mxu0 %v4123
    %5156 = vmatpush.bf16.msra.mxu0 %v4115
    %5157 = vmatpush.bf16.msra.mxu0 %v4107
    %5158 = vmatpush.bf16.msra.mxu0 %v4099
    %5159 = vmatpush.bf16.msra.mxu0 %v4091
    %5160 = vmatpush.bf16.msra.mxu0 %v4083
    %5161 = vmatpush.bf16.msra.mxu0 %v4075
    %5162 = vmatmul.bf16.gmra.mxu0 %v1574
    %v5163 = vpop.f32.mrf.mxu0
    %v5164 = vadd.f32 %v5151, %v5163
    %v5165 = vpop.f32.mrf.mxu0
    %5166 = vdwg.mxu0
    %5167 = vmatpush.bf16.msra.mxu0 %v3684
    %5168 = vmatpush.bf16.msra.mxu0 %v3676
    %5169 = vmatpush.bf16.msra.mxu0 %v3668
    %5170 = vmatpush.bf16.msra.mxu0 %v3660
    %5171 = vmatpush.bf16.msra.mxu0 %v3652
    %5172 = vmatpush.bf16.msra.mxu0 %v3644
    %5173 = vmatpush.bf16.msra.mxu0 %v3636
    %5174 = vmatpush.bf16.msra.mxu0 %v3628
    %5175 = vmatmul.bf16.gmra.mxu0 %v1567
    %v5176 = vpop.f32.mrf.mxu0
    %v5177 = vadd.f32 0.0, %v5176
    %v5178 = vpop.f32.mrf.mxu0
    %5179 = vdwg.mxu0
    %5180 = vmatpush.bf16.msra.mxu0 %v3748
    %5181 = vmatpush.bf16.msra.mxu0 %v3740
    %5182 = vmatpush.bf16.msra.mxu0 %v3732
    %5183 = vmatpush.bf16.msra.mxu0 %v3724
    %5184 = vmatpush.bf16.msra.mxu0 %v3716
    %5185 = vmatpush.bf16.msra.mxu0 %v3708
    %5186 = vmatpush.bf16.msra.mxu0 %v3700
    %5187 = vmatpush.bf16.msra.mxu0 %v3692
    %5188 = vmatmul.bf16.gmra.mxu0 %v1568
    %v5189 = vpop.f32.mrf.mxu0
    %v5190 = vadd.f32 %v5177, %v5189
    %v5191 = vpop.f32.mrf.mxu0
    %5192 = vdwg.mxu0
    %5193 = vmatpush.bf16.msra.mxu0 %v3812
    %5194 = vmatpush.bf16.msra.mxu0 %v3804
    %5195 = vmatpush.bf16.msra.mxu0 %v3796
    %5196 = vmatpush.bf16.msra.mxu0 %v3788
    %5197 = vmatpush.bf16.msra.mxu0 %v3780
    %5198 = vmatpush.bf16.msra.mxu0 %v3772
    %5199 = vmatpush.bf16.msra.mxu0 %v3764
    %5200 = vmatpush.bf16.msra.mxu0 %v3756
    %5201 = vmatmul.bf16.gmra.mxu0 %v1569
    %v5202 = vpop.f32.mrf.mxu0
    %v5203 = vadd.f32 %v5190, %v5202
    %v5204 = vpop.f32.mrf.mxu0
    %5205 = vdwg.mxu0
    %5206 = vmatpush.bf16.msra.mxu0 %v3876
    %5207 = vmatpush.bf16.msra.mxu0 %v3868
    %5208 = vmatpush.bf16.msra.mxu0 %v3860
    %5209 = vmatpush.bf16.msra.mxu0 %v3852
    %5210 = vmatpush.bf16.msra.mxu0 %v3844
    %5211 = vmatpush.bf16.msra.mxu0 %v3836
    %5212 = vmatpush.bf16.msra.mxu0 %v3828
    %5213 = vmatpush.bf16.msra.mxu0 %v3820
    %5214 = vmatmul.bf16.gmra.mxu0 %v1570
    %v5215 = vpop.f32.mrf.mxu0
    %v5216 = vadd.f32 %v5203, %v5215
    %v5217 = vpop.f32.mrf.mxu0
    %5218 = vdwg.mxu0
    %5219 = vmatpush.bf16.msra.mxu0 %v3940
    %5220 = vmatpush.bf16.msra.mxu0 %v3932
    %5221 = vmatpush.bf16.msra.mxu0 %v3924
    %5222 = vmatpush.bf16.msra.mxu0 %v3916
    %5223 = vmatpush.bf16.msra.mxu0 %v3908
    %5224 = vmatpush.bf16.msra.mxu0 %v3900
    %5225 = vmatpush.bf16.msra.mxu0 %v3892
    %5226 = vmatpush.bf16.msra.mxu0 %v3884
    %5227 = vmatmul.bf16.gmra.mxu0 %v1571
    %v5228 = vpop.f32.mrf.mxu0
    %v5229 = vadd.f32 %v5216, %v5228
    %v5230 = vpop.f32.mrf.mxu0
    %5231 = vdwg.mxu0
    %5232 = vmatpush.bf16.msra.mxu0 %v4004
    %5233 = vmatpush.bf16.msra.mxu0 %v3996
    %5234 = vmatpush.bf16.msra.mxu0 %v3988
    %5235 = vmatpush.bf16.msra.mxu0 %v3980
    %5236 = vmatpush.bf16.msra.mxu0 %v3972
    %5237 = vmatpush.bf16.msra.mxu0 %v3964
    %5238 = vmatpush.bf16.msra.mxu0 %v3956
    %5239 = vmatpush.bf16.msra.mxu0 %v3948
    %5240 = vmatmul.bf16.gmra.mxu0 %v1572
    %v5241 = vpop.f32.mrf.mxu0
    %v5242 = vadd.f32 %v5229, %v5241
    %v5243 = vpop.f32.mrf.mxu0
    %5244 = vdwg.mxu0
    %5245 = vmatpush.bf16.msra.mxu0 %v4068
    %5246 = vmatpush.bf16.msra.mxu0 %v4060
    %5247 = vmatpush.bf16.msra.mxu0 %v4052
    %5248 = vmatpush.bf16.msra.mxu0 %v4044
    %5249 = vmatpush.bf16.msra.mxu0 %v4036
    %5250 = vmatpush.bf16.msra.mxu0 %v4028
    %5251 = vmatpush.bf16.msra.mxu0 %v4020
    %5252 = vmatpush.bf16.msra.mxu0 %v4012
    %5253 = vmatmul.bf16.gmra.mxu0 %v1573
    %v5254 = vpop.f32.mrf.mxu0
    %v5255 = vadd.f32 %v5242, %v5254
    %v5256 = vpop.f32.mrf.mxu0
    %5257 = vdwg.mxu0
    %5258 = vmatpush.bf16.msra.mxu0 %v4132
    %5259 = vmatpush.bf16.msra.mxu0 %v4124
    %5260 = vmatpush.bf16.msra.mxu0 %v4116
    %5261 = vmatpush.bf16.msra.mxu0 %v4108
    %5262 = vmatpush.bf16.msra.mxu0 %v4100
    %5263 = vmatpush.bf16.msra.mxu0 %v4092
    %5264 = vmatpush.bf16.msra.mxu0 %v4084
    %5265 = vmatpush.bf16.msra.mxu0 %v4076
    %5266 = vmatmul.bf16.gmra.mxu0 %v1574
    %v5267 = vpop.f32.mrf.mxu0
    %v5268 = vadd.f32 %v5255, %v5267
    %v5269 = vpop.f32.mrf.mxu0
    %5270 = vdwg.mxu0
    %5271 = vmatpush.bf16.msra.mxu0 %v3685
    %5272 = vmatpush.bf16.msra.mxu0 %v3677
    %5273 = vmatpush.bf16.msra.mxu0 %v3669
    %5274 = vmatpush.bf16.msra.mxu0 %v3661
    %5275 = vmatpush.bf16.msra.mxu0 %v3653
    %5276 = vmatpush.bf16.msra.mxu0 %v3645
    %5277 = vmatpush.bf16.msra.mxu0 %v3637
    %5278 = vmatpush.bf16.msra.mxu0 %v3629
    %5279 = vmatmul.bf16.gmra.mxu0 %v1567
    %v5280 = vpop.f32.mrf.mxu0
    %v5281 = vadd.f32 0.0, %v5280
    %v5282 = vpop.f32.mrf.mxu0
    %5283 = vdwg.mxu0
    %5284 = vmatpush.bf16.msra.mxu0 %v3749
    %5285 = vmatpush.bf16.msra.mxu0 %v3741
    %5286 = vmatpush.bf16.msra.mxu0 %v3733
    %5287 = vmatpush.bf16.msra.mxu0 %v3725
    %5288 = vmatpush.bf16.msra.mxu0 %v3717
    %5289 = vmatpush.bf16.msra.mxu0 %v3709
    %5290 = vmatpush.bf16.msra.mxu0 %v3701
    %5291 = vmatpush.bf16.msra.mxu0 %v3693
    %5292 = vmatmul.bf16.gmra.mxu0 %v1568
    %v5293 = vpop.f32.mrf.mxu0
    %v5294 = vadd.f32 %v5281, %v5293
    %v5295 = vpop.f32.mrf.mxu0
    %5296 = vdwg.mxu0
    %5297 = vmatpush.bf16.msra.mxu0 %v3813
    %5298 = vmatpush.bf16.msra.mxu0 %v3805
    %5299 = vmatpush.bf16.msra.mxu0 %v3797
    %5300 = vmatpush.bf16.msra.mxu0 %v3789
    %5301 = vmatpush.bf16.msra.mxu0 %v3781
    %5302 = vmatpush.bf16.msra.mxu0 %v3773
    %5303 = vmatpush.bf16.msra.mxu0 %v3765
    %5304 = vmatpush.bf16.msra.mxu0 %v3757
    %5305 = vmatmul.bf16.gmra.mxu0 %v1569
    %v5306 = vpop.f32.mrf.mxu0
    %v5307 = vadd.f32 %v5294, %v5306
    %v5308 = vpop.f32.mrf.mxu0
    %5309 = vdwg.mxu0
    %5310 = vmatpush.bf16.msra.mxu0 %v3877
    %5311 = vmatpush.bf16.msra.mxu0 %v3869
    %5312 = vmatpush.bf16.msra.mxu0 %v3861
    %5313 = vmatpush.bf16.msra.mxu0 %v3853
    %5314 = vmatpush.bf16.msra.mxu0 %v3845
    %5315 = vmatpush.bf16.msra.mxu0 %v3837
    %5316 = vmatpush.bf16.msra.mxu0 %v3829
    %5317 = vmatpush.bf16.msra.mxu0 %v3821
    %5318 = vmatmul.bf16.gmra.mxu0 %v1570
    %v5319 = vpop.f32.mrf.mxu0
    %v5320 = vadd.f32 %v5307, %v5319
    %v5321 = vpop.f32.mrf.mxu0
    %5322 = vdwg.mxu0
    %5323 = vmatpush.bf16.msra.mxu0 %v3941
    %5324 = vmatpush.bf16.msra.mxu0 %v3933
    %5325 = vmatpush.bf16.msra.mxu0 %v3925
    %5326 = vmatpush.bf16.msra.mxu0 %v3917
    %5327 = vmatpush.bf16.msra.mxu0 %v3909
    %5328 = vmatpush.bf16.msra.mxu0 %v3901
    %5329 = vmatpush.bf16.msra.mxu0 %v3893
    %5330 = vmatpush.bf16.msra.mxu0 %v3885
    %5331 = vmatmul.bf16.gmra.mxu0 %v1571
    %v5332 = vpop.f32.mrf.mxu0
    %v5333 = vadd.f32 %v5320, %v5332
    %v5334 = vpop.f32.mrf.mxu0
    %5335 = vdwg.mxu0
    %5336 = vmatpush.bf16.msra.mxu0 %v4005
    %5337 = vmatpush.bf16.msra.mxu0 %v3997
    %5338 = vmatpush.bf16.msra.mxu0 %v3989
    %5339 = vmatpush.bf16.msra.mxu0 %v3981
    %5340 = vmatpush.bf16.msra.mxu0 %v3973
    %5341 = vmatpush.bf16.msra.mxu0 %v3965
    %5342 = vmatpush.bf16.msra.mxu0 %v3957
    %5343 = vmatpush.bf16.msra.mxu0 %v3949
    %5344 = vmatmul.bf16.gmra.mxu0 %v1572
    %v5345 = vpop.f32.mrf.mxu0
    %v5346 = vadd.f32 %v5333, %v5345
    %v5347 = vpop.f32.mrf.mxu0
    %5348 = vdwg.mxu0
    %5349 = vmatpush.bf16.msra.mxu0 %v4069
    %5350 = vmatpush.bf16.msra.mxu0 %v4061
    %5351 = vmatpush.bf16.msra.mxu0 %v4053
    %5352 = vmatpush.bf16.msra.mxu0 %v4045
    %5353 = vmatpush.bf16.msra.mxu0 %v4037
    %5354 = vmatpush.bf16.msra.mxu0 %v4029
    %5355 = vmatpush.bf16.msra.mxu0 %v4021
    %5356 = vmatpush.bf16.msra.mxu0 %v4013
    %5357 = vmatmul.bf16.gmra.mxu0 %v1573
    %v5358 = vpop.f32.mrf.mxu0
    %v5359 = vadd.f32 %v5346, %v5358
    %v5360 = vpop.f32.mrf.mxu0
    %5361 = vdwg.mxu0
    %5362 = vmatpush.bf16.msra.mxu0 %v4133
    %5363 = vmatpush.bf16.msra.mxu0 %v4125
    %5364 = vmatpush.bf16.msra.mxu0 %v4117
    %5365 = vmatpush.bf16.msra.mxu0 %v4109
    %5366 = vmatpush.bf16.msra.mxu0 %v4101
    %5367 = vmatpush.bf16.msra.mxu0 %v4093
    %5368 = vmatpush.bf16.msra.mxu0 %v4085
    %5369 = vmatpush.bf16.msra.mxu0 %v4077
    %5370 = vmatmul.bf16.gmra.mxu0 %v1574
    %v5371 = vpop.f32.mrf.mxu0
    %v5372 = vadd.f32 %v5359, %v5371
    %v5373 = vpop.f32.mrf.mxu0
    %5374 = vdwg.mxu0
    %5375 = vmatpush.bf16.msra.mxu0 %v3686
    %5376 = vmatpush.bf16.msra.mxu0 %v3678
    %5377 = vmatpush.bf16.msra.mxu0 %v3670
    %5378 = vmatpush.bf16.msra.mxu0 %v3662
    %5379 = vmatpush.bf16.msra.mxu0 %v3654
    %5380 = vmatpush.bf16.msra.mxu0 %v3646
    %5381 = vmatpush.bf16.msra.mxu0 %v3638
    %5382 = vmatpush.bf16.msra.mxu0 %v3630
    %5383 = vmatmul.bf16.gmra.mxu0 %v1567
    %v5384 = vpop.f32.mrf.mxu0
    %v5385 = vadd.f32 0.0, %v5384
    %v5386 = vpop.f32.mrf.mxu0
    %5387 = vdwg.mxu0
    %5388 = vmatpush.bf16.msra.mxu0 %v3750
    %5389 = vmatpush.bf16.msra.mxu0 %v3742
    %5390 = vmatpush.bf16.msra.mxu0 %v3734
    %5391 = vmatpush.bf16.msra.mxu0 %v3726
    %5392 = vmatpush.bf16.msra.mxu0 %v3718
    %5393 = vmatpush.bf16.msra.mxu0 %v3710
    %5394 = vmatpush.bf16.msra.mxu0 %v3702
    %5395 = vmatpush.bf16.msra.mxu0 %v3694
    %5396 = vmatmul.bf16.gmra.mxu0 %v1568
    %v5397 = vpop.f32.mrf.mxu0
    %v5398 = vadd.f32 %v5385, %v5397
    %v5399 = vpop.f32.mrf.mxu0
    %5400 = vdwg.mxu0
    %5401 = vmatpush.bf16.msra.mxu0 %v3814
    %5402 = vmatpush.bf16.msra.mxu0 %v3806
    %5403 = vmatpush.bf16.msra.mxu0 %v3798
    %5404 = vmatpush.bf16.msra.mxu0 %v3790
    %5405 = vmatpush.bf16.msra.mxu0 %v3782
    %5406 = vmatpush.bf16.msra.mxu0 %v3774
    %5407 = vmatpush.bf16.msra.mxu0 %v3766
    %5408 = vmatpush.bf16.msra.mxu0 %v3758
    %5409 = vmatmul.bf16.gmra.mxu0 %v1569
    %v5410 = vpop.f32.mrf.mxu0
    %v5411 = vadd.f32 %v5398, %v5410
    %v5412 = vpop.f32.mrf.mxu0
    %5413 = vdwg.mxu0
    %5414 = vmatpush.bf16.msra.mxu0 %v3878
    %5415 = vmatpush.bf16.msra.mxu0 %v3870
    %5416 = vmatpush.bf16.msra.mxu0 %v3862
    %5417 = vmatpush.bf16.msra.mxu0 %v3854
    %5418 = vmatpush.bf16.msra.mxu0 %v3846
    %5419 = vmatpush.bf16.msra.mxu0 %v3838
    %5420 = vmatpush.bf16.msra.mxu0 %v3830
    %5421 = vmatpush.bf16.msra.mxu0 %v3822
    %5422 = vmatmul.bf16.gmra.mxu0 %v1570
    %v5423 = vpop.f32.mrf.mxu0
    %v5424 = vadd.f32 %v5411, %v5423
    %v5425 = vpop.f32.mrf.mxu0
    %5426 = vdwg.mxu0
    %5427 = vmatpush.bf16.msra.mxu0 %v3942
    %5428 = vmatpush.bf16.msra.mxu0 %v3934
    %5429 = vmatpush.bf16.msra.mxu0 %v3926
    %5430 = vmatpush.bf16.msra.mxu0 %v3918
    %5431 = vmatpush.bf16.msra.mxu0 %v3910
    %5432 = vmatpush.bf16.msra.mxu0 %v3902
    %5433 = vmatpush.bf16.msra.mxu0 %v3894
    %5434 = vmatpush.bf16.msra.mxu0 %v3886
    %5435 = vmatmul.bf16.gmra.mxu0 %v1571
    %v5436 = vpop.f32.mrf.mxu0
    %v5437 = vadd.f32 %v5424, %v5436
    %v5438 = vpop.f32.mrf.mxu0
    %5439 = vdwg.mxu0
    %5440 = vmatpush.bf16.msra.mxu0 %v4006
    %5441 = vmatpush.bf16.msra.mxu0 %v3998
    %5442 = vmatpush.bf16.msra.mxu0 %v3990
    %5443 = vmatpush.bf16.msra.mxu0 %v3982
    %5444 = vmatpush.bf16.msra.mxu0 %v3974
    %5445 = vmatpush.bf16.msra.mxu0 %v3966
    %5446 = vmatpush.bf16.msra.mxu0 %v3958
    %5447 = vmatpush.bf16.msra.mxu0 %v3950
    %5448 = vmatmul.bf16.gmra.mxu0 %v1572
    %v5449 = vpop.f32.mrf.mxu0
    %v5450 = vadd.f32 %v5437, %v5449
    %v5451 = vpop.f32.mrf.mxu0
    %5452 = vdwg.mxu0
    %5453 = vmatpush.bf16.msra.mxu0 %v4070
    %5454 = vmatpush.bf16.msra.mxu0 %v4062
    %5455 = vmatpush.bf16.msra.mxu0 %v4054
    %5456 = vmatpush.bf16.msra.mxu0 %v4046
    %5457 = vmatpush.bf16.msra.mxu0 %v4038
    %5458 = vmatpush.bf16.msra.mxu0 %v4030
    %5459 = vmatpush.bf16.msra.mxu0 %v4022
    %5460 = vmatpush.bf16.msra.mxu0 %v4014
    %5461 = vmatmul.bf16.gmra.mxu0 %v1573
    %v5462 = vpop.f32.mrf.mxu0
    %v5463 = vadd.f32 %v5450, %v5462
    %v5464 = vpop.f32.mrf.mxu0
    %5465 = vdwg.mxu0
    %5466 = vmatpush.bf16.msra.mxu0 %v4134
    %5467 = vmatpush.bf16.msra.mxu0 %v4126
    %5468 = vmatpush.bf16.msra.mxu0 %v4118
    %5469 = vmatpush.bf16.msra.mxu0 %v4110
    %5470 = vmatpush.bf16.msra.mxu0 %v4102
    %5471 = vmatpush.bf16.msra.mxu0 %v4094
    %5472 = vmatpush.bf16.msra.mxu0 %v4086
    %5473 = vmatpush.bf16.msra.mxu0 %v4078
    %5474 = vmatmul.bf16.gmra.mxu0 %v1574
    %v5475 = vpop.f32.mrf.mxu0
    %v5476 = vadd.f32 %v5463, %v5475
    %v5477 = vpop.f32.mrf.mxu0
    %5478 = vdwg.mxu0
    %v5479 = vld [vmem:[#allocation19] sm:$0xff]
    %v5481 = vperm.slane %v5479, 0
    %v5482 = vperm.slane %v5479, 1
    %v5483 = vperm.slane %v5479, 2
    %v5484 = vperm.slane %v5479, 3
    %v5485 = vperm.slane %v5479, 4
    %v5486 = vperm.slane %v5479, 5
    %v5487 = vperm.slane %v5479, 6
    %v5488 = vperm.slane %v5479, 7
    %v5497 = vmul.f32 %v4748, %v5481
    %v5498 = vmul.f32 %v4852, %v5482
    %v5499 = vmul.f32 %v4956, %v5483
    %v5500 = vmul.f32 %v5060, %v5484
    %v5501 = vmul.f32 %v5164, %v5485
    %v5502 = vmul.f32 %v5268, %v5486
    %v5503 = vmul.f32 %v5372, %v5487
    %v5504 = vmul.f32 %v5476, %v5488
    %v5505 = vld [vmem:[#allocation20] sm:$0xff]
    %v5507 = vperm.slane %v5505, 0
    %v5508 = vperm.slane %v5505, 1
    %v5509 = vperm.slane %v5505, 2
    %v5510 = vperm.slane %v5505, 3
    %v5511 = vperm.slane %v5505, 4
    %v5512 = vperm.slane %v5505, 5
    %v5513 = vperm.slane %v5505, 6
    %v5514 = vperm.slane %v5505, 7
    %v5523 = vadd.f32 %v5497, %v5507
    %v5524 = vadd.f32 %v5498, %v5508
    %v5525 = vadd.f32 %v5499, %v5509
    %v5526 = vadd.f32 %v5500, %v5510
    %v5527 = vadd.f32 %v5501, %v5511
    %v5528 = vadd.f32 %v5502, %v5512
    %v5529 = vadd.f32 %v5503, %v5513
    %v5530 = vadd.f32 %v5504, %v5514
    %v5531 = vmax.f32 %v5523, 0.0
    %v5532 = vmax.f32 %v5524, 0.0
    %v5533 = vmax.f32 %v5525, 0.0
    %v5534 = vmax.f32 %v5526, 0.0
    %v5535 = vmax.f32 %v5527, 0.0
    %v5536 = vmax.f32 %v5528, 0.0
    %v5537 = vmax.f32 %v5529, 0.0
    %v5538 = vmax.f32 %v5530, 0.0
    %v5539 = vpack.c.bf16 %v5531, %v5531
    %v5540 = vpack.c.bf16 %v5532, %v5532
    %v5541 = vpack.c.bf16 %v5533, %v5533
    %v5542 = vpack.c.bf16 %v5534, %v5534
    %v5543 = vpack.c.bf16 %v5535, %v5535
    %v5544 = vpack.c.bf16 %v5536, %v5536
    %v5545 = vpack.c.bf16 %v5537, %v5537
    %v5546 = vpack.c.bf16 %v5538, %v5538
    %v5547 = vld [vmem:[#allocation22] sm:$0xff]
    %v5548 = vld [vmem:[#allocation22 + $0x8] sm:$0xff]
    %v5549 = vld [vmem:[#allocation22 + $0x10] sm:$0xff]
    %v5550 = vld [vmem:[#allocation22 + $0x18] sm:$0xff]
    %v5551 = vld [vmem:[#allocation22 + $0x20] sm:$0xff]
    %v5552 = vld [vmem:[#allocation22 + $0x28] sm:$0xff]
    %v5553 = vld [vmem:[#allocation22 + $0x30] sm:$0xff]
    %v5554 = vld [vmem:[#allocation22 + $0x38] sm:$0xff]
    %v5555 = vld [vmem:[#allocation22 + $0x40] sm:$0xff]
    %v5556 = vld [vmem:[#allocation22 + $0x48] sm:$0xff]
    %v5557 = vld [vmem:[#allocation22 + $0x50] sm:$0xff]
    %v5558 = vld [vmem:[#allocation22 + $0x58] sm:$0xff]
    %v5559 = vld [vmem:[#allocation22 + $0x60] sm:$0xff]
    %v5560 = vld [vmem:[#allocation22 + $0x68] sm:$0xff]
    %v5561 = vld [vmem:[#allocation22 + $0x70] sm:$0xff]
    %v5562 = vld [vmem:[#allocation22 + $0x78] sm:$0xff]
    %v5563 = vld [vmem:[#allocation22 + $0x80] sm:$0xff]
    %v5564 = vld [vmem:[#allocation22 + $0x88] sm:$0xff]
    %v5565 = vld [vmem:[#allocation22 + $0x90] sm:$0xff]
    %v5566 = vld [vmem:[#allocation22 + $0x98] sm:$0xff]
    %v5567 = vld [vmem:[#allocation22 + $0xa0] sm:$0xff]
    %v5568 = vld [vmem:[#allocation22 + $0xa8] sm:$0xff]
    %v5569 = vld [vmem:[#allocation22 + $0xb0] sm:$0xff]
    %v5570 = vld [vmem:[#allocation22 + $0xb8] sm:$0xff]
    %v5571 = vld [vmem:[#allocation22 + $0xc0] sm:$0xff]
    %v5572 = vld [vmem:[#allocation22 + $0xc8] sm:$0xff]
    %v5573 = vld [vmem:[#allocation22 + $0xd0] sm:$0xff]
    %v5574 = vld [vmem:[#allocation22 + $0xd8] sm:$0xff]
    %v5575 = vld [vmem:[#allocation22 + $0xe0] sm:$0xff]
    %v5576 = vld [vmem:[#allocation22 + $0xe8] sm:$0xff]
    %v5577 = vld [vmem:[#allocation22 + $0xf0] sm:$0xff]
    %v5578 = vld [vmem:[#allocation22 + $0xf8] sm:$0xff]
    %v5579 = vld [vmem:[#allocation22 + $0x100] sm:$0xff]
    %v5580 = vld [vmem:[#allocation22 + $0x108] sm:$0xff]
    %v5581 = vld [vmem:[#allocation22 + $0x110] sm:$0xff]
    %v5582 = vld [vmem:[#allocation22 + $0x118] sm:$0xff]
    %v5583 = vld [vmem:[#allocation22 + $0x120] sm:$0xff]
    %v5584 = vld [vmem:[#allocation22 + $0x128] sm:$0xff]
    %v5585 = vld [vmem:[#allocation22 + $0x130] sm:$0xff]
    %v5586 = vld [vmem:[#allocation22 + $0x138] sm:$0xff]
    %v5587 = vld [vmem:[#allocation22 + $0x140] sm:$0xff]
    %v5588 = vld [vmem:[#allocation22 + $0x148] sm:$0xff]
    %v5589 = vld [vmem:[#allocation22 + $0x150] sm:$0xff]
    %v5590 = vld [vmem:[#allocation22 + $0x158] sm:$0xff]
    %v5591 = vld [vmem:[#allocation22 + $0x160] sm:$0xff]
    %v5592 = vld [vmem:[#allocation22 + $0x168] sm:$0xff]
    %v5593 = vld [vmem:[#allocation22 + $0x170] sm:$0xff]
    %v5594 = vld [vmem:[#allocation22 + $0x178] sm:$0xff]
    %v5595 = vld [vmem:[#allocation22 + $0x180] sm:$0xff]
    %v5596 = vld [vmem:[#allocation22 + $0x188] sm:$0xff]
    %v5597 = vld [vmem:[#allocation22 + $0x190] sm:$0xff]
    %v5598 = vld [vmem:[#allocation22 + $0x198] sm:$0xff]
    %v5599 = vld [vmem:[#allocation22 + $0x1a0] sm:$0xff]
    %v5600 = vld [vmem:[#allocation22 + $0x1a8] sm:$0xff]
    %v5601 = vld [vmem:[#allocation22 + $0x1b0] sm:$0xff]
    %v5602 = vld [vmem:[#allocation22 + $0x1b8] sm:$0xff]
    %v5603 = vld [vmem:[#allocation22 + $0x1c0] sm:$0xff]
    %v5604 = vld [vmem:[#allocation22 + $0x1c8] sm:$0xff]
    %v5605 = vld [vmem:[#allocation22 + $0x1d0] sm:$0xff]
    %v5606 = vld [vmem:[#allocation22 + $0x1d8] sm:$0xff]
    %v5607 = vld [vmem:[#allocation22 + $0x1e0] sm:$0xff]
    %v5608 = vld [vmem:[#allocation22 + $0x1e8] sm:$0xff]
    %v5609 = vld [vmem:[#allocation22 + $0x1f0] sm:$0xff]
    %v5610 = vld [vmem:[#allocation22 + $0x1f8] sm:$0xff]
    %v5611 = vld [vmem:[#allocation22 + $0x200] sm:$0xff]
    %v5612 = vld [vmem:[#allocation22 + $0x208] sm:$0xff]
    %v5613 = vld [vmem:[#allocation22 + $0x210] sm:$0xff]
    %v5614 = vld [vmem:[#allocation22 + $0x218] sm:$0xff]
    %v5615 = vld [vmem:[#allocation22 + $0x220] sm:$0xff]
    %v5616 = vld [vmem:[#allocation22 + $0x228] sm:$0xff]
    %v5617 = vld [vmem:[#allocation22 + $0x230] sm:$0xff]
    %v5618 = vld [vmem:[#allocation22 + $0x238] sm:$0xff]
    %v5619 = vld [vmem:[#allocation22 + $0x240] sm:$0xff]
    %v5620 = vld [vmem:[#allocation22 + $0x248] sm:$0xff]
    %v5621 = vld [vmem:[#allocation22 + $0x250] sm:$0xff]
    %v5622 = vld [vmem:[#allocation22 + $0x258] sm:$0xff]
    %v5623 = vld [vmem:[#allocation22 + $0x260] sm:$0xff]
    %v5624 = vld [vmem:[#allocation22 + $0x268] sm:$0xff]
    %v5625 = vld [vmem:[#allocation22 + $0x270] sm:$0xff]
    %v5626 = vld [vmem:[#allocation22 + $0x278] sm:$0xff]
    %v5627 = vld [vmem:[#allocation22 + $0x280] sm:$0xff]
    %v5628 = vld [vmem:[#allocation22 + $0x288] sm:$0xff]
    %v5629 = vld [vmem:[#allocation22 + $0x290] sm:$0xff]
    %v5630 = vld [vmem:[#allocation22 + $0x298] sm:$0xff]
    %v5631 = vld [vmem:[#allocation22 + $0x2a0] sm:$0xff]
    %v5632 = vld [vmem:[#allocation22 + $0x2a8] sm:$0xff]
    %v5633 = vld [vmem:[#allocation22 + $0x2b0] sm:$0xff]
    %v5634 = vld [vmem:[#allocation22 + $0x2b8] sm:$0xff]
    %v5635 = vld [vmem:[#allocation22 + $0x2c0] sm:$0xff]
    %v5636 = vld [vmem:[#allocation22 + $0x2c8] sm:$0xff]
    %v5637 = vld [vmem:[#allocation22 + $0x2d0] sm:$0xff]
    %v5638 = vld [vmem:[#allocation22 + $0x2d8] sm:$0xff]
    %v5639 = vld [vmem:[#allocation22 + $0x2e0] sm:$0xff]
    %v5640 = vld [vmem:[#allocation22 + $0x2e8] sm:$0xff]
    %v5641 = vld [vmem:[#allocation22 + $0x2f0] sm:$0xff]
    %v5642 = vld [vmem:[#allocation22 + $0x2f8] sm:$0xff]
    %v5643 = vld [vmem:[#allocation22 + $0x300] sm:$0xff]
    %v5644 = vld [vmem:[#allocation22 + $0x308] sm:$0xff]
    %v5645 = vld [vmem:[#allocation22 + $0x310] sm:$0xff]
    %v5646 = vld [vmem:[#allocation22 + $0x318] sm:$0xff]
    %v5647 = vld [vmem:[#allocation22 + $0x320] sm:$0xff]
    %v5648 = vld [vmem:[#allocation22 + $0x328] sm:$0xff]
    %v5649 = vld [vmem:[#allocation22 + $0x330] sm:$0xff]
    %v5650 = vld [vmem:[#allocation22 + $0x338] sm:$0xff]
    %v5651 = vld [vmem:[#allocation22 + $0x340] sm:$0xff]
    %v5652 = vld [vmem:[#allocation22 + $0x348] sm:$0xff]
    %v5653 = vld [vmem:[#allocation22 + $0x350] sm:$0xff]
    %v5654 = vld [vmem:[#allocation22 + $0x358] sm:$0xff]
    %v5655 = vld [vmem:[#allocation22 + $0x360] sm:$0xff]
    %v5656 = vld [vmem:[#allocation22 + $0x368] sm:$0xff]
    %v5657 = vld [vmem:[#allocation22 + $0x370] sm:$0xff]
    %v5658 = vld [vmem:[#allocation22 + $0x378] sm:$0xff]
    %v5659 = vld [vmem:[#allocation22 + $0x380] sm:$0xff]
    %v5660 = vld [vmem:[#allocation22 + $0x388] sm:$0xff]
    %v5661 = vld [vmem:[#allocation22 + $0x390] sm:$0xff]
    %v5662 = vld [vmem:[#allocation22 + $0x398] sm:$0xff]
    %v5663 = vld [vmem:[#allocation22 + $0x3a0] sm:$0xff]
    %v5664 = vld [vmem:[#allocation22 + $0x3a8] sm:$0xff]
    %v5665 = vld [vmem:[#allocation22 + $0x3b0] sm:$0xff]
    %v5666 = vld [vmem:[#allocation22 + $0x3b8] sm:$0xff]
    %v5667 = vld [vmem:[#allocation22 + $0x3c0] sm:$0xff]
    %v5668 = vld [vmem:[#allocation22 + $0x3c8] sm:$0xff]
    %v5669 = vld [vmem:[#allocation22 + $0x3d0] sm:$0xff]
    %v5670 = vld [vmem:[#allocation22 + $0x3d8] sm:$0xff]
    %v5671 = vld [vmem:[#allocation22 + $0x3e0] sm:$0xff]
    %v5672 = vld [vmem:[#allocation22 + $0x3e8] sm:$0xff]
    %v5673 = vld [vmem:[#allocation22 + $0x3f0] sm:$0xff]
    %v5674 = vld [vmem:[#allocation22 + $0x3f8] sm:$0xff]
    %v5675 = vld [vmem:[#allocation22 + $0x400] sm:$0xff]
    %v5676 = vld [vmem:[#allocation22 + $0x408] sm:$0xff]
    %v5677 = vld [vmem:[#allocation22 + $0x410] sm:$0xff]
    %v5678 = vld [vmem:[#allocation22 + $0x418] sm:$0xff]
    %v5679 = vld [vmem:[#allocation22 + $0x420] sm:$0xff]
    %v5680 = vld [vmem:[#allocation22 + $0x428] sm:$0xff]
    %v5681 = vld [vmem:[#allocation22 + $0x430] sm:$0xff]
    %v5682 = vld [vmem:[#allocation22 + $0x438] sm:$0xff]
    %v5683 = vld [vmem:[#allocation22 + $0x440] sm:$0xff]
    %v5684 = vld [vmem:[#allocation22 + $0x448] sm:$0xff]
    %v5685 = vld [vmem:[#allocation22 + $0x450] sm:$0xff]
    %v5686 = vld [vmem:[#allocation22 + $0x458] sm:$0xff]
    %v5687 = vld [vmem:[#allocation22 + $0x460] sm:$0xff]
    %v5688 = vld [vmem:[#allocation22 + $0x468] sm:$0xff]
    %v5689 = vld [vmem:[#allocation22 + $0x470] sm:$0xff]
    %v5690 = vld [vmem:[#allocation22 + $0x478] sm:$0xff]
    %v5691 = vld [vmem:[#allocation22 + $0x480] sm:$0xff]
    %v5692 = vld [vmem:[#allocation22 + $0x488] sm:$0xff]
    %v5693 = vld [vmem:[#allocation22 + $0x490] sm:$0xff]
    %v5694 = vld [vmem:[#allocation22 + $0x498] sm:$0xff]
    %v5695 = vld [vmem:[#allocation22 + $0x4a0] sm:$0xff]
    %v5696 = vld [vmem:[#allocation22 + $0x4a8] sm:$0xff]
    %v5697 = vld [vmem:[#allocation22 + $0x4b0] sm:$0xff]
    %v5698 = vld [vmem:[#allocation22 + $0x4b8] sm:$0xff]
    %v5699 = vld [vmem:[#allocation22 + $0x4c0] sm:$0xff]
    %v5700 = vld [vmem:[#allocation22 + $0x4c8] sm:$0xff]
    %v5701 = vld [vmem:[#allocation22 + $0x4d0] sm:$0xff]
    %v5702 = vld [vmem:[#allocation22 + $0x4d8] sm:$0xff]
    %v5703 = vld [vmem:[#allocation22 + $0x4e0] sm:$0xff]
    %v5704 = vld [vmem:[#allocation22 + $0x4e8] sm:$0xff]
    %v5705 = vld [vmem:[#allocation22 + $0x4f0] sm:$0xff]
    %v5706 = vld [vmem:[#allocation22 + $0x4f8] sm:$0xff]
    %v5707 = vld [vmem:[#allocation22 + $0x500] sm:$0xff]
    %v5708 = vld [vmem:[#allocation22 + $0x508] sm:$0xff]
    %v5709 = vld [vmem:[#allocation22 + $0x510] sm:$0xff]
    %v5710 = vld [vmem:[#allocation22 + $0x518] sm:$0xff]
    %v5711 = vld [vmem:[#allocation22 + $0x520] sm:$0xff]
    %v5712 = vld [vmem:[#allocation22 + $0x528] sm:$0xff]
    %v5713 = vld [vmem:[#allocation22 + $0x530] sm:$0xff]
    %v5714 = vld [vmem:[#allocation22 + $0x538] sm:$0xff]
    %v5715 = vld [vmem:[#allocation22 + $0x540] sm:$0xff]
    %v5716 = vld [vmem:[#allocation22 + $0x548] sm:$0xff]
    %v5717 = vld [vmem:[#allocation22 + $0x550] sm:$0xff]
    %v5718 = vld [vmem:[#allocation22 + $0x558] sm:$0xff]
    %v5719 = vld [vmem:[#allocation22 + $0x560] sm:$0xff]
    %v5720 = vld [vmem:[#allocation22 + $0x568] sm:$0xff]
    %v5721 = vld [vmem:[#allocation22 + $0x570] sm:$0xff]
    %v5722 = vld [vmem:[#allocation22 + $0x578] sm:$0xff]
    %v5723 = vld [vmem:[#allocation22 + $0x580] sm:$0xff]
    %v5724 = vld [vmem:[#allocation22 + $0x588] sm:$0xff]
    %v5725 = vld [vmem:[#allocation22 + $0x590] sm:$0xff]
    %v5726 = vld [vmem:[#allocation22 + $0x598] sm:$0xff]
    %v5727 = vld [vmem:[#allocation22 + $0x5a0] sm:$0xff]
    %v5728 = vld [vmem:[#allocation22 + $0x5a8] sm:$0xff]
    %v5729 = vld [vmem:[#allocation22 + $0x5b0] sm:$0xff]
    %v5730 = vld [vmem:[#allocation22 + $0x5b8] sm:$0xff]
    %v5731 = vld [vmem:[#allocation22 + $0x5c0] sm:$0xff]
    %v5732 = vld [vmem:[#allocation22 + $0x5c8] sm:$0xff]
    %v5733 = vld [vmem:[#allocation22 + $0x5d0] sm:$0xff]
    %v5734 = vld [vmem:[#allocation22 + $0x5d8] sm:$0xff]
    %v5735 = vld [vmem:[#allocation22 + $0x5e0] sm:$0xff]
    %v5736 = vld [vmem:[#allocation22 + $0x5e8] sm:$0xff]
    %v5737 = vld [vmem:[#allocation22 + $0x5f0] sm:$0xff]
    %v5738 = vld [vmem:[#allocation22 + $0x5f8] sm:$0xff]
    %v5739 = vld [vmem:[#allocation22 + $0x600] sm:$0xff]
    %v5740 = vld [vmem:[#allocation22 + $0x608] sm:$0xff]
    %v5741 = vld [vmem:[#allocation22 + $0x610] sm:$0xff]
    %v5742 = vld [vmem:[#allocation22 + $0x618] sm:$0xff]
    %v5743 = vld [vmem:[#allocation22 + $0x620] sm:$0xff]
    %v5744 = vld [vmem:[#allocation22 + $0x628] sm:$0xff]
    %v5745 = vld [vmem:[#allocation22 + $0x630] sm:$0xff]
    %v5746 = vld [vmem:[#allocation22 + $0x638] sm:$0xff]
    %v5747 = vld [vmem:[#allocation22 + $0x640] sm:$0xff]
    %v5748 = vld [vmem:[#allocation22 + $0x648] sm:$0xff]
    %v5749 = vld [vmem:[#allocation22 + $0x650] sm:$0xff]
    %v5750 = vld [vmem:[#allocation22 + $0x658] sm:$0xff]
    %v5751 = vld [vmem:[#allocation22 + $0x660] sm:$0xff]
    %v5752 = vld [vmem:[#allocation22 + $0x668] sm:$0xff]
    %v5753 = vld [vmem:[#allocation22 + $0x670] sm:$0xff]
    %v5754 = vld [vmem:[#allocation22 + $0x678] sm:$0xff]
    %v5755 = vld [vmem:[#allocation22 + $0x680] sm:$0xff]
    %v5756 = vld [vmem:[#allocation22 + $0x688] sm:$0xff]
    %v5757 = vld [vmem:[#allocation22 + $0x690] sm:$0xff]
    %v5758 = vld [vmem:[#allocation22 + $0x698] sm:$0xff]
    %v5759 = vld [vmem:[#allocation22 + $0x6a0] sm:$0xff]
    %v5760 = vld [vmem:[#allocation22 + $0x6a8] sm:$0xff]
    %v5761 = vld [vmem:[#allocation22 + $0x6b0] sm:$0xff]
    %v5762 = vld [vmem:[#allocation22 + $0x6b8] sm:$0xff]
    %v5763 = vld [vmem:[#allocation22 + $0x6c0] sm:$0xff]
    %v5764 = vld [vmem:[#allocation22 + $0x6c8] sm:$0xff]
    %v5765 = vld [vmem:[#allocation22 + $0x6d0] sm:$0xff]
    %v5766 = vld [vmem:[#allocation22 + $0x6d8] sm:$0xff]
    %v5767 = vld [vmem:[#allocation22 + $0x6e0] sm:$0xff]
    %v5768 = vld [vmem:[#allocation22 + $0x6e8] sm:$0xff]
    %v5769 = vld [vmem:[#allocation22 + $0x6f0] sm:$0xff]
    %v5770 = vld [vmem:[#allocation22 + $0x6f8] sm:$0xff]
    %v5771 = vld [vmem:[#allocation22 + $0x700] sm:$0xff]
    %v5772 = vld [vmem:[#allocation22 + $0x708] sm:$0xff]
    %v5773 = vld [vmem:[#allocation22 + $0x710] sm:$0xff]
    %v5774 = vld [vmem:[#allocation22 + $0x718] sm:$0xff]
    %v5775 = vld [vmem:[#allocation22 + $0x720] sm:$0xff]
    %v5776 = vld [vmem:[#allocation22 + $0x728] sm:$0xff]
    %v5777 = vld [vmem:[#allocation22 + $0x730] sm:$0xff]
    %v5778 = vld [vmem:[#allocation22 + $0x738] sm:$0xff]
    %v5779 = vld [vmem:[#allocation22 + $0x740] sm:$0xff]
    %v5780 = vld [vmem:[#allocation22 + $0x748] sm:$0xff]
    %v5781 = vld [vmem:[#allocation22 + $0x750] sm:$0xff]
    %v5782 = vld [vmem:[#allocation22 + $0x758] sm:$0xff]
    %v5783 = vld [vmem:[#allocation22 + $0x760] sm:$0xff]
    %v5784 = vld [vmem:[#allocation22 + $0x768] sm:$0xff]
    %v5785 = vld [vmem:[#allocation22 + $0x770] sm:$0xff]
    %v5786 = vld [vmem:[#allocation22 + $0x778] sm:$0xff]
    %v5787 = vld [vmem:[#allocation22 + $0x780] sm:$0xff]
    %v5788 = vld [vmem:[#allocation22 + $0x788] sm:$0xff]
    %v5789 = vld [vmem:[#allocation22 + $0x790] sm:$0xff]
    %v5790 = vld [vmem:[#allocation22 + $0x798] sm:$0xff]
    %v5791 = vld [vmem:[#allocation22 + $0x7a0] sm:$0xff]
    %v5792 = vld [vmem:[#allocation22 + $0x7a8] sm:$0xff]
    %v5793 = vld [vmem:[#allocation22 + $0x7b0] sm:$0xff]
    %v5794 = vld [vmem:[#allocation22 + $0x7b8] sm:$0xff]
    %v5795 = vld [vmem:[#allocation22 + $0x7c0] sm:$0xff]
    %v5796 = vld [vmem:[#allocation22 + $0x7c8] sm:$0xff]
    %v5797 = vld [vmem:[#allocation22 + $0x7d0] sm:$0xff]
    %v5798 = vld [vmem:[#allocation22 + $0x7d8] sm:$0xff]
    %v5799 = vld [vmem:[#allocation22 + $0x7e0] sm:$0xff]
    %v5800 = vld [vmem:[#allocation22 + $0x7e8] sm:$0xff]
    %v5801 = vld [vmem:[#allocation22 + $0x7f0] sm:$0xff]
    %v5802 = vld [vmem:[#allocation22 + $0x7f8] sm:$0xff]
    %v6059 = vunpack.c.l.b16 %v5547
    %v6060 = vunpack.c.h.b16 %v5547
    %v6061 = vunpack.c.l.b16 %v5548
    %v6062 = vunpack.c.h.b16 %v5548
    %v6063 = vunpack.c.l.b16 %v5549
    %v6064 = vunpack.c.h.b16 %v5549
    %v6065 = vunpack.c.l.b16 %v5550
    %v6066 = vunpack.c.h.b16 %v5550
    %v6067 = vunpack.c.l.b16 %v5551
    %v6068 = vunpack.c.h.b16 %v5551
    %v6069 = vunpack.c.l.b16 %v5552
    %v6070 = vunpack.c.h.b16 %v5552
    %v6071 = vunpack.c.l.b16 %v5553
    %v6072 = vunpack.c.h.b16 %v5553
    %v6073 = vunpack.c.l.b16 %v5554
    %v6074 = vunpack.c.h.b16 %v5554
    %v6075 = vunpack.c.l.b16 %v5555
    %v6076 = vunpack.c.h.b16 %v5555
    %v6077 = vunpack.c.l.b16 %v5556
    %v6078 = vunpack.c.h.b16 %v5556
    %v6079 = vunpack.c.l.b16 %v5557
    %v6080 = vunpack.c.h.b16 %v5557
    %v6081 = vunpack.c.l.b16 %v5558
    %v6082 = vunpack.c.h.b16 %v5558
    %v6083 = vunpack.c.l.b16 %v5559
    %v6084 = vunpack.c.h.b16 %v5559
    %v6085 = vunpack.c.l.b16 %v5560
    %v6086 = vunpack.c.h.b16 %v5560
    %v6087 = vunpack.c.l.b16 %v5561
    %v6088 = vunpack.c.h.b16 %v5561
    %v6089 = vunpack.c.l.b16 %v5562
    %v6090 = vunpack.c.h.b16 %v5562
    %v6091 = vunpack.c.l.b16 %v5563
    %v6092 = vunpack.c.h.b16 %v5563
    %v6093 = vunpack.c.l.b16 %v5564
    %v6094 = vunpack.c.h.b16 %v5564
    %v6095 = vunpack.c.l.b16 %v5565
    %v6096 = vunpack.c.h.b16 %v5565
    %v6097 = vunpack.c.l.b16 %v5566
    %v6098 = vunpack.c.h.b16 %v5566
    %v6099 = vunpack.c.l.b16 %v5567
    %v6100 = vunpack.c.h.b16 %v5567
    %v6101 = vunpack.c.l.b16 %v5568
    %v6102 = vunpack.c.h.b16 %v5568
    %v6103 = vunpack.c.l.b16 %v5569
    %v6104 = vunpack.c.h.b16 %v5569
    %v6105 = vunpack.c.l.b16 %v5570
    %v6106 = vunpack.c.h.b16 %v5570
    %v6107 = vunpack.c.l.b16 %v5571
    %v6108 = vunpack.c.h.b16 %v5571
    %v6109 = vunpack.c.l.b16 %v5572
    %v6110 = vunpack.c.h.b16 %v5572
    %v6111 = vunpack.c.l.b16 %v5573
    %v6112 = vunpack.c.h.b16 %v5573
    %v6113 = vunpack.c.l.b16 %v5574
    %v6114 = vunpack.c.h.b16 %v5574
    %v6115 = vunpack.c.l.b16 %v5575
    %v6116 = vunpack.c.h.b16 %v5575
    %v6117 = vunpack.c.l.b16 %v5576
    %v6118 = vunpack.c.h.b16 %v5576
    %v6119 = vunpack.c.l.b16 %v5577
    %v6120 = vunpack.c.h.b16 %v5577
    %v6121 = vunpack.c.l.b16 %v5578
    %v6122 = vunpack.c.h.b16 %v5578
    %v6123 = vunpack.c.l.b16 %v5579
    %v6124 = vunpack.c.h.b16 %v5579
    %v6125 = vunpack.c.l.b16 %v5580
    %v6126 = vunpack.c.h.b16 %v5580
    %v6127 = vunpack.c.l.b16 %v5581
    %v6128 = vunpack.c.h.b16 %v5581
    %v6129 = vunpack.c.l.b16 %v5582
    %v6130 = vunpack.c.h.b16 %v5582
    %v6131 = vunpack.c.l.b16 %v5583
    %v6132 = vunpack.c.h.b16 %v5583
    %v6133 = vunpack.c.l.b16 %v5584
    %v6134 = vunpack.c.h.b16 %v5584
    %v6135 = vunpack.c.l.b16 %v5585
    %v6136 = vunpack.c.h.b16 %v5585
    %v6137 = vunpack.c.l.b16 %v5586
    %v6138 = vunpack.c.h.b16 %v5586
    %v6139 = vunpack.c.l.b16 %v5587
    %v6140 = vunpack.c.h.b16 %v5587
    %v6141 = vunpack.c.l.b16 %v5588
    %v6142 = vunpack.c.h.b16 %v5588
    %v6143 = vunpack.c.l.b16 %v5589
    %v6144 = vunpack.c.h.b16 %v5589
    %v6145 = vunpack.c.l.b16 %v5590
    %v6146 = vunpack.c.h.b16 %v5590
    %v6147 = vunpack.c.l.b16 %v5591
    %v6148 = vunpack.c.h.b16 %v5591
    %v6149 = vunpack.c.l.b16 %v5592
    %v6150 = vunpack.c.h.b16 %v5592
    %v6151 = vunpack.c.l.b16 %v5593
    %v6152 = vunpack.c.h.b16 %v5593
    %v6153 = vunpack.c.l.b16 %v5594
    %v6154 = vunpack.c.h.b16 %v5594
    %v6155 = vunpack.c.l.b16 %v5595
    %v6156 = vunpack.c.h.b16 %v5595
    %v6157 = vunpack.c.l.b16 %v5596
    %v6158 = vunpack.c.h.b16 %v5596
    %v6159 = vunpack.c.l.b16 %v5597
    %v6160 = vunpack.c.h.b16 %v5597
    %v6161 = vunpack.c.l.b16 %v5598
    %v6162 = vunpack.c.h.b16 %v5598
    %v6163 = vunpack.c.l.b16 %v5599
    %v6164 = vunpack.c.h.b16 %v5599
    %v6165 = vunpack.c.l.b16 %v5600
    %v6166 = vunpack.c.h.b16 %v5600
    %v6167 = vunpack.c.l.b16 %v5601
    %v6168 = vunpack.c.h.b16 %v5601
    %v6169 = vunpack.c.l.b16 %v5602
    %v6170 = vunpack.c.h.b16 %v5602
    %v6171 = vunpack.c.l.b16 %v5603
    %v6172 = vunpack.c.h.b16 %v5603
    %v6173 = vunpack.c.l.b16 %v5604
    %v6174 = vunpack.c.h.b16 %v5604
    %v6175 = vunpack.c.l.b16 %v5605
    %v6176 = vunpack.c.h.b16 %v5605
    %v6177 = vunpack.c.l.b16 %v5606
    %v6178 = vunpack.c.h.b16 %v5606
    %v6179 = vunpack.c.l.b16 %v5607
    %v6180 = vunpack.c.h.b16 %v5607
    %v6181 = vunpack.c.l.b16 %v5608
    %v6182 = vunpack.c.h.b16 %v5608
    %v6183 = vunpack.c.l.b16 %v5609
    %v6184 = vunpack.c.h.b16 %v5609
    %v6185 = vunpack.c.l.b16 %v5610
    %v6186 = vunpack.c.h.b16 %v5610
    %v6187 = vunpack.c.l.b16 %v5611
    %v6188 = vunpack.c.h.b16 %v5611
    %v6189 = vunpack.c.l.b16 %v5612
    %v6190 = vunpack.c.h.b16 %v5612
    %v6191 = vunpack.c.l.b16 %v5613
    %v6192 = vunpack.c.h.b16 %v5613
    %v6193 = vunpack.c.l.b16 %v5614
    %v6194 = vunpack.c.h.b16 %v5614
    %v6195 = vunpack.c.l.b16 %v5615
    %v6196 = vunpack.c.h.b16 %v5615
    %v6197 = vunpack.c.l.b16 %v5616
    %v6198 = vunpack.c.h.b16 %v5616
    %v6199 = vunpack.c.l.b16 %v5617
    %v6200 = vunpack.c.h.b16 %v5617
    %v6201 = vunpack.c.l.b16 %v5618
    %v6202 = vunpack.c.h.b16 %v5618
    %v6203 = vunpack.c.l.b16 %v5619
    %v6204 = vunpack.c.h.b16 %v5619
    %v6205 = vunpack.c.l.b16 %v5620
    %v6206 = vunpack.c.h.b16 %v5620
    %v6207 = vunpack.c.l.b16 %v5621
    %v6208 = vunpack.c.h.b16 %v5621
    %v6209 = vunpack.c.l.b16 %v5622
    %v6210 = vunpack.c.h.b16 %v5622
    %v6211 = vunpack.c.l.b16 %v5623
    %v6212 = vunpack.c.h.b16 %v5623
    %v6213 = vunpack.c.l.b16 %v5624
    %v6214 = vunpack.c.h.b16 %v5624
    %v6215 = vunpack.c.l.b16 %v5625
    %v6216 = vunpack.c.h.b16 %v5625
    %v6217 = vunpack.c.l.b16 %v5626
    %v6218 = vunpack.c.h.b16 %v5626
    %v6219 = vunpack.c.l.b16 %v5627
    %v6220 = vunpack.c.h.b16 %v5627
    %v6221 = vunpack.c.l.b16 %v5628
    %v6222 = vunpack.c.h.b16 %v5628
    %v6223 = vunpack.c.l.b16 %v5629
    %v6224 = vunpack.c.h.b16 %v5629
    %v6225 = vunpack.c.l.b16 %v5630
    %v6226 = vunpack.c.h.b16 %v5630
    %v6227 = vunpack.c.l.b16 %v5631
    %v6228 = vunpack.c.h.b16 %v5631
    %v6229 = vunpack.c.l.b16 %v5632
    %v6230 = vunpack.c.h.b16 %v5632
    %v6231 = vunpack.c.l.b16 %v5633
    %v6232 = vunpack.c.h.b16 %v5633
    %v6233 = vunpack.c.l.b16 %v5634
    %v6234 = vunpack.c.h.b16 %v5634
    %v6235 = vunpack.c.l.b16 %v5635
    %v6236 = vunpack.c.h.b16 %v5635
    %v6237 = vunpack.c.l.b16 %v5636
    %v6238 = vunpack.c.h.b16 %v5636
    %v6239 = vunpack.c.l.b16 %v5637
    %v6240 = vunpack.c.h.b16 %v5637
    %v6241 = vunpack.c.l.b16 %v5638
    %v6242 = vunpack.c.h.b16 %v5638
    %v6243 = vunpack.c.l.b16 %v5639
    %v6244 = vunpack.c.h.b16 %v5639
    %v6245 = vunpack.c.l.b16 %v5640
    %v6246 = vunpack.c.h.b16 %v5640
    %v6247 = vunpack.c.l.b16 %v5641
    %v6248 = vunpack.c.h.b16 %v5641
    %v6249 = vunpack.c.l.b16 %v5642
    %v6250 = vunpack.c.h.b16 %v5642
    %v6251 = vunpack.c.l.b16 %v5643
    %v6252 = vunpack.c.h.b16 %v5643
    %v6253 = vunpack.c.l.b16 %v5644
    %v6254 = vunpack.c.h.b16 %v5644
    %v6255 = vunpack.c.l.b16 %v5645
    %v6256 = vunpack.c.h.b16 %v5645
    %v6257 = vunpack.c.l.b16 %v5646
    %v6258 = vunpack.c.h.b16 %v5646
    %v6259 = vunpack.c.l.b16 %v5647
    %v6260 = vunpack.c.h.b16 %v5647
    %v6261 = vunpack.c.l.b16 %v5648
    %v6262 = vunpack.c.h.b16 %v5648
    %v6263 = vunpack.c.l.b16 %v5649
    %v6264 = vunpack.c.h.b16 %v5649
    %v6265 = vunpack.c.l.b16 %v5650
    %v6266 = vunpack.c.h.b16 %v5650
    %v6267 = vunpack.c.l.b16 %v5651
    %v6268 = vunpack.c.h.b16 %v5651
    %v6269 = vunpack.c.l.b16 %v5652
    %v6270 = vunpack.c.h.b16 %v5652
    %v6271 = vunpack.c.l.b16 %v5653
    %v6272 = vunpack.c.h.b16 %v5653
    %v6273 = vunpack.c.l.b16 %v5654
    %v6274 = vunpack.c.h.b16 %v5654
    %v6275 = vunpack.c.l.b16 %v5655
    %v6276 = vunpack.c.h.b16 %v5655
    %v6277 = vunpack.c.l.b16 %v5656
    %v6278 = vunpack.c.h.b16 %v5656
    %v6279 = vunpack.c.l.b16 %v5657
    %v6280 = vunpack.c.h.b16 %v5657
    %v6281 = vunpack.c.l.b16 %v5658
    %v6282 = vunpack.c.h.b16 %v5658
    %v6283 = vunpack.c.l.b16 %v5659
    %v6284 = vunpack.c.h.b16 %v5659
    %v6285 = vunpack.c.l.b16 %v5660
    %v6286 = vunpack.c.h.b16 %v5660
    %v6287 = vunpack.c.l.b16 %v5661
    %v6288 = vunpack.c.h.b16 %v5661
    %v6289 = vunpack.c.l.b16 %v5662
    %v6290 = vunpack.c.h.b16 %v5662
    %v6291 = vunpack.c.l.b16 %v5663
    %v6292 = vunpack.c.h.b16 %v5663
    %v6293 = vunpack.c.l.b16 %v5664
    %v6294 = vunpack.c.h.b16 %v5664
    %v6295 = vunpack.c.l.b16 %v5665
    %v6296 = vunpack.c.h.b16 %v5665
    %v6297 = vunpack.c.l.b16 %v5666
    %v6298 = vunpack.c.h.b16 %v5666
    %v6299 = vunpack.c.l.b16 %v5667
    %v6300 = vunpack.c.h.b16 %v5667
    %v6301 = vunpack.c.l.b16 %v5668
    %v6302 = vunpack.c.h.b16 %v5668
    %v6303 = vunpack.c.l.b16 %v5669
    %v6304 = vunpack.c.h.b16 %v5669
    %v6305 = vunpack.c.l.b16 %v5670
    %v6306 = vunpack.c.h.b16 %v5670
    %v6307 = vunpack.c.l.b16 %v5671
    %v6308 = vunpack.c.h.b16 %v5671
    %v6309 = vunpack.c.l.b16 %v5672
    %v6310 = vunpack.c.h.b16 %v5672
    %v6311 = vunpack.c.l.b16 %v5673
    %v6312 = vunpack.c.h.b16 %v5673
    %v6313 = vunpack.c.l.b16 %v5674
    %v6314 = vunpack.c.h.b16 %v5674
    %v6315 = vunpack.c.l.b16 %v5675
    %v6316 = vunpack.c.h.b16 %v5675
    %v6317 = vunpack.c.l.b16 %v5676
    %v6318 = vunpack.c.h.b16 %v5676
    %v6319 = vunpack.c.l.b16 %v5677
    %v6320 = vunpack.c.h.b16 %v5677
    %v6321 = vunpack.c.l.b16 %v5678
    %v6322 = vunpack.c.h.b16 %v5678
    %v6323 = vunpack.c.l.b16 %v5679
    %v6324 = vunpack.c.h.b16 %v5679
    %v6325 = vunpack.c.l.b16 %v5680
    %v6326 = vunpack.c.h.b16 %v5680
    %v6327 = vunpack.c.l.b16 %v5681
    %v6328 = vunpack.c.h.b16 %v5681
    %v6329 = vunpack.c.l.b16 %v5682
    %v6330 = vunpack.c.h.b16 %v5682
    %v6331 = vunpack.c.l.b16 %v5683
    %v6332 = vunpack.c.h.b16 %v5683
    %v6333 = vunpack.c.l.b16 %v5684
    %v6334 = vunpack.c.h.b16 %v5684
    %v6335 = vunpack.c.l.b16 %v5685
    %v6336 = vunpack.c.h.b16 %v5685
    %v6337 = vunpack.c.l.b16 %v5686
    %v6338 = vunpack.c.h.b16 %v5686
    %v6339 = vunpack.c.l.b16 %v5687
    %v6340 = vunpack.c.h.b16 %v5687
    %v6341 = vunpack.c.l.b16 %v5688
    %v6342 = vunpack.c.h.b16 %v5688
    %v6343 = vunpack.c.l.b16 %v5689
    %v6344 = vunpack.c.h.b16 %v5689
    %v6345 = vunpack.c.l.b16 %v5690
    %v6346 = vunpack.c.h.b16 %v5690
    %v6347 = vunpack.c.l.b16 %v5691
    %v6348 = vunpack.c.h.b16 %v5691
    %v6349 = vunpack.c.l.b16 %v5692
    %v6350 = vunpack.c.h.b16 %v5692
    %v6351 = vunpack.c.l.b16 %v5693
    %v6352 = vunpack.c.h.b16 %v5693
    %v6353 = vunpack.c.l.b16 %v5694
    %v6354 = vunpack.c.h.b16 %v5694
    %v6355 = vunpack.c.l.b16 %v5695
    %v6356 = vunpack.c.h.b16 %v5695
    %v6357 = vunpack.c.l.b16 %v5696
    %v6358 = vunpack.c.h.b16 %v5696
    %v6359 = vunpack.c.l.b16 %v5697
    %v6360 = vunpack.c.h.b16 %v5697
    %v6361 = vunpack.c.l.b16 %v5698
    %v6362 = vunpack.c.h.b16 %v5698
    %v6363 = vunpack.c.l.b16 %v5699
    %v6364 = vunpack.c.h.b16 %v5699
    %v6365 = vunpack.c.l.b16 %v5700
    %v6366 = vunpack.c.h.b16 %v5700
    %v6367 = vunpack.c.l.b16 %v5701
    %v6368 = vunpack.c.h.b16 %v5701
    %v6369 = vunpack.c.l.b16 %v5702
    %v6370 = vunpack.c.h.b16 %v5702
    %v6371 = vunpack.c.l.b16 %v5703
    %v6372 = vunpack.c.h.b16 %v5703
    %v6373 = vunpack.c.l.b16 %v5704
    %v6374 = vunpack.c.h.b16 %v5704
    %v6375 = vunpack.c.l.b16 %v5705
    %v6376 = vunpack.c.h.b16 %v5705
    %v6377 = vunpack.c.l.b16 %v5706
    %v6378 = vunpack.c.h.b16 %v5706
    %v6379 = vunpack.c.l.b16 %v5707
    %v6380 = vunpack.c.h.b16 %v5707
    %v6381 = vunpack.c.l.b16 %v5708
    %v6382 = vunpack.c.h.b16 %v5708
    %v6383 = vunpack.c.l.b16 %v5709
    %v6384 = vunpack.c.h.b16 %v5709
    %v6385 = vunpack.c.l.b16 %v5710
    %v6386 = vunpack.c.h.b16 %v5710
    %v6387 = vunpack.c.l.b16 %v5711
    %v6388 = vunpack.c.h.b16 %v5711
    %v6389 = vunpack.c.l.b16 %v5712
    %v6390 = vunpack.c.h.b16 %v5712
    %v6391 = vunpack.c.l.b16 %v5713
    %v6392 = vunpack.c.h.b16 %v5713
    %v6393 = vunpack.c.l.b16 %v5714
    %v6394 = vunpack.c.h.b16 %v5714
    %v6395 = vunpack.c.l.b16 %v5715
    %v6396 = vunpack.c.h.b16 %v5715
    %v6397 = vunpack.c.l.b16 %v5716
    %v6398 = vunpack.c.h.b16 %v5716
    %v6399 = vunpack.c.l.b16 %v5717
    %v6400 = vunpack.c.h.b16 %v5717
    %v6401 = vunpack.c.l.b16 %v5718
    %v6402 = vunpack.c.h.b16 %v5718
    %v6403 = vunpack.c.l.b16 %v5719
    %v6404 = vunpack.c.h.b16 %v5719
    %v6405 = vunpack.c.l.b16 %v5720
    %v6406 = vunpack.c.h.b16 %v5720
    %v6407 = vunpack.c.l.b16 %v5721
    %v6408 = vunpack.c.h.b16 %v5721
    %v6409 = vunpack.c.l.b16 %v5722
    %v6410 = vunpack.c.h.b16 %v5722
    %v6411 = vunpack.c.l.b16 %v5723
    %v6412 = vunpack.c.h.b16 %v5723
    %v6413 = vunpack.c.l.b16 %v5724
    %v6414 = vunpack.c.h.b16 %v5724
    %v6415 = vunpack.c.l.b16 %v5725
    %v6416 = vunpack.c.h.b16 %v5725
    %v6417 = vunpack.c.l.b16 %v5726
    %v6418 = vunpack.c.h.b16 %v5726
    %v6419 = vunpack.c.l.b16 %v5727
    %v6420 = vunpack.c.h.b16 %v5727
    %v6421 = vunpack.c.l.b16 %v5728
    %v6422 = vunpack.c.h.b16 %v5728
    %v6423 = vunpack.c.l.b16 %v5729
    %v6424 = vunpack.c.h.b16 %v5729
    %v6425 = vunpack.c.l.b16 %v5730
    %v6426 = vunpack.c.h.b16 %v5730
    %v6427 = vunpack.c.l.b16 %v5731
    %v6428 = vunpack.c.h.b16 %v5731
    %v6429 = vunpack.c.l.b16 %v5732
    %v6430 = vunpack.c.h.b16 %v5732
    %v6431 = vunpack.c.l.b16 %v5733
    %v6432 = vunpack.c.h.b16 %v5733
    %v6433 = vunpack.c.l.b16 %v5734
    %v6434 = vunpack.c.h.b16 %v5734
    %v6435 = vunpack.c.l.b16 %v5735
    %v6436 = vunpack.c.h.b16 %v5735
    %v6437 = vunpack.c.l.b16 %v5736
    %v6438 = vunpack.c.h.b16 %v5736
    %v6439 = vunpack.c.l.b16 %v5737
    %v6440 = vunpack.c.h.b16 %v5737
    %v6441 = vunpack.c.l.b16 %v5738
    %v6442 = vunpack.c.h.b16 %v5738
    %v6443 = vunpack.c.l.b16 %v5739
    %v6444 = vunpack.c.h.b16 %v5739
    %v6445 = vunpack.c.l.b16 %v5740
    %v6446 = vunpack.c.h.b16 %v5740
    %v6447 = vunpack.c.l.b16 %v5741
    %v6448 = vunpack.c.h.b16 %v5741
    %v6449 = vunpack.c.l.b16 %v5742
    %v6450 = vunpack.c.h.b16 %v5742
    %v6451 = vunpack.c.l.b16 %v5743
    %v6452 = vunpack.c.h.b16 %v5743
    %v6453 = vunpack.c.l.b16 %v5744
    %v6454 = vunpack.c.h.b16 %v5744
    %v6455 = vunpack.c.l.b16 %v5745
    %v6456 = vunpack.c.h.b16 %v5745
    %v6457 = vunpack.c.l.b16 %v5746
    %v6458 = vunpack.c.h.b16 %v5746
    %v6459 = vunpack.c.l.b16 %v5747
    %v6460 = vunpack.c.h.b16 %v5747
    %v6461 = vunpack.c.l.b16 %v5748
    %v6462 = vunpack.c.h.b16 %v5748
    %v6463 = vunpack.c.l.b16 %v5749
    %v6464 = vunpack.c.h.b16 %v5749
    %v6465 = vunpack.c.l.b16 %v5750
    %v6466 = vunpack.c.h.b16 %v5750
    %v6467 = vunpack.c.l.b16 %v5751
    %v6468 = vunpack.c.h.b16 %v5751
    %v6469 = vunpack.c.l.b16 %v5752
    %v6470 = vunpack.c.h.b16 %v5752
    %v6471 = vunpack.c.l.b16 %v5753
    %v6472 = vunpack.c.h.b16 %v5753
    %v6473 = vunpack.c.l.b16 %v5754
    %v6474 = vunpack.c.h.b16 %v5754
    %v6475 = vunpack.c.l.b16 %v5755
    %v6476 = vunpack.c.h.b16 %v5755
    %v6477 = vunpack.c.l.b16 %v5756
    %v6478 = vunpack.c.h.b16 %v5756
    %v6479 = vunpack.c.l.b16 %v5757
    %v6480 = vunpack.c.h.b16 %v5757
    %v6481 = vunpack.c.l.b16 %v5758
    %v6482 = vunpack.c.h.b16 %v5758
    %v6483 = vunpack.c.l.b16 %v5759
    %v6484 = vunpack.c.h.b16 %v5759
    %v6485 = vunpack.c.l.b16 %v5760
    %v6486 = vunpack.c.h.b16 %v5760
    %v6487 = vunpack.c.l.b16 %v5761
    %v6488 = vunpack.c.h.b16 %v5761
    %v6489 = vunpack.c.l.b16 %v5762
    %v6490 = vunpack.c.h.b16 %v5762
    %v6491 = vunpack.c.l.b16 %v5763
    %v6492 = vunpack.c.h.b16 %v5763
    %v6493 = vunpack.c.l.b16 %v5764
    %v6494 = vunpack.c.h.b16 %v5764
    %v6495 = vunpack.c.l.b16 %v5765
    %v6496 = vunpack.c.h.b16 %v5765
    %v6497 = vunpack.c.l.b16 %v5766
    %v6498 = vunpack.c.h.b16 %v5766
    %v6499 = vunpack.c.l.b16 %v5767
    %v6500 = vunpack.c.h.b16 %v5767
    %v6501 = vunpack.c.l.b16 %v5768
    %v6502 = vunpack.c.h.b16 %v5768
    %v6503 = vunpack.c.l.b16 %v5769
    %v6504 = vunpack.c.h.b16 %v5769
    %v6505 = vunpack.c.l.b16 %v5770
    %v6506 = vunpack.c.h.b16 %v5770
    %v6507 = vunpack.c.l.b16 %v5771
    %v6508 = vunpack.c.h.b16 %v5771
    %v6509 = vunpack.c.l.b16 %v5772
    %v6510 = vunpack.c.h.b16 %v5772
    %v6511 = vunpack.c.l.b16 %v5773
    %v6512 = vunpack.c.h.b16 %v5773
    %v6513 = vunpack.c.l.b16 %v5774
    %v6514 = vunpack.c.h.b16 %v5774
    %v6515 = vunpack.c.l.b16 %v5775
    %v6516 = vunpack.c.h.b16 %v5775
    %v6517 = vunpack.c.l.b16 %v5776
    %v6518 = vunpack.c.h.b16 %v5776
    %v6519 = vunpack.c.l.b16 %v5777
    %v6520 = vunpack.c.h.b16 %v5777
    %v6521 = vunpack.c.l.b16 %v5778
    %v6522 = vunpack.c.h.b16 %v5778
    %v6523 = vunpack.c.l.b16 %v5779
    %v6524 = vunpack.c.h.b16 %v5779
    %v6525 = vunpack.c.l.b16 %v5780
    %v6526 = vunpack.c.h.b16 %v5780
    %v6527 = vunpack.c.l.b16 %v5781
    %v6528 = vunpack.c.h.b16 %v5781
    %v6529 = vunpack.c.l.b16 %v5782
    %v6530 = vunpack.c.h.b16 %v5782
    %v6531 = vunpack.c.l.b16 %v5783
    %v6532 = vunpack.c.h.b16 %v5783
    %v6533 = vunpack.c.l.b16 %v5784
    %v6534 = vunpack.c.h.b16 %v5784
    %v6535 = vunpack.c.l.b16 %v5785
    %v6536 = vunpack.c.h.b16 %v5785
    %v6537 = vunpack.c.l.b16 %v5786
    %v6538 = vunpack.c.h.b16 %v5786
    %v6539 = vunpack.c.l.b16 %v5787
    %v6540 = vunpack.c.h.b16 %v5787
    %v6541 = vunpack.c.l.b16 %v5788
    %v6542 = vunpack.c.h.b16 %v5788
    %v6543 = vunpack.c.l.b16 %v5789
    %v6544 = vunpack.c.h.b16 %v5789
    %v6545 = vunpack.c.l.b16 %v5790
    %v6546 = vunpack.c.h.b16 %v5790
    %v6547 = vunpack.c.l.b16 %v5791
    %v6548 = vunpack.c.h.b16 %v5791
    %v6549 = vunpack.c.l.b16 %v5792
    %v6550 = vunpack.c.h.b16 %v5792
    %v6551 = vunpack.c.l.b16 %v5793
    %v6552 = vunpack.c.h.b16 %v5793
    %v6553 = vunpack.c.l.b16 %v5794
    %v6554 = vunpack.c.h.b16 %v5794
    %v6555 = vunpack.c.l.b16 %v5795
    %v6556 = vunpack.c.h.b16 %v5795
    %v6557 = vunpack.c.l.b16 %v5796
    %v6558 = vunpack.c.h.b16 %v5796
    %v6559 = vunpack.c.l.b16 %v5797
    %v6560 = vunpack.c.h.b16 %v5797
    %v6561 = vunpack.c.l.b16 %v5798
    %v6562 = vunpack.c.h.b16 %v5798
    %v6563 = vunpack.c.l.b16 %v5799
    %v6564 = vunpack.c.h.b16 %v5799
    %v6565 = vunpack.c.l.b16 %v5800
    %v6566 = vunpack.c.h.b16 %v5800
    %v6567 = vunpack.c.l.b16 %v5801
    %v6568 = vunpack.c.h.b16 %v5801
    %v6569 = vunpack.c.l.b16 %v5802
    %v6570 = vunpack.c.h.b16 %v5802
    %v6571 = vpack.c.b16 %v6063, %v6059
    %v6572 = vpack.c.b16 %v6064, %v6060
    %v6573 = vpack.c.b16 %v6065, %v6061
    %v6574 = vpack.c.b16 %v6066, %v6062
    %v6575 = vpack.c.b16 %v6071, %v6067
    %v6576 = vpack.c.b16 %v6072, %v6068
    %v6577 = vpack.c.b16 %v6073, %v6069
    %v6578 = vpack.c.b16 %v6074, %v6070
    %v6579 = vpack.c.b16 %v6079, %v6075
    %v6580 = vpack.c.b16 %v6080, %v6076
    %v6581 = vpack.c.b16 %v6081, %v6077
    %v6582 = vpack.c.b16 %v6082, %v6078
    %v6583 = vpack.c.b16 %v6087, %v6083
    %v6584 = vpack.c.b16 %v6088, %v6084
    %v6585 = vpack.c.b16 %v6089, %v6085
    %v6586 = vpack.c.b16 %v6090, %v6086
    %v6587 = vpack.c.b16 %v6095, %v6091
    %v6588 = vpack.c.b16 %v6096, %v6092
    %v6589 = vpack.c.b16 %v6097, %v6093
    %v6590 = vpack.c.b16 %v6098, %v6094
    %v6591 = vpack.c.b16 %v6103, %v6099
    %v6592 = vpack.c.b16 %v6104, %v6100
    %v6593 = vpack.c.b16 %v6105, %v6101
    %v6594 = vpack.c.b16 %v6106, %v6102
    %v6595 = vpack.c.b16 %v6111, %v6107
    %v6596 = vpack.c.b16 %v6112, %v6108
    %v6597 = vpack.c.b16 %v6113, %v6109
    %v6598 = vpack.c.b16 %v6114, %v6110
    %v6599 = vpack.c.b16 %v6119, %v6115
    %v6600 = vpack.c.b16 %v6120, %v6116
    %v6601 = vpack.c.b16 %v6121, %v6117
    %v6602 = vpack.c.b16 %v6122, %v6118
    %v6603 = vpack.c.b16 %v6127, %v6123
    %v6604 = vpack.c.b16 %v6128, %v6124
    %v6605 = vpack.c.b16 %v6129, %v6125
    %v6606 = vpack.c.b16 %v6130, %v6126
    %v6607 = vpack.c.b16 %v6135, %v6131
    %v6608 = vpack.c.b16 %v6136, %v6132
    %v6609 = vpack.c.b16 %v6137, %v6133
    %v6610 = vpack.c.b16 %v6138, %v6134
    %v6611 = vpack.c.b16 %v6143, %v6139
    %v6612 = vpack.c.b16 %v6144, %v6140
    %v6613 = vpack.c.b16 %v6145, %v6141
    %v6614 = vpack.c.b16 %v6146, %v6142
    %v6615 = vpack.c.b16 %v6151, %v6147
    %v6616 = vpack.c.b16 %v6152, %v6148
    %v6617 = vpack.c.b16 %v6153, %v6149
    %v6618 = vpack.c.b16 %v6154, %v6150
    %v6619 = vpack.c.b16 %v6159, %v6155
    %v6620 = vpack.c.b16 %v6160, %v6156
    %v6621 = vpack.c.b16 %v6161, %v6157
    %v6622 = vpack.c.b16 %v6162, %v6158
    %v6623 = vpack.c.b16 %v6167, %v6163
    %v6624 = vpack.c.b16 %v6168, %v6164
    %v6625 = vpack.c.b16 %v6169, %v6165
    %v6626 = vpack.c.b16 %v6170, %v6166
    %v6627 = vpack.c.b16 %v6175, %v6171
    %v6628 = vpack.c.b16 %v6176, %v6172
    %v6629 = vpack.c.b16 %v6177, %v6173
    %v6630 = vpack.c.b16 %v6178, %v6174
    %v6631 = vpack.c.b16 %v6183, %v6179
    %v6632 = vpack.c.b16 %v6184, %v6180
    %v6633 = vpack.c.b16 %v6185, %v6181
    %v6634 = vpack.c.b16 %v6186, %v6182
    %v6635 = vpack.c.b16 %v6191, %v6187
    %v6636 = vpack.c.b16 %v6192, %v6188
    %v6637 = vpack.c.b16 %v6193, %v6189
    %v6638 = vpack.c.b16 %v6194, %v6190
    %v6639 = vpack.c.b16 %v6199, %v6195
    %v6640 = vpack.c.b16 %v6200, %v6196
    %v6641 = vpack.c.b16 %v6201, %v6197
    %v6642 = vpack.c.b16 %v6202, %v6198
    %v6643 = vpack.c.b16 %v6207, %v6203
    %v6644 = vpack.c.b16 %v6208, %v6204
    %v6645 = vpack.c.b16 %v6209, %v6205
    %v6646 = vpack.c.b16 %v6210, %v6206
    %v6647 = vpack.c.b16 %v6215, %v6211
    %v6648 = vpack.c.b16 %v6216, %v6212
    %v6649 = vpack.c.b16 %v6217, %v6213
    %v6650 = vpack.c.b16 %v6218, %v6214
    %v6651 = vpack.c.b16 %v6223, %v6219
    %v6652 = vpack.c.b16 %v6224, %v6220
    %v6653 = vpack.c.b16 %v6225, %v6221
    %v6654 = vpack.c.b16 %v6226, %v6222
    %v6655 = vpack.c.b16 %v6231, %v6227
    %v6656 = vpack.c.b16 %v6232, %v6228
    %v6657 = vpack.c.b16 %v6233, %v6229
    %v6658 = vpack.c.b16 %v6234, %v6230
    %v6659 = vpack.c.b16 %v6239, %v6235
    %v6660 = vpack.c.b16 %v6240, %v6236
    %v6661 = vpack.c.b16 %v6241, %v6237
    %v6662 = vpack.c.b16 %v6242, %v6238
    %v6663 = vpack.c.b16 %v6247, %v6243
    %v6664 = vpack.c.b16 %v6248, %v6244
    %v6665 = vpack.c.b16 %v6249, %v6245
    %v6666 = vpack.c.b16 %v6250, %v6246
    %v6667 = vpack.c.b16 %v6255, %v6251
    %v6668 = vpack.c.b16 %v6256, %v6252
    %v6669 = vpack.c.b16 %v6257, %v6253
    %v6670 = vpack.c.b16 %v6258, %v6254
    %v6671 = vpack.c.b16 %v6263, %v6259
    %v6672 = vpack.c.b16 %v6264, %v6260
    %v6673 = vpack.c.b16 %v6265, %v6261
    %v6674 = vpack.c.b16 %v6266, %v6262
    %v6675 = vpack.c.b16 %v6271, %v6267
    %v6676 = vpack.c.b16 %v6272, %v6268
    %v6677 = vpack.c.b16 %v6273, %v6269
    %v6678 = vpack.c.b16 %v6274, %v6270
    %v6679 = vpack.c.b16 %v6279, %v6275
    %v6680 = vpack.c.b16 %v6280, %v6276
    %v6681 = vpack.c.b16 %v6281, %v6277
    %v6682 = vpack.c.b16 %v6282, %v6278
    %v6683 = vpack.c.b16 %v6287, %v6283
    %v6684 = vpack.c.b16 %v6288, %v6284
    %v6685 = vpack.c.b16 %v6289, %v6285
    %v6686 = vpack.c.b16 %v6290, %v6286
    %v6687 = vpack.c.b16 %v6295, %v6291
    %v6688 = vpack.c.b16 %v6296, %v6292
    %v6689 = vpack.c.b16 %v6297, %v6293
    %v6690 = vpack.c.b16 %v6298, %v6294
    %v6691 = vpack.c.b16 %v6303, %v6299
    %v6692 = vpack.c.b16 %v6304, %v6300
    %v6693 = vpack.c.b16 %v6305, %v6301
    %v6694 = vpack.c.b16 %v6306, %v6302
    %v6695 = vpack.c.b16 %v6311, %v6307
    %v6696 = vpack.c.b16 %v6312, %v6308
    %v6697 = vpack.c.b16 %v6313, %v6309
    %v6698 = vpack.c.b16 %v6314, %v6310
    %v6699 = vpack.c.b16 %v6319, %v6315
    %v6700 = vpack.c.b16 %v6320, %v6316
    %v6701 = vpack.c.b16 %v6321, %v6317
    %v6702 = vpack.c.b16 %v6322, %v6318
    %v6703 = vpack.c.b16 %v6327, %v6323
    %v6704 = vpack.c.b16 %v6328, %v6324
    %v6705 = vpack.c.b16 %v6329, %v6325
    %v6706 = vpack.c.b16 %v6330, %v6326
    %v6707 = vpack.c.b16 %v6335, %v6331
    %v6708 = vpack.c.b16 %v6336, %v6332
    %v6709 = vpack.c.b16 %v6337, %v6333
    %v6710 = vpack.c.b16 %v6338, %v6334
    %v6711 = vpack.c.b16 %v6343, %v6339
    %v6712 = vpack.c.b16 %v6344, %v6340
    %v6713 = vpack.c.b16 %v6345, %v6341
    %v6714 = vpack.c.b16 %v6346, %v6342
    %v6715 = vpack.c.b16 %v6351, %v6347
    %v6716 = vpack.c.b16 %v6352, %v6348
    %v6717 = vpack.c.b16 %v6353, %v6349
    %v6718 = vpack.c.b16 %v6354, %v6350
    %v6719 = vpack.c.b16 %v6359, %v6355
    %v6720 = vpack.c.b16 %v6360, %v6356
    %v6721 = vpack.c.b16 %v6361, %v6357
    %v6722 = vpack.c.b16 %v6362, %v6358
    %v6723 = vpack.c.b16 %v6367, %v6363
    %v6724 = vpack.c.b16 %v6368, %v6364
    %v6725 = vpack.c.b16 %v6369, %v6365
    %v6726 = vpack.c.b16 %v6370, %v6366
    %v6727 = vpack.c.b16 %v6375, %v6371
    %v6728 = vpack.c.b16 %v6376, %v6372
    %v6729 = vpack.c.b16 %v6377, %v6373
    %v6730 = vpack.c.b16 %v6378, %v6374
    %v6731 = vpack.c.b16 %v6383, %v6379
    %v6732 = vpack.c.b16 %v6384, %v6380
    %v6733 = vpack.c.b16 %v6385, %v6381
    %v6734 = vpack.c.b16 %v6386, %v6382
    %v6735 = vpack.c.b16 %v6391, %v6387
    %v6736 = vpack.c.b16 %v6392, %v6388
    %v6737 = vpack.c.b16 %v6393, %v6389
    %v6738 = vpack.c.b16 %v6394, %v6390
    %v6739 = vpack.c.b16 %v6399, %v6395
    %v6740 = vpack.c.b16 %v6400, %v6396
    %v6741 = vpack.c.b16 %v6401, %v6397
    %v6742 = vpack.c.b16 %v6402, %v6398
    %v6743 = vpack.c.b16 %v6407, %v6403
    %v6744 = vpack.c.b16 %v6408, %v6404
    %v6745 = vpack.c.b16 %v6409, %v6405
    %v6746 = vpack.c.b16 %v6410, %v6406
    %v6747 = vpack.c.b16 %v6415, %v6411
    %v6748 = vpack.c.b16 %v6416, %v6412
    %v6749 = vpack.c.b16 %v6417, %v6413
    %v6750 = vpack.c.b16 %v6418, %v6414
    %v6751 = vpack.c.b16 %v6423, %v6419
    %v6752 = vpack.c.b16 %v6424, %v6420
    %v6753 = vpack.c.b16 %v6425, %v6421
    %v6754 = vpack.c.b16 %v6426, %v6422
    %v6755 = vpack.c.b16 %v6431, %v6427
    %v6756 = vpack.c.b16 %v6432, %v6428
    %v6757 = vpack.c.b16 %v6433, %v6429
    %v6758 = vpack.c.b16 %v6434, %v6430
    %v6759 = vpack.c.b16 %v6439, %v6435
    %v6760 = vpack.c.b16 %v6440, %v6436
    %v6761 = vpack.c.b16 %v6441, %v6437
    %v6762 = vpack.c.b16 %v6442, %v6438
    %v6763 = vpack.c.b16 %v6447, %v6443
    %v6764 = vpack.c.b16 %v6448, %v6444
    %v6765 = vpack.c.b16 %v6449, %v6445
    %v6766 = vpack.c.b16 %v6450, %v6446
    %v6767 = vpack.c.b16 %v6455, %v6451
    %v6768 = vpack.c.b16 %v6456, %v6452
    %v6769 = vpack.c.b16 %v6457, %v6453
    %v6770 = vpack.c.b16 %v6458, %v6454
    %v6771 = vpack.c.b16 %v6463, %v6459
    %v6772 = vpack.c.b16 %v6464, %v6460
    %v6773 = vpack.c.b16 %v6465, %v6461
    %v6774 = vpack.c.b16 %v6466, %v6462
    %v6775 = vpack.c.b16 %v6471, %v6467
    %v6776 = vpack.c.b16 %v6472, %v6468
    %v6777 = vpack.c.b16 %v6473, %v6469
    %v6778 = vpack.c.b16 %v6474, %v6470
    %v6779 = vpack.c.b16 %v6479, %v6475
    %v6780 = vpack.c.b16 %v6480, %v6476
    %v6781 = vpack.c.b16 %v6481, %v6477
    %v6782 = vpack.c.b16 %v6482, %v6478
    %v6783 = vpack.c.b16 %v6487, %v6483
    %v6784 = vpack.c.b16 %v6488, %v6484
    %v6785 = vpack.c.b16 %v6489, %v6485
    %v6786 = vpack.c.b16 %v6490, %v6486
    %v6787 = vpack.c.b16 %v6495, %v6491
    %v6788 = vpack.c.b16 %v6496, %v6492
    %v6789 = vpack.c.b16 %v6497, %v6493
    %v6790 = vpack.c.b16 %v6498, %v6494
    %v6791 = vpack.c.b16 %v6503, %v6499
    %v6792 = vpack.c.b16 %v6504, %v6500
    %v6793 = vpack.c.b16 %v6505, %v6501
    %v6794 = vpack.c.b16 %v6506, %v6502
    %v6795 = vpack.c.b16 %v6511, %v6507
    %v6796 = vpack.c.b16 %v6512, %v6508
    %v6797 = vpack.c.b16 %v6513, %v6509
    %v6798 = vpack.c.b16 %v6514, %v6510
    %v6799 = vpack.c.b16 %v6519, %v6515
    %v6800 = vpack.c.b16 %v6520, %v6516
    %v6801 = vpack.c.b16 %v6521, %v6517
    %v6802 = vpack.c.b16 %v6522, %v6518
    %v6803 = vpack.c.b16 %v6527, %v6523
    %v6804 = vpack.c.b16 %v6528, %v6524
    %v6805 = vpack.c.b16 %v6529, %v6525
    %v6806 = vpack.c.b16 %v6530, %v6526
    %v6807 = vpack.c.b16 %v6535, %v6531
    %v6808 = vpack.c.b16 %v6536, %v6532
    %v6809 = vpack.c.b16 %v6537, %v6533
    %v6810 = vpack.c.b16 %v6538, %v6534
    %v6811 = vpack.c.b16 %v6543, %v6539
    %v6812 = vpack.c.b16 %v6544, %v6540
    %v6813 = vpack.c.b16 %v6545, %v6541
    %v6814 = vpack.c.b16 %v6546, %v6542
    %v6815 = vpack.c.b16 %v6551, %v6547
    %v6816 = vpack.c.b16 %v6552, %v6548
    %v6817 = vpack.c.b16 %v6553, %v6549
    %v6818 = vpack.c.b16 %v6554, %v6550
    %v6819 = vpack.c.b16 %v6559, %v6555
    %v6820 = vpack.c.b16 %v6560, %v6556
    %v6821 = vpack.c.b16 %v6561, %v6557
    %v6822 = vpack.c.b16 %v6562, %v6558
    %v6823 = vpack.c.b16 %v6567, %v6563
    %v6824 = vpack.c.b16 %v6568, %v6564
    %v6825 = vpack.c.b16 %v6569, %v6565
    %v6826 = vpack.c.b16 %v6570, %v6566
    %7083 = vmatpush.bf16.msra.mxu0 %v6599
    %7084 = vmatpush.bf16.msra.mxu0 %v6595
    %7085 = vmatpush.bf16.msra.mxu0 %v6591
    %7086 = vmatpush.bf16.msra.mxu0 %v6587
    %7087 = vmatpush.bf16.msra.mxu0 %v6583
    %7088 = vmatpush.bf16.msra.mxu0 %v6579
    %7089 = vmatpush.bf16.msra.mxu0 %v6575
    %7090 = vmatpush.bf16.msra.mxu0 %v6571
    %7091 = vmatmul.bf16.gmra.mxu0 %v5539
    %v7092 = vpop.f32.mrf.mxu0
    %v7093 = vadd.f32 0.0, %v7092
    %v7094 = vpop.f32.mrf.mxu0
    %7095 = vdwg.mxu0
    %7096 = vmatpush.bf16.msra.mxu0 %v6631
    %7097 = vmatpush.bf16.msra.mxu0 %v6627
    %7098 = vmatpush.bf16.msra.mxu0 %v6623
    %7099 = vmatpush.bf16.msra.mxu0 %v6619
    %7100 = vmatpush.bf16.msra.mxu0 %v6615
    %7101 = vmatpush.bf16.msra.mxu0 %v6611
    %7102 = vmatpush.bf16.msra.mxu0 %v6607
    %7103 = vmatpush.bf16.msra.mxu0 %v6603
    %7104 = vmatmul.bf16.gmra.mxu0 %v5540
    %v7105 = vpop.f32.mrf.mxu0
    %v7106 = vadd.f32 %v7093, %v7105
    %v7107 = vpop.f32.mrf.mxu0
    %7108 = vdwg.mxu0
    %7109 = vmatpush.bf16.msra.mxu0 %v6663
    %7110 = vmatpush.bf16.msra.mxu0 %v6659
    %7111 = vmatpush.bf16.msra.mxu0 %v6655
    %7112 = vmatpush.bf16.msra.mxu0 %v6651
    %7113 = vmatpush.bf16.msra.mxu0 %v6647
    %7114 = vmatpush.bf16.msra.mxu0 %v6643
    %7115 = vmatpush.bf16.msra.mxu0 %v6639
    %7116 = vmatpush.bf16.msra.mxu0 %v6635
    %7117 = vmatmul.bf16.gmra.mxu0 %v5541
    %v7118 = vpop.f32.mrf.mxu0
    %v7119 = vadd.f32 %v7106, %v7118
    %v7120 = vpop.f32.mrf.mxu0
    %7121 = vdwg.mxu0
    %7122 = vmatpush.bf16.msra.mxu0 %v6695
    %7123 = vmatpush.bf16.msra.mxu0 %v6691
    %7124 = vmatpush.bf16.msra.mxu0 %v6687
    %7125 = vmatpush.bf16.msra.mxu0 %v6683
    %7126 = vmatpush.bf16.msra.mxu0 %v6679
    %7127 = vmatpush.bf16.msra.mxu0 %v6675
    %7128 = vmatpush.bf16.msra.mxu0 %v6671
    %7129 = vmatpush.bf16.msra.mxu0 %v6667
    %7130 = vmatmul.bf16.gmra.mxu0 %v5542
    %v7131 = vpop.f32.mrf.mxu0
    %v7132 = vadd.f32 %v7119, %v7131
    %v7133 = vpop.f32.mrf.mxu0
    %7134 = vdwg.mxu0
    %7135 = vmatpush.bf16.msra.mxu0 %v6727
    %7136 = vmatpush.bf16.msra.mxu0 %v6723
    %7137 = vmatpush.bf16.msra.mxu0 %v6719
    %7138 = vmatpush.bf16.msra.mxu0 %v6715
    %7139 = vmatpush.bf16.msra.mxu0 %v6711
    %7140 = vmatpush.bf16.msra.mxu0 %v6707
    %7141 = vmatpush.bf16.msra.mxu0 %v6703
    %7142 = vmatpush.bf16.msra.mxu0 %v6699
    %7143 = vmatmul.bf16.gmra.mxu0 %v5543
    %v7144 = vpop.f32.mrf.mxu0
    %v7145 = vadd.f32 %v7132, %v7144
    %v7146 = vpop.f32.mrf.mxu0
    %7147 = vdwg.mxu0
    %7148 = vmatpush.bf16.msra.mxu0 %v6759
    %7149 = vmatpush.bf16.msra.mxu0 %v6755
    %7150 = vmatpush.bf16.msra.mxu0 %v6751
    %7151 = vmatpush.bf16.msra.mxu0 %v6747
    %7152 = vmatpush.bf16.msra.mxu0 %v6743
    %7153 = vmatpush.bf16.msra.mxu0 %v6739
    %7154 = vmatpush.bf16.msra.mxu0 %v6735
    %7155 = vmatpush.bf16.msra.mxu0 %v6731
    %7156 = vmatmul.bf16.gmra.mxu0 %v5544
    %v7157 = vpop.f32.mrf.mxu0
    %v7158 = vadd.f32 %v7145, %v7157
    %v7159 = vpop.f32.mrf.mxu0
    %7160 = vdwg.mxu0
    %7161 = vmatpush.bf16.msra.mxu0 %v6791
    %7162 = vmatpush.bf16.msra.mxu0 %v6787
    %7163 = vmatpush.bf16.msra.mxu0 %v6783
    %7164 = vmatpush.bf16.msra.mxu0 %v6779
    %7165 = vmatpush.bf16.msra.mxu0 %v6775
    %7166 = vmatpush.bf16.msra.mxu0 %v6771
    %7167 = vmatpush.bf16.msra.mxu0 %v6767
    %7168 = vmatpush.bf16.msra.mxu0 %v6763
    %7169 = vmatmul.bf16.gmra.mxu0 %v5545
    %v7170 = vpop.f32.mrf.mxu0
    %v7171 = vadd.f32 %v7158, %v7170
    %v7172 = vpop.f32.mrf.mxu0
    %7173 = vdwg.mxu0
    %7174 = vmatpush.bf16.msra.mxu0 %v6823
    %7175 = vmatpush.bf16.msra.mxu0 %v6819
    %7176 = vmatpush.bf16.msra.mxu0 %v6815
    %7177 = vmatpush.bf16.msra.mxu0 %v6811
    %7178 = vmatpush.bf16.msra.mxu0 %v6807
    %7179 = vmatpush.bf16.msra.mxu0 %v6803
    %7180 = vmatpush.bf16.msra.mxu0 %v6799
    %7181 = vmatpush.bf16.msra.mxu0 %v6795
    %7182 = vmatmul.bf16.gmra.mxu0 %v5546
    %v7183 = vpop.f32.mrf.mxu0
    %v7184 = vadd.f32 %v7171, %v7183
    %v7185 = vpop.f32.mrf.mxu0
    %7186 = vdwg.mxu0
    %7187 = vmatpush.bf16.msra.mxu0 %v6600
    %7188 = vmatpush.bf16.msra.mxu0 %v6596
    %7189 = vmatpush.bf16.msra.mxu0 %v6592
    %7190 = vmatpush.bf16.msra.mxu0 %v6588
    %7191 = vmatpush.bf16.msra.mxu0 %v6584
    %7192 = vmatpush.bf16.msra.mxu0 %v6580
    %7193 = vmatpush.bf16.msra.mxu0 %v6576
    %7194 = vmatpush.bf16.msra.mxu0 %v6572
    %7195 = vmatmul.bf16.gmra.mxu0 %v5539
    %v7196 = vpop.f32.mrf.mxu0
    %v7197 = vadd.f32 0.0, %v7196
    %v7198 = vpop.f32.mrf.mxu0
    %7199 = vdwg.mxu0
    %7200 = vmatpush.bf16.msra.mxu0 %v6632
    %7201 = vmatpush.bf16.msra.mxu0 %v6628
    %7202 = vmatpush.bf16.msra.mxu0 %v6624
    %7203 = vmatpush.bf16.msra.mxu0 %v6620
    %7204 = vmatpush.bf16.msra.mxu0 %v6616
    %7205 = vmatpush.bf16.msra.mxu0 %v6612
    %7206 = vmatpush.bf16.msra.mxu0 %v6608
    %7207 = vmatpush.bf16.msra.mxu0 %v6604
    %7208 = vmatmul.bf16.gmra.mxu0 %v5540
    %v7209 = vpop.f32.mrf.mxu0
    %v7210 = vadd.f32 %v7197, %v7209
    %v7211 = vpop.f32.mrf.mxu0
    %7212 = vdwg.mxu0
    %7213 = vmatpush.bf16.msra.mxu0 %v6664
    %7214 = vmatpush.bf16.msra.mxu0 %v6660
    %7215 = vmatpush.bf16.msra.mxu0 %v6656
    %7216 = vmatpush.bf16.msra.mxu0 %v6652
    %7217 = vmatpush.bf16.msra.mxu0 %v6648
    %7218 = vmatpush.bf16.msra.mxu0 %v6644
    %7219 = vmatpush.bf16.msra.mxu0 %v6640
    %7220 = vmatpush.bf16.msra.mxu0 %v6636
    %7221 = vmatmul.bf16.gmra.mxu0 %v5541
    %v7222 = vpop.f32.mrf.mxu0
    %v7223 = vadd.f32 %v7210, %v7222
    %v7224 = vpop.f32.mrf.mxu0
    %7225 = vdwg.mxu0
    %7226 = vmatpush.bf16.msra.mxu0 %v6696
    %7227 = vmatpush.bf16.msra.mxu0 %v6692
    %7228 = vmatpush.bf16.msra.mxu0 %v6688
    %7229 = vmatpush.bf16.msra.mxu0 %v6684
    %7230 = vmatpush.bf16.msra.mxu0 %v6680
    %7231 = vmatpush.bf16.msra.mxu0 %v6676
    %7232 = vmatpush.bf16.msra.mxu0 %v6672
    %7233 = vmatpush.bf16.msra.mxu0 %v6668
    %7234 = vmatmul.bf16.gmra.mxu0 %v5542
    %v7235 = vpop.f32.mrf.mxu0
    %v7236 = vadd.f32 %v7223, %v7235
    %v7237 = vpop.f32.mrf.mxu0
    %7238 = vdwg.mxu0
    %7239 = vmatpush.bf16.msra.mxu0 %v6728
    %7240 = vmatpush.bf16.msra.mxu0 %v6724
    %7241 = vmatpush.bf16.msra.mxu0 %v6720
    %7242 = vmatpush.bf16.msra.mxu0 %v6716
    %7243 = vmatpush.bf16.msra.mxu0 %v6712
    %7244 = vmatpush.bf16.msra.mxu0 %v6708
    %7245 = vmatpush.bf16.msra.mxu0 %v6704
    %7246 = vmatpush.bf16.msra.mxu0 %v6700
    %7247 = vmatmul.bf16.gmra.mxu0 %v5543
    %v7248 = vpop.f32.mrf.mxu0
    %v7249 = vadd.f32 %v7236, %v7248
    %v7250 = vpop.f32.mrf.mxu0
    %7251 = vdwg.mxu0
    %7252 = vmatpush.bf16.msra.mxu0 %v6760
    %7253 = vmatpush.bf16.msra.mxu0 %v6756
    %7254 = vmatpush.bf16.msra.mxu0 %v6752
    %7255 = vmatpush.bf16.msra.mxu0 %v6748
    %7256 = vmatpush.bf16.msra.mxu0 %v6744
    %7257 = vmatpush.bf16.msra.mxu0 %v6740
    %7258 = vmatpush.bf16.msra.mxu0 %v6736
    %7259 = vmatpush.bf16.msra.mxu0 %v6732
    %7260 = vmatmul.bf16.gmra.mxu0 %v5544
    %v7261 = vpop.f32.mrf.mxu0
    %v7262 = vadd.f32 %v7249, %v7261
    %v7263 = vpop.f32.mrf.mxu0
    %7264 = vdwg.mxu0
    %7265 = vmatpush.bf16.msra.mxu0 %v6792
    %7266 = vmatpush.bf16.msra.mxu0 %v6788
    %7267 = vmatpush.bf16.msra.mxu0 %v6784
    %7268 = vmatpush.bf16.msra.mxu0 %v6780
    %7269 = vmatpush.bf16.msra.mxu0 %v6776
    %7270 = vmatpush.bf16.msra.mxu0 %v6772
    %7271 = vmatpush.bf16.msra.mxu0 %v6768
    %7272 = vmatpush.bf16.msra.mxu0 %v6764
    %7273 = vmatmul.bf16.gmra.mxu0 %v5545
    %v7274 = vpop.f32.mrf.mxu0
    %v7275 = vadd.f32 %v7262, %v7274
    %v7276 = vpop.f32.mrf.mxu0
    %7277 = vdwg.mxu0
    %7278 = vmatpush.bf16.msra.mxu0 %v6824
    %7279 = vmatpush.bf16.msra.mxu0 %v6820
    %7280 = vmatpush.bf16.msra.mxu0 %v6816
    %7281 = vmatpush.bf16.msra.mxu0 %v6812
    %7282 = vmatpush.bf16.msra.mxu0 %v6808
    %7283 = vmatpush.bf16.msra.mxu0 %v6804
    %7284 = vmatpush.bf16.msra.mxu0 %v6800
    %7285 = vmatpush.bf16.msra.mxu0 %v6796
    %7286 = vmatmul.bf16.gmra.mxu0 %v5546
    %v7287 = vpop.f32.mrf.mxu0
    %v7288 = vadd.f32 %v7275, %v7287
    %v7289 = vpop.f32.mrf.mxu0
    %7290 = vdwg.mxu0
    %7291 = vmatpush.bf16.msra.mxu0 %v6601
    %7292 = vmatpush.bf16.msra.mxu0 %v6597
    %7293 = vmatpush.bf16.msra.mxu0 %v6593
    %7294 = vmatpush.bf16.msra.mxu0 %v6589
    %7295 = vmatpush.bf16.msra.mxu0 %v6585
    %7296 = vmatpush.bf16.msra.mxu0 %v6581
    %7297 = vmatpush.bf16.msra.mxu0 %v6577
    %7298 = vmatpush.bf16.msra.mxu0 %v6573
    %7299 = vmatmul.bf16.gmra.mxu0 %v5539
    %v7300 = vpop.f32.mrf.mxu0
    %v7301 = vadd.f32 0.0, %v7300
    %v7302 = vpop.f32.mrf.mxu0
    %7303 = vdwg.mxu0
    %7304 = vmatpush.bf16.msra.mxu0 %v6633
    %7305 = vmatpush.bf16.msra.mxu0 %v6629
    %7306 = vmatpush.bf16.msra.mxu0 %v6625
    %7307 = vmatpush.bf16.msra.mxu0 %v6621
    %7308 = vmatpush.bf16.msra.mxu0 %v6617
    %7309 = vmatpush.bf16.msra.mxu0 %v6613
    %7310 = vmatpush.bf16.msra.mxu0 %v6609
    %7311 = vmatpush.bf16.msra.mxu0 %v6605
    %7312 = vmatmul.bf16.gmra.mxu0 %v5540
    %v7313 = vpop.f32.mrf.mxu0
    %v7314 = vadd.f32 %v7301, %v7313
    %v7315 = vpop.f32.mrf.mxu0
    %7316 = vdwg.mxu0
    %7317 = vmatpush.bf16.msra.mxu0 %v6665
    %7318 = vmatpush.bf16.msra.mxu0 %v6661
    %7319 = vmatpush.bf16.msra.mxu0 %v6657
    %7320 = vmatpush.bf16.msra.mxu0 %v6653
    %7321 = vmatpush.bf16.msra.mxu0 %v6649
    %7322 = vmatpush.bf16.msra.mxu0 %v6645
    %7323 = vmatpush.bf16.msra.mxu0 %v6641
    %7324 = vmatpush.bf16.msra.mxu0 %v6637
    %7325 = vmatmul.bf16.gmra.mxu0 %v5541
    %v7326 = vpop.f32.mrf.mxu0
    %v7327 = vadd.f32 %v7314, %v7326
    %v7328 = vpop.f32.mrf.mxu0
    %7329 = vdwg.mxu0
    %7330 = vmatpush.bf16.msra.mxu0 %v6697
    %7331 = vmatpush.bf16.msra.mxu0 %v6693
    %7332 = vmatpush.bf16.msra.mxu0 %v6689
    %7333 = vmatpush.bf16.msra.mxu0 %v6685
    %7334 = vmatpush.bf16.msra.mxu0 %v6681
    %7335 = vmatpush.bf16.msra.mxu0 %v6677
    %7336 = vmatpush.bf16.msra.mxu0 %v6673
    %7337 = vmatpush.bf16.msra.mxu0 %v6669
    %7338 = vmatmul.bf16.gmra.mxu0 %v5542
    %v7339 = vpop.f32.mrf.mxu0
    %v7340 = vadd.f32 %v7327, %v7339
    %v7341 = vpop.f32.mrf.mxu0
    %7342 = vdwg.mxu0
    %7343 = vmatpush.bf16.msra.mxu0 %v6729
    %7344 = vmatpush.bf16.msra.mxu0 %v6725
    %7345 = vmatpush.bf16.msra.mxu0 %v6721
    %7346 = vmatpush.bf16.msra.mxu0 %v6717
    %7347 = vmatpush.bf16.msra.mxu0 %v6713
    %7348 = vmatpush.bf16.msra.mxu0 %v6709
    %7349 = vmatpush.bf16.msra.mxu0 %v6705
    %7350 = vmatpush.bf16.msra.mxu0 %v6701
    %7351 = vmatmul.bf16.gmra.mxu0 %v5543
    %v7352 = vpop.f32.mrf.mxu0
    %v7353 = vadd.f32 %v7340, %v7352
    %v7354 = vpop.f32.mrf.mxu0
    %7355 = vdwg.mxu0
    %7356 = vmatpush.bf16.msra.mxu0 %v6761
    %7357 = vmatpush.bf16.msra.mxu0 %v6757
    %7358 = vmatpush.bf16.msra.mxu0 %v6753
    %7359 = vmatpush.bf16.msra.mxu0 %v6749
    %7360 = vmatpush.bf16.msra.mxu0 %v6745
    %7361 = vmatpush.bf16.msra.mxu0 %v6741
    %7362 = vmatpush.bf16.msra.mxu0 %v6737
    %7363 = vmatpush.bf16.msra.mxu0 %v6733
    %7364 = vmatmul.bf16.gmra.mxu0 %v5544
    %v7365 = vpop.f32.mrf.mxu0
    %v7366 = vadd.f32 %v7353, %v7365
    %v7367 = vpop.f32.mrf.mxu0
    %7368 = vdwg.mxu0
    %7369 = vmatpush.bf16.msra.mxu0 %v6793
    %7370 = vmatpush.bf16.msra.mxu0 %v6789
    %7371 = vmatpush.bf16.msra.mxu0 %v6785
    %7372 = vmatpush.bf16.msra.mxu0 %v6781
    %7373 = vmatpush.bf16.msra.mxu0 %v6777
    %7374 = vmatpush.bf16.msra.mxu0 %v6773
    %7375 = vmatpush.bf16.msra.mxu0 %v6769
    %7376 = vmatpush.bf16.msra.mxu0 %v6765
    %7377 = vmatmul.bf16.gmra.mxu0 %v5545
    %v7378 = vpop.f32.mrf.mxu0
    %v7379 = vadd.f32 %v7366, %v7378
    %v7380 = vpop.f32.mrf.mxu0
    %7381 = vdwg.mxu0
    %7382 = vmatpush.bf16.msra.mxu0 %v6825
    %7383 = vmatpush.bf16.msra.mxu0 %v6821
    %7384 = vmatpush.bf16.msra.mxu0 %v6817
    %7385 = vmatpush.bf16.msra.mxu0 %v6813
    %7386 = vmatpush.bf16.msra.mxu0 %v6809
    %7387 = vmatpush.bf16.msra.mxu0 %v6805
    %7388 = vmatpush.bf16.msra.mxu0 %v6801
    %7389 = vmatpush.bf16.msra.mxu0 %v6797
    %7390 = vmatmul.bf16.gmra.mxu0 %v5546
    %v7391 = vpop.f32.mrf.mxu0
    %v7392 = vadd.f32 %v7379, %v7391
    %v7393 = vpop.f32.mrf.mxu0
    %7394 = vdwg.mxu0
    %7395 = vmatpush.bf16.msra.mxu0 %v6602
    %7396 = vmatpush.bf16.msra.mxu0 %v6598
    %7397 = vmatpush.bf16.msra.mxu0 %v6594
    %7398 = vmatpush.bf16.msra.mxu0 %v6590
    %7399 = vmatpush.bf16.msra.mxu0 %v6586
    %7400 = vmatpush.bf16.msra.mxu0 %v6582
    %7401 = vmatpush.bf16.msra.mxu0 %v6578
    %7402 = vmatpush.bf16.msra.mxu0 %v6574
    %7403 = vmatmul.bf16.gmra.mxu0 %v5539
    %v7404 = vpop.f32.mrf.mxu0
    %v7405 = vadd.f32 0.0, %v7404
    %v7406 = vpop.f32.mrf.mxu0
    %7407 = vdwg.mxu0
    %7408 = vmatpush.bf16.msra.mxu0 %v6634
    %7409 = vmatpush.bf16.msra.mxu0 %v6630
    %7410 = vmatpush.bf16.msra.mxu0 %v6626
    %7411 = vmatpush.bf16.msra.mxu0 %v6622
    %7412 = vmatpush.bf16.msra.mxu0 %v6618
    %7413 = vmatpush.bf16.msra.mxu0 %v6614
    %7414 = vmatpush.bf16.msra.mxu0 %v6610
    %7415 = vmatpush.bf16.msra.mxu0 %v6606
    %7416 = vmatmul.bf16.gmra.mxu0 %v5540
    %v7417 = vpop.f32.mrf.mxu0
    %v7418 = vadd.f32 %v7405, %v7417
    %v7419 = vpop.f32.mrf.mxu0
    %7420 = vdwg.mxu0
    %7421 = vmatpush.bf16.msra.mxu0 %v6666
    %7422 = vmatpush.bf16.msra.mxu0 %v6662
    %7423 = vmatpush.bf16.msra.mxu0 %v6658
    %7424 = vmatpush.bf16.msra.mxu0 %v6654
    %7425 = vmatpush.bf16.msra.mxu0 %v6650
    %7426 = vmatpush.bf16.msra.mxu0 %v6646
    %7427 = vmatpush.bf16.msra.mxu0 %v6642
    %7428 = vmatpush.bf16.msra.mxu0 %v6638
    %7429 = vmatmul.bf16.gmra.mxu0 %v5541
    %v7430 = vpop.f32.mrf.mxu0
    %v7431 = vadd.f32 %v7418, %v7430
    %v7432 = vpop.f32.mrf.mxu0
    %7433 = vdwg.mxu0
    %7434 = vmatpush.bf16.msra.mxu0 %v6698
    %7435 = vmatpush.bf16.msra.mxu0 %v6694
    %7436 = vmatpush.bf16.msra.mxu0 %v6690
    %7437 = vmatpush.bf16.msra.mxu0 %v6686
    %7438 = vmatpush.bf16.msra.mxu0 %v6682
    %7439 = vmatpush.bf16.msra.mxu0 %v6678
    %7440 = vmatpush.bf16.msra.mxu0 %v6674
    %7441 = vmatpush.bf16.msra.mxu0 %v6670
    %7442 = vmatmul.bf16.gmra.mxu0 %v5542
    %v7443 = vpop.f32.mrf.mxu0
    %v7444 = vadd.f32 %v7431, %v7443
    %v7445 = vpop.f32.mrf.mxu0
    %7446 = vdwg.mxu0
    %7447 = vmatpush.bf16.msra.mxu0 %v6730
    %7448 = vmatpush.bf16.msra.mxu0 %v6726
    %7449 = vmatpush.bf16.msra.mxu0 %v6722
    %7450 = vmatpush.bf16.msra.mxu0 %v6718
    %7451 = vmatpush.bf16.msra.mxu0 %v6714
    %7452 = vmatpush.bf16.msra.mxu0 %v6710
    %7453 = vmatpush.bf16.msra.mxu0 %v6706
    %7454 = vmatpush.bf16.msra.mxu0 %v6702
    %7455 = vmatmul.bf16.gmra.mxu0 %v5543
    %v7456 = vpop.f32.mrf.mxu0
    %v7457 = vadd.f32 %v7444, %v7456
    %v7458 = vpop.f32.mrf.mxu0
    %7459 = vdwg.mxu0
    %7460 = vmatpush.bf16.msra.mxu0 %v6762
    %7461 = vmatpush.bf16.msra.mxu0 %v6758
    %7462 = vmatpush.bf16.msra.mxu0 %v6754
    %7463 = vmatpush.bf16.msra.mxu0 %v6750
    %7464 = vmatpush.bf16.msra.mxu0 %v6746
    %7465 = vmatpush.bf16.msra.mxu0 %v6742
    %7466 = vmatpush.bf16.msra.mxu0 %v6738
    %7467 = vmatpush.bf16.msra.mxu0 %v6734
    %7468 = vmatmul.bf16.gmra.mxu0 %v5544
    %v7469 = vpop.f32.mrf.mxu0
    %v7470 = vadd.f32 %v7457, %v7469
    %v7471 = vpop.f32.mrf.mxu0
    %7472 = vdwg.mxu0
    %7473 = vmatpush.bf16.msra.mxu0 %v6794
    %7474 = vmatpush.bf16.msra.mxu0 %v6790
    %7475 = vmatpush.bf16.msra.mxu0 %v6786
    %7476 = vmatpush.bf16.msra.mxu0 %v6782
    %7477 = vmatpush.bf16.msra.mxu0 %v6778
    %7478 = vmatpush.bf16.msra.mxu0 %v6774
    %7479 = vmatpush.bf16.msra.mxu0 %v6770
    %7480 = vmatpush.bf16.msra.mxu0 %v6766
    %7481 = vmatmul.bf16.gmra.mxu0 %v5545
    %v7482 = vpop.f32.mrf.mxu0
    %v7483 = vadd.f32 %v7470, %v7482
    %v7484 = vpop.f32.mrf.mxu0
    %7485 = vdwg.mxu0
    %7486 = vmatpush.bf16.msra.mxu0 %v6826
    %7487 = vmatpush.bf16.msra.mxu0 %v6822
    %7488 = vmatpush.bf16.msra.mxu0 %v6818
    %7489 = vmatpush.bf16.msra.mxu0 %v6814
    %7490 = vmatpush.bf16.msra.mxu0 %v6810
    %7491 = vmatpush.bf16.msra.mxu0 %v6806
    %7492 = vmatpush.bf16.msra.mxu0 %v6802
    %7493 = vmatpush.bf16.msra.mxu0 %v6798
    %7494 = vmatmul.bf16.gmra.mxu0 %v5546
    %v7495 = vpop.f32.mrf.mxu0
    %v7496 = vadd.f32 %v7483, %v7495
    %v7497 = vpop.f32.mrf.mxu0
    %7498 = vdwg.mxu0
    %v7499 = vld [vmem:[#allocation23] sm:$0xf]
    %v7501 = vperm.slane %v7499, 0
    %v7502 = vperm.slane %v7499, 1
    %v7503 = vperm.slane %v7499, 2
    %v7504 = vperm.slane %v7499, 3
    %v7509 = vmul.f32 %v7184, %v7501
    %v7510 = vmul.f32 %v7288, %v7502
    %v7511 = vmul.f32 %v7392, %v7503
    %v7512 = vmul.f32 %v7496, %v7504
    %v7513 = vld [vmem:[#allocation25] sm:$0xf]
    %v7515 = vperm.slane %v7513, 0
    %v7516 = vperm.slane %v7513, 1
    %v7517 = vperm.slane %v7513, 2
    %v7518 = vperm.slane %v7513, 3
    %v7523 = vadd.f32 %v7509, %v7515
    %v7524 = vadd.f32 %v7510, %v7516
    %v7525 = vadd.f32 %v7511, %v7517
    %v7526 = vadd.f32 %v7512, %v7518
    %v7527 = vmax.f32 %v7523, 0.0
    %v7528 = vmax.f32 %v7524, 0.0
    %v7529 = vmax.f32 %v7525, 0.0
    %v7530 = vmax.f32 %v7526, 0.0
    %v7531 = vpack.c.bf16 %v7527, %v7527
    %v7532 = vpack.c.bf16 %v7528, %v7528
    %v7533 = vld [vmem:[%s16] sm:$0xf]
    %v7534 = vld [vmem:[%s16 + $0x4] sm:$0xf]
    %v7535 = vld [vmem:[%s16 + $0x8] sm:$0xf]
    %v7536 = vld [vmem:[%s16 + $0xc] sm:$0xf]
    %v7537 = vld [vmem:[%s16 + $0x10] sm:$0xf]
    %v7538 = vld [vmem:[%s16 + $0x14] sm:$0xf]
    %v7539 = vld [vmem:[%s16 + $0x18] sm:$0xf]
    %v7540 = vld [vmem:[%s16 + $0x1c] sm:$0xf]
    %v7541 = vld [vmem:[%s16 + $0x20] sm:$0xf]
    %v7542 = vld [vmem:[%s16 + $0x24] sm:$0xf]
    %v7543 = vld [vmem:[%s16 + $0x28] sm:$0xf]
    %v7544 = vld [vmem:[%s16 + $0x2c] sm:$0xf]
    %v7545 = vld [vmem:[%s16 + $0x30] sm:$0xf]
    %v7546 = vld [vmem:[%s16 + $0x34] sm:$0xf]
    %v7547 = vld [vmem:[%s16 + $0x38] sm:$0xf]
    %v7548 = vld [vmem:[%s16 + $0x3c] sm:$0xf]
    %v7549 = vld [vmem:[%s16 + $0x40] sm:$0xf]
    %v7550 = vld [vmem:[%s16 + $0x44] sm:$0xf]
    %v7551 = vld [vmem:[%s16 + $0x48] sm:$0xf]
    %v7552 = vld [vmem:[%s16 + $0x4c] sm:$0xf]
    %v7553 = vld [vmem:[%s16 + $0x50] sm:$0xf]
    %v7554 = vld [vmem:[%s16 + $0x54] sm:$0xf]
    %v7555 = vld [vmem:[%s16 + $0x58] sm:$0xf]
    %v7556 = vld [vmem:[%s16 + $0x5c] sm:$0xf]
    %v7557 = vld [vmem:[%s16 + $0x60] sm:$0xf]
    %v7558 = vld [vmem:[%s16 + $0x64] sm:$0xf]
    %v7559 = vld [vmem:[%s16 + $0x68] sm:$0xf]
    %v7560 = vld [vmem:[%s16 + $0x6c] sm:$0xf]
    %v7561 = vld [vmem:[%s16 + $0x70] sm:$0xf]
    %v7562 = vld [vmem:[%s16 + $0x74] sm:$0xf]
    %v7563 = vld [vmem:[%s16 + $0x78] sm:$0xf]
    %v7564 = vld [vmem:[%s16 + $0x7c] sm:$0xf]
    %v7565 = vld [vmem:[#allocation26] sm:$0x1]
    %v7567 = vperm.slane %v7565, 0
    %v7601 = vunpack.c.l.b16 %v7533
    %v7602 = vunpack.c.l.b16 %v7534
    %v7603 = vunpack.c.l.b16 %v7535
    %v7604 = vunpack.c.l.b16 %v7536
    %v7605 = vunpack.c.l.b16 %v7537
    %v7606 = vunpack.c.l.b16 %v7538
    %v7607 = vunpack.c.l.b16 %v7539
    %v7608 = vunpack.c.l.b16 %v7540
    %v7609 = vunpack.c.l.b16 %v7541
    %v7610 = vunpack.c.l.b16 %v7542
    %v7611 = vunpack.c.l.b16 %v7543
    %v7612 = vunpack.c.l.b16 %v7544
    %v7613 = vunpack.c.l.b16 %v7545
    %v7614 = vunpack.c.l.b16 %v7546
    %v7615 = vunpack.c.l.b16 %v7547
    %v7616 = vunpack.c.l.b16 %v7548
    %v7617 = vunpack.c.l.b16 %v7549
    %v7618 = vunpack.c.l.b16 %v7550
    %v7619 = vunpack.c.l.b16 %v7551
    %v7620 = vunpack.c.l.b16 %v7552
    %v7621 = vunpack.c.l.b16 %v7553
    %v7622 = vunpack.c.l.b16 %v7554
    %v7623 = vunpack.c.l.b16 %v7555
    %v7624 = vunpack.c.l.b16 %v7556
    %v7625 = vunpack.c.l.b16 %v7557
    %v7626 = vunpack.c.l.b16 %v7558
    %v7627 = vunpack.c.l.b16 %v7559
    %v7628 = vunpack.c.l.b16 %v7560
    %v7629 = vunpack.c.l.b16 %v7561
    %v7630 = vunpack.c.l.b16 %v7562
    %v7631 = vunpack.c.l.b16 %v7563
    %v7632 = vunpack.c.l.b16 %v7564
    %v7633 = vpack.c.b16 %v7602, %v7601
    %v7634 = vpack.c.b16 %v7604, %v7603
    %v7635 = vpack.c.b16 %v7606, %v7605
    %v7636 = vpack.c.b16 %v7608, %v7607
    %v7637 = vpack.c.b16 %v7610, %v7609
    %v7638 = vpack.c.b16 %v7612, %v7611
    %v7639 = vpack.c.b16 %v7614, %v7613
    %v7640 = vpack.c.b16 %v7616, %v7615
    %v7641 = vpack.c.b16 %v7618, %v7617
    %v7642 = vpack.c.b16 %v7620, %v7619
    %v7643 = vpack.c.b16 %v7622, %v7621
    %v7644 = vpack.c.b16 %v7624, %v7623
    %v7645 = vpack.c.b16 %v7626, %v7625
    %v7646 = vpack.c.b16 %v7628, %v7627
    %v7647 = vpack.c.b16 %v7630, %v7629
    %v7648 = vpack.c.b16 %v7632, %v7631
    %7665 = vmatpush.bf16.msra.mxu0 %v7640
    %7666 = vmatpush.bf16.msra.mxu0 %v7639
    %7667 = vmatpush.bf16.msra.mxu0 %v7638
    %7668 = vmatpush.bf16.msra.mxu0 %v7637
    %7669 = vmatpush.bf16.msra.mxu0 %v7636
    %7670 = vmatpush.bf16.msra.mxu0 %v7635
    %7671 = vmatpush.bf16.msra.mxu0 %v7634
    %7672 = vmatpush.bf16.msra.mxu0 %v7633
    %7673 = vmatmul.bf16.gmra.mxu0 %v7531
    %v7674 = vpop.f32.mrf.mxu0
    %v7675 = vadd.f32 %v7567, %v7674
    %v7676 = vpop.f32.mrf.mxu0
    %7677 = vdwg.mxu0
    %7678 = vmatpush.bf16.msra.mxu0 %v7648
    %7679 = vmatpush.bf16.msra.mxu0 %v7647
    %7680 = vmatpush.bf16.msra.mxu0 %v7646
    %7681 = vmatpush.bf16.msra.mxu0 %v7645
    %7682 = vmatpush.bf16.msra.mxu0 %v7644
    %7683 = vmatpush.bf16.msra.mxu0 %v7643
    %7684 = vmatpush.bf16.msra.mxu0 %v7642
    %7685 = vmatpush.bf16.msra.mxu0 %v7641
    %7686 = vmatmul.bf16.gmra.mxu0 %v7532
    %v7687 = vpop.f32.mrf.mxu0
    %v7688 = vadd.f32 %v7675, %v7687
    %v7689 = vpop.f32.mrf.mxu0
    %7690 = vdwg.mxu0
    %vm7691 = vcmask 11264
    %v7692 = vsel %vm7691, %v7688, -inf
    %7693 = vmax.xlane.f32.xlu0 %v7692
    %v7694 = vpop.xlane.xlu0 %7693
    %v7695 = vsub.f32 %v7688, %v7694
    %v7696 = vmul.f32 %v7695, 1.442695
    %v7697 = vpow.pop %v7696
    %v7698 = vsel %vm7691, %v7697, 0.0
    %7699 = vadd.xlane.f32.xlu0 %v7698
    %v7700 = vpop.xlane.xlu0 %7699
    %v7701 = vlog2.pop %v7700
    %v7702 = vmul.f32 %v7701, 0.6931472
    %v7703 = vadd.f32 %v7694, %v7702
    %v7704 = vsub.f32 %v7688, %v7703
    %7705 = vst.msk [vmem:[%s20] sm:$0xf] %vm7691, %v7704
    %v7706 = vpack.c.bf16 %v7529, %v7529
    %v7707 = vpack.c.bf16 %v7530, %v7530
    %v7708 = vld [vmem:[%s18] sm:$0xf]
    %v7709 = vld [vmem:[%s18 + $0x4] sm:$0xf]
    %v7710 = vld [vmem:[%s18 + $0x8] sm:$0xf]
    %v7711 = vld [vmem:[%s18 + $0xc] sm:$0xf]
    %v7712 = vld [vmem:[%s18 + $0x10] sm:$0xf]
    %v7713 = vld [vmem:[%s18 + $0x14] sm:$0xf]
    %v7714 = vld [vmem:[%s18 + $0x18] sm:$0xf]
    %v7715 = vld [vmem:[%s18 + $0x1c] sm:$0xf]
    %v7716 = vld [vmem:[%s18 + $0x20] sm:$0xf]
    %v7717 = vld [vmem:[%s18 + $0x24] sm:$0xf]
    %v7718 = vld [vmem:[%s18 + $0x28] sm:$0xf]
    %v7719 = vld [vmem:[%s18 + $0x2c] sm:$0xf]
    %v7720 = vld [vmem:[%s18 + $0x30] sm:$0xf]
    %v7721 = vld [vmem:[%s18 + $0x34] sm:$0xf]
    %v7722 = vld [vmem:[%s18 + $0x38] sm:$0xf]
    %v7723 = vld [vmem:[%s18 + $0x3c] sm:$0xf]
    %v7724 = vld [vmem:[%s18 + $0x40] sm:$0xf]
    %v7725 = vld [vmem:[%s18 + $0x44] sm:$0xf]
    %v7726 = vld [vmem:[%s18 + $0x48] sm:$0xf]
    %v7727 = vld [vmem:[%s18 + $0x4c] sm:$0xf]
    %v7728 = vld [vmem:[%s18 + $0x50] sm:$0xf]
    %v7729 = vld [vmem:[%s18 + $0x54] sm:$0xf]
    %v7730 = vld [vmem:[%s18 + $0x58] sm:$0xf]
    %v7731 = vld [vmem:[%s18 + $0x5c] sm:$0xf]
    %v7732 = vld [vmem:[%s18 + $0x60] sm:$0xf]
    %v7733 = vld [vmem:[%s18 + $0x64] sm:$0xf]
    %v7734 = vld [vmem:[%s18 + $0x68] sm:$0xf]
    %v7735 = vld [vmem:[%s18 + $0x6c] sm:$0xf]
    %v7736 = vld [vmem:[%s18 + $0x70] sm:$0xf]
    %v7737 = vld [vmem:[%s18 + $0x74] sm:$0xf]
    %v7738 = vld [vmem:[%s18 + $0x78] sm:$0xf]
    %v7739 = vld [vmem:[%s18 + $0x7c] sm:$0xf]
    %v7740 = vld [vmem:[#allocation28] sm:$0x1]
    %v7742 = vperm.slane %v7740, 0
    %v7776 = vunpack.c.l.b16 %v7708
    %v7777 = vunpack.c.l.b16 %v7709
    %v7778 = vunpack.c.l.b16 %v7710
    %v7779 = vunpack.c.l.b16 %v7711
    %v7780 = vunpack.c.l.b16 %v7712
    %v7781 = vunpack.c.l.b16 %v7713
    %v7782 = vunpack.c.l.b16 %v7714
    %v7783 = vunpack.c.l.b16 %v7715
    %v7784 = vunpack.c.l.b16 %v7716
    %v7785 = vunpack.c.l.b16 %v7717
    %v7786 = vunpack.c.l.b16 %v7718
    %v7787 = vunpack.c.l.b16 %v7719
    %v7788 = vunpack.c.l.b16 %v7720
    %v7789 = vunpack.c.l.b16 %v7721
    %v7790 = vunpack.c.l.b16 %v7722
    %v7791 = vunpack.c.l.b16 %v7723
    %v7792 = vunpack.c.l.b16 %v7724
    %v7793 = vunpack.c.l.b16 %v7725
    %v7794 = vunpack.c.l.b16 %v7726
    %v7795 = vunpack.c.l.b16 %v7727
    %v7796 = vunpack.c.l.b16 %v7728
    %v7797 = vunpack.c.l.b16 %v7729
    %v7798 = vunpack.c.l.b16 %v7730
    %v7799 = vunpack.c.l.b16 %v7731
    %v7800 = vunpack.c.l.b16 %v7732
    %v7801 = vunpack.c.l.b16 %v7733
    %v7802 = vunpack.c.l.b16 %v7734
    %v7803 = vunpack.c.l.b16 %v7735
    %v7804 = vunpack.c.l.b16 %v7736
    %v7805 = vunpack.c.l.b16 %v7737
    %v7806 = vunpack.c.l.b16 %v7738
    %v7807 = vunpack.c.l.b16 %v7739
    %v7808 = vpack.c.b16 %v7777, %v7776
    %v7809 = vpack.c.b16 %v7779, %v7778
    %v7810 = vpack.c.b16 %v7781, %v7780
    %v7811 = vpack.c.b16 %v7783, %v7782
    %v7812 = vpack.c.b16 %v7785, %v7784
    %v7813 = vpack.c.b16 %v7787, %v7786
    %v7814 = vpack.c.b16 %v7789, %v7788
    %v7815 = vpack.c.b16 %v7791, %v7790
    %v7816 = vpack.c.b16 %v7793, %v7792
    %v7817 = vpack.c.b16 %v7795, %v7794
    %v7818 = vpack.c.b16 %v7797, %v7796
    %v7819 = vpack.c.b16 %v7799, %v7798
    %v7820 = vpack.c.b16 %v7801, %v7800
    %v7821 = vpack.c.b16 %v7803, %v7802
    %v7822 = vpack.c.b16 %v7805, %v7804
    %v7823 = vpack.c.b16 %v7807, %v7806
    %7840 = vmatpush.bf16.msra.mxu0 %v7815
    %7841 = vmatpush.bf16.msra.mxu0 %v7814
    %7842 = vmatpush.bf16.msra.mxu0 %v7813
    %7843 = vmatpush.bf16.msra.mxu0 %v7812
    %7844 = vmatpush.bf16.msra.mxu0 %v7811
    %7845 = vmatpush.bf16.msra.mxu0 %v7810
    %7846 = vmatpush.bf16.msra.mxu0 %v7809
    %7847 = vmatpush.bf16.msra.mxu0 %v7808
    %7848 = vmatmul.bf16.gmra.mxu0 %v7706
    %v7849 = vpop.f32.mrf.mxu0
    %v7850 = vadd.f32 %v7742, %v7849
    %v7851 = vpop.f32.mrf.mxu0
    %7852 = vdwg.mxu0
    %7853 = vmatpush.bf16.msra.mxu0 %v7823
    %7854 = vmatpush.bf16.msra.mxu0 %v7822
    %7855 = vmatpush.bf16.msra.mxu0 %v7821
    %7856 = vmatpush.bf16.msra.mxu0 %v7820
    %7857 = vmatpush.bf16.msra.mxu0 %v7819
    %7858 = vmatpush.bf16.msra.mxu0 %v7818
    %7859 = vmatpush.bf16.msra.mxu0 %v7817
    %7860 = vmatpush.bf16.msra.mxu0 %v7816
    %7861 = vmatmul.bf16.gmra.mxu0 %v7707
    %v7862 = vpop.f32.mrf.mxu0
    %v7863 = vadd.f32 %v7850, %v7862
    %v7864 = vpop.f32.mrf.mxu0
    %7865 = vdwg.mxu0
    %vm7866 = vcmask 68608
    %7867 = vst.msk [vmem:[#allocation29] sm:$0xf] %vm7866, %v7863
    // Predicated region
    $region150: #{pointnet_cls_and_pose.1} parent=1 // pred_check
      _
    $region151: #{pointnet_cls_and_pose.1} parent=1 // pred_check_branch
      %7869 = sbr.rel (0) target = $region153
    $region152: #{pointnet_cls_and_pose.1} parent=1 // pred_region
      _
    $region153: #{pointnet_cls_and_pose.1} parent=1 // pred_fallthru
      _
    // Predicated region
    $region154: #{pointnet_cls_and_pose.1} parent=1 // pred_check
      _
    $region155: #{pointnet_cls_and_pose.1} parent=1 // pred_check_branch
      %7871 = sbr.rel (0) target = $region157
    $region156: #{pointnet_cls_and_pose.1} parent=1 // pred_region
      %7873 = vsyncadd [#allocation4], 0
      %s7875 = sshll.u32 [#allocation29], 4
      %s7876 = int_to_ptr.vmem [resolvable:$true] %s7875
      %s7877 = sshll.u32 %s21, 4
      %s7878 = int_to_ptr.hbm [resolvable:$true] %s7877
      %7880 = dma.vmem_to_hbm [thread:$0]  %s7876, 64, %s7878, [#allocation4]
    $region157: #{pointnet_cls_and_pose.1} parent=1 // pred_fallthru
      _
    // Predicated region
    $region158: #{pointnet_cls_and_pose.1} parent=1 // pred_check
      _
    $region159: #{pointnet_cls_and_pose.1} parent=1 // pred_check_branch
      %7882 = sbr.rel (0) target = $region161
    $region160: #{pointnet_cls_and_pose.1} parent=1 // pred_region
      _
    $region161: #{pointnet_cls_and_pose.1} parent=1 // pred_fallthru
      _
    // Predicated region
    $region162: #{pointnet_cls_and_pose.1} parent=1 // pred_check
      _
    $region163: #{pointnet_cls_and_pose.1} parent=1 // pred_check_branch
      %7884 = sbr.rel (0) target = $region165
    $region164: #{pointnet_cls_and_pose.1} parent=1 // pred_region
      %7886 = dma.done [#allocation4], 64
    $region165: #{pointnet_cls_and_pose.1} parent=1 // pred_fallthru
      _
    %7887 = vsyncpa [#allocation3], 1
    %7888 = vsyncpa [#allocation6], 1
    %7889 = vsyncpa [#allocation9], 1
    %7890 = vsyncpa [#allocation12], 1
    %7891 = vsyncpa [#allocation15], 1
    %7892 = vsyncpa [#allocation18], 1
    %7893 = vsyncpa [#allocation21], 1
    %7894 = vsyncpa [#allocation24], 1
    %7895 = vsyncpa [#allocation27], 1
    %7896 = vsyncpa [#allocation4], 1

</llo_original>
